<compile_context>
chip_gen: v7x
topology: tpu7x:2x2x1
jax: 0.10.0
libtpu: 0.0.40
codegen_flags: <defaults>
</compile_context>

<pallas_src>
import functools

import jax
import jax.numpy as jnp
from jax.experimental import pallas as pl
from jax.experimental.pallas import tpu as pltpu


_VMEM_LIMIT = 32 * 1024 * 1024   # safe default across v5e/v6e/v7x (v5e/v6e could go higher)


def _round_up(x, m):
    return -(-x // m) * m


# ----------------------------- Pallas kernels -----------------------------

def _elu(x):
    # ELU(alpha=1): x if x > 0 else exp(x) - 1   (clamp exp arg to avoid overflow)
    return jnp.where(x > 0, x, jnp.exp(jnp.minimum(x, 0.0)) - 1.0)


def _fused_conv_kernel(x_ref, w_ref, b_ref, scale_ref, shift_ref, mask_ref,
                       o_ref, sum_ref, m2_ref, *, offsets, inv_cnt, pre_act):
    """Fused (optional BN-affine+ELU+mask) -> 9-tap conv via lane rolls -> bias -> stats.

    x_ref:    (K, Pp)  padded-flat activation (one image per grid step)
    w_ref:    (9, Co, K) per-tap weight blocks (tap order matches `offsets`)
    mask_ref: (1, Pp)  1.0 at meaningful output columns (also the interior-input mask)
    Outputs: o (Co, Pp) raw conv output, per-block partial sum and centered M2 (Co, 1).
    """
    x = x_ref[...]
    mask = mask_ref[...]
    if pre_act:
        # zero-padding is applied AFTER BN+ELU (mask kills the pad ring exactly).
        a = _elu(x * scale_ref[...] + shift_ref[...]) * mask
    else:
        a = x
    pp = a.shape[-1]
    co = w_ref.shape[1]

    acc = jnp.zeros((co, pp), jnp.float32)
    for t, off in enumerate(offsets):
        at = a if off == 0 else pltpu.roll(a, (-off) % pp, axis=1)   # at[:, j] = a[:, j+off]
        acc = acc + jnp.dot(w_ref[t], at, preferred_element_type=jnp.float32)
    y = acc + b_ref[...]
    o_ref[...] = y

    s = jnp.sum(y * mask, axis=1, keepdims=True)          # per-block masked sum
    d = (y - s * inv_cnt) * mask                          # centered (per-block mean)
    sum_ref[...] = s
    m2_ref[...] = jnp.sum(d * d, axis=1, keepdims=True)   # per-block centered 2nd moment


def _residual_elu_kernel(out1_ref, cur_ref, scale_ref, shift_ref, o_ref):
    t = cur_ref[...] * scale_ref[...] + shift_ref[...]
    o_ref[...] = _elu(out1_ref[...] + t)


def _residual_head_kernel(out1_ref, cur_ref, scale_ref, shift_ref,
                          wdiff_ref, bdiff_ref, p_ref):
    """ELU(out1 + BN(cur)) -> 1x1 conv to 2 channels -> softmax, via sigmoid(z1 - z0)."""
    t = cur_ref[...] * scale_ref[...] + shift_ref[...]
    o = _elu(out1_ref[...] + t)
    z = jnp.sum(o * wdiff_ref[...], axis=0, keepdims=True) + bdiff_ref[...]   # (1, Pp)
    p1 = 1.0 / (1.0 + jnp.exp(-z))
    p_ref[...] = jnp.concatenate([1.0 - p1, p1], axis=0)                      # (2, Pp)


# ----------------------------- pallas_call wrappers ------------------------

def fused_conv_bn(x_flat, w9, bias, scale, shift, mask, *, offsets, cnt, pre_act):
    """x_flat (N, K, Pp) -> (out (N, Co, Pp), partial sum (N, Co, 1), partial M2 (N, Co, 1))."""
    N, K, Pp = x_flat.shape
    Co = w9.shape[1]
    kern = functools.partial(_fused_conv_kernel, offsets=offsets,
                             inv_cnt=1.0 / float(cnt), pre_act=pre_act)
    return pl.pallas_call(
        kern,
        out_shape=(jax.ShapeDtypeStruct((N, Co, Pp), jnp.float32),
                   jax.ShapeDtypeStruct((N, Co, 1), jnp.float32),
                   jax.ShapeDtypeStruct((N, Co, 1), jnp.float32)),
        grid=(N,),
        in_specs=[pl.BlockSpec((None, K, Pp), lambda n: (n, 0, 0)),
                  pl.BlockSpec((9, Co, K), lambda n: (0, 0, 0)),
                  pl.BlockSpec((Co, 1), lambda n: (0, 0)),
                  pl.BlockSpec((K, 1), lambda n: (0, 0)),
                  pl.BlockSpec((K, 1), lambda n: (0, 0)),
                  pl.BlockSpec((1, Pp), lambda n: (0, 0))],
        out_specs=(pl.BlockSpec((None, Co, Pp), lambda n: (n, 0, 0)),
                   pl.BlockSpec((None, Co, 1), lambda n: (n, 0, 0)),
                   pl.BlockSpec((None, Co, 1), lambda n: (n, 0, 0))),
        compiler_params=pltpu.CompilerParams(
            dimension_semantics=("parallel",),           # no cross-step state -> megacore-safe
            vmem_limit_bytes=_VMEM_LIMIT),
    )(x_flat, w9, bias, scale, shift, mask)


def residual_elu(out1, cur, scale, shift):
    N, C, Pp = out1.shape
    return pl.pallas_call(
        _residual_elu_kernel,
        out_shape=jax.ShapeDtypeStruct((N, C, Pp), jnp.float32),
        grid=(N,),
        in_specs=[pl.BlockSpec((None, C, Pp), lambda n: (n, 0, 0)),
                  pl.BlockSpec((None, C, Pp), lambda n: (n, 0, 0)),
                  pl.BlockSpec((C, 1), lambda n: (0, 0)),
                  pl.BlockSpec((C, 1), lambda n: (0, 0))],
        out_specs=pl.BlockSpec((None, C, Pp), lambda n: (n, 0, 0)),
        compiler_params=pltpu.CompilerParams(
            dimension_semantics=("parallel",), vmem_limit_bytes=_VMEM_LIMIT),
    )(out1, cur, scale, shift)


def residual_softmax_head(out1, cur, scale, shift, wdiff, bdiff):
    N, C, Pp = out1.shape
    return pl.pallas_call(
        _residual_head_kernel,
        out_shape=jax.ShapeDtypeStruct((N, 2, Pp), jnp.float32),
        grid=(N,),
        in_specs=[pl.BlockSpec((None, C, Pp), lambda n: (n, 0, 0)),
                  pl.BlockSpec((None, C, Pp), lambda n: (n, 0, 0)),
                  pl.BlockSpec((C, 1), lambda n: (0, 0)),
                  pl.BlockSpec((C, 1), lambda n: (0, 0)),
                  pl.BlockSpec((C, 1), lambda n: (0, 0)),
                  pl.BlockSpec((1, 1), lambda n: (0, 0))],
        out_specs=pl.BlockSpec((None, 2, Pp), lambda n: (n, 0, 0)),
        compiler_params=pltpu.CompilerParams(
            dimension_semantics=("parallel",), vmem_limit_bytes=_VMEM_LIMIT),
    )(out1, cur, scale, shift, wdiff, bdiff)


# ----------------------------- glue: layout / weights / stats ---------------

# polyphase decomposition of ConvTranspose2d(k=4, s=2, p=1):
# output parity p uses padded-input offsets _PH_OFF[p] paired with kernel taps _PH_KIDX[p]
_PH_OFF = ((0, 1), (1, 2))
_PH_KIDX = ((3, 1), (2, 0))


def _upconv_tap_weights(w_up, cout, kp):
    """(Cin, Cout, 4, 4) ConvTranspose2d weight -> (9, 4*Cout, kp) per-tap weight blocks
    with structural zeros (each phase row block only uses 4 of the 9 taps)."""
    cin = w_up.shape[0]
    w9 = jnp.zeros((9, 4 * cout, kp), jnp.float32)
    for py in range(2):
        for px in range(2):
            g = 2 * py + px
            for a in range(2):
                for b in range(2):
                    dy, dx = _PH_OFF[py][a], _PH_OFF[px][b]
                    ky, kx = _PH_KIDX[py][a], _PH_KIDX[px][b]
                    w9 = w9.at[dy * 3 + dx, g * cout:(g + 1) * cout, :cin].set(
                        w_up[:, :, ky, kx].T)
    return w9


def _interior_mask(h, w, pp):
    """(1, pp) mask: 1.0 at interior pixels of a padded (h+2, w+2) flat image."""
    p = (h + 2) * (w + 2)
    idx = jnp.arange(p)
    yy = idx // (w + 2)
    xx = idx % (w + 2)
    m = ((yy >= 1) & (yy <= h) & (xx >= 1) & (xx <= w)).astype(jnp.float32)
    return jnp.pad(m, (0, pp - p)).reshape(1, pp)


def _topleft_mask(h, w, wp, p, pp):
    """(1, pp) mask: 1.0 at columns (yi < h, xi < w) of a flat image with row width wp."""
    idx = jnp.arange(p)
    yy = idx // wp
    xx = idx % wp
    m = ((yy < h) & (xx < w)).astype(jnp.float32)
    return jnp.pad(m, (0, pp - p)).reshape(1, pp)


def _bn_from_partials(sums, m2s, cnt, gamma, beta, eps=1e-5):
    """Chan-combine per-block (sum, centered-M2) partials into BN scale/shift (C, 1)."""
    g = sums.shape[0]
    total = float(g * cnt)
    gmean = jnp.sum(sums, axis=0) / total
    group_mean = sums / float(cnt)
    var = (jnp.sum(m2s, axis=0)
           + float(cnt) * jnp.sum((group_mean - gmean[None, :]) ** 2, axis=0)) / total
    scale = gamma / jnp.sqrt(var + eps)                    # biased (train-mode) variance
    shift = beta - gmean * scale
    return scale.reshape(-1, 1), shift.reshape(-1, 1)


# ----------------------------- forward --------------------------------------

def up_transition_forward(x_nchw, params, layer, last):
    N, Cin, H, W = x_nchw.shape
    Cout = params["w_up"].shape[1]
    OH, OW = 2 * H, 2 * W

    Kp = max(8, _round_up(Cin, 8))                 # pad contraction dim to a sublane multiple
    Pi = (H + 2) * (W + 2)
    Pip = _round_up(Pi, 128)
    P = (OH + 2) * (OW + 2)
    Pp = _round_up(P, 128)

    # --- ConvTranspose2d(k4,s2,p1): collapsed polyphase, one fused kernel (bias + stats) ---
    x_pad = jnp.pad(x_nchw.astype(jnp.float32),
                    ((0, 0), (0, 0), (1, 1), (1, 1))).reshape(N, Cin, Pi)
    x_flat = jnp.pad(x_pad, ((0, 0), (0, Kp - Cin), (0, Pip - Pi)))
    w9_up = _upconv_tap_weights(params["w_up"].astype(jnp.float32), Cout, Kp)
    b_up = jnp.tile(params["b_up"].astype(jnp.float32), 4).reshape(4 * Cout, 1)
    up_mask = _topleft_mask(H, W, W + 2, Pi, Pip)
    up_off = tuple(dy * (W + 2) + dx for dy in range(3) for dx in range(3))
    dummy = jnp.zeros((Kp, 1), jnp.float32)
    ph, s0, m20 = fused_conv_bn(x_flat, w9_up, b_up, dummy, dummy, up_mask,
                                offsets=up_off, cnt=H * W, pre_act=False)

    # phase-major (N, 4*Cout, .) -> padded-flat image-major (N, Cout, Pp)   [XLA glue]
    ph_img = ph[:, :, :Pi].reshape(N, 2, 2, Cout, H + 2, W + 2)[:, :, :, :, :H, :W]
    out1_img = ph_img.transpose(0, 3, 4, 1, 5, 2).reshape(N, Cout, OH, OW)
    out1_flat = jnp.pad(out1_img, ((0, 0), (0, 0), (1, 1), (1, 1))).reshape(N, Cout, P)
    out1_flat = jnp.pad(out1_flat, ((0, 0), (0, 0), (0, Pp - P)))

    scale, shift = _bn_from_partials(s0.reshape(N * 4, Cout), m20.reshape(N * 4, Cout),
                                     H * W, params["bn0_g"], params["bn0_b"])

    # --- [ELU -> Conv3x3 -> BN] * layer : one fused pallas_call per layer ---
    lmask = _interior_mask(OH, OW, Pp)
    loff = tuple((ky - 1) * (OW + 2) + (kx - 1) for ky in range(3) for kx in range(3))
    cur = out1_flat
    for i in range(layer):
        w9 = jnp.stack([params["w_conv"][i][:, :, ky, kx]
                        for ky in range(3) for kx in range(3)], axis=0).astype(jnp.float32)
        b = params["b_conv"][i].astype(jnp.float32).reshape(Cout, 1)
        cur, s_i, m2_i = fused_conv_bn(cur, w9, b, scale, shift, lmask,
                                       offsets=loff, cnt=OH * OW, pre_act=True)
        scale, shift = _bn_from_partials(s_i.reshape(N, Cout), m2_i.reshape(N, Cout),
                                         OH * OW, params["bn_g"][i], params["bn_b"][i])

    # --- residual ELU (+ optional fused 1x1 head with 2-way softmax) ---
    if last:
        wdiff = (params["w1"][1, :, 0, 0] - params["w1"][0, :, 0, 0]).reshape(Cout, 1)
        bdiff = (params["b1"][1] - params["b1"][0]).reshape(1, 1)
        p = residual_softmax_head(out1_flat, cur, scale, shift,
                                  wdiff.astype(jnp.float32), bdiff.astype(jnp.float32))
        probs = p[:, :, :P].reshape(N, 2, OH + 2, OW + 2)[:, :, 1:OH + 1, 1:OW + 1]
        return probs.transpose(0, 2, 3, 1).reshape(-1, 2)     # (N*OH*OW, 2), rows (n, oy, ox)
    out = residual_elu(out1_flat, cur, scale, shift)
    return out[:, :, :P].reshape(N, Cout, OH + 2, OW + 2)[:, :, 1:OH + 1, 1:OW + 1]  # NCHW


# ----------------------------- pure-JAX reference --------------------------

def reference_forward(x_nchw, params, layer, last):
    def conv(x, w, b, pad, lhs_dil=(1, 1)):
        y = jax.lax.conv_general_dilated(
            x, w, window_strides=(1, 1), padding=[(pad, pad), (pad, pad)],
            lhs_dilation=lhs_dil, dimension_numbers=("NCHW", "OIHW", "NCHW"))
        return y + b[None, :, None, None]

    def bn(x, g, b, eps=1e-5):
        mean = x.mean(axis=(0, 2, 3), keepdims=True)
        var = x.var(axis=(0, 2, 3), keepdims=True)
        return (x - mean) / jnp.sqrt(var + eps) * g[None, :, None, None] \
            + b[None, :, None, None]

    w_eq = jnp.transpose(params["w_up"], (1, 0, 2, 3))[:, :, ::-1, ::-1]
    out1 = conv(x_nchw, w_eq, params["b_up"], pad=2, lhs_dil=(2, 2))
    t = bn(out1, params["bn0_g"], params["bn0_b"])
    for i in range(layer):
        t = jax.nn.elu(t)
        t = conv(t, params["w_conv"][i], params["b_conv"][i], pad=1)
        t = bn(t, params["bn_g"][i], params["bn_b"][i])
    out = jax.nn.elu(out1 + t)
    if last:
        z = conv(out, params["w1"], params["b1"], pad=0)
        z = jnp.transpose(z, (0, 2, 3, 1)).reshape(-1, 2)
        return jax.nn.softmax(z, axis=1)
    return out                                               # NCHW, matching the PyTorch module


# ----------------------------- params / main -------------------------------

def init_params(key, inchan, outchan, layer, last):
    n_keys = 4 + 4 * layer + 2
    ks = list(jax.random.split(key, n_keys))
    nxt = iter(ks).__next__
    p = {
        "w_up": 0.1 * jax.random.normal(nxt(), (inchan, outchan, 4, 4), jnp.float32),
        "b_up": 0.05 * jax.random.normal(nxt(), (outchan,), jnp.float32),
        "bn0_g": 1.0 + 0.1 * jax.random.normal(nxt(), (outchan,), jnp.float32),
        "bn0_b": 0.1 * jax.random.normal(nxt(), (outchan,), jnp.float32),
        "w_conv": [], "b_conv": [], "bn_g": [], "bn_b": [],
    }
    for _ in range(layer):
        p["w_conv"].append(0.1 * jax.random.normal(nxt(), (outchan, outchan, 3, 3), jnp.float32))
        p["b_conv"].append(0.05 * jax.random.normal(nxt(), (outchan,), jnp.float32))
        p["bn_g"].append(1.0 + 0.1 * jax.random.normal(nxt(), (outchan,), jnp.float32))
        p["bn_b"].append(0.1 * jax.random.normal(nxt(), (outchan,), jnp.float32))
    if last:
        p["w1"] = 0.1 * jax.random.normal(nxt(), (2, outchan, 1, 1), jnp.float32)
        p["b1"] = 0.05 * jax.random.normal(nxt(), (2,), jnp.float32)
    return p


if __name__ == "__main__":
    inchan, outchan, layer = 4, 8, 2
    N, H, W = 2, 16, 16

    key = jax.random.PRNGKey(0)
    kx, kp = jax.random.split(key)
    x = jax.random.normal(kx, (N, inchan, H, W), jnp.float32)

    for last in (True, False):
        params = init_params(kp, inchan, outchan, layer, last)
        fwd = jax.jit(functools.partial(up_transition_forward, layer=layer, last=last))
        out = jax.block_until_ready(fwd(x, params))
        ref = reference_forward(x, params, layer, last)
        assert out.shape == ref.shape, (last, out.shape, ref.shape)
        if not bool(jnp.allclose(out, ref, atol=2e-3, rtol=2e-3)):
            err = float(jnp.max(jnp.abs(out - ref)))
            raise AssertionError(f"Pallas output mismatch (last={last}, max err {err:.3e})")
    print("KERNEL_OK")
</pallas_src>

<mosaic_0001>
module attributes {stable_mosaic.version = 11 : i64} {
  func.func @_fused_conv_kernel(%arg0: i32, %arg1: memref<1x8x384xf32, #tpu.memory_space<vmem>>, %arg2: memref<9x32x8xf32, #tpu.memory_space<vmem>>, %arg3: memref<32x1xf32, #tpu.memory_space<vmem>>, %arg4: memref<8x1xf32, #tpu.memory_space<vmem>>, %arg5: memref<8x1xf32, #tpu.memory_space<vmem>>, %arg6: memref<1x384xf32, #tpu.memory_space<vmem>>, %arg7: memref<1x32x384xf32, #tpu.memory_space<vmem>>, %arg8: memref<1x32x1xf32, #tpu.memory_space<vmem>>, %arg9: memref<1x32x1xf32, #tpu.memory_space<vmem>>) attributes {dimension_semantics = [#tpu.dimension_semantics<parallel>], iteration_bounds = array<i64: 2>, scalar_prefetch = 0 : i64, scratch_operands = 0 : i64, tpu.core_type = #tpu.core_type<tc>, window_params = [{transform_indices = @transform_0, window_bounds = array<i64: 1, 8, 384>}, {pipeline_mode = #tpu.pipeline_mode<synchronous>, transform_indices = @transform_1, window_bounds = array<i64: 9, 32, 8>}, {pipeline_mode = #tpu.pipeline_mode<synchronous>, transform_indices = @transform_2, window_bounds = array<i64: 32, 1>}, {pipeline_mode = #tpu.pipeline_mode<synchronous>, transform_indices = @transform_3, window_bounds = array<i64: 8, 1>}, {pipeline_mode = #tpu.pipeline_mode<synchronous>, transform_indices = @transform_4, window_bounds = array<i64: 8, 1>}, {pipeline_mode = #tpu.pipeline_mode<synchronous>, transform_indices = @transform_5, window_bounds = array<i64: 1, 384>}, {transform_indices = @transform_6, window_bounds = array<i64: 1, 32, 384>}, {transform_indices = @transform_7, window_bounds = array<i64: 1, 32, 1>}, {transform_indices = @transform_8, window_bounds = array<i64: 1, 32, 1>}]} {
    %c0 = arith.constant 0 : index
    %c0_0 = arith.constant 0 : index
    %c0_1 = arith.constant 0 : index
    %0 = vector.load %arg1[%c0, %c0_0, %c0_1] : memref<1x8x384xf32, #tpu.memory_space<vmem>>, vector<1x8x384xf32>
    %1 = vector.shape_cast %0 : vector<1x8x384xf32> to vector<8x384xf32>
    %c0_2 = arith.constant 0 : index
    %c0_3 = arith.constant 0 : index
    %2 = vector.load %arg6[%c0_2, %c0_3] : memref<1x384xf32, #tpu.memory_space<vmem>>, vector<1x384xf32>
    %cst = arith.constant 0.000000e+00 : f32
    %3 = vector.broadcast %cst : f32 to vector<32x384xf32>
    %c0_4 = arith.constant 0 : index
    %c0_5 = arith.constant 0 : index
    %c0_6 = arith.constant 0 : index
    %4 = vector.load %arg2[%c0_4, %c0_5, %c0_6] : memref<9x32x8xf32, #tpu.memory_space<vmem>>, vector<1x32x8xf32>
    %5 = vector.shape_cast %4 : vector<1x32x8xf32> to vector<32x8xf32>
    %cst_7 = arith.constant dense<0.000000e+00> : vector<32x384xf32>
    %6 = tpu.matmul %5, %1, %cst_7 {dimension_numbers = #tpu.dot_dimension_numbers<[1], [0], [0], [1], [0, 0, 1, 1], [], []>} : vector<32x8xf32>, vector<8x384xf32>, vector<32x384xf32> -> vector<32x384xf32>
    %7 = arith.addf %3, %6 : vector<32x384xf32>
    %c383_i32 = arith.constant 383 : i32
    %8 = tpu.dynamic_rotate %1 by %c383_i32 dim 1 : vector<8x384xf32>, i32 -> vector<8x384xf32>
    %c1 = arith.constant 1 : index
    %c0_8 = arith.constant 0 : index
    %c0_9 = arith.constant 0 : index
    %9 = vector.load %arg2[%c1, %c0_8, %c0_9] : memref<9x32x8xf32, #tpu.memory_space<vmem>>, vector<1x32x8xf32>
    %10 = vector.shape_cast %9 : vector<1x32x8xf32> to vector<32x8xf32>
    %cst_10 = arith.constant dense<0.000000e+00> : vector<32x384xf32>
    %11 = tpu.matmul %10, %8, %cst_10 {dimension_numbers = #tpu.dot_dimension_numbers<[1], [0], [0], [1], [0, 0, 1, 1], [], []>} : vector<32x8xf32>, vector<8x384xf32>, vector<32x384xf32> -> vector<32x384xf32>
    %12 = arith.addf %7, %11 : vector<32x384xf32>
    %c382_i32 = arith.constant 382 : i32
    %13 = tpu.dynamic_rotate %1 by %c382_i32 dim 1 : vector<8x384xf32>, i32 -> vector<8x384xf32>
    %c2 = arith.constant 2 : index
    %c0_11 = arith.constant 0 : index
    %c0_12 = arith.constant 0 : index
    %14 = vector.load %arg2[%c2, %c0_11, %c0_12] : memref<9x32x8xf32, #tpu.memory_space<vmem>>, vector<1x32x8xf32>
    %15 = vector.shape_cast %14 : vector<1x32x8xf32> to vector<32x8xf32>
    %cst_13 = arith.constant dense<0.000000e+00> : vector<32x384xf32>
    %16 = tpu.matmul %15, %13, %cst_13 {dimension_numbers = #tpu.dot_dimension_numbers<[1], [0], [0], [1], [0, 0, 1, 1], [], []>} : vector<32x8xf32>, vector<8x384xf32>, vector<32x384xf32> -> vector<32x384xf32>
    %17 = arith.addf %12, %16 : vector<32x384xf32>
    %c366_i32 = arith.constant 366 : i32
    %18 = tpu.dynamic_rotate %1 by %c366_i32 dim 1 : vector<8x384xf32>, i32 -> vector<8x384xf32>
    %c3 = arith.constant 3 : index
    %c0_14 = arith.constant 0 : index
    %c0_15 = arith.constant 0 : index
    %19 = vector.load %arg2[%c3, %c0_14, %c0_15] : memref<9x32x8xf32, #tpu.memory_space<vmem>>, vector<1x32x8xf32>
    %20 = vector.shape_cast %19 : vector<1x32x8xf32> to vector<32x8xf32>
    %cst_16 = arith.constant dense<0.000000e+00> : vector<32x384xf32>
    %21 = tpu.matmul %20, %18, %cst_16 {dimension_numbers = #tpu.dot_dimension_numbers<[1], [0], [0], [1], [0, 0, 1, 1], [], []>} : vector<32x8xf32>, vector<8x384xf32>, vector<32x384xf32> -> vector<32x384xf32>
    %22 = arith.addf %17, %21 : vector<32x384xf32>
    %c365_i32 = arith.constant 365 : i32
    %23 = tpu.dynamic_rotate %1 by %c365_i32 dim 1 : vector<8x384xf32>, i32 -> vector<8x384xf32>
    %c4 = arith.constant 4 : index
    %c0_17 = arith.constant 0 : index
    %c0_18 = arith.constant 0 : index
    %24 = vector.load %arg2[%c4, %c0_17, %c0_18] : memref<9x32x8xf32, #tpu.memory_space<vmem>>, vector<1x32x8xf32>
    %25 = vector.shape_cast %24 : vector<1x32x8xf32> to vector<32x8xf32>
    %cst_19 = arith.constant dense<0.000000e+00> : vector<32x384xf32>
    %26 = tpu.matmul %25, %23, %cst_19 {dimension_numbers = #tpu.dot_dimension_numbers<[1], [0], [0], [1], [0, 0, 1, 1], [], []>} : vector<32x8xf32>, vector<8x384xf32>, vector<32x384xf32> -> vector<32x384xf32>
    %27 = arith.addf %22, %26 : vector<32x384xf32>
    %c364_i32 = arith.constant 364 : i32
    %28 = tpu.dynamic_rotate %1 by %c364_i32 dim 1 : vector<8x384xf32>, i32 -> vector<8x384xf32>
    %c5 = arith.constant 5 : index
    %c0_20 = arith.constant 0 : index
    %c0_21 = arith.constant 0 : index
    %29 = vector.load %arg2[%c5, %c0_20, %c0_21] : memref<9x32x8xf32, #tpu.memory_space<vmem>>, vector<1x32x8xf32>
    %30 = vector.shape_cast %29 : vector<1x32x8xf32> to vector<32x8xf32>
    %cst_22 = arith.constant dense<0.000000e+00> : vector<32x384xf32>
    %31 = tpu.matmul %30, %28, %cst_22 {dimension_numbers = #tpu.dot_dimension_numbers<[1], [0], [0], [1], [0, 0, 1, 1], [], []>} : vector<32x8xf32>, vector<8x384xf32>, vector<32x384xf32> -> vector<32x384xf32>
    %32 = arith.addf %27, %31 : vector<32x384xf32>
    %c348_i32 = arith.constant 348 : i32
    %33 = tpu.dynamic_rotate %1 by %c348_i32 dim 1 : vector<8x384xf32>, i32 -> vector<8x384xf32>
    %c6 = arith.constant 6 : index
    %c0_23 = arith.constant 0 : index
    %c0_24 = arith.constant 0 : index
    %34 = vector.load %arg2[%c6, %c0_23, %c0_24] : memref<9x32x8xf32, #tpu.memory_space<vmem>>, vector<1x32x8xf32>
    %35 = vector.shape_cast %34 : vector<1x32x8xf32> to vector<32x8xf32>
    %cst_25 = arith.constant dense<0.000000e+00> : vector<32x384xf32>
    %36 = tpu.matmul %35, %33, %cst_25 {dimension_numbers = #tpu.dot_dimension_numbers<[1], [0], [0], [1], [0, 0, 1, 1], [], []>} : vector<32x8xf32>, vector<8x384xf32>, vector<32x384xf32> -> vector<32x384xf32>
    %37 = arith.addf %32, %36 : vector<32x384xf32>
    %c347_i32 = arith.constant 347 : i32
    %38 = tpu.dynamic_rotate %1 by %c347_i32 dim 1 : vector<8x384xf32>, i32 -> vector<8x384xf32>
    %c7 = arith.constant 7 : index
    %c0_26 = arith.constant 0 : index
    %c0_27 = arith.constant 0 : index
    %39 = vector.load %arg2[%c7, %c0_26, %c0_27] : memref<9x32x8xf32, #tpu.memory_space<vmem>>, vector<1x32x8xf32>
    %40 = vector.shape_cast %39 : vector<1x32x8xf32> to vector<32x8xf32>
    %cst_28 = arith.constant dense<0.000000e+00> : vector<32x384xf32>
    %41 = tpu.matmul %40, %38, %cst_28 {dimension_numbers = #tpu.dot_dimension_numbers<[1], [0], [0], [1], [0, 0, 1, 1], [], []>} : vector<32x8xf32>, vector<8x384xf32>, vector<32x384xf32> -> vector<32x384xf32>
    %42 = arith.addf %37, %41 : vector<32x384xf32>
    %c346_i32 = arith.constant 346 : i32
    %43 = tpu.dynamic_rotate %1 by %c346_i32 dim 1 : vector<8x384xf32>, i32 -> vector<8x384xf32>
    %c8 = arith.constant 8 : index
    %c0_29 = arith.constant 0 : index
    %c0_30 = arith.constant 0 : index
    %44 = vector.load %arg2[%c8, %c0_29, %c0_30] : memref<9x32x8xf32, #tpu.memory_space<vmem>>, vector<1x32x8xf32>
    %45 = vector.shape_cast %44 : vector<1x32x8xf32> to vector<32x8xf32>
    %cst_31 = arith.constant dense<0.000000e+00> : vector<32x384xf32>
    %46 = tpu.matmul %45, %43, %cst_31 {dimension_numbers = #tpu.dot_dimension_numbers<[1], [0], [0], [1], [0, 0, 1, 1], [], []>} : vector<32x8xf32>, vector<8x384xf32>, vector<32x384xf32> -> vector<32x384xf32>
    %47 = arith.addf %42, %46 : vector<32x384xf32>
    %c0_32 = arith.constant 0 : index
    %c0_33 = arith.constant 0 : index
    %48 = vector.load %arg3[%c0_32, %c0_33] : memref<32x1xf32, #tpu.memory_space<vmem>>, vector<32x1xf32>
    %49 = vector.broadcast %48 : vector<32x1xf32> to vector<32x384xf32>
    %50 = arith.addf %47, %49 : vector<32x384xf32>
    %c0_34 = arith.constant 0 : index
    %c0_35 = arith.constant 0 : index
    %c0_36 = arith.constant 0 : index
    %51 = vector.load %arg7[%c0_34, %c0_35, %c0_36] : memref<1x32x384xf32, #tpu.memory_space<vmem>>, vector<1x32x384xf32>
    %52 = vector.shape_cast %51 : vector<1x32x384xf32> to vector<32x384xf32>
    %53 = vector.shape_cast %50 : vector<32x384xf32> to vector<1x32x384xf32>
    tpu.vector_store %arg7[%c0_34, %c0_35, %c0_36], %53 {strides = array<i32>} : memref<1x32x384xf32, #tpu.memory_space<vmem>>, vector<1x32x384xf32>,
    %54 = vector.broadcast %2 : vector<1x384xf32> to vector<32x384xf32>
    %55 = arith.mulf %50, %54 : vector<32x384xf32>
    %cst_37 = arith.constant dense<0.000000e+00> : vector<32xf32>
    %56 = vector.multi_reduction <add>, %55, %cst_37 [1] : vector<32x384xf32> to vector<32xf32>
    %57 = vector.shape_cast %56 : vector<32xf32> to vector<32x1xf32>
    %cst_38 = arith.constant 3.906250e-03 : f32
    %58 = vector.broadcast %cst_38 : f32 to vector<32x1xf32>
    %59 = arith.mulf %57, %58 : vector<32x1xf32>
    %60 = vector.broadcast %59 : vector<32x1xf32> to vector<32x384xf32>
    %61 = arith.subf %50, %60 : vector<32x384xf32>
    %62 = vector.broadcast %2 : vector<1x384xf32> to vector<32x384xf32>
    %63 = arith.mulf %61, %62 : vector<32x384xf32>
    %c0_39 = arith.constant 0 : index
    %c0_40 = arith.constant 0 : index
    %c0_41 = arith.constant 0 : index
    %64 = vector.load %arg8[%c0_39, %c0_40, %c0_41] : memref<1x32x1xf32, #tpu.memory_space<vmem>>, vector<1x32x1xf32>
    %65 = vector.shape_cast %64 : vector<1x32x1xf32> to vector<32x1xf32>
    %66 = vector.shape_cast %57 : vector<32x1xf32> to vector<1x32x1xf32>
    tpu.vector_store %arg8[%c0_39, %c0_40, %c0_41], %66 {strides = array<i32>} : memref<1x32x1xf32, #tpu.memory_space<vmem>>, vector<1x32x1xf32>,
    %67 = arith.mulf %63, %63 : vector<32x384xf32>
    %cst_42 = arith.constant dense<0.000000e+00> : vector<32xf32>
    %68 = vector.multi_reduction <add>, %67, %cst_42 [1] : vector<32x384xf32> to vector<32xf32>
    %69 = vector.shape_cast %68 : vector<32xf32> to vector<32x1xf32>
    %c0_43 = arith.constant 0 : index
    %c0_44 = arith.constant 0 : index
    %c0_45 = arith.constant 0 : index
    %70 = vector.load %arg9[%c0_43, %c0_44, %c0_45] : memref<1x32x1xf32, #tpu.memory_space<vmem>>, vector<1x32x1xf32>
    %71 = vector.shape_cast %70 : vector<1x32x1xf32> to vector<32x1xf32>
    %72 = vector.shape_cast %69 : vector<32x1xf32> to vector<1x32x1xf32>
    tpu.vector_store %arg9[%c0_43, %c0_44, %c0_45], %72 {strides = array<i32>} : memref<1x32x1xf32, #tpu.memory_space<vmem>>, vector<1x32x1xf32>,
    return
  }
  func.func @transform_0(%arg0: i32) -> (i32, i32, i32) {
    %c0_i32 = arith.constant 0 : i32
    %c0_i32_0 = arith.constant 0 : i32
    %c0_i32_1 = arith.constant 0 : i32
    return %arg0, %c0_i32, %c0_i32_0 : i32, i32, i32
  }
  func.func @transform_1(%arg0: i32) -> (i32, i32, i32) {
    %c0_i32 = arith.constant 0 : i32
    %c0_i32_0 = arith.constant 0 : i32
    %c0_i32_1 = arith.constant 0 : i32
    %c0_i32_2 = arith.constant 0 : i32
    return %c0_i32, %c0_i32_0, %c0_i32_1 : i32, i32, i32
  }
  func.func @transform_2(%arg0: i32) -> (i32, i32) {
    %c0_i32 = arith.constant 0 : i32
    %c0_i32_0 = arith.constant 0 : i32
    %c0_i32_1 = arith.constant 0 : i32
    return %c0_i32, %c0_i32_0 : i32, i32
  }
  func.func @transform_3(%arg0: i32) -> (i32, i32) {
    %c0_i32 = arith.constant 0 : i32
    %c0_i32_0 = arith.constant 0 : i32
    %c0_i32_1 = arith.constant 0 : i32
    return %c0_i32, %c0_i32_0 : i32, i32
  }
  func.func @transform_4(%arg0: i32) -> (i32, i32) {
    %c0_i32 = arith.constant 0 : i32
    %c0_i32_0 = arith.constant 0 : i32
    %c0_i32_1 = arith.constant 0 : i32
    return %c0_i32, %c0_i32_0 : i32, i32
  }
  func.func @transform_5(%arg0: i32) -> (i32, i32) {
    %c0_i32 = arith.constant 0 : i32
    %c0_i32_0 = arith.constant 0 : i32
    %c0_i32_1 = arith.constant 0 : i32
    return %c0_i32, %c0_i32_0 : i32, i32
  }
  func.func @transform_6(%arg0: i32) -> (i32, i32, i32) {
    %c0_i32 = arith.constant 0 : i32
    %c0_i32_0 = arith.constant 0 : i32
    %c0_i32_1 = arith.constant 0 : i32
    return %arg0, %c0_i32, %c0_i32_0 : i32, i32, i32
  }
  func.func @transform_7(%arg0: i32) -> (i32, i32, i32) {
    %c0_i32 = arith.constant 0 : i32
    %c0_i32_0 = arith.constant 0 : i32
    %c0_i32_1 = arith.constant 0 : i32
    return %arg0, %c0_i32, %c0_i32_0 : i32, i32, i32
  }
  func.func @transform_8(%arg0: i32) -> (i32, i32, i32) {
    %c0_i32 = arith.constant 0 : i32
    %c0_i32_0 = arith.constant 0 : i32
    %c0_i32_1 = arith.constant 0 : i32
    return %arg0, %c0_i32, %c0_i32_0 : i32, i32, i32
  }
}

module attributes {stable_mosaic.version = 11 : i64} {
  func.func @_fused_conv_kernel(%arg0: i32, %arg1: memref<1x8x1280xf32, #tpu.memory_space<vmem>>, %arg2: memref<9x8x8xf32, #tpu.memory_space<vmem>>, %arg3: memref<8x1xf32, #tpu.memory_space<vmem>>, %arg4: memref<8x1xf32, #tpu.memory_space<vmem>>, %arg5: memref<8x1xf32, #tpu.memory_space<vmem>>, %arg6: memref<1x1280xf32, #tpu.memory_space<vmem>>, %arg7: memref<1x8x1280xf32, #tpu.memory_space<vmem>>, %arg8: memref<1x8x1xf32, #tpu.memory_space<vmem>>, %arg9: memref<1x8x1xf32, #tpu.memory_space<vmem>>) attributes {dimension_semantics = [#tpu.dimension_semantics<parallel>], iteration_bounds = array<i64: 2>, scalar_prefetch = 0 : i64, scratch_operands = 0 : i64, tpu.core_type = #tpu.core_type<tc>, window_params = [{transform_indices = @transform_0, window_bounds = array<i64: 1, 8, 1280>}, {pipeline_mode = #tpu.pipeline_mode<synchronous>, transform_indices = @transform_1, window_bounds = array<i64: 9, 8, 8>}, {pipeline_mode = #tpu.pipeline_mode<synchronous>, transform_indices = @transform_2, window_bounds = array<i64: 8, 1>}, {pipeline_mode = #tpu.pipeline_mode<synchronous>, transform_indices = @transform_3, window_bounds = array<i64: 8, 1>}, {pipeline_mode = #tpu.pipeline_mode<synchronous>, transform_indices = @transform_4, window_bounds = array<i64: 8, 1>}, {pipeline_mode = #tpu.pipeline_mode<synchronous>, transform_indices = @transform_5, window_bounds = array<i64: 1, 1280>}, {transform_indices = @transform_6, window_bounds = array<i64: 1, 8, 1280>}, {transform_indices = @transform_7, window_bounds = array<i64: 1, 8, 1>}, {transform_indices = @transform_8, window_bounds = array<i64: 1, 8, 1>}]} {
    %c0 = arith.constant 0 : index
    %c0_0 = arith.constant 0 : index
    %c0_1 = arith.constant 0 : index
    %0 = vector.load %arg1[%c0, %c0_0, %c0_1] : memref<1x8x1280xf32, #tpu.memory_space<vmem>>, vector<1x8x1280xf32>
    %1 = vector.shape_cast %0 : vector<1x8x1280xf32> to vector<8x1280xf32>
    %c0_2 = arith.constant 0 : index
    %c0_3 = arith.constant 0 : index
    %2 = vector.load %arg6[%c0_2, %c0_3] : memref<1x1280xf32, #tpu.memory_space<vmem>>, vector<1x1280xf32>
    %c0_4 = arith.constant 0 : index
    %c0_5 = arith.constant 0 : index
    %3 = vector.load %arg4[%c0_4, %c0_5] : memref<8x1xf32, #tpu.memory_space<vmem>>, vector<8x1xf32>
    %4 = vector.broadcast %3 : vector<8x1xf32> to vector<8x1280xf32>
    %5 = arith.mulf %1, %4 : vector<8x1280xf32>
    %c0_6 = arith.constant 0 : index
    %c0_7 = arith.constant 0 : index
    %6 = vector.load %arg5[%c0_6, %c0_7] : memref<8x1xf32, #tpu.memory_space<vmem>>, vector<8x1xf32>
    %7 = vector.broadcast %6 : vector<8x1xf32> to vector<8x1280xf32>
    %8 = arith.addf %5, %7 : vector<8x1280xf32>
    %cst = arith.constant 0.000000e+00 : f32
    %9 = vector.broadcast %cst : f32 to vector<8x1280xf32>
    %10 = arith.cmpf ogt, %8, %9 : vector<8x1280xf32>
    %cst_8 = arith.constant 0.000000e+00 : f32
    %11 = vector.broadcast %cst_8 : f32 to vector<8x1280xf32>
    %12 = arith.minimumf %8, %11 : vector<8x1280xf32>
    %13 = math.exp %12 : vector<8x1280xf32>
    %cst_9 = arith.constant 1.000000e+00 : f32
    %14 = vector.broadcast %cst_9 : f32 to vector<8x1280xf32>
    %15 = arith.subf %13, %14 : vector<8x1280xf32>
    %16 = arith.select %10, %8, %15 : vector<8x1280xi1>, vector<8x1280xf32>
    %17 = vector.broadcast %2 : vector<1x1280xf32> to vector<8x1280xf32>
    %18 = arith.mulf %16, %17 : vector<8x1280xf32>
    %cst_10 = arith.constant 0.000000e+00 : f32
    %19 = vector.broadcast %cst_10 : f32 to vector<8x1280xf32>
    %c35_i32 = arith.constant 35 : i32
    %20 = tpu.dynamic_rotate %18 by %c35_i32 dim 1 : vector<8x1280xf32>, i32 -> vector<8x1280xf32>
    %c0_11 = arith.constant 0 : index
    %c0_12 = arith.constant 0 : index
    %c0_13 = arith.constant 0 : index
    %21 = vector.load %arg2[%c0_11, %c0_12, %c0_13] : memref<9x8x8xf32, #tpu.memory_space<vmem>>, vector<1x8x8xf32>
    %22 = vector.shape_cast %21 : vector<1x8x8xf32> to vector<8x8xf32>
    %cst_14 = arith.constant dense<0.000000e+00> : vector<8x1280xf32>
    %23 = tpu.matmul %22, %20, %cst_14 {dimension_numbers = #tpu.dot_dimension_numbers<[1], [0], [0], [1], [0, 0, 1, 1], [], []>} : vector<8x8xf32>, vector<8x1280xf32>, vector<8x1280xf32> -> vector<8x1280xf32>
    %24 = arith.addf %19, %23 : vector<8x1280xf32>
    %c34_i32 = arith.constant 34 : i32
    %25 = tpu.dynamic_rotate %18 by %c34_i32 dim 1 : vector<8x1280xf32>, i32 -> vector<8x1280xf32>
    %c1 = arith.constant 1 : index
    %c0_15 = arith.constant 0 : index
    %c0_16 = arith.constant 0 : index
    %26 = vector.load %arg2[%c1, %c0_15, %c0_16] : memref<9x8x8xf32, #tpu.memory_space<vmem>>, vector<1x8x8xf32>
    %27 = vector.shape_cast %26 : vector<1x8x8xf32> to vector<8x8xf32>
    %cst_17 = arith.constant dense<0.000000e+00> : vector<8x1280xf32>
    %28 = tpu.matmul %27, %25, %cst_17 {dimension_numbers = #tpu.dot_dimension_numbers<[1], [0], [0], [1], [0, 0, 1, 1], [], []>} : vector<8x8xf32>, vector<8x1280xf32>, vector<8x1280xf32> -> vector<8x1280xf32>
    %29 = arith.addf %24, %28 : vector<8x1280xf32>
    %c33_i32 = arith.constant 33 : i32
    %30 = tpu.dynamic_rotate %18 by %c33_i32 dim 1 : vector<8x1280xf32>, i32 -> vector<8x1280xf32>
    %c2 = arith.constant 2 : index
    %c0_18 = arith.constant 0 : index
    %c0_19 = arith.constant 0 : index
    %31 = vector.load %arg2[%c2, %c0_18, %c0_19] : memref<9x8x8xf32, #tpu.memory_space<vmem>>, vector<1x8x8xf32>
    %32 = vector.shape_cast %31 : vector<1x8x8xf32> to vector<8x8xf32>
    %cst_20 = arith.constant dense<0.000000e+00> : vector<8x1280xf32>
    %33 = tpu.matmul %32, %30, %cst_20 {dimension_numbers = #tpu.dot_dimension_numbers<[1], [0], [0], [1], [0, 0, 1, 1], [], []>} : vector<8x8xf32>, vector<8x1280xf32>, vector<8x1280xf32> -> vector<8x1280xf32>
    %34 = arith.addf %29, %33 : vector<8x1280xf32>
    %c1_i32 = arith.constant 1 : i32
    %35 = tpu.dynamic_rotate %18 by %c1_i32 dim 1 : vector<8x1280xf32>, i32 -> vector<8x1280xf32>
    %c3 = arith.constant 3 : index
    %c0_21 = arith.constant 0 : index
    %c0_22 = arith.constant 0 : index
    %36 = vector.load %arg2[%c3, %c0_21, %c0_22] : memref<9x8x8xf32, #tpu.memory_space<vmem>>, vector<1x8x8xf32>
    %37 = vector.shape_cast %36 : vector<1x8x8xf32> to vector<8x8xf32>
    %cst_23 = arith.constant dense<0.000000e+00> : vector<8x1280xf32>
    %38 = tpu.matmul %37, %35, %cst_23 {dimension_numbers = #tpu.dot_dimension_numbers<[1], [0], [0], [1], [0, 0, 1, 1], [], []>} : vector<8x8xf32>, vector<8x1280xf32>, vector<8x1280xf32> -> vector<8x1280xf32>
    %39 = arith.addf %34, %38 : vector<8x1280xf32>
    %c4 = arith.constant 4 : index
    %c0_24 = arith.constant 0 : index
    %c0_25 = arith.constant 0 : index
    %40 = vector.load %arg2[%c4, %c0_24, %c0_25] : memref<9x8x8xf32, #tpu.memory_space<vmem>>, vector<1x8x8xf32>
    %41 = vector.shape_cast %40 : vector<1x8x8xf32> to vector<8x8xf32>
    %cst_26 = arith.constant dense<0.000000e+00> : vector<8x1280xf32>
    %42 = tpu.matmul %41, %18, %cst_26 {dimension_numbers = #tpu.dot_dimension_numbers<[1], [0], [0], [1], [0, 0, 1, 1], [], []>} : vector<8x8xf32>, vector<8x1280xf32>, vector<8x1280xf32> -> vector<8x1280xf32>
    %43 = arith.addf %39, %42 : vector<8x1280xf32>
    %c1279_i32 = arith.constant 1279 : i32
    %44 = tpu.dynamic_rotate %18 by %c1279_i32 dim 1 : vector<8x1280xf32>, i32 -> vector<8x1280xf32>
    %c5 = arith.constant 5 : index
    %c0_27 = arith.constant 0 : index
    %c0_28 = arith.constant 0 : index
    %45 = vector.load %arg2[%c5, %c0_27, %c0_28] : memref<9x8x8xf32, #tpu.memory_space<vmem>>, vector<1x8x8xf32>
    %46 = vector.shape_cast %45 : vector<1x8x8xf32> to vector<8x8xf32>
    %cst_29 = arith.constant dense<0.000000e+00> : vector<8x1280xf32>
    %47 = tpu.matmul %46, %44, %cst_29 {dimension_numbers = #tpu.dot_dimension_numbers<[1], [0], [0], [1], [0, 0, 1, 1], [], []>} : vector<8x8xf32>, vector<8x1280xf32>, vector<8x1280xf32> -> vector<8x1280xf32>
    %48 = arith.addf %43, %47 : vector<8x1280xf32>
    %c1247_i32 = arith.constant 1247 : i32
    %49 = tpu.dynamic_rotate %18 by %c1247_i32 dim 1 : vector<8x1280xf32>, i32 -> vector<8x1280xf32>
    %c6 = arith.constant 6 : index
    %c0_30 = arith.constant 0 : index
    %c0_31 = arith.constant 0 : index
    %50 = vector.load %arg2[%c6, %c0_30, %c0_31] : memref<9x8x8xf32, #tpu.memory_space<vmem>>, vector<1x8x8xf32>
    %51 = vector.shape_cast %50 : vector<1x8x8xf32> to vector<8x8xf32>
    %cst_32 = arith.constant dense<0.000000e+00> : vector<8x1280xf32>
    %52 = tpu.matmul %51, %49, %cst_32 {dimension_numbers = #tpu.dot_dimension_numbers<[1], [0], [0], [1], [0, 0, 1, 1], [], []>} : vector<8x8xf32>, vector<8x1280xf32>, vector<8x1280xf32> -> vector<8x1280xf32>
    %53 = arith.addf %48, %52 : vector<8x1280xf32>
    %c1246_i32 = arith.constant 1246 : i32
    %54 = tpu.dynamic_rotate %18 by %c1246_i32 dim 1 : vector<8x1280xf32>, i32 -> vector<8x1280xf32>
    %c7 = arith.constant 7 : index
    %c0_33 = arith.constant 0 : index
    %c0_34 = arith.constant 0 : index
    %55 = vector.load %arg2[%c7, %c0_33, %c0_34] : memref<9x8x8xf32, #tpu.memory_space<vmem>>, vector<1x8x8xf32>
    %56 = vector.shape_cast %55 : vector<1x8x8xf32> to vector<8x8xf32>
    %cst_35 = arith.constant dense<0.000000e+00> : vector<8x1280xf32>
    %57 = tpu.matmul %56, %54, %cst_35 {dimension_numbers = #tpu.dot_dimension_numbers<[1], [0], [0], [1], [0, 0, 1, 1], [], []>} : vector<8x8xf32>, vector<8x1280xf32>, vector<8x1280xf32> -> vector<8x1280xf32>
    %58 = arith.addf %53, %57 : vector<8x1280xf32>
    %c1245_i32 = arith.constant 1245 : i32
    %59 = tpu.dynamic_rotate %18 by %c1245_i32 dim 1 : vector<8x1280xf32>, i32 -> vector<8x1280xf32>
    %c8 = arith.constant 8 : index
    %c0_36 = arith.constant 0 : index
    %c0_37 = arith.constant 0 : index
    %60 = vector.load %arg2[%c8, %c0_36, %c0_37] : memref<9x8x8xf32, #tpu.memory_space<vmem>>, vector<1x8x8xf32>
    %61 = vector.shape_cast %60 : vector<1x8x8xf32> to vector<8x8xf32>
    %cst_38 = arith.constant dense<0.000000e+00> : vector<8x1280xf32>
    %62 = tpu.matmul %61, %59, %cst_38 {dimension_numbers = #tpu.dot_dimension_numbers<[1], [0], [0], [1], [0, 0, 1, 1], [], []>} : vector<8x8xf32>, vector<8x1280xf32>, vector<8x1280xf32> -> vector<8x1280xf32>
    %63 = arith.addf %58, %62 : vector<8x1280xf32>
    %c0_39 = arith.constant 0 : index
    %c0_40 = arith.constant 0 : index
    %64 = vector.load %arg3[%c0_39, %c0_40] : memref<8x1xf32, #tpu.memory_space<vmem>>, vector<8x1xf32>
    %65 = vector.broadcast %64 : vector<8x1xf32> to vector<8x1280xf32>
    %66 = arith.addf %63, %65 : vector<8x1280xf32>
    %c0_41 = arith.constant 0 : index
    %c0_42 = arith.constant 0 : index
    %c0_43 = arith.constant 0 : index
    %67 = vector.load %arg7[%c0_41, %c0_42, %c0_43] : memref<1x8x1280xf32, #tpu.memory_space<vmem>>, vector<1x8x1280xf32>
    %68 = vector.shape_cast %67 : vector<1x8x1280xf32> to vector<8x1280xf32>
    %69 = vector.shape_cast %66 : vector<8x1280xf32> to vector<1x8x1280xf32>
    tpu.vector_store %arg7[%c0_41, %c0_42, %c0_43], %69 {strides = array<i32>} : memref<1x8x1280xf32, #tpu.memory_space<vmem>>, vector<1x8x1280xf32>,
    %70 = vector.broadcast %2 : vector<1x1280xf32> to vector<8x1280xf32>
    %71 = arith.mulf %66, %70 : vector<8x1280xf32>
    %cst_44 = arith.constant dense<0.000000e+00> : vector<8xf32>
    %72 = vector.multi_reduction <add>, %71, %cst_44 [1] : vector<8x1280xf32> to vector<8xf32>
    %73 = vector.shape_cast %72 : vector<8xf32> to vector<8x1xf32>
    %cst_45 = arith.constant 9.765625E-4 : f32
    %74 = vector.broadcast %cst_45 : f32 to vector<8x1xf32>
    %75 = arith.mulf %73, %74 : vector<8x1xf32>
    %76 = vector.broadcast %75 : vector<8x1xf32> to vector<8x1280xf32>
    %77 = arith.subf %66, %76 : vector<8x1280xf32>
    %78 = vector.broadcast %2 : vector<1x1280xf32> to vector<8x1280xf32>
    %79 = arith.mulf %77, %78 : vector<8x1280xf32>
    %c0_46 = arith.constant 0 : index
    %c0_47 = arith.constant 0 : index
    %c0_48 = arith.constant 0 : index
    %80 = vector.load %arg8[%c0_46, %c0_47, %c0_48] : memref<1x8x1xf32, #tpu.memory_space<vmem>>, vector<1x8x1xf32>
    %81 = vector.shape_cast %80 : vector<1x8x1xf32> to vector<8x1xf32>
    %82 = vector.shape_cast %73 : vector<8x1xf32> to vector<1x8x1xf32>
    tpu.vector_store %arg8[%c0_46, %c0_47, %c0_48], %82 {strides = array<i32>} : memref<1x8x1xf32, #tpu.memory_space<vmem>>, vector<1x8x1xf32>,
    %83 = arith.mulf %79, %79 : vector<8x1280xf32>
    %cst_49 = arith.constant dense<0.000000e+00> : vector<8xf32>
    %84 = vector.multi_reduction <add>, %83, %cst_49 [1] : vector<8x1280xf32> to vector<8xf32>
    %85 = vector.shape_cast %84 : vector<8xf32> to vector<8x1xf32>
    %c0_50 = arith.constant 0 : index
    %c0_51 = arith.constant 0 : index
    %c0_52 = arith.constant 0 : index
    %86 = vector.load %arg9[%c0_50, %c0_51, %c0_52] : memref<1x8x1xf32, #tpu.memory_space<vmem>>, vector<1x8x1xf32>
    %87 = vector.shape_cast %86 : vector<1x8x1xf32> to vector<8x1xf32>
    %88 = vector.shape_cast %85 : vector<8x1xf32> to vector<1x8x1xf32>
    tpu.vector_store %arg9[%c0_50, %c0_51, %c0_52], %88 {strides = array<i32>} : memref<1x8x1xf32, #tpu.memory_space<vmem>>, vector<1x8x1xf32>,
    return
  }
  func.func @transform_0(%arg0: i32) -> (i32, i32, i32) {
    %c0_i32 = arith.constant 0 : i32
    %c0_i32_0 = arith.constant 0 : i32
    %c0_i32_1 = arith.constant 0 : i32
    return %arg0, %c0_i32, %c0_i32_0 : i32, i32, i32
  }
  func.func @transform_1(%arg0: i32) -> (i32, i32, i32) {
    %c0_i32 = arith.constant 0 : i32
    %c0_i32_0 = arith.constant 0 : i32
    %c0_i32_1 = arith.constant 0 : i32
    %c0_i32_2 = arith.constant 0 : i32
    return %c0_i32, %c0_i32_0, %c0_i32_1 : i32, i32, i32
  }
  func.func @transform_2(%arg0: i32) -> (i32, i32) {
    %c0_i32 = arith.constant 0 : i32
    %c0_i32_0 = arith.constant 0 : i32
    %c0_i32_1 = arith.constant 0 : i32
    return %c0_i32, %c0_i32_0 : i32, i32
  }
  func.func @transform_3(%arg0: i32) -> (i32, i32) {
    %c0_i32 = arith.constant 0 : i32
    %c0_i32_0 = arith.constant 0 : i32
    %c0_i32_1 = arith.constant 0 : i32
    return %c0_i32, %c0_i32_0 : i32, i32
  }
  func.func @transform_4(%arg0: i32) -> (i32, i32) {
    %c0_i32 = arith.constant 0 : i32
    %c0_i32_0 = arith.constant 0 : i32
    %c0_i32_1 = arith.constant 0 : i32
    return %c0_i32, %c0_i32_0 : i32, i32
  }
  func.func @transform_5(%arg0: i32) -> (i32, i32) {
    %c0_i32 = arith.constant 0 : i32
    %c0_i32_0 = arith.constant 0 : i32
    %c0_i32_1 = arith.constant 0 : i32
    return %c0_i32, %c0_i32_0 : i32, i32
  }
  func.func @transform_6(%arg0: i32) -> (i32, i32, i32) {
    %c0_i32 = arith.constant 0 : i32
    %c0_i32_0 = arith.constant 0 : i32
    %c0_i32_1 = arith.constant 0 : i32
    return %arg0, %c0_i32, %c0_i32_0 : i32, i32, i32
  }
  func.func @transform_7(%arg0: i32) -> (i32, i32, i32) {
    %c0_i32 = arith.constant 0 : i32
    %c0_i32_0 = arith.constant 0 : i32
    %c0_i32_1 = arith.constant 0 : i32
    return %arg0, %c0_i32, %c0_i32_0 : i32, i32, i32
  }
  func.func @transform_8(%arg0: i32) -> (i32, i32, i32) {
    %c0_i32 = arith.constant 0 : i32
    %c0_i32_0 = arith.constant 0 : i32
    %c0_i32_1 = arith.constant 0 : i32
    return %arg0, %c0_i32, %c0_i32_0 : i32, i32, i32
  }
}

module attributes {stable_mosaic.version = 11 : i64} {
  func.func @_residual_head_kernel(%arg0: i32, %arg1: memref<1x8x1280xf32, #tpu.memory_space<vmem>>, %arg2: memref<1x8x1280xf32, #tpu.memory_space<vmem>>, %arg3: memref<8x1xf32, #tpu.memory_space<vmem>>, %arg4: memref<8x1xf32, #tpu.memory_space<vmem>>, %arg5: memref<8x1xf32, #tpu.memory_space<vmem>>, %arg6: memref<1x1xf32, #tpu.memory_space<vmem>>, %arg7: memref<1x2x1280xf32, #tpu.memory_space<vmem>>) attributes {dimension_semantics = [#tpu.dimension_semantics<parallel>], iteration_bounds = array<i64: 2>, scalar_prefetch = 0 : i64, scratch_operands = 0 : i64, tpu.core_type = #tpu.core_type<tc>, window_params = [{transform_indices = @transform_0, window_bounds = array<i64: 1, 8, 1280>}, {transform_indices = @transform_1, window_bounds = array<i64: 1, 8, 1280>}, {pipeline_mode = #tpu.pipeline_mode<synchronous>, transform_indices = @transform_2, window_bounds = array<i64: 8, 1>}, {pipeline_mode = #tpu.pipeline_mode<synchronous>, transform_indices = @transform_3, window_bounds = array<i64: 8, 1>}, {pipeline_mode = #tpu.pipeline_mode<synchronous>, transform_indices = @transform_4, window_bounds = array<i64: 8, 1>}, {pipeline_mode = #tpu.pipeline_mode<synchronous>, transform_indices = @transform_5, window_bounds = array<i64: 1, 1>}, {transform_indices = @transform_6, window_bounds = array<i64: 1, 2, 1280>}]} {
    %c0 = arith.constant 0 : index
    %c0_0 = arith.constant 0 : index
    %c0_1 = arith.constant 0 : index
    %0 = vector.load %arg2[%c0, %c0_0, %c0_1] : memref<1x8x1280xf32, #tpu.memory_space<vmem>>, vector<1x8x1280xf32>
    %1 = vector.shape_cast %0 : vector<1x8x1280xf32> to vector<8x1280xf32>
    %c0_2 = arith.constant 0 : index
    %c0_3 = arith.constant 0 : index
    %2 = vector.load %arg3[%c0_2, %c0_3] : memref<8x1xf32, #tpu.memory_space<vmem>>, vector<8x1xf32>
    %3 = vector.broadcast %2 : vector<8x1xf32> to vector<8x1280xf32>
    %4 = arith.mulf %1, %3 : vector<8x1280xf32>
    %c0_4 = arith.constant 0 : index
    %c0_5 = arith.constant 0 : index
    %5 = vector.load %arg4[%c0_4, %c0_5] : memref<8x1xf32, #tpu.memory_space<vmem>>, vector<8x1xf32>
    %6 = vector.broadcast %5 : vector<8x1xf32> to vector<8x1280xf32>
    %7 = arith.addf %4, %6 : vector<8x1280xf32>
    %c0_6 = arith.constant 0 : index
    %c0_7 = arith.constant 0 : index
    %c0_8 = arith.constant 0 : index
    %8 = vector.load %arg1[%c0_6, %c0_7, %c0_8] : memref<1x8x1280xf32, #tpu.memory_space<vmem>>, vector<1x8x1280xf32>
    %9 = vector.shape_cast %8 : vector<1x8x1280xf32> to vector<8x1280xf32>
    %10 = arith.addf %9, %7 : vector<8x1280xf32>
    %cst = arith.constant 0.000000e+00 : f32
    %11 = vector.broadcast %cst : f32 to vector<8x1280xf32>
    %12 = arith.cmpf ogt, %10, %11 : vector<8x1280xf32>
    %cst_9 = arith.constant 0.000000e+00 : f32
    %13 = vector.broadcast %cst_9 : f32 to vector<8x1280xf32>
    %14 = arith.minimumf %10, %13 : vector<8x1280xf32>
    %15 = math.exp %14 : vector<8x1280xf32>
    %cst_10 = arith.constant 1.000000e+00 : f32
    %16 = vector.broadcast %cst_10 : f32 to vector<8x1280xf32>
    %17 = arith.subf %15, %16 : vector<8x1280xf32>
    %18 = arith.select %12, %10, %17 : vector<8x1280xi1>, vector<8x1280xf32>
    %c0_11 = arith.constant 0 : index
    %c0_12 = arith.constant 0 : index
    %19 = vector.load %arg5[%c0_11, %c0_12] : memref<8x1xf32, #tpu.memory_space<vmem>>, vector<8x1xf32>
    %20 = vector.broadcast %19 : vector<8x1xf32> to vector<8x1280xf32>
    %21 = arith.mulf %18, %20 : vector<8x1280xf32>
    %cst_13 = arith.constant dense<0.000000e+00> : vector<1280xf32>
    %22 = vector.multi_reduction <add>, %21, %cst_13 [0] : vector<8x1280xf32> to vector<1280xf32>
    %23 = vector.shape_cast %22 : vector<1280xf32> to vector<1x1280xf32>
    %c0_14 = arith.constant 0 : index
    %c0_15 = arith.constant 0 : index
    %24 = vector.load %arg6[%c0_14, %c0_15] : memref<1x1xf32, #tpu.memory_space<vmem>>, vector<1x1xf32>
    %25 = vector.broadcast %24 : vector<1x1xf32> to vector<1x1280xf32>
    %26 = arith.addf %23, %25 : vector<1x1280xf32>
    %cst_16 = arith.constant 0.000000e+00 : f32
    %27 = vector.broadcast %cst_16 : f32 to vector<1x1280xf32>
    %28 = arith.subf %27, %26 : vector<1x1280xf32>
    %29 = math.exp %28 : vector<1x1280xf32>
    %cst_17 = arith.constant 1.000000e+00 : f32
    %30 = vector.broadcast %cst_17 : f32 to vector<1x1280xf32>
    %31 = arith.addf %30, %29 : vector<1x1280xf32>
    %cst_18 = arith.constant 1.000000e+00 : f32
    %32 = vector.broadcast %cst_18 : f32 to vector<1x1280xf32>
    %33 = arith.divf %32, %31 : vector<1x1280xf32>
    %cst_19 = arith.constant 1.000000e+00 : f32
    %34 = vector.broadcast %cst_19 : f32 to vector<1x1280xf32>
    %35 = arith.subf %34, %33 : vector<1x1280xf32>
    %36 = tpu.concatenate %35, %33 in 0 : vector<1x1280xf32>, vector<1x1280xf32> -> vector<2x1280xf32>
    %c0_20 = arith.constant 0 : index
    %c0_21 = arith.constant 0 : index
    %c0_22 = arith.constant 0 : index
    %37 = vector.load %arg7[%c0_20, %c0_21, %c0_22] : memref<1x2x1280xf32, #tpu.memory_space<vmem>>, vector<1x2x1280xf32>
    %38 = vector.shape_cast %37 : vector<1x2x1280xf32> to vector<2x1280xf32>
    %39 = vector.shape_cast %36 : vector<2x1280xf32> to vector<1x2x1280xf32>
    tpu.vector_store %arg7[%c0_20, %c0_21, %c0_22], %39 {strides = array<i32>} : memref<1x2x1280xf32, #tpu.memory_space<vmem>>, vector<1x2x1280xf32>,
    return
  }
  func.func @transform_0(%arg0: i32) -> (i32, i32, i32) {
    %c0_i32 = arith.constant 0 : i32
    %c0_i32_0 = arith.constant 0 : i32
    %c0_i32_1 = arith.constant 0 : i32
    return %arg0, %c0_i32, %c0_i32_0 : i32, i32, i32
  }
  func.func @transform_1(%arg0: i32) -> (i32, i32, i32) {
    %c0_i32 = arith.constant 0 : i32
    %c0_i32_0 = arith.constant 0 : i32
    %c0_i32_1 = arith.constant 0 : i32
    return %arg0, %c0_i32, %c0_i32_0 : i32, i32, i32
  }
  func.func @transform_2(%arg0: i32) -> (i32, i32) {
    %c0_i32 = arith.constant 0 : i32
    %c0_i32_0 = arith.constant 0 : i32
    %c0_i32_1 = arith.constant 0 : i32
    return %c0_i32, %c0_i32_0 : i32, i32
  }
  func.func @transform_3(%arg0: i32) -> (i32, i32) {
    %c0_i32 = arith.constant 0 : i32
    %c0_i32_0 = arith.constant 0 : i32
    %c0_i32_1 = arith.constant 0 : i32
    return %c0_i32, %c0_i32_0 : i32, i32
  }
  func.func @transform_4(%arg0: i32) -> (i32, i32) {
    %c0_i32 = arith.constant 0 : i32
    %c0_i32_0 = arith.constant 0 : i32
    %c0_i32_1 = arith.constant 0 : i32
    return %c0_i32, %c0_i32_0 : i32, i32
  }
  func.func @transform_5(%arg0: i32) -> (i32, i32) {
    %c0_i32 = arith.constant 0 : i32
    %c0_i32_0 = arith.constant 0 : i32
    %c0_i32_1 = arith.constant 0 : i32
    return %c0_i32, %c0_i32_0 : i32, i32
  }
  func.func @transform_6(%arg0: i32) -> (i32, i32, i32) {
    %c0_i32 = arith.constant 0 : i32
    %c0_i32_0 = arith.constant 0 : i32
    %c0_i32_1 = arith.constant 0 : i32
    return %arg0, %c0_i32, %c0_i32_0 : i32, i32, i32
  }
}

</mosaic_0001>

<llo_original>
// kernel: tile.8
$region0: #{tile.8}
  #allocation0 [shape = 's32[1]{0}', space=sflag, size = 0x4, scoped, tag = 'scoped memory for tile.8']
  %s0 = inlined_call_operand.vmem [shape: f32[8], index: 0, kind: input, shape index: {}]
  %s1 = inlined_call_operand.vmem [shape: f32[4,8], index: 1, kind: output, shape index: {}]
  // Predicated region
  $region2: #{tile.8} parent=0 // pred_check
    _
  $region3: #{tile.8} parent=0 // pred_check_branch
    %3 = sbr.rel (0) target = $region5
  $region4: #{tile.8} parent=0 // pred_region
    _
  $region5: #{tile.8} parent=0 // pred_fallthru
    _
  %v4 = vld [vmem:[%s0] ss:$0 sm:$0xff]
  %5 = vst [vmem:[%s1] sm:$0xf] %v4

// kernel: tile.0
$region0: #{tile.0}
  %s0 = inlined_call_operand.vmem [shape: f32[4,8], index: 0, kind: input, shape index: {}]
  %s1 = inlined_call_operand.vmem [shape: f32[32,1], index: 1, kind: output, shape index: {}]
  $region1: #{tile.0} parent=0
    #allocation0 [shape = 'u8[4096]{0}', space=vmem, size = 0x1000, scoped, tag = 'scoped mem for input reshape']
    %s3 = sshllo.u32 0, 4
    %v4 = vld [vmem:[%s0] sm:%s3]
    %5 = vst [vmem:[#allocation0] sm:%s3] %v4
    %v6 = vld [vmem:[#allocation0] sm:$0xf]
    %vm7 = vcmask 7168
    %8 = vst.msk [vmem:[%s1] ss:$8 sm:$0xf] %vm7, %v6
    %v9 = vld [vmem:[#allocation0] sm:$0xf]
    %10 = vrot.lane.b32.xlu0 %v9, 127
    %v11 = vpop.permute.xlu0 %10
    %vm12 = vcmask 7168
    %s13 = scalar_lea.vmem %s1, 1
    %14 = vst.msk [vmem:[%s13] ss:$8 sm:$0xf] %vm12, %v11
    %v15 = vld [vmem:[#allocation0] sm:$0xf]
    %16 = vrot.lane.b32.xlu0 %v15, 126
    %v17 = vpop.permute.xlu0 %16
    %vm18 = vcmask 7168
    %s19 = scalar_lea.vmem %s1, 2
    %20 = vst.msk [vmem:[%s19] ss:$8 sm:$0xf] %vm18, %v17
    %v21 = vld [vmem:[#allocation0] sm:$0xf]
    %22 = vrot.lane.b32.xlu0 %v21, 125
    %v23 = vpop.permute.xlu0 %22
    %vm24 = vcmask 7168
    %s25 = scalar_lea.vmem %s1, 3
    %26 = vst.msk [vmem:[%s25] ss:$8 sm:$0xf] %vm24, %v23
    %v27 = vld [vmem:[#allocation0] sm:$0xf]
    %28 = vrot.lane.b32.xlu0 %v27, 124
    %v29 = vpop.permute.xlu0 %28
    %vm30 = vcmask 7168
    %s31 = scalar_lea.vmem %s1, 4
    %32 = vst.msk [vmem:[%s31] ss:$8 sm:$0xf] %vm30, %v29
    %v33 = vld [vmem:[#allocation0] sm:$0xf]
    %34 = vrot.lane.b32.xlu0 %v33, 123
    %v35 = vpop.permute.xlu0 %34
    %vm36 = vcmask 7168
    %s37 = scalar_lea.vmem %s1, 5
    %38 = vst.msk [vmem:[%s37] ss:$8 sm:$0xf] %vm36, %v35
    %v39 = vld [vmem:[#allocation0] sm:$0xf]
    %40 = vrot.lane.b32.xlu0 %v39, 122
    %v41 = vpop.permute.xlu0 %40
    %vm42 = vcmask 7168
    %s43 = scalar_lea.vmem %s1, 6
    %44 = vst.msk [vmem:[%s43] ss:$8 sm:$0xf] %vm42, %v41
    %v45 = vld [vmem:[#allocation0] sm:$0xf]
    %46 = vrot.lane.b32.xlu0 %v45, 121
    %v47 = vpop.permute.xlu0 %46
    %vm48 = vcmask 7168
    %s49 = scalar_lea.vmem %s1, 7
    %50 = vst.msk [vmem:[%s49] ss:$8 sm:$0xf] %vm48, %v47

// kernel: up_transition_forward.4
$region0: #{up_transition_forward.4}
  #allocation0 [shape = 'u32[]', space=smem, size = 0x4, offset = 0x4, fixed_abs, tag = 'smem constant byte address 0x4 - core index']
  #allocation1 [shape = 'u32[144,128]{1,0:T(1,128)}', space=vmem, size = 0x12000, scoped, tag = 'internal scratch']
  %s0 = inlined_call_operand.vmem [shape: f32[2,8,384], index: 0, kind: input, shape index: {}]
  %s1 = inlined_call_operand.vmem [shape: f32[9,32,8], index: 1, kind: input, shape index: {}]
  %s2 = inlined_call_operand.vmem [shape: f32[32,1], index: 2, kind: input, shape index: {}]
  %s3 = inlined_call_operand.vmem [shape: f32[8,1], index: 3, kind: input, shape index: {}, may-alias: {3,4}]
  %s4 = inlined_call_operand.vmem [shape: f32[8,1], index: 4, kind: input, shape index: {}, may-alias: {3,4}]
  %s5 = inlined_call_operand.vmem [shape: f32[1,384], index: 5, kind: input, shape index: {}]
  %s6 = inlined_call_operand.vmem [shape: f32[2,32,384], index: 6, kind: output, shape index: {0}]
  %s7 = inlined_call_operand.vmem [shape: f32[2,32,1], index: 7, kind: output, shape index: {1}]
  %s8 = inlined_call_operand.vmem [shape: f32[2,32,1], index: 8, kind: output, shape index: {2}]
  %9 = xla_tuple %s6, %s7, %s8
  %s10 = sld [smem:[#allocation0]]
  $region73: #{up_transition_forward.4} parent=0
    _
  %s12 = ssub.s32 1, %s10
  %s13 = scalar_select 0, %s12, %s10
  loop: start=0, step=1, limit=4
  $region2: #{up_transition_forward.4} parent=0 // loop_pre_header
    _
  $region3: #{up_transition_forward.4} parent=0 // loop_header
    %s15 = sphi 0, %s19
    %p16 = scmp.ge.s32.totalorder %s15, 4
    %s25 = sphi 0, %s27
    %s28 = sphi 0, %s25
    %s29 = sphi 0, %s28
    %s45 = sphi 0, %s29
    %s49 = sphi 0, %s49
    %s51 = sphi 0, %s49
    %s52 = sphi 0, %s51
    %s66 = sphi 0, %s52
    %s70 = sphi 0, %s70
    %s72 = sphi 0, %s70
    %s73 = sphi 0, %s72
    %s87 = sphi 0, %s73
    %s91 = sphi 0, %s91
    %s93 = sphi 0, %s91
    %s94 = sphi 0, %s93
    %s108 = sphi 0, %s94
    %s112 = sphi 0, %s112
    %s114 = sphi 0, %s112
    %s115 = sphi 0, %s114
    %s129 = sphi 0, %s115
    %s133 = sphi 0, %s133
    %s135 = sphi 0, %s133
    %s136 = sphi 0, %s135
    %s150 = sphi 0, %s136
    %s156 = sphi 0, %s158
    %s159 = sphi 0, %s156
    %s160 = sphi 0, %s159
    %s176 = sphi 0, %s160
    %s182 = sphi 0, %s184
    %s185 = sphi 0, %s182
    %s186 = sphi 0, %s185
    %s202 = sphi 0, %s186
    %s208 = sphi 0, %s210
    %s211 = sphi 0, %s208
    %s212 = sphi 0, %s211
    %s228 = sphi 0, %s212
  $region4: #{up_transition_forward.4} parent=0 // loop_header_branch
    %18 = sbr.rel (%p16) target = $region8
  $region5: #{up_transition_forward.4} parent=0 // loop_body
    %s20 = ssub.s32 %s15, 1
    %s21 = ssub.s32 %s15, 2
    %s22 = sadd.s32 %s15, 1
    %s23 = ssub.s32 %s15, %s22
    %p24 = scmp.eq.s32.totalorder %s23, 0
    %s26 = sadd.s32 %s25, 1
    %s27 = scalar_select %p24, %s25, %s26
    %p30 = pneg %p24
    %p31 = scmp.eq.s32.totalorder %s15, 1
    %p32 = por %p30, %p31
    %p33 = scmp.ne.s32.totalorder %s25, %s28
    %p34 = scmp.eq.s32.totalorder %s15, 0
    %p35 = por %p33, %p34
    %p36 = scmp.ne.s32.totalorder %s25, %s28
    %p37 = scmp.eq.s32.totalorder %s20, 1
    %p38 = por %p36, %p37
    %p39 = scmp.ne.s32.totalorder %s28, %s29
    %p40 = scmp.eq.s32.totalorder %s20, 0
    %p41 = por %p39, %p40
    %p42 = scmp.ne.s32.totalorder %s28, %s29
    %p43 = scmp.eq.s32.totalorder %s21, 1
    %p44 = por %p42, %p43
    %p46 = scmp.ne.s32.totalorder %s29, %s45
    %p47 = scmp.eq.s32.totalorder %s21, 0
    %p48 = por %p46, %p47
    %s50 = sadd.s32 %s49, 1
    %p53 = scmp.eq.s32.totalorder %s15, 1
    %p54 = scmp.ne.s32.totalorder %s49, %s51
    %p55 = scmp.eq.s32.totalorder %s15, 0
    %p56 = por %p54, %p55
    %p57 = scmp.ne.s32.totalorder %s49, %s51
    %p58 = scmp.eq.s32.totalorder %s20, 1
    %p59 = por %p57, %p58
    %p60 = scmp.ne.s32.totalorder %s51, %s52
    %p61 = scmp.eq.s32.totalorder %s20, 0
    %p62 = por %p60, %p61
    %p63 = scmp.ne.s32.totalorder %s51, %s52
    %p64 = scmp.eq.s32.totalorder %s21, 1
    %p65 = por %p63, %p64
    %p67 = scmp.ne.s32.totalorder %s52, %s66
    %p68 = scmp.eq.s32.totalorder %s21, 0
    %p69 = por %p67, %p68
    %s71 = sadd.s32 %s70, 1
    %p74 = scmp.eq.s32.totalorder %s15, 1
    %p75 = scmp.ne.s32.totalorder %s70, %s72
    %p76 = scmp.eq.s32.totalorder %s15, 0
    %p77 = por %p75, %p76
    %p78 = scmp.ne.s32.totalorder %s70, %s72
    %p79 = scmp.eq.s32.totalorder %s20, 1
    %p80 = por %p78, %p79
    %p81 = scmp.ne.s32.totalorder %s72, %s73
    %p82 = scmp.eq.s32.totalorder %s20, 0
    %p83 = por %p81, %p82
    %p84 = scmp.ne.s32.totalorder %s72, %s73
    %p85 = scmp.eq.s32.totalorder %s21, 1
    %p86 = por %p84, %p85
    %p88 = scmp.ne.s32.totalorder %s73, %s87
    %p89 = scmp.eq.s32.totalorder %s21, 0
    %p90 = por %p88, %p89
    %s92 = sadd.s32 %s91, 1
    %p95 = scmp.eq.s32.totalorder %s15, 1
    %p96 = scmp.ne.s32.totalorder %s91, %s93
    %p97 = scmp.eq.s32.totalorder %s15, 0
    %p98 = por %p96, %p97
    %p99 = scmp.ne.s32.totalorder %s91, %s93
    %p100 = scmp.eq.s32.totalorder %s20, 1
    %p101 = por %p99, %p100
    %p102 = scmp.ne.s32.totalorder %s93, %s94
    %p103 = scmp.eq.s32.totalorder %s20, 0
    %p104 = por %p102, %p103
    %p105 = scmp.ne.s32.totalorder %s93, %s94
    %p106 = scmp.eq.s32.totalorder %s21, 1
    %p107 = por %p105, %p106
    %p109 = scmp.ne.s32.totalorder %s94, %s108
    %p110 = scmp.eq.s32.totalorder %s21, 0
    %p111 = por %p109, %p110
    %s113 = sadd.s32 %s112, 1
    %p116 = scmp.eq.s32.totalorder %s15, 1
    %p117 = scmp.ne.s32.totalorder %s112, %s114
    %p118 = scmp.eq.s32.totalorder %s15, 0
    %p119 = por %p117, %p118
    %p120 = scmp.ne.s32.totalorder %s112, %s114
    %p121 = scmp.eq.s32.totalorder %s20, 1
    %p122 = por %p120, %p121
    %p123 = scmp.ne.s32.totalorder %s114, %s115
    %p124 = scmp.eq.s32.totalorder %s20, 0
    %p125 = por %p123, %p124
    %p126 = scmp.ne.s32.totalorder %s114, %s115
    %p127 = scmp.eq.s32.totalorder %s21, 1
    %p128 = por %p126, %p127
    %p130 = scmp.ne.s32.totalorder %s115, %s129
    %p131 = scmp.eq.s32.totalorder %s21, 0
    %p132 = por %p130, %p131
    %s134 = sadd.s32 %s133, 1
    %p137 = scmp.eq.s32.totalorder %s15, 1
    %p138 = scmp.ne.s32.totalorder %s133, %s135
    %p139 = scmp.eq.s32.totalorder %s15, 0
    %p140 = por %p138, %p139
    %p141 = scmp.ne.s32.totalorder %s133, %s135
    %p142 = scmp.eq.s32.totalorder %s20, 1
    %p143 = por %p141, %p142
    %p144 = scmp.ne.s32.totalorder %s135, %s136
    %p145 = scmp.eq.s32.totalorder %s20, 0
    %p146 = por %p144, %p145
    %p147 = scmp.ne.s32.totalorder %s135, %s136
    %p148 = scmp.eq.s32.totalorder %s21, 1
    %p149 = por %p147, %p148
    %p151 = scmp.ne.s32.totalorder %s136, %s150
    %p152 = scmp.eq.s32.totalorder %s21, 0
    %p153 = por %p151, %p152
    %s154 = ssub.s32 %s15, %s22
    %p155 = scmp.eq.s32.totalorder %s154, 0
    %s157 = sadd.s32 %s156, 1
    %s158 = scalar_select %p155, %s156, %s157
    %p161 = pneg %p155
    %p162 = scmp.eq.s32.totalorder %s15, 1
    %p163 = por %p161, %p162
    %p164 = scmp.ne.s32.totalorder %s156, %s159
    %p165 = scmp.eq.s32.totalorder %s15, 0
    %p166 = por %p164, %p165
    %p167 = scmp.ne.s32.totalorder %s156, %s159
    %p168 = scmp.eq.s32.totalorder %s20, 1
    %p169 = por %p167, %p168
    %p170 = scmp.ne.s32.totalorder %s159, %s160
    %p171 = scmp.eq.s32.totalorder %s20, 0
    %p172 = por %p170, %p171
    %p173 = scmp.ne.s32.totalorder %s159, %s160
    %p174 = scmp.eq.s32.totalorder %s21, 1
    %p175 = por %p173, %p174
    %p177 = scmp.ne.s32.totalorder %s160, %s176
    %p178 = scmp.eq.s32.totalorder %s21, 0
    %p179 = por %p177, %p178
    %s180 = ssub.s32 %s15, %s22
    %p181 = scmp.eq.s32.totalorder %s180, 0
    %s183 = sadd.s32 %s182, 1
    %s184 = scalar_select %p181, %s182, %s183
    %p187 = pneg %p181
    %p188 = scmp.eq.s32.totalorder %s15, 1
    %p189 = por %p187, %p188
    %p190 = scmp.ne.s32.totalorder %s182, %s185
    %p191 = scmp.eq.s32.totalorder %s15, 0
    %p192 = por %p190, %p191
    %p193 = scmp.ne.s32.totalorder %s182, %s185
    %p194 = scmp.eq.s32.totalorder %s20, 1
    %p195 = por %p193, %p194
    %p196 = scmp.ne.s32.totalorder %s185, %s186
    %p197 = scmp.eq.s32.totalorder %s20, 0
    %p198 = por %p196, %p197
    %p199 = scmp.ne.s32.totalorder %s185, %s186
    %p200 = scmp.eq.s32.totalorder %s21, 1
    %p201 = por %p199, %p200
    %p203 = scmp.ne.s32.totalorder %s186, %s202
    %p204 = scmp.eq.s32.totalorder %s21, 0
    %p205 = por %p203, %p204
    %s206 = ssub.s32 %s15, %s22
    %p207 = scmp.eq.s32.totalorder %s206, 0
    %s209 = sadd.s32 %s208, 1
    %s210 = scalar_select %p207, %s208, %s209
    %p213 = pneg %p207
    %p214 = scmp.eq.s32.totalorder %s15, 1
    %p215 = por %p213, %p214
    %p216 = scmp.ne.s32.totalorder %s208, %s211
    %p217 = scmp.eq.s32.totalorder %s15, 0
    %p218 = por %p216, %p217
    %p219 = scmp.ne.s32.totalorder %s208, %s211
    %p220 = scmp.eq.s32.totalorder %s20, 1
    %p221 = por %p219, %p220
    %p222 = scmp.ne.s32.totalorder %s211, %s212
    %p223 = scmp.eq.s32.totalorder %s20, 0
    %p224 = por %p222, %p223
    %p225 = scmp.ne.s32.totalorder %s211, %s212
    %p226 = scmp.eq.s32.totalorder %s21, 1
    %p227 = por %p225, %p226
    %p229 = scmp.ne.s32.totalorder %s212, %s228
    %p230 = scmp.eq.s32.totalorder %s21, 0
    %p231 = por %p229, %p230
    %p232 = scmp.le.s32.totalorder 1, %s15
    %p233 = scmp.lt.s32.totalorder %s15, 3
    %p234 = pnand %p232, %p233
    %p235 = pneg %p234
    // Predicated region
    $region9: #{up_transition_forward.4} parent=5 // pred_check
      _
    $region10: #{up_transition_forward.4} parent=5 // pred_check_branch
      %237 = sbr.rel (%p234) target = $region12
    $region11: #{up_transition_forward.4} parent=5 // pred_region
      %s238 = ssub.s32 %s15, 1
      // Predicated region
      $region13: #{up_transition_forward.4} parent=11 // pred_check
        %p239 = pneg %p62
      $region14: #{up_transition_forward.4} parent=11 // pred_check_branch
        %241 = sbr.rel (%p239) target = $region16
      $region15: #{up_transition_forward.4} parent=11 // pred_region
        _
      $region16: #{up_transition_forward.4} parent=11 // pred_fallthru
        _
      // Predicated region
      $region17: #{up_transition_forward.4} parent=11 // pred_check
        %p242 = pneg %p83
      $region18: #{up_transition_forward.4} parent=11 // pred_check_branch
        %244 = sbr.rel (%p242) target = $region20
      $region19: #{up_transition_forward.4} parent=11 // pred_region
        _
      $region20: #{up_transition_forward.4} parent=11 // pred_fallthru
        _
      // Predicated region
      $region21: #{up_transition_forward.4} parent=11 // pred_check
        %p245 = pneg %p104
      $region22: #{up_transition_forward.4} parent=11 // pred_check_branch
        %247 = sbr.rel (%p245) target = $region24
      $region23: #{up_transition_forward.4} parent=11 // pred_region
        _
      $region24: #{up_transition_forward.4} parent=11 // pred_fallthru
        _
      // Predicated region
      $region25: #{up_transition_forward.4} parent=11 // pred_check
        %p248 = pneg %p125
      $region26: #{up_transition_forward.4} parent=11 // pred_check_branch
        %250 = sbr.rel (%p248) target = $region28
      $region27: #{up_transition_forward.4} parent=11 // pred_region
        _
      $region28: #{up_transition_forward.4} parent=11 // pred_fallthru
        _
      // Predicated region
      $region29: #{up_transition_forward.4} parent=11 // pred_check
        %p251 = pneg %p146
      $region30: #{up_transition_forward.4} parent=11 // pred_check_branch
        %253 = sbr.rel (%p251) target = $region32
      $region31: #{up_transition_forward.4} parent=11 // pred_region
        _
      $region32: #{up_transition_forward.4} parent=11 // pred_fallthru
        _
    $region12: #{up_transition_forward.4} parent=5 // pred_fallthru
      _
    %p254 = scmp.lt.s32.totalorder %s15, 2
    // Predicated region
    $region33: #{up_transition_forward.4} parent=5 // pred_check
      %p255 = pneg %p254
    $region34: #{up_transition_forward.4} parent=5 // pred_check_branch
      %257 = sbr.rel (%p255) target = $region36
    $region35: #{up_transition_forward.4} parent=5 // pred_region
      // Predicated region
      $region37: #{up_transition_forward.4} parent=35 // pred_check
        %p258 = pneg %p35
      $region38: #{up_transition_forward.4} parent=35 // pred_check_branch
        %260 = sbr.rel (%p258) target = $region40
      $region39: #{up_transition_forward.4} parent=35 // pred_region
        %p261 = scmp.lt.s32.totalorder %s15, 1
        %s262 = scalar_select %p261, %s15, 1
        %s263 = smul.addr %s262, 3
        %s264 = smul.addr %s263, 8
        %s265 = scalar_lea.vmem %s0, %s264
      $region40: #{up_transition_forward.4} parent=35 // pred_fallthru
        _
    $region36: #{up_transition_forward.4} parent=5 // pred_fallthru
      _
    %p266 = scmp.le.s32.totalorder 1, %s15
    %p267 = scmp.lt.s32.totalorder %s15, 3
    %p268 = pnand %p266, %p267
    %p269 = pneg %p268
    // Predicated region
    $region41: #{up_transition_forward.4} parent=5 // pred_check
      _
    $region42: #{up_transition_forward.4} parent=5 // pred_check_branch
      %271 = sbr.rel (%p268) target = $region44
    $region43: #{up_transition_forward.4} parent=5 // pred_region
      %s272 = ssub.s32 %s15, 1
      %p273 = scmp.lt.s32.totalorder %s20, 1
      %s274 = scalar_select %p273, %s20, 1
      %s275 = smul.addr %s274, 3
      %s276 = smul.addr %s275, 8
      %s277 = scalar_lea.vmem %s0, %s276
      %p278 = pneg %p41
      %p279 = pneg %p38
      %p280 = pneg %p62
      %p281 = pneg %p59
      %p282 = pneg %p83
      %p283 = pneg %p80
      %p284 = pneg %p104
      %p285 = pneg %p101
      %p286 = pneg %p125
      %p287 = pneg %p122
      %p288 = pneg %p146
      %p289 = pneg %p143
      %p290 = pneg %p172
      %p291 = pneg %p169
      %p292 = scmp.lt.s32.totalorder %s20, 1
      %s293 = scalar_select %p292, %s20, 1
      %s294 = smul.addr %s293, 12
      %s295 = smul.addr %s294, 8
      %s296 = scalar_lea.vmem %s6, %s295
      %p297 = pneg %p198
      %p298 = pneg %p195
      %p299 = scmp.lt.s32.totalorder %s20, 1
      %s300 = scalar_select %p299, %s20, 1
      %s301 = smul.addr %s300, 4
      %s302 = smul.addr %s301, 8
      %s303 = scalar_lea.vmem %s7, %s302
      %p304 = pneg %p224
      %p305 = pneg %p221
      %p306 = scmp.lt.s32.totalorder %s20, 1
      %s307 = scalar_select %p306, %s20, 1
      %s308 = smul.addr %s307, 4
      %s309 = smul.addr %s308, 8
      %s310 = scalar_lea.vmem %s8, %s309
      %p311 = scmp.lt.s32.totalorder %s20, 1
      %s312 = scalar_select %p311, %s20, 1
      %s313 = smul.addr %s312, 3
      %s314 = smul.addr %s313, 8
      %s315 = scalar_lea.vmem %s0, %s314
      %p316 = scmp.lt.s32.totalorder %s20, 1
      %s317 = scalar_select %p316, %s20, 1
      %s318 = smul.addr %s317, 12
      %s319 = smul.addr %s318, 8
      %s320 = scalar_lea.vmem %s6, %s319
      %p321 = scmp.lt.s32.totalorder %s20, 1
      %s322 = scalar_select %p321, %s20, 1
      %s323 = smul.addr %s322, 4
      %s324 = smul.addr %s323, 8
      %s325 = scalar_lea.vmem %s7, %s324
      %p326 = scmp.lt.s32.totalorder %s20, 1
      %s327 = scalar_select %p326, %s20, 1
      %s328 = smul.addr %s327, 4
      %s329 = smul.addr %s328, 8
      %s330 = scalar_lea.vmem %s8, %s329
      %v331 = vld [vmem:[%s315] sm:$0xff]
      %v332 = vld [vmem:[%s315 + $0x8] sm:$0xff]
      %v333 = vld [vmem:[%s315 + $0x10] sm:$0xff]
      %v334 = vld [vmem:[%s5] sm:$0x7]
      %v335 = vld [vmem:[%s1] sm:$0xff]
      %v336 = vld [vmem:[%s1 + $0x8] sm:$0xff]
      %v337 = vld [vmem:[%s1 + $0x10] sm:$0xff]
      %v338 = vld [vmem:[%s1 + $0x18] sm:$0xff]
      %339 = vrot.lane.b32.xlu0 %v331, 127
      %v340 = vpop.permute.xlu0 %339
      %341 = vrot.lane.b32.xlu0 %v332, 127
      %v342 = vpop.permute.xlu0 %341
      %343 = vrot.lane.b32.xlu0 %v333, 127
      %v344 = vpop.permute.xlu0 %343
      %v345 = vlaneseq
      %v346 = vand.u32 %v345, 127
      %vm347 = vcmp.lt.s32.totalorder %v346, 127
      %v348 = vsel %vm347, %v342, %v344
      %v349 = vsel %vm347, %v340, %v342
      %v350 = vsel %vm347, %v344, %v340
      %s351 = scalar_lea.vmem %s1, 32
      %v352 = vld [vmem:[%s351] sm:$0xff]
      %v353 = vld [vmem:[%s351 + $0x8] sm:$0xff]
      %v354 = vld [vmem:[%s351 + $0x10] sm:$0xff]
      %v355 = vld [vmem:[%s351 + $0x18] sm:$0xff]
      %vm356 = vcmask 64512
      %v358 = vsel %vm356, %v352, 0
      %v361 = vsel %vm356, %v353, 0
      %v364 = vsel %vm356, %v354, 0
      %v367 = vsel %vm356, %v355, 0
      %369 = vmatprep.subr.mxu0 %v348
      %370 = vmatpush1.msra.mxu0 %v349
      %371 = vmatprep.subr.mxu0 0.0
      %372 = vmatpush1.msra.mxu0 0.0
      %373 = vmatprep.subr.mxu0 0.0
      %374 = vmatpush1.msra.mxu0 0.0
      %375 = vmatprep.subr.mxu0 0.0
      %376 = vmatpush1.msra.mxu0 0.0
      %377 = vmatprep.subr.mxu0 0.0
      %378 = vmatpush1.msra.mxu0 0.0
      %379 = vmatprep.subr.mxu0 0.0
      %380 = vmatpush1.msra.mxu0 0.0
      %381 = vmatprep.subr.mxu0 0.0
      %382 = vmatpush1.msra.mxu0 0.0
      %383 = vmatprep.subr.mxu0 0.0
      %384 = vmatpush1.msra.mxu0 0.0
      %385 = vmatprep.subr.mxu0 0.0
      %386 = vmatpush1.msra.mxu0 0.0
      %387 = vmatprep.subr.mxu0 0.0
      %388 = vmatpush1.msra.mxu0 0.0
      %389 = vmatprep.subr.mxu0 0.0
      %390 = vmatpush1.msra.mxu0 0.0
      %391 = vmatprep.subr.mxu0 0.0
      %392 = vmatpush1.msra.mxu0 0.0
      %393 = vmatprep.subr.mxu0 0.0
      %394 = vmatpush1.msra.mxu0 0.0
      %395 = vmatprep.subr.mxu0 0.0
      %396 = vmatpush1.msra.mxu0 0.0
      %397 = vmatprep.subr.mxu0 0.0
      %398 = vmatpush1.msra.mxu0 0.0
      %399 = vmatprep.subr.mxu0 0.0
      %400 = vmatpush1.msra.mxu0 0.0
      %401 = vmatprep.subr.mxu0 0.0
      %402 = vmatpush1.msra.mxu0 0.0
      %403 = vmatprep.subr.mxu0 0.0
      %404 = vmatpush1.msra.mxu0 0.0
      %405 = vmatprep.subr.mxu0 0.0
      %406 = vmatpush1.msra.mxu0 0.0
      %407 = vmatprep.subr.mxu0 0.0
      %408 = vmatpush1.msra.mxu0 0.0
      %409 = vmatprep.subr.mxu0 0.0
      %410 = vmatpush1.msra.mxu0 0.0
      %411 = vmatprep.subr.mxu0 0.0
      %412 = vmatpush1.msra.mxu0 0.0
      %413 = vmatprep.subr.mxu0 0.0
      %414 = vmatpush1.msra.mxu0 0.0
      %415 = vmatprep.subr.mxu0 0.0
      %416 = vmatpush1.msra.mxu0 0.0
      %417 = vmatprep.subr.mxu0 0.0
      %418 = vmatpush1.msra.mxu0 0.0
      %419 = vmatprep.subr.mxu0 0.0
      %420 = vmatpush1.msra.mxu0 0.0
      %421 = vmatprep.subr.mxu0 0.0
      %422 = vmatpush1.msra.mxu0 0.0
      %423 = vmatprep.subr.mxu0 0.0
      %424 = vmatpush1.msra.mxu0 0.0
      %425 = vmatprep.subr.mxu0 0.0
      %426 = vmatpush1.msra.mxu0 0.0
      %427 = vmatprep.subr.mxu0 0.0
      %428 = vmatpush1.msra.mxu0 0.0
      %429 = vmatprep.subr.mxu0 0.0
      %430 = vmatpush1.msra.mxu0 0.0
      %431 = vmatprep.subr.mxu0 0.0
      %432 = vmatpush1.msra.mxu0 0.0
      %433 = vmatprep.mubr.f32.mxu0 0.0
      %434 = vmatmul.mubr.f32.gmra.mrb[0].mxu0 %v358
      %v435 = vpop.f32.mrb[0].mxu0
      %v436 = vadd.f32 0.0, %v435
      %v437 = vpop.f32.mrb[0].mxu0
      %v438 = vadd.f32 0.0, %v437
      %439 = vmatprep.mubr.f32.mxu0 0.0
      %440 = vmatmul.mubr.f32.gmra.mrb[0].mxu0 %v361
      %v441 = vpop.f32.mrb[0].mxu0
      %v442 = vadd.f32 0.0, %v441
      %v443 = vpop.f32.mrb[0].mxu0
      %v444 = vadd.f32 0.0, %v443
      %445 = vmatprep.mubr.f32.mxu0 0.0
      %446 = vmatmul.mubr.f32.gmra.mrb[0].mxu0 %v364
      %v447 = vpop.f32.mrb[0].mxu0
      %v448 = vadd.f32 0.0, %v447
      %v449 = vpop.f32.mrb[0].mxu0
      %v450 = vadd.f32 0.0, %v449
      %451 = vmatprep.mubr.f32.mxu0 0.0
      %452 = vmatmul.mubr.f32.gmra.mrb[0].mxu0 %v367
      %v453 = vpop.f32.mrb[0].mxu0
      %v454 = vadd.f32 0.0, %v453
      %v455 = vpop.f32.mrb[0].mxu0
      %v456 = vadd.f32 0.0, %v455
      %457 = vdwg.mxu0
      %458 = vmatprep.subr.mxu0 0.0
      %459 = vmatpush1.msra.mxu0 %v350
      %460 = vmatprep.subr.mxu0 0.0
      %461 = vmatpush1.msra.mxu0 0.0
      %462 = vmatprep.subr.mxu0 0.0
      %463 = vmatpush1.msra.mxu0 0.0
      %464 = vmatprep.subr.mxu0 0.0
      %465 = vmatpush1.msra.mxu0 0.0
      %466 = vmatprep.subr.mxu0 0.0
      %467 = vmatpush1.msra.mxu0 0.0
      %468 = vmatprep.subr.mxu0 0.0
      %469 = vmatpush1.msra.mxu0 0.0
      %470 = vmatprep.subr.mxu0 0.0
      %471 = vmatpush1.msra.mxu0 0.0
      %472 = vmatprep.subr.mxu0 0.0
      %473 = vmatpush1.msra.mxu0 0.0
      %474 = vmatprep.subr.mxu0 0.0
      %475 = vmatpush1.msra.mxu0 0.0
      %476 = vmatprep.subr.mxu0 0.0
      %477 = vmatpush1.msra.mxu0 0.0
      %478 = vmatprep.subr.mxu0 0.0
      %479 = vmatpush1.msra.mxu0 0.0
      %480 = vmatprep.subr.mxu0 0.0
      %481 = vmatpush1.msra.mxu0 0.0
      %482 = vmatprep.subr.mxu0 0.0
      %483 = vmatpush1.msra.mxu0 0.0
      %484 = vmatprep.subr.mxu0 0.0
      %485 = vmatpush1.msra.mxu0 0.0
      %486 = vmatprep.subr.mxu0 0.0
      %487 = vmatpush1.msra.mxu0 0.0
      %488 = vmatprep.subr.mxu0 0.0
      %489 = vmatpush1.msra.mxu0 0.0
      %490 = vmatprep.subr.mxu0 0.0
      %491 = vmatpush1.msra.mxu0 0.0
      %492 = vmatprep.subr.mxu0 0.0
      %493 = vmatpush1.msra.mxu0 0.0
      %494 = vmatprep.subr.mxu0 0.0
      %495 = vmatpush1.msra.mxu0 0.0
      %496 = vmatprep.subr.mxu0 0.0
      %497 = vmatpush1.msra.mxu0 0.0
      %498 = vmatprep.subr.mxu0 0.0
      %499 = vmatpush1.msra.mxu0 0.0
      %500 = vmatprep.subr.mxu0 0.0
      %501 = vmatpush1.msra.mxu0 0.0
      %502 = vmatprep.subr.mxu0 0.0
      %503 = vmatpush1.msra.mxu0 0.0
      %504 = vmatprep.subr.mxu0 0.0
      %505 = vmatpush1.msra.mxu0 0.0
      %506 = vmatprep.subr.mxu0 0.0
      %507 = vmatpush1.msra.mxu0 0.0
      %508 = vmatprep.subr.mxu0 0.0
      %509 = vmatpush1.msra.mxu0 0.0
      %510 = vmatprep.subr.mxu0 0.0
      %511 = vmatpush1.msra.mxu0 0.0
      %512 = vmatprep.subr.mxu0 0.0
      %513 = vmatpush1.msra.mxu0 0.0
      %514 = vmatprep.subr.mxu0 0.0
      %515 = vmatpush1.msra.mxu0 0.0
      %516 = vmatprep.subr.mxu0 0.0
      %517 = vmatpush1.msra.mxu0 0.0
      %518 = vmatprep.subr.mxu0 0.0
      %519 = vmatpush1.msra.mxu0 0.0
      %520 = vmatprep.subr.mxu0 0.0
      %521 = vmatpush1.msra.mxu0 0.0
      %522 = vmatprep.mubr.f32.mxu0 0.0
      %523 = vmatmul.mubr.f32.gmra.mrb[0].mxu0 %v358
      %v524 = vpop.f32.mrb[0].mxu0
      %v525 = vadd.f32 0.0, %v524
      %v526 = vpop.f32.mrb[0].mxu0
      %527 = vmatprep.mubr.f32.mxu0 0.0
      %528 = vmatmul.mubr.f32.gmra.mrb[0].mxu0 %v361
      %v529 = vpop.f32.mrb[0].mxu0
      %v530 = vadd.f32 0.0, %v529
      %v531 = vpop.f32.mrb[0].mxu0
      %532 = vmatprep.mubr.f32.mxu0 0.0
      %533 = vmatmul.mubr.f32.gmra.mrb[0].mxu0 %v364
      %v534 = vpop.f32.mrb[0].mxu0
      %v535 = vadd.f32 0.0, %v534
      %v536 = vpop.f32.mrb[0].mxu0
      %537 = vmatprep.mubr.f32.mxu0 0.0
      %538 = vmatmul.mubr.f32.gmra.mrb[0].mxu0 %v367
      %v539 = vpop.f32.mrb[0].mxu0
      %v540 = vadd.f32 0.0, %v539
      %v541 = vpop.f32.mrb[0].mxu0
      %542 = vdwg.mxu0
      %v544 = vsel %vm356, %v335, 0
      %v547 = vsel %vm356, %v336, 0
      %v550 = vsel %vm356, %v337, 0
      %v553 = vsel %vm356, %v338, 0
      %555 = vmatprep.subr.mxu0 %v332
      %556 = vmatpush1.msra.mxu0 %v331
      %557 = vmatprep.subr.mxu0 0.0
      %558 = vmatpush1.msra.mxu0 0.0
      %559 = vmatprep.subr.mxu0 0.0
      %560 = vmatpush1.msra.mxu0 0.0
      %561 = vmatprep.subr.mxu0 0.0
      %562 = vmatpush1.msra.mxu0 0.0
      %563 = vmatprep.subr.mxu0 0.0
      %564 = vmatpush1.msra.mxu0 0.0
      %565 = vmatprep.subr.mxu0 0.0
      %566 = vmatpush1.msra.mxu0 0.0
      %567 = vmatprep.subr.mxu0 0.0
      %568 = vmatpush1.msra.mxu0 0.0
      %569 = vmatprep.subr.mxu0 0.0
      %570 = vmatpush1.msra.mxu0 0.0
      %571 = vmatprep.subr.mxu0 0.0
      %572 = vmatpush1.msra.mxu0 0.0
      %573 = vmatprep.subr.mxu0 0.0
      %574 = vmatpush1.msra.mxu0 0.0
      %575 = vmatprep.subr.mxu0 0.0
      %576 = vmatpush1.msra.mxu0 0.0
      %577 = vmatprep.subr.mxu0 0.0
      %578 = vmatpush1.msra.mxu0 0.0
      %579 = vmatprep.subr.mxu0 0.0
      %580 = vmatpush1.msra.mxu0 0.0
      %581 = vmatprep.subr.mxu0 0.0
      %582 = vmatpush1.msra.mxu0 0.0
      %583 = vmatprep.subr.mxu0 0.0
      %584 = vmatpush1.msra.mxu0 0.0
      %585 = vmatprep.subr.mxu0 0.0
      %586 = vmatpush1.msra.mxu0 0.0
      %587 = vmatprep.subr.mxu0 0.0
      %588 = vmatpush1.msra.mxu0 0.0
      %589 = vmatprep.subr.mxu0 0.0
      %590 = vmatpush1.msra.mxu0 0.0
      %591 = vmatprep.subr.mxu0 0.0
      %592 = vmatpush1.msra.mxu0 0.0
      %593 = vmatprep.subr.mxu0 0.0
      %594 = vmatpush1.msra.mxu0 0.0
      %595 = vmatprep.subr.mxu0 0.0
      %596 = vmatpush1.msra.mxu0 0.0
      %597 = vmatprep.subr.mxu0 0.0
      %598 = vmatpush1.msra.mxu0 0.0
      %599 = vmatprep.subr.mxu0 0.0
      %600 = vmatpush1.msra.mxu0 0.0
      %601 = vmatprep.subr.mxu0 0.0
      %602 = vmatpush1.msra.mxu0 0.0
      %603 = vmatprep.subr.mxu0 0.0
      %604 = vmatpush1.msra.mxu0 0.0
      %605 = vmatprep.subr.mxu0 0.0
      %606 = vmatpush1.msra.mxu0 0.0
      %607 = vmatprep.subr.mxu0 0.0
      %608 = vmatpush1.msra.mxu0 0.0
      %609 = vmatprep.subr.mxu0 0.0
      %610 = vmatpush1.msra.mxu0 0.0
      %611 = vmatprep.subr.mxu0 0.0
      %612 = vmatpush1.msra.mxu0 0.0
      %613 = vmatprep.subr.mxu0 0.0
      %614 = vmatpush1.msra.mxu0 0.0
      %615 = vmatprep.subr.mxu0 0.0
      %616 = vmatpush1.msra.mxu0 0.0
      %617 = vmatprep.subr.mxu0 0.0
      %618 = vmatpush1.msra.mxu0 0.0
      %619 = vmatprep.mubr.f32.mxu0 0.0
      %620 = vmatmul.mubr.f32.gmra.mrb[0].mxu0 %v544
      %v621 = vpop.f32.mrb[0].mxu0
      %v622 = vadd.f32 %v436, %v621
      %v623 = vpop.f32.mrb[0].mxu0
      %v624 = vadd.f32 %v438, %v623
      %625 = vmatprep.mubr.f32.mxu0 0.0
      %626 = vmatmul.mubr.f32.gmra.mrb[0].mxu0 %v547
      %v627 = vpop.f32.mrb[0].mxu0
      %v628 = vadd.f32 %v442, %v627
      %v629 = vpop.f32.mrb[0].mxu0
      %v630 = vadd.f32 %v444, %v629
      %631 = vmatprep.mubr.f32.mxu0 0.0
      %632 = vmatmul.mubr.f32.gmra.mrb[0].mxu0 %v550
      %v633 = vpop.f32.mrb[0].mxu0
      %v634 = vadd.f32 %v448, %v633
      %v635 = vpop.f32.mrb[0].mxu0
      %v636 = vadd.f32 %v450, %v635
      %637 = vmatprep.mubr.f32.mxu0 0.0
      %638 = vmatmul.mubr.f32.gmra.mrb[0].mxu0 %v553
      %v639 = vpop.f32.mrb[0].mxu0
      %v640 = vadd.f32 %v454, %v639
      %v641 = vpop.f32.mrb[0].mxu0
      %v642 = vadd.f32 %v456, %v641
      %643 = vdwg.mxu0
      %644 = vmatprep.subr.mxu0 0.0
      %645 = vmatpush1.msra.mxu0 %v333
      %646 = vmatprep.subr.mxu0 0.0
      %647 = vmatpush1.msra.mxu0 0.0
      %648 = vmatprep.subr.mxu0 0.0
      %649 = vmatpush1.msra.mxu0 0.0
      %650 = vmatprep.subr.mxu0 0.0
      %651 = vmatpush1.msra.mxu0 0.0
      %652 = vmatprep.subr.mxu0 0.0
      %653 = vmatpush1.msra.mxu0 0.0
      %654 = vmatprep.subr.mxu0 0.0
      %655 = vmatpush1.msra.mxu0 0.0
      %656 = vmatprep.subr.mxu0 0.0
      %657 = vmatpush1.msra.mxu0 0.0
      %658 = vmatprep.subr.mxu0 0.0
      %659 = vmatpush1.msra.mxu0 0.0
      %660 = vmatprep.subr.mxu0 0.0
      %661 = vmatpush1.msra.mxu0 0.0
      %662 = vmatprep.subr.mxu0 0.0
      %663 = vmatpush1.msra.mxu0 0.0
      %664 = vmatprep.subr.mxu0 0.0
      %665 = vmatpush1.msra.mxu0 0.0
      %666 = vmatprep.subr.mxu0 0.0
      %667 = vmatpush1.msra.mxu0 0.0
      %668 = vmatprep.subr.mxu0 0.0
      %669 = vmatpush1.msra.mxu0 0.0
      %670 = vmatprep.subr.mxu0 0.0
      %671 = vmatpush1.msra.mxu0 0.0
      %672 = vmatprep.subr.mxu0 0.0
      %673 = vmatpush1.msra.mxu0 0.0
      %674 = vmatprep.subr.mxu0 0.0
      %675 = vmatpush1.msra.mxu0 0.0
      %676 = vmatprep.subr.mxu0 0.0
      %677 = vmatpush1.msra.mxu0 0.0
      %678 = vmatprep.subr.mxu0 0.0
      %679 = vmatpush1.msra.mxu0 0.0
      %680 = vmatprep.subr.mxu0 0.0
      %681 = vmatpush1.msra.mxu0 0.0
      %682 = vmatprep.subr.mxu0 0.0
      %683 = vmatpush1.msra.mxu0 0.0
      %684 = vmatprep.subr.mxu0 0.0
      %685 = vmatpush1.msra.mxu0 0.0
      %686 = vmatprep.subr.mxu0 0.0
      %687 = vmatpush1.msra.mxu0 0.0
      %688 = vmatprep.subr.mxu0 0.0
      %689 = vmatpush1.msra.mxu0 0.0
      %690 = vmatprep.subr.mxu0 0.0
      %691 = vmatpush1.msra.mxu0 0.0
      %692 = vmatprep.subr.mxu0 0.0
      %693 = vmatpush1.msra.mxu0 0.0
      %694 = vmatprep.subr.mxu0 0.0
      %695 = vmatpush1.msra.mxu0 0.0
      %696 = vmatprep.subr.mxu0 0.0
      %697 = vmatpush1.msra.mxu0 0.0
      %698 = vmatprep.subr.mxu0 0.0
      %699 = vmatpush1.msra.mxu0 0.0
      %700 = vmatprep.subr.mxu0 0.0
      %701 = vmatpush1.msra.mxu0 0.0
      %702 = vmatprep.subr.mxu0 0.0
      %703 = vmatpush1.msra.mxu0 0.0
      %704 = vmatprep.subr.mxu0 0.0
      %705 = vmatpush1.msra.mxu0 0.0
      %706 = vmatprep.subr.mxu0 0.0
      %707 = vmatpush1.msra.mxu0 0.0
      %708 = vmatprep.mubr.f32.mxu0 0.0
      %709 = vmatmul.mubr.f32.gmra.mrb[0].mxu0 %v544
      %v710 = vpop.f32.mrb[0].mxu0
      %v711 = vadd.f32 %v525, %v710
      %v712 = vpop.f32.mrb[0].mxu0
      %713 = vmatprep.mubr.f32.mxu0 0.0
      %714 = vmatmul.mubr.f32.gmra.mrb[0].mxu0 %v547
      %v715 = vpop.f32.mrb[0].mxu0
      %v716 = vadd.f32 %v530, %v715
      %v717 = vpop.f32.mrb[0].mxu0
      %718 = vmatprep.mubr.f32.mxu0 0.0
      %719 = vmatmul.mubr.f32.gmra.mrb[0].mxu0 %v550
      %v720 = vpop.f32.mrb[0].mxu0
      %v721 = vadd.f32 %v535, %v720
      %v722 = vpop.f32.mrb[0].mxu0
      %723 = vmatprep.mubr.f32.mxu0 0.0
      %724 = vmatmul.mubr.f32.gmra.mrb[0].mxu0 %v553
      %v725 = vpop.f32.mrb[0].mxu0
      %v726 = vadd.f32 %v540, %v725
      %v727 = vpop.f32.mrb[0].mxu0
      %728 = vdwg.mxu0
      %729 = vrot.lane.b32.xlu0 %v331, 126
      %v730 = vpop.permute.xlu0 %729
      %731 = vrot.lane.b32.xlu0 %v332, 126
      %v732 = vpop.permute.xlu0 %731
      %733 = vrot.lane.b32.xlu0 %v333, 126
      %v734 = vpop.permute.xlu0 %733
      %vm735 = vcmp.lt.s32.totalorder %v346, 126
      %v736 = vsel %vm735, %v732, %v734
      %v737 = vsel %vm735, %v730, %v732
      %v738 = vsel %vm735, %v734, %v730
      %s739 = scalar_lea.vmem %s1, 64
      %v740 = vld [vmem:[%s739] sm:$0xff]
      %v741 = vld [vmem:[%s739 + $0x8] sm:$0xff]
      %v742 = vld [vmem:[%s739 + $0x10] sm:$0xff]
      %v743 = vld [vmem:[%s739 + $0x18] sm:$0xff]
      %v745 = vsel %vm356, %v740, 0
      %v748 = vsel %vm356, %v741, 0
      %v751 = vsel %vm356, %v742, 0
      %v754 = vsel %vm356, %v743, 0
      %756 = vmatprep.subr.mxu0 %v736
      %757 = vmatpush1.msra.mxu0 %v737
      %758 = vmatprep.subr.mxu0 0.0
      %759 = vmatpush1.msra.mxu0 0.0
      %760 = vmatprep.subr.mxu0 0.0
      %761 = vmatpush1.msra.mxu0 0.0
      %762 = vmatprep.subr.mxu0 0.0
      %763 = vmatpush1.msra.mxu0 0.0
      %764 = vmatprep.subr.mxu0 0.0
      %765 = vmatpush1.msra.mxu0 0.0
      %766 = vmatprep.subr.mxu0 0.0
      %767 = vmatpush1.msra.mxu0 0.0
      %768 = vmatprep.subr.mxu0 0.0
      %769 = vmatpush1.msra.mxu0 0.0
      %770 = vmatprep.subr.mxu0 0.0
      %771 = vmatpush1.msra.mxu0 0.0
      %772 = vmatprep.subr.mxu0 0.0
      %773 = vmatpush1.msra.mxu0 0.0
      %774 = vmatprep.subr.mxu0 0.0
      %775 = vmatpush1.msra.mxu0 0.0
      %776 = vmatprep.subr.mxu0 0.0
      %777 = vmatpush1.msra.mxu0 0.0
      %778 = vmatprep.subr.mxu0 0.0
      %779 = vmatpush1.msra.mxu0 0.0
      %780 = vmatprep.subr.mxu0 0.0
      %781 = vmatpush1.msra.mxu0 0.0
      %782 = vmatprep.subr.mxu0 0.0
      %783 = vmatpush1.msra.mxu0 0.0
      %784 = vmatprep.subr.mxu0 0.0
      %785 = vmatpush1.msra.mxu0 0.0
      %786 = vmatprep.subr.mxu0 0.0
      %787 = vmatpush1.msra.mxu0 0.0
      %788 = vmatprep.subr.mxu0 0.0
      %789 = vmatpush1.msra.mxu0 0.0
      %790 = vmatprep.subr.mxu0 0.0
      %791 = vmatpush1.msra.mxu0 0.0
      %792 = vmatprep.subr.mxu0 0.0
      %793 = vmatpush1.msra.mxu0 0.0
      %794 = vmatprep.subr.mxu0 0.0
      %795 = vmatpush1.msra.mxu0 0.0
      %796 = vmatprep.subr.mxu0 0.0
      %797 = vmatpush1.msra.mxu0 0.0
      %798 = vmatprep.subr.mxu0 0.0
      %799 = vmatpush1.msra.mxu0 0.0
      %800 = vmatprep.subr.mxu0 0.0
      %801 = vmatpush1.msra.mxu0 0.0
      %802 = vmatprep.subr.mxu0 0.0
      %803 = vmatpush1.msra.mxu0 0.0
      %804 = vmatprep.subr.mxu0 0.0
      %805 = vmatpush1.msra.mxu0 0.0
      %806 = vmatprep.subr.mxu0 0.0
      %807 = vmatpush1.msra.mxu0 0.0
      %808 = vmatprep.subr.mxu0 0.0
      %809 = vmatpush1.msra.mxu0 0.0
      %810 = vmatprep.subr.mxu0 0.0
      %811 = vmatpush1.msra.mxu0 0.0
      %812 = vmatprep.subr.mxu0 0.0
      %813 = vmatpush1.msra.mxu0 0.0
      %814 = vmatprep.subr.mxu0 0.0
      %815 = vmatpush1.msra.mxu0 0.0
      %816 = vmatprep.subr.mxu0 0.0
      %817 = vmatpush1.msra.mxu0 0.0
      %818 = vmatprep.subr.mxu0 0.0
      %819 = vmatpush1.msra.mxu0 0.0
      %820 = vmatprep.mubr.f32.mxu0 0.0
      %821 = vmatmul.mubr.f32.gmra.mrb[0].mxu0 %v745
      %v822 = vpop.f32.mrb[0].mxu0
      %v823 = vadd.f32 0.0, %v822
      %v824 = vpop.f32.mrb[0].mxu0
      %v825 = vadd.f32 0.0, %v824
      %826 = vmatprep.mubr.f32.mxu0 0.0
      %827 = vmatmul.mubr.f32.gmra.mrb[0].mxu0 %v748
      %v828 = vpop.f32.mrb[0].mxu0
      %v829 = vadd.f32 0.0, %v828
      %v830 = vpop.f32.mrb[0].mxu0
      %v831 = vadd.f32 0.0, %v830
      %832 = vmatprep.mubr.f32.mxu0 0.0
      %833 = vmatmul.mubr.f32.gmra.mrb[0].mxu0 %v751
      %v834 = vpop.f32.mrb[0].mxu0
      %v835 = vadd.f32 0.0, %v834
      %v836 = vpop.f32.mrb[0].mxu0
      %v837 = vadd.f32 0.0, %v836
      %838 = vmatprep.mubr.f32.mxu0 0.0
      %839 = vmatmul.mubr.f32.gmra.mrb[0].mxu0 %v754
      %v840 = vpop.f32.mrb[0].mxu0
      %v841 = vadd.f32 0.0, %v840
      %v842 = vpop.f32.mrb[0].mxu0
      %v843 = vadd.f32 0.0, %v842
      %844 = vdwg.mxu0
      %845 = vmatprep.subr.mxu0 0.0
      %846 = vmatpush1.msra.mxu0 %v738
      %847 = vmatprep.subr.mxu0 0.0
      %848 = vmatpush1.msra.mxu0 0.0
      %849 = vmatprep.subr.mxu0 0.0
      %850 = vmatpush1.msra.mxu0 0.0
      %851 = vmatprep.subr.mxu0 0.0
      %852 = vmatpush1.msra.mxu0 0.0
      %853 = vmatprep.subr.mxu0 0.0
      %854 = vmatpush1.msra.mxu0 0.0
      %855 = vmatprep.subr.mxu0 0.0
      %856 = vmatpush1.msra.mxu0 0.0
      %857 = vmatprep.subr.mxu0 0.0
      %858 = vmatpush1.msra.mxu0 0.0
      %859 = vmatprep.subr.mxu0 0.0
      %860 = vmatpush1.msra.mxu0 0.0
      %861 = vmatprep.subr.mxu0 0.0
      %862 = vmatpush1.msra.mxu0 0.0
      %863 = vmatprep.subr.mxu0 0.0
      %864 = vmatpush1.msra.mxu0 0.0
      %865 = vmatprep.subr.mxu0 0.0
      %866 = vmatpush1.msra.mxu0 0.0
      %867 = vmatprep.subr.mxu0 0.0
      %868 = vmatpush1.msra.mxu0 0.0
      %869 = vmatprep.subr.mxu0 0.0
      %870 = vmatpush1.msra.mxu0 0.0
      %871 = vmatprep.subr.mxu0 0.0
      %872 = vmatpush1.msra.mxu0 0.0
      %873 = vmatprep.subr.mxu0 0.0
      %874 = vmatpush1.msra.mxu0 0.0
      %875 = vmatprep.subr.mxu0 0.0
      %876 = vmatpush1.msra.mxu0 0.0
      %877 = vmatprep.subr.mxu0 0.0
      %878 = vmatpush1.msra.mxu0 0.0
      %879 = vmatprep.subr.mxu0 0.0
      %880 = vmatpush1.msra.mxu0 0.0
      %881 = vmatprep.subr.mxu0 0.0
      %882 = vmatpush1.msra.mxu0 0.0
      %883 = vmatprep.subr.mxu0 0.0
      %884 = vmatpush1.msra.mxu0 0.0
      %885 = vmatprep.subr.mxu0 0.0
      %886 = vmatpush1.msra.mxu0 0.0
      %887 = vmatprep.subr.mxu0 0.0
      %888 = vmatpush1.msra.mxu0 0.0
      %889 = vmatprep.subr.mxu0 0.0
      %890 = vmatpush1.msra.mxu0 0.0
      %891 = vmatprep.subr.mxu0 0.0
      %892 = vmatpush1.msra.mxu0 0.0
      %893 = vmatprep.subr.mxu0 0.0
      %894 = vmatpush1.msra.mxu0 0.0
      %895 = vmatprep.subr.mxu0 0.0
      %896 = vmatpush1.msra.mxu0 0.0
      %897 = vmatprep.subr.mxu0 0.0
      %898 = vmatpush1.msra.mxu0 0.0
      %899 = vmatprep.subr.mxu0 0.0
      %900 = vmatpush1.msra.mxu0 0.0
      %901 = vmatprep.subr.mxu0 0.0
      %902 = vmatpush1.msra.mxu0 0.0
      %903 = vmatprep.subr.mxu0 0.0
      %904 = vmatpush1.msra.mxu0 0.0
      %905 = vmatprep.subr.mxu0 0.0
      %906 = vmatpush1.msra.mxu0 0.0
      %907 = vmatprep.subr.mxu0 0.0
      %908 = vmatpush1.msra.mxu0 0.0
      %909 = vmatprep.mubr.f32.mxu0 0.0
      %910 = vmatmul.mubr.f32.gmra.mrb[0].mxu0 %v745
      %v911 = vpop.f32.mrb[0].mxu0
      %v912 = vadd.f32 0.0, %v911
      %v913 = vpop.f32.mrb[0].mxu0
      %914 = vmatprep.mubr.f32.mxu0 0.0
      %915 = vmatmul.mubr.f32.gmra.mrb[0].mxu0 %v748
      %v916 = vpop.f32.mrb[0].mxu0
      %v917 = vadd.f32 0.0, %v916
      %v918 = vpop.f32.mrb[0].mxu0
      %919 = vmatprep.mubr.f32.mxu0 0.0
      %920 = vmatmul.mubr.f32.gmra.mrb[0].mxu0 %v751
      %v921 = vpop.f32.mrb[0].mxu0
      %v922 = vadd.f32 0.0, %v921
      %v923 = vpop.f32.mrb[0].mxu0
      %924 = vmatprep.mubr.f32.mxu0 0.0
      %925 = vmatmul.mubr.f32.gmra.mrb[0].mxu0 %v754
      %v926 = vpop.f32.mrb[0].mxu0
      %v927 = vadd.f32 0.0, %v926
      %v928 = vpop.f32.mrb[0].mxu0
      %929 = vdwg.mxu0
      %v930 = vadd.f32 %v622, %v823
      %v931 = vadd.f32 %v624, %v825
      %v932 = vadd.f32 %v711, %v912
      %v933 = vadd.f32 %v628, %v829
      %v934 = vadd.f32 %v630, %v831
      %v935 = vadd.f32 %v716, %v917
      %v936 = vadd.f32 %v634, %v835
      %v937 = vadd.f32 %v636, %v837
      %v938 = vadd.f32 %v721, %v922
      %v939 = vadd.f32 %v640, %v841
      %v940 = vadd.f32 %v642, %v843
      %v941 = vadd.f32 %v726, %v927
      %942 = vrot.lane.b32.xlu0 %v331, 110
      %v943 = vpop.permute.xlu0 %942
      %944 = vrot.lane.b32.xlu0 %v332, 110
      %v945 = vpop.permute.xlu0 %944
      %946 = vrot.lane.b32.xlu0 %v333, 110
      %v947 = vpop.permute.xlu0 %946
      %vm948 = vcmp.lt.s32.totalorder %v346, 110
      %v949 = vsel %vm948, %v945, %v947
      %v950 = vsel %vm948, %v943, %v945
      %v951 = vsel %vm948, %v947, %v943
      %s952 = scalar_lea.vmem %s1, 96
      %v953 = vld [vmem:[%s952] sm:$0xff]
      %v954 = vld [vmem:[%s952 + $0x8] sm:$0xff]
      %v955 = vld [vmem:[%s952 + $0x10] sm:$0xff]
      %v956 = vld [vmem:[%s952 + $0x18] sm:$0xff]
      %v958 = vsel %vm356, %v953, 0
      %v961 = vsel %vm356, %v954, 0
      %v964 = vsel %vm356, %v955, 0
      %v967 = vsel %vm356, %v956, 0
      %969 = vmatprep.subr.mxu0 %v949
      %970 = vmatpush1.msra.mxu0 %v950
      %971 = vmatprep.subr.mxu0 0.0
      %972 = vmatpush1.msra.mxu0 0.0
      %973 = vmatprep.subr.mxu0 0.0
      %974 = vmatpush1.msra.mxu0 0.0
      %975 = vmatprep.subr.mxu0 0.0
      %976 = vmatpush1.msra.mxu0 0.0
      %977 = vmatprep.subr.mxu0 0.0
      %978 = vmatpush1.msra.mxu0 0.0
      %979 = vmatprep.subr.mxu0 0.0
      %980 = vmatpush1.msra.mxu0 0.0
      %981 = vmatprep.subr.mxu0 0.0
      %982 = vmatpush1.msra.mxu0 0.0
      %983 = vmatprep.subr.mxu0 0.0
      %984 = vmatpush1.msra.mxu0 0.0
      %985 = vmatprep.subr.mxu0 0.0
      %986 = vmatpush1.msra.mxu0 0.0
      %987 = vmatprep.subr.mxu0 0.0
      %988 = vmatpush1.msra.mxu0 0.0
      %989 = vmatprep.subr.mxu0 0.0
      %990 = vmatpush1.msra.mxu0 0.0
      %991 = vmatprep.subr.mxu0 0.0
      %992 = vmatpush1.msra.mxu0 0.0
      %993 = vmatprep.subr.mxu0 0.0
      %994 = vmatpush1.msra.mxu0 0.0
      %995 = vmatprep.subr.mxu0 0.0
      %996 = vmatpush1.msra.mxu0 0.0
      %997 = vmatprep.subr.mxu0 0.0
      %998 = vmatpush1.msra.mxu0 0.0
      %999 = vmatprep.subr.mxu0 0.0
      %1000 = vmatpush1.msra.mxu0 0.0
      %1001 = vmatprep.subr.mxu0 0.0
      %1002 = vmatpush1.msra.mxu0 0.0
      %1003 = vmatprep.subr.mxu0 0.0
      %1004 = vmatpush1.msra.mxu0 0.0
      %1005 = vmatprep.subr.mxu0 0.0
      %1006 = vmatpush1.msra.mxu0 0.0
      %1007 = vmatprep.subr.mxu0 0.0
      %1008 = vmatpush1.msra.mxu0 0.0
      %1009 = vmatprep.subr.mxu0 0.0
      %1010 = vmatpush1.msra.mxu0 0.0
      %1011 = vmatprep.subr.mxu0 0.0
      %1012 = vmatpush1.msra.mxu0 0.0
      %1013 = vmatprep.subr.mxu0 0.0
      %1014 = vmatpush1.msra.mxu0 0.0
      %1015 = vmatprep.subr.mxu0 0.0
      %1016 = vmatpush1.msra.mxu0 0.0
      %1017 = vmatprep.subr.mxu0 0.0
      %1018 = vmatpush1.msra.mxu0 0.0
      %1019 = vmatprep.subr.mxu0 0.0
      %1020 = vmatpush1.msra.mxu0 0.0
      %1021 = vmatprep.subr.mxu0 0.0
      %1022 = vmatpush1.msra.mxu0 0.0
      %1023 = vmatprep.subr.mxu0 0.0
      %1024 = vmatpush1.msra.mxu0 0.0
      %1025 = vmatprep.subr.mxu0 0.0
      %1026 = vmatpush1.msra.mxu0 0.0
      %1027 = vmatprep.subr.mxu0 0.0
      %1028 = vmatpush1.msra.mxu0 0.0
      %1029 = vmatprep.subr.mxu0 0.0
      %1030 = vmatpush1.msra.mxu0 0.0
      %1031 = vmatprep.subr.mxu0 0.0
      %1032 = vmatpush1.msra.mxu0 0.0
      %1033 = vmatprep.mubr.f32.mxu0 0.0
      %1034 = vmatmul.mubr.f32.gmra.mrb[0].mxu0 %v958
      %v1035 = vpop.f32.mrb[0].mxu0
      %v1036 = vadd.f32 0.0, %v1035
      %v1037 = vpop.f32.mrb[0].mxu0
      %v1038 = vadd.f32 0.0, %v1037
      %1039 = vmatprep.mubr.f32.mxu0 0.0
      %1040 = vmatmul.mubr.f32.gmra.mrb[0].mxu0 %v961
      %v1041 = vpop.f32.mrb[0].mxu0
      %v1042 = vadd.f32 0.0, %v1041
      %v1043 = vpop.f32.mrb[0].mxu0
      %v1044 = vadd.f32 0.0, %v1043
      %1045 = vmatprep.mubr.f32.mxu0 0.0
      %1046 = vmatmul.mubr.f32.gmra.mrb[0].mxu0 %v964
      %v1047 = vpop.f32.mrb[0].mxu0
      %v1048 = vadd.f32 0.0, %v1047
      %v1049 = vpop.f32.mrb[0].mxu0
      %v1050 = vadd.f32 0.0, %v1049
      %1051 = vmatprep.mubr.f32.mxu0 0.0
      %1052 = vmatmul.mubr.f32.gmra.mrb[0].mxu0 %v967
      %v1053 = vpop.f32.mrb[0].mxu0
      %v1054 = vadd.f32 0.0, %v1053
      %v1055 = vpop.f32.mrb[0].mxu0
      %v1056 = vadd.f32 0.0, %v1055
      %1057 = vdwg.mxu0
      %1058 = vmatprep.subr.mxu0 0.0
      %1059 = vmatpush1.msra.mxu0 %v951
      %1060 = vmatprep.subr.mxu0 0.0
      %1061 = vmatpush1.msra.mxu0 0.0
      %1062 = vmatprep.subr.mxu0 0.0
      %1063 = vmatpush1.msra.mxu0 0.0
      %1064 = vmatprep.subr.mxu0 0.0
      %1065 = vmatpush1.msra.mxu0 0.0
      %1066 = vmatprep.subr.mxu0 0.0
      %1067 = vmatpush1.msra.mxu0 0.0
      %1068 = vmatprep.subr.mxu0 0.0
      %1069 = vmatpush1.msra.mxu0 0.0
      %1070 = vmatprep.subr.mxu0 0.0
      %1071 = vmatpush1.msra.mxu0 0.0
      %1072 = vmatprep.subr.mxu0 0.0
      %1073 = vmatpush1.msra.mxu0 0.0
      %1074 = vmatprep.subr.mxu0 0.0
      %1075 = vmatpush1.msra.mxu0 0.0
      %1076 = vmatprep.subr.mxu0 0.0
      %1077 = vmatpush1.msra.mxu0 0.0
      %1078 = vmatprep.subr.mxu0 0.0
      %1079 = vmatpush1.msra.mxu0 0.0
      %1080 = vmatprep.subr.mxu0 0.0
      %1081 = vmatpush1.msra.mxu0 0.0
      %1082 = vmatprep.subr.mxu0 0.0
      %1083 = vmatpush1.msra.mxu0 0.0
      %1084 = vmatprep.subr.mxu0 0.0
      %1085 = vmatpush1.msra.mxu0 0.0
      %1086 = vmatprep.subr.mxu0 0.0
      %1087 = vmatpush1.msra.mxu0 0.0
      %1088 = vmatprep.subr.mxu0 0.0
      %1089 = vmatpush1.msra.mxu0 0.0
      %1090 = vmatprep.subr.mxu0 0.0
      %1091 = vmatpush1.msra.mxu0 0.0
      %1092 = vmatprep.subr.mxu0 0.0
      %1093 = vmatpush1.msra.mxu0 0.0
      %1094 = vmatprep.subr.mxu0 0.0
      %1095 = vmatpush1.msra.mxu0 0.0
      %1096 = vmatprep.subr.mxu0 0.0
      %1097 = vmatpush1.msra.mxu0 0.0
      %1098 = vmatprep.subr.mxu0 0.0
      %1099 = vmatpush1.msra.mxu0 0.0
      %1100 = vmatprep.subr.mxu0 0.0
      %1101 = vmatpush1.msra.mxu0 0.0
      %1102 = vmatprep.subr.mxu0 0.0
      %1103 = vmatpush1.msra.mxu0 0.0
      %1104 = vmatprep.subr.mxu0 0.0
      %1105 = vmatpush1.msra.mxu0 0.0
      %1106 = vmatprep.subr.mxu0 0.0
      %1107 = vmatpush1.msra.mxu0 0.0
      %1108 = vmatprep.subr.mxu0 0.0
      %1109 = vmatpush1.msra.mxu0 0.0
      %1110 = vmatprep.subr.mxu0 0.0
      %1111 = vmatpush1.msra.mxu0 0.0
      %1112 = vmatprep.subr.mxu0 0.0
      %1113 = vmatpush1.msra.mxu0 0.0
      %1114 = vmatprep.subr.mxu0 0.0
      %1115 = vmatpush1.msra.mxu0 0.0
      %1116 = vmatprep.subr.mxu0 0.0
      %1117 = vmatpush1.msra.mxu0 0.0
      %1118 = vmatprep.subr.mxu0 0.0
      %1119 = vmatpush1.msra.mxu0 0.0
      %1120 = vmatprep.subr.mxu0 0.0
      %1121 = vmatpush1.msra.mxu0 0.0
      %1122 = vmatprep.mubr.f32.mxu0 0.0
      %1123 = vmatmul.mubr.f32.gmra.mrb[0].mxu0 %v958
      %v1124 = vpop.f32.mrb[0].mxu0
      %v1125 = vadd.f32 0.0, %v1124
      %v1126 = vpop.f32.mrb[0].mxu0
      %1127 = vmatprep.mubr.f32.mxu0 0.0
      %1128 = vmatmul.mubr.f32.gmra.mrb[0].mxu0 %v961
      %v1129 = vpop.f32.mrb[0].mxu0
      %v1130 = vadd.f32 0.0, %v1129
      %v1131 = vpop.f32.mrb[0].mxu0
      %1132 = vmatprep.mubr.f32.mxu0 0.0
      %1133 = vmatmul.mubr.f32.gmra.mrb[0].mxu0 %v964
      %v1134 = vpop.f32.mrb[0].mxu0
      %v1135 = vadd.f32 0.0, %v1134
      %v1136 = vpop.f32.mrb[0].mxu0
      %1137 = vmatprep.mubr.f32.mxu0 0.0
      %1138 = vmatmul.mubr.f32.gmra.mrb[0].mxu0 %v967
      %v1139 = vpop.f32.mrb[0].mxu0
      %v1140 = vadd.f32 0.0, %v1139
      %v1141 = vpop.f32.mrb[0].mxu0
      %1142 = vdwg.mxu0
      %v1143 = vadd.f32 %v930, %v1036
      %v1144 = vadd.f32 %v931, %v1038
      %v1145 = vadd.f32 %v932, %v1125
      %v1146 = vadd.f32 %v933, %v1042
      %v1147 = vadd.f32 %v934, %v1044
      %v1148 = vadd.f32 %v935, %v1130
      %v1149 = vadd.f32 %v936, %v1048
      %v1150 = vadd.f32 %v937, %v1050
      %v1151 = vadd.f32 %v938, %v1135
      %v1152 = vadd.f32 %v939, %v1054
      %v1153 = vadd.f32 %v940, %v1056
      %v1154 = vadd.f32 %v941, %v1140
      %1155 = vrot.lane.b32.xlu0 %v331, 109
      %v1156 = vpop.permute.xlu0 %1155
      %1157 = vrot.lane.b32.xlu0 %v332, 109
      %v1158 = vpop.permute.xlu0 %1157
      %1159 = vrot.lane.b32.xlu0 %v333, 109
      %v1160 = vpop.permute.xlu0 %1159
      %vm1161 = vcmp.lt.s32.totalorder %v346, 109
      %v1162 = vsel %vm1161, %v1158, %v1160
      %v1163 = vsel %vm1161, %v1156, %v1158
      %v1164 = vsel %vm1161, %v1160, %v1156
      %s1165 = scalar_lea.vmem %s1, 128
      %v1166 = vld [vmem:[%s1165] sm:$0xff]
      %v1167 = vld [vmem:[%s1165 + $0x8] sm:$0xff]
      %v1168 = vld [vmem:[%s1165 + $0x10] sm:$0xff]
      %v1169 = vld [vmem:[%s1165 + $0x18] sm:$0xff]
      %v1171 = vsel %vm356, %v1166, 0
      %v1174 = vsel %vm356, %v1167, 0
      %v1177 = vsel %vm356, %v1168, 0
      %v1180 = vsel %vm356, %v1169, 0
      %1182 = vmatprep.subr.mxu0 %v1162
      %1183 = vmatpush1.msra.mxu0 %v1163
      %1184 = vmatprep.subr.mxu0 0.0
      %1185 = vmatpush1.msra.mxu0 0.0
      %1186 = vmatprep.subr.mxu0 0.0
      %1187 = vmatpush1.msra.mxu0 0.0
      %1188 = vmatprep.subr.mxu0 0.0
      %1189 = vmatpush1.msra.mxu0 0.0
      %1190 = vmatprep.subr.mxu0 0.0
      %1191 = vmatpush1.msra.mxu0 0.0
      %1192 = vmatprep.subr.mxu0 0.0
      %1193 = vmatpush1.msra.mxu0 0.0
      %1194 = vmatprep.subr.mxu0 0.0
      %1195 = vmatpush1.msra.mxu0 0.0
      %1196 = vmatprep.subr.mxu0 0.0
      %1197 = vmatpush1.msra.mxu0 0.0
      %1198 = vmatprep.subr.mxu0 0.0
      %1199 = vmatpush1.msra.mxu0 0.0
      %1200 = vmatprep.subr.mxu0 0.0
      %1201 = vmatpush1.msra.mxu0 0.0
      %1202 = vmatprep.subr.mxu0 0.0
      %1203 = vmatpush1.msra.mxu0 0.0
      %1204 = vmatprep.subr.mxu0 0.0
      %1205 = vmatpush1.msra.mxu0 0.0
      %1206 = vmatprep.subr.mxu0 0.0
      %1207 = vmatpush1.msra.mxu0 0.0
      %1208 = vmatprep.subr.mxu0 0.0
      %1209 = vmatpush1.msra.mxu0 0.0
      %1210 = vmatprep.subr.mxu0 0.0
      %1211 = vmatpush1.msra.mxu0 0.0
      %1212 = vmatprep.subr.mxu0 0.0
      %1213 = vmatpush1.msra.mxu0 0.0
      %1214 = vmatprep.subr.mxu0 0.0
      %1215 = vmatpush1.msra.mxu0 0.0
      %1216 = vmatprep.subr.mxu0 0.0
      %1217 = vmatpush1.msra.mxu0 0.0
      %1218 = vmatprep.subr.mxu0 0.0
      %1219 = vmatpush1.msra.mxu0 0.0
      %1220 = vmatprep.subr.mxu0 0.0
      %1221 = vmatpush1.msra.mxu0 0.0
      %1222 = vmatprep.subr.mxu0 0.0
      %1223 = vmatpush1.msra.mxu0 0.0
      %1224 = vmatprep.subr.mxu0 0.0
      %1225 = vmatpush1.msra.mxu0 0.0
      %1226 = vmatprep.subr.mxu0 0.0
      %1227 = vmatpush1.msra.mxu0 0.0
      %1228 = vmatprep.subr.mxu0 0.0
      %1229 = vmatpush1.msra.mxu0 0.0
      %1230 = vmatprep.subr.mxu0 0.0
      %1231 = vmatpush1.msra.mxu0 0.0
      %1232 = vmatprep.subr.mxu0 0.0
      %1233 = vmatpush1.msra.mxu0 0.0
      %1234 = vmatprep.subr.mxu0 0.0
      %1235 = vmatpush1.msra.mxu0 0.0
      %1236 = vmatprep.subr.mxu0 0.0
      %1237 = vmatpush1.msra.mxu0 0.0
      %1238 = vmatprep.subr.mxu0 0.0
      %1239 = vmatpush1.msra.mxu0 0.0
      %1240 = vmatprep.subr.mxu0 0.0
      %1241 = vmatpush1.msra.mxu0 0.0
      %1242 = vmatprep.subr.mxu0 0.0
      %1243 = vmatpush1.msra.mxu0 0.0
      %1244 = vmatprep.subr.mxu0 0.0
      %1245 = vmatpush1.msra.mxu0 0.0
      %1246 = vmatprep.mubr.f32.mxu0 0.0
      %1247 = vmatmul.mubr.f32.gmra.mrb[0].mxu0 %v1171
      %v1248 = vpop.f32.mrb[0].mxu0
      %v1249 = vadd.f32 0.0, %v1248
      %v1250 = vpop.f32.mrb[0].mxu0
      %v1251 = vadd.f32 0.0, %v1250
      %1252 = vmatprep.mubr.f32.mxu0 0.0
      %1253 = vmatmul.mubr.f32.gmra.mrb[0].mxu0 %v1174
      %v1254 = vpop.f32.mrb[0].mxu0
      %v1255 = vadd.f32 0.0, %v1254
      %v1256 = vpop.f32.mrb[0].mxu0
      %v1257 = vadd.f32 0.0, %v1256
      %1258 = vmatprep.mubr.f32.mxu0 0.0
      %1259 = vmatmul.mubr.f32.gmra.mrb[0].mxu0 %v1177
      %v1260 = vpop.f32.mrb[0].mxu0
      %v1261 = vadd.f32 0.0, %v1260
      %v1262 = vpop.f32.mrb[0].mxu0
      %v1263 = vadd.f32 0.0, %v1262
      %1264 = vmatprep.mubr.f32.mxu0 0.0
      %1265 = vmatmul.mubr.f32.gmra.mrb[0].mxu0 %v1180
      %v1266 = vpop.f32.mrb[0].mxu0
      %v1267 = vadd.f32 0.0, %v1266
      %v1268 = vpop.f32.mrb[0].mxu0
      %v1269 = vadd.f32 0.0, %v1268
      %1270 = vdwg.mxu0
      %1271 = vmatprep.subr.mxu0 0.0
      %1272 = vmatpush1.msra.mxu0 %v1164
      %1273 = vmatprep.subr.mxu0 0.0
      %1274 = vmatpush1.msra.mxu0 0.0
      %1275 = vmatprep.subr.mxu0 0.0
      %1276 = vmatpush1.msra.mxu0 0.0
      %1277 = vmatprep.subr.mxu0 0.0
      %1278 = vmatpush1.msra.mxu0 0.0
      %1279 = vmatprep.subr.mxu0 0.0
      %1280 = vmatpush1.msra.mxu0 0.0
      %1281 = vmatprep.subr.mxu0 0.0
      %1282 = vmatpush1.msra.mxu0 0.0
      %1283 = vmatprep.subr.mxu0 0.0
      %1284 = vmatpush1.msra.mxu0 0.0
      %1285 = vmatprep.subr.mxu0 0.0
      %1286 = vmatpush1.msra.mxu0 0.0
      %1287 = vmatprep.subr.mxu0 0.0
      %1288 = vmatpush1.msra.mxu0 0.0
      %1289 = vmatprep.subr.mxu0 0.0
      %1290 = vmatpush1.msra.mxu0 0.0
      %1291 = vmatprep.subr.mxu0 0.0
      %1292 = vmatpush1.msra.mxu0 0.0
      %1293 = vmatprep.subr.mxu0 0.0
      %1294 = vmatpush1.msra.mxu0 0.0
      %1295 = vmatprep.subr.mxu0 0.0
      %1296 = vmatpush1.msra.mxu0 0.0
      %1297 = vmatprep.subr.mxu0 0.0
      %1298 = vmatpush1.msra.mxu0 0.0
      %1299 = vmatprep.subr.mxu0 0.0
      %1300 = vmatpush1.msra.mxu0 0.0
      %1301 = vmatprep.subr.mxu0 0.0
      %1302 = vmatpush1.msra.mxu0 0.0
      %1303 = vmatprep.subr.mxu0 0.0
      %1304 = vmatpush1.msra.mxu0 0.0
      %1305 = vmatprep.subr.mxu0 0.0
      %1306 = vmatpush1.msra.mxu0 0.0
      %1307 = vmatprep.subr.mxu0 0.0
      %1308 = vmatpush1.msra.mxu0 0.0
      %1309 = vmatprep.subr.mxu0 0.0
      %1310 = vmatpush1.msra.mxu0 0.0
      %1311 = vmatprep.subr.mxu0 0.0
      %1312 = vmatpush1.msra.mxu0 0.0
      %1313 = vmatprep.subr.mxu0 0.0
      %1314 = vmatpush1.msra.mxu0 0.0
      %1315 = vmatprep.subr.mxu0 0.0
      %1316 = vmatpush1.msra.mxu0 0.0
      %1317 = vmatprep.subr.mxu0 0.0
      %1318 = vmatpush1.msra.mxu0 0.0
      %1319 = vmatprep.subr.mxu0 0.0
      %1320 = vmatpush1.msra.mxu0 0.0
      %1321 = vmatprep.subr.mxu0 0.0
      %1322 = vmatpush1.msra.mxu0 0.0
      %1323 = vmatprep.subr.mxu0 0.0
      %1324 = vmatpush1.msra.mxu0 0.0
      %1325 = vmatprep.subr.mxu0 0.0
      %1326 = vmatpush1.msra.mxu0 0.0
      %1327 = vmatprep.subr.mxu0 0.0
      %1328 = vmatpush1.msra.mxu0 0.0
      %1329 = vmatprep.subr.mxu0 0.0
      %1330 = vmatpush1.msra.mxu0 0.0
      %1331 = vmatprep.subr.mxu0 0.0
      %1332 = vmatpush1.msra.mxu0 0.0
      %1333 = vmatprep.subr.mxu0 0.0
      %1334 = vmatpush1.msra.mxu0 0.0
      %1335 = vmatprep.mubr.f32.mxu0 0.0
      %1336 = vmatmul.mubr.f32.gmra.mrb[0].mxu0 %v1171
      %v1337 = vpop.f32.mrb[0].mxu0
      %v1338 = vadd.f32 0.0, %v1337
      %v1339 = vpop.f32.mrb[0].mxu0
      %1340 = vmatprep.mubr.f32.mxu0 0.0
      %1341 = vmatmul.mubr.f32.gmra.mrb[0].mxu0 %v1174
      %v1342 = vpop.f32.mrb[0].mxu0
      %v1343 = vadd.f32 0.0, %v1342
      %v1344 = vpop.f32.mrb[0].mxu0
      %1345 = vmatprep.mubr.f32.mxu0 0.0
      %1346 = vmatmul.mubr.f32.gmra.mrb[0].mxu0 %v1177
      %v1347 = vpop.f32.mrb[0].mxu0
      %v1348 = vadd.f32 0.0, %v1347
      %v1349 = vpop.f32.mrb[0].mxu0
      %1350 = vmatprep.mubr.f32.mxu0 0.0
      %1351 = vmatmul.mubr.f32.gmra.mrb[0].mxu0 %v1180
      %v1352 = vpop.f32.mrb[0].mxu0
      %v1353 = vadd.f32 0.0, %v1352
      %v1354 = vpop.f32.mrb[0].mxu0
      %1355 = vdwg.mxu0
      %v1356 = vadd.f32 %v1143, %v1249
      %v1357 = vadd.f32 %v1144, %v1251
      %v1358 = vadd.f32 %v1145, %v1338
      %v1359 = vadd.f32 %v1146, %v1255
      %v1360 = vadd.f32 %v1147, %v1257
      %v1361 = vadd.f32 %v1148, %v1343
      %v1362 = vadd.f32 %v1149, %v1261
      %v1363 = vadd.f32 %v1150, %v1263
      %v1364 = vadd.f32 %v1151, %v1348
      %v1365 = vadd.f32 %v1152, %v1267
      %v1366 = vadd.f32 %v1153, %v1269
      %v1367 = vadd.f32 %v1154, %v1353
      %1368 = vrot.lane.b32.xlu0 %v331, 108
      %v1369 = vpop.permute.xlu0 %1368
      %1370 = vrot.lane.b32.xlu0 %v332, 108
      %v1371 = vpop.permute.xlu0 %1370
      %1372 = vrot.lane.b32.xlu0 %v333, 108
      %v1373 = vpop.permute.xlu0 %1372
      %vm1374 = vcmp.lt.s32.totalorder %v346, 108
      %v1375 = vsel %vm1374, %v1371, %v1373
      %v1376 = vsel %vm1374, %v1369, %v1371
      %v1377 = vsel %vm1374, %v1373, %v1369
      %s1378 = scalar_lea.vmem %s1, 160
      %v1379 = vld [vmem:[%s1378] sm:$0xff]
      %v1380 = vld [vmem:[%s1378 + $0x8] sm:$0xff]
      %v1381 = vld [vmem:[%s1378 + $0x10] sm:$0xff]
      %v1382 = vld [vmem:[%s1378 + $0x18] sm:$0xff]
      %v1384 = vsel %vm356, %v1379, 0
      %v1387 = vsel %vm356, %v1380, 0
      %v1390 = vsel %vm356, %v1381, 0
      %v1393 = vsel %vm356, %v1382, 0
      %1395 = vmatprep.subr.mxu0 %v1375
      %1396 = vmatpush1.msra.mxu0 %v1376
      %1397 = vmatprep.subr.mxu0 0.0
      %1398 = vmatpush1.msra.mxu0 0.0
      %1399 = vmatprep.subr.mxu0 0.0
      %1400 = vmatpush1.msra.mxu0 0.0
      %1401 = vmatprep.subr.mxu0 0.0
      %1402 = vmatpush1.msra.mxu0 0.0
      %1403 = vmatprep.subr.mxu0 0.0
      %1404 = vmatpush1.msra.mxu0 0.0
      %1405 = vmatprep.subr.mxu0 0.0
      %1406 = vmatpush1.msra.mxu0 0.0
      %1407 = vmatprep.subr.mxu0 0.0
      %1408 = vmatpush1.msra.mxu0 0.0
      %1409 = vmatprep.subr.mxu0 0.0
      %1410 = vmatpush1.msra.mxu0 0.0
      %1411 = vmatprep.subr.mxu0 0.0
      %1412 = vmatpush1.msra.mxu0 0.0
      %1413 = vmatprep.subr.mxu0 0.0
      %1414 = vmatpush1.msra.mxu0 0.0
      %1415 = vmatprep.subr.mxu0 0.0
      %1416 = vmatpush1.msra.mxu0 0.0
      %1417 = vmatprep.subr.mxu0 0.0
      %1418 = vmatpush1.msra.mxu0 0.0
      %1419 = vmatprep.subr.mxu0 0.0
      %1420 = vmatpush1.msra.mxu0 0.0
      %1421 = vmatprep.subr.mxu0 0.0
      %1422 = vmatpush1.msra.mxu0 0.0
      %1423 = vmatprep.subr.mxu0 0.0
      %1424 = vmatpush1.msra.mxu0 0.0
      %1425 = vmatprep.subr.mxu0 0.0
      %1426 = vmatpush1.msra.mxu0 0.0
      %1427 = vmatprep.subr.mxu0 0.0
      %1428 = vmatpush1.msra.mxu0 0.0
      %1429 = vmatprep.subr.mxu0 0.0
      %1430 = vmatpush1.msra.mxu0 0.0
      %1431 = vmatprep.subr.mxu0 0.0
      %1432 = vmatpush1.msra.mxu0 0.0
      %1433 = vmatprep.subr.mxu0 0.0
      %1434 = vmatpush1.msra.mxu0 0.0
      %1435 = vmatprep.subr.mxu0 0.0
      %1436 = vmatpush1.msra.mxu0 0.0
      %1437 = vmatprep.subr.mxu0 0.0
      %1438 = vmatpush1.msra.mxu0 0.0
      %1439 = vmatprep.subr.mxu0 0.0
      %1440 = vmatpush1.msra.mxu0 0.0
      %1441 = vmatprep.subr.mxu0 0.0
      %1442 = vmatpush1.msra.mxu0 0.0
      %1443 = vmatprep.subr.mxu0 0.0
      %1444 = vmatpush1.msra.mxu0 0.0
      %1445 = vmatprep.subr.mxu0 0.0
      %1446 = vmatpush1.msra.mxu0 0.0
      %1447 = vmatprep.subr.mxu0 0.0
      %1448 = vmatpush1.msra.mxu0 0.0
      %1449 = vmatprep.subr.mxu0 0.0
      %1450 = vmatpush1.msra.mxu0 0.0
      %1451 = vmatprep.subr.mxu0 0.0
      %1452 = vmatpush1.msra.mxu0 0.0
      %1453 = vmatprep.subr.mxu0 0.0
      %1454 = vmatpush1.msra.mxu0 0.0
      %1455 = vmatprep.subr.mxu0 0.0
      %1456 = vmatpush1.msra.mxu0 0.0
      %1457 = vmatprep.subr.mxu0 0.0
      %1458 = vmatpush1.msra.mxu0 0.0
      %1459 = vmatprep.mubr.f32.mxu0 0.0
      %1460 = vmatmul.mubr.f32.gmra.mrb[0].mxu0 %v1384
      %v1461 = vpop.f32.mrb[0].mxu0
      %v1462 = vadd.f32 0.0, %v1461
      %v1463 = vpop.f32.mrb[0].mxu0
      %v1464 = vadd.f32 0.0, %v1463
      %1465 = vmatprep.mubr.f32.mxu0 0.0
      %1466 = vmatmul.mubr.f32.gmra.mrb[0].mxu0 %v1387
      %v1467 = vpop.f32.mrb[0].mxu0
      %v1468 = vadd.f32 0.0, %v1467
      %v1469 = vpop.f32.mrb[0].mxu0
      %v1470 = vadd.f32 0.0, %v1469
      %1471 = vmatprep.mubr.f32.mxu0 0.0
      %1472 = vmatmul.mubr.f32.gmra.mrb[0].mxu0 %v1390
      %v1473 = vpop.f32.mrb[0].mxu0
      %v1474 = vadd.f32 0.0, %v1473
      %v1475 = vpop.f32.mrb[0].mxu0
      %v1476 = vadd.f32 0.0, %v1475
      %1477 = vmatprep.mubr.f32.mxu0 0.0
      %1478 = vmatmul.mubr.f32.gmra.mrb[0].mxu0 %v1393
      %v1479 = vpop.f32.mrb[0].mxu0
      %v1480 = vadd.f32 0.0, %v1479
      %v1481 = vpop.f32.mrb[0].mxu0
      %v1482 = vadd.f32 0.0, %v1481
      %1483 = vdwg.mxu0
      %1484 = vmatprep.subr.mxu0 0.0
      %1485 = vmatpush1.msra.mxu0 %v1377
      %1486 = vmatprep.subr.mxu0 0.0
      %1487 = vmatpush1.msra.mxu0 0.0
      %1488 = vmatprep.subr.mxu0 0.0
      %1489 = vmatpush1.msra.mxu0 0.0
      %1490 = vmatprep.subr.mxu0 0.0
      %1491 = vmatpush1.msra.mxu0 0.0
      %1492 = vmatprep.subr.mxu0 0.0
      %1493 = vmatpush1.msra.mxu0 0.0
      %1494 = vmatprep.subr.mxu0 0.0
      %1495 = vmatpush1.msra.mxu0 0.0
      %1496 = vmatprep.subr.mxu0 0.0
      %1497 = vmatpush1.msra.mxu0 0.0
      %1498 = vmatprep.subr.mxu0 0.0
      %1499 = vmatpush1.msra.mxu0 0.0
      %1500 = vmatprep.subr.mxu0 0.0
      %1501 = vmatpush1.msra.mxu0 0.0
      %1502 = vmatprep.subr.mxu0 0.0
      %1503 = vmatpush1.msra.mxu0 0.0
      %1504 = vmatprep.subr.mxu0 0.0
      %1505 = vmatpush1.msra.mxu0 0.0
      %1506 = vmatprep.subr.mxu0 0.0
      %1507 = vmatpush1.msra.mxu0 0.0
      %1508 = vmatprep.subr.mxu0 0.0
      %1509 = vmatpush1.msra.mxu0 0.0
      %1510 = vmatprep.subr.mxu0 0.0
      %1511 = vmatpush1.msra.mxu0 0.0
      %1512 = vmatprep.subr.mxu0 0.0
      %1513 = vmatpush1.msra.mxu0 0.0
      %1514 = vmatprep.subr.mxu0 0.0
      %1515 = vmatpush1.msra.mxu0 0.0
      %1516 = vmatprep.subr.mxu0 0.0
      %1517 = vmatpush1.msra.mxu0 0.0
      %1518 = vmatprep.subr.mxu0 0.0
      %1519 = vmatpush1.msra.mxu0 0.0
      %1520 = vmatprep.subr.mxu0 0.0
      %1521 = vmatpush1.msra.mxu0 0.0
      %1522 = vmatprep.subr.mxu0 0.0
      %1523 = vmatpush1.msra.mxu0 0.0
      %1524 = vmatprep.subr.mxu0 0.0
      %1525 = vmatpush1.msra.mxu0 0.0
      %1526 = vmatprep.subr.mxu0 0.0
      %1527 = vmatpush1.msra.mxu0 0.0
      %1528 = vmatprep.subr.mxu0 0.0
      %1529 = vmatpush1.msra.mxu0 0.0
      %1530 = vmatprep.subr.mxu0 0.0
      %1531 = vmatpush1.msra.mxu0 0.0
      %1532 = vmatprep.subr.mxu0 0.0
      %1533 = vmatpush1.msra.mxu0 0.0
      %1534 = vmatprep.subr.mxu0 0.0
      %1535 = vmatpush1.msra.mxu0 0.0
      %1536 = vmatprep.subr.mxu0 0.0
      %1537 = vmatpush1.msra.mxu0 0.0
      %1538 = vmatprep.subr.mxu0 0.0
      %1539 = vmatpush1.msra.mxu0 0.0
      %1540 = vmatprep.subr.mxu0 0.0
      %1541 = vmatpush1.msra.mxu0 0.0
      %1542 = vmatprep.subr.mxu0 0.0
      %1543 = vmatpush1.msra.mxu0 0.0
      %1544 = vmatprep.subr.mxu0 0.0
      %1545 = vmatpush1.msra.mxu0 0.0
      %1546 = vmatprep.subr.mxu0 0.0
      %1547 = vmatpush1.msra.mxu0 0.0
      %1548 = vmatprep.mubr.f32.mxu0 0.0
      %1549 = vmatmul.mubr.f32.gmra.mrb[0].mxu0 %v1384
      %v1550 = vpop.f32.mrb[0].mxu0
      %v1551 = vadd.f32 0.0, %v1550
      %v1552 = vpop.f32.mrb[0].mxu0
      %1553 = vmatprep.mubr.f32.mxu0 0.0
      %1554 = vmatmul.mubr.f32.gmra.mrb[0].mxu0 %v1387
      %v1555 = vpop.f32.mrb[0].mxu0
      %v1556 = vadd.f32 0.0, %v1555
      %v1557 = vpop.f32.mrb[0].mxu0
      %1558 = vmatprep.mubr.f32.mxu0 0.0
      %1559 = vmatmul.mubr.f32.gmra.mrb[0].mxu0 %v1390
      %v1560 = vpop.f32.mrb[0].mxu0
      %v1561 = vadd.f32 0.0, %v1560
      %v1562 = vpop.f32.mrb[0].mxu0
      %1563 = vmatprep.mubr.f32.mxu0 0.0
      %1564 = vmatmul.mubr.f32.gmra.mrb[0].mxu0 %v1393
      %v1565 = vpop.f32.mrb[0].mxu0
      %v1566 = vadd.f32 0.0, %v1565
      %v1567 = vpop.f32.mrb[0].mxu0
      %1568 = vdwg.mxu0
      %v1569 = vadd.f32 %v1356, %v1462
      %v1570 = vadd.f32 %v1357, %v1464
      %v1571 = vadd.f32 %v1358, %v1551
      %v1572 = vadd.f32 %v1359, %v1468
      %v1573 = vadd.f32 %v1360, %v1470
      %v1574 = vadd.f32 %v1361, %v1556
      %v1575 = vadd.f32 %v1362, %v1474
      %v1576 = vadd.f32 %v1363, %v1476
      %v1577 = vadd.f32 %v1364, %v1561
      %v1578 = vadd.f32 %v1365, %v1480
      %v1579 = vadd.f32 %v1366, %v1482
      %v1580 = vadd.f32 %v1367, %v1566
      %1581 = vrot.lane.b32.xlu0 %v331, 92
      %v1582 = vpop.permute.xlu0 %1581
      %1583 = vrot.lane.b32.xlu0 %v332, 92
      %v1584 = vpop.permute.xlu0 %1583
      %1585 = vrot.lane.b32.xlu0 %v333, 92
      %v1586 = vpop.permute.xlu0 %1585
      %vm1587 = vcmp.lt.s32.totalorder %v346, 92
      %v1588 = vsel %vm1587, %v1584, %v1586
      %v1589 = vsel %vm1587, %v1582, %v1584
      %v1590 = vsel %vm1587, %v1586, %v1582
      %s1591 = scalar_lea.vmem %s1, 192
      %v1592 = vld [vmem:[%s1591] sm:$0xff]
      %v1593 = vld [vmem:[%s1591 + $0x8] sm:$0xff]
      %v1594 = vld [vmem:[%s1591 + $0x10] sm:$0xff]
      %v1595 = vld [vmem:[%s1591 + $0x18] sm:$0xff]
      %v1597 = vsel %vm356, %v1592, 0
      %v1600 = vsel %vm356, %v1593, 0
      %v1603 = vsel %vm356, %v1594, 0
      %v1606 = vsel %vm356, %v1595, 0
      %1608 = vmatprep.subr.mxu0 %v1588
      %1609 = vmatpush1.msra.mxu0 %v1589
      %1610 = vmatprep.subr.mxu0 0.0
      %1611 = vmatpush1.msra.mxu0 0.0
      %1612 = vmatprep.subr.mxu0 0.0
      %1613 = vmatpush1.msra.mxu0 0.0
      %1614 = vmatprep.subr.mxu0 0.0
      %1615 = vmatpush1.msra.mxu0 0.0
      %1616 = vmatprep.subr.mxu0 0.0
      %1617 = vmatpush1.msra.mxu0 0.0
      %1618 = vmatprep.subr.mxu0 0.0
      %1619 = vmatpush1.msra.mxu0 0.0
      %1620 = vmatprep.subr.mxu0 0.0
      %1621 = vmatpush1.msra.mxu0 0.0
      %1622 = vmatprep.subr.mxu0 0.0
      %1623 = vmatpush1.msra.mxu0 0.0
      %1624 = vmatprep.subr.mxu0 0.0
      %1625 = vmatpush1.msra.mxu0 0.0
      %1626 = vmatprep.subr.mxu0 0.0
      %1627 = vmatpush1.msra.mxu0 0.0
      %1628 = vmatprep.subr.mxu0 0.0
      %1629 = vmatpush1.msra.mxu0 0.0
      %1630 = vmatprep.subr.mxu0 0.0
      %1631 = vmatpush1.msra.mxu0 0.0
      %1632 = vmatprep.subr.mxu0 0.0
      %1633 = vmatpush1.msra.mxu0 0.0
      %1634 = vmatprep.subr.mxu0 0.0
      %1635 = vmatpush1.msra.mxu0 0.0
      %1636 = vmatprep.subr.mxu0 0.0
      %1637 = vmatpush1.msra.mxu0 0.0
      %1638 = vmatprep.subr.mxu0 0.0
      %1639 = vmatpush1.msra.mxu0 0.0
      %1640 = vmatprep.subr.mxu0 0.0
      %1641 = vmatpush1.msra.mxu0 0.0
      %1642 = vmatprep.subr.mxu0 0.0
      %1643 = vmatpush1.msra.mxu0 0.0
      %1644 = vmatprep.subr.mxu0 0.0
      %1645 = vmatpush1.msra.mxu0 0.0
      %1646 = vmatprep.subr.mxu0 0.0
      %1647 = vmatpush1.msra.mxu0 0.0
      %1648 = vmatprep.subr.mxu0 0.0
      %1649 = vmatpush1.msra.mxu0 0.0
      %1650 = vmatprep.subr.mxu0 0.0
      %1651 = vmatpush1.msra.mxu0 0.0
      %1652 = vmatprep.subr.mxu0 0.0
      %1653 = vmatpush1.msra.mxu0 0.0
      %1654 = vmatprep.subr.mxu0 0.0
      %1655 = vmatpush1.msra.mxu0 0.0
      %1656 = vmatprep.subr.mxu0 0.0
      %1657 = vmatpush1.msra.mxu0 0.0
      %1658 = vmatprep.subr.mxu0 0.0
      %1659 = vmatpush1.msra.mxu0 0.0
      %1660 = vmatprep.subr.mxu0 0.0
      %1661 = vmatpush1.msra.mxu0 0.0
      %1662 = vmatprep.subr.mxu0 0.0
      %1663 = vmatpush1.msra.mxu0 0.0
      %1664 = vmatprep.subr.mxu0 0.0
      %1665 = vmatpush1.msra.mxu0 0.0
      %1666 = vmatprep.subr.mxu0 0.0
      %1667 = vmatpush1.msra.mxu0 0.0
      %1668 = vmatprep.subr.mxu0 0.0
      %1669 = vmatpush1.msra.mxu0 0.0
      %1670 = vmatprep.subr.mxu0 0.0
      %1671 = vmatpush1.msra.mxu0 0.0
      %1672 = vmatprep.mubr.f32.mxu0 0.0
      %1673 = vmatmul.mubr.f32.gmra.mrb[0].mxu0 %v1597
      %v1674 = vpop.f32.mrb[0].mxu0
      %v1675 = vadd.f32 0.0, %v1674
      %v1676 = vpop.f32.mrb[0].mxu0
      %v1677 = vadd.f32 0.0, %v1676
      %1678 = vmatprep.mubr.f32.mxu0 0.0
      %1679 = vmatmul.mubr.f32.gmra.mrb[0].mxu0 %v1600
      %v1680 = vpop.f32.mrb[0].mxu0
      %v1681 = vadd.f32 0.0, %v1680
      %v1682 = vpop.f32.mrb[0].mxu0
      %v1683 = vadd.f32 0.0, %v1682
      %1684 = vmatprep.mubr.f32.mxu0 0.0
      %1685 = vmatmul.mubr.f32.gmra.mrb[0].mxu0 %v1603
      %v1686 = vpop.f32.mrb[0].mxu0
      %v1687 = vadd.f32 0.0, %v1686
      %v1688 = vpop.f32.mrb[0].mxu0
      %v1689 = vadd.f32 0.0, %v1688
      %1690 = vmatprep.mubr.f32.mxu0 0.0
      %1691 = vmatmul.mubr.f32.gmra.mrb[0].mxu0 %v1606
      %v1692 = vpop.f32.mrb[0].mxu0
      %v1693 = vadd.f32 0.0, %v1692
      %v1694 = vpop.f32.mrb[0].mxu0
      %v1695 = vadd.f32 0.0, %v1694
      %1696 = vdwg.mxu0
      %1697 = vmatprep.subr.mxu0 0.0
      %1698 = vmatpush1.msra.mxu0 %v1590
      %1699 = vmatprep.subr.mxu0 0.0
      %1700 = vmatpush1.msra.mxu0 0.0
      %1701 = vmatprep.subr.mxu0 0.0
      %1702 = vmatpush1.msra.mxu0 0.0
      %1703 = vmatprep.subr.mxu0 0.0
      %1704 = vmatpush1.msra.mxu0 0.0
      %1705 = vmatprep.subr.mxu0 0.0
      %1706 = vmatpush1.msra.mxu0 0.0
      %1707 = vmatprep.subr.mxu0 0.0
      %1708 = vmatpush1.msra.mxu0 0.0
      %1709 = vmatprep.subr.mxu0 0.0
      %1710 = vmatpush1.msra.mxu0 0.0
      %1711 = vmatprep.subr.mxu0 0.0
      %1712 = vmatpush1.msra.mxu0 0.0
      %1713 = vmatprep.subr.mxu0 0.0
      %1714 = vmatpush1.msra.mxu0 0.0
      %1715 = vmatprep.subr.mxu0 0.0
      %1716 = vmatpush1.msra.mxu0 0.0
      %1717 = vmatprep.subr.mxu0 0.0
      %1718 = vmatpush1.msra.mxu0 0.0
      %1719 = vmatprep.subr.mxu0 0.0
      %1720 = vmatpush1.msra.mxu0 0.0
      %1721 = vmatprep.subr.mxu0 0.0
      %1722 = vmatpush1.msra.mxu0 0.0
      %1723 = vmatprep.subr.mxu0 0.0
      %1724 = vmatpush1.msra.mxu0 0.0
      %1725 = vmatprep.subr.mxu0 0.0
      %1726 = vmatpush1.msra.mxu0 0.0
      %1727 = vmatprep.subr.mxu0 0.0
      %1728 = vmatpush1.msra.mxu0 0.0
      %1729 = vmatprep.subr.mxu0 0.0
      %1730 = vmatpush1.msra.mxu0 0.0
      %1731 = vmatprep.subr.mxu0 0.0
      %1732 = vmatpush1.msra.mxu0 0.0
      %1733 = vmatprep.subr.mxu0 0.0
      %1734 = vmatpush1.msra.mxu0 0.0
      %1735 = vmatprep.subr.mxu0 0.0
      %1736 = vmatpush1.msra.mxu0 0.0
      %1737 = vmatprep.subr.mxu0 0.0
      %1738 = vmatpush1.msra.mxu0 0.0
      %1739 = vmatprep.subr.mxu0 0.0
      %1740 = vmatpush1.msra.mxu0 0.0
      %1741 = vmatprep.subr.mxu0 0.0
      %1742 = vmatpush1.msra.mxu0 0.0
      %1743 = vmatprep.subr.mxu0 0.0
      %1744 = vmatpush1.msra.mxu0 0.0
      %1745 = vmatprep.subr.mxu0 0.0
      %1746 = vmatpush1.msra.mxu0 0.0
      %1747 = vmatprep.subr.mxu0 0.0
      %1748 = vmatpush1.msra.mxu0 0.0
      %1749 = vmatprep.subr.mxu0 0.0
      %1750 = vmatpush1.msra.mxu0 0.0
      %1751 = vmatprep.subr.mxu0 0.0
      %1752 = vmatpush1.msra.mxu0 0.0
      %1753 = vmatprep.subr.mxu0 0.0
      %1754 = vmatpush1.msra.mxu0 0.0
      %1755 = vmatprep.subr.mxu0 0.0
      %1756 = vmatpush1.msra.mxu0 0.0
      %1757 = vmatprep.subr.mxu0 0.0
      %1758 = vmatpush1.msra.mxu0 0.0
      %1759 = vmatprep.subr.mxu0 0.0
      %1760 = vmatpush1.msra.mxu0 0.0
      %1761 = vmatprep.mubr.f32.mxu0 0.0
      %1762 = vmatmul.mubr.f32.gmra.mrb[0].mxu0 %v1597
      %v1763 = vpop.f32.mrb[0].mxu0
      %v1764 = vadd.f32 0.0, %v1763
      %v1765 = vpop.f32.mrb[0].mxu0
      %1766 = vmatprep.mubr.f32.mxu0 0.0
      %1767 = vmatmul.mubr.f32.gmra.mrb[0].mxu0 %v1600
      %v1768 = vpop.f32.mrb[0].mxu0
      %v1769 = vadd.f32 0.0, %v1768
      %v1770 = vpop.f32.mrb[0].mxu0
      %1771 = vmatprep.mubr.f32.mxu0 0.0
      %1772 = vmatmul.mubr.f32.gmra.mrb[0].mxu0 %v1603
      %v1773 = vpop.f32.mrb[0].mxu0
      %v1774 = vadd.f32 0.0, %v1773
      %v1775 = vpop.f32.mrb[0].mxu0
      %1776 = vmatprep.mubr.f32.mxu0 0.0
      %1777 = vmatmul.mubr.f32.gmra.mrb[0].mxu0 %v1606
      %v1778 = vpop.f32.mrb[0].mxu0
      %v1779 = vadd.f32 0.0, %v1778
      %v1780 = vpop.f32.mrb[0].mxu0
      %1781 = vdwg.mxu0
      %v1782 = vadd.f32 %v1569, %v1675
      %v1783 = vadd.f32 %v1570, %v1677
      %v1784 = vadd.f32 %v1571, %v1764
      %v1785 = vadd.f32 %v1572, %v1681
      %v1786 = vadd.f32 %v1573, %v1683
      %v1787 = vadd.f32 %v1574, %v1769
      %v1788 = vadd.f32 %v1575, %v1687
      %v1789 = vadd.f32 %v1576, %v1689
      %v1790 = vadd.f32 %v1577, %v1774
      %v1791 = vadd.f32 %v1578, %v1693
      %v1792 = vadd.f32 %v1579, %v1695
      %v1793 = vadd.f32 %v1580, %v1779
      %1794 = vrot.lane.b32.xlu0 %v331, 91
      %v1795 = vpop.permute.xlu0 %1794
      %1796 = vrot.lane.b32.xlu0 %v332, 91
      %v1797 = vpop.permute.xlu0 %1796
      %1798 = vrot.lane.b32.xlu0 %v333, 91
      %v1799 = vpop.permute.xlu0 %1798
      %vm1800 = vcmp.lt.s32.totalorder %v346, 91
      %v1801 = vsel %vm1800, %v1797, %v1799
      %v1802 = vsel %vm1800, %v1795, %v1797
      %v1803 = vsel %vm1800, %v1799, %v1795
      %s1804 = scalar_lea.vmem %s1, 224
      %v1805 = vld [vmem:[%s1804] sm:$0xff]
      %v1806 = vld [vmem:[%s1804 + $0x8] sm:$0xff]
      %v1807 = vld [vmem:[%s1804 + $0x10] sm:$0xff]
      %v1808 = vld [vmem:[%s1804 + $0x18] sm:$0xff]
      %v1810 = vsel %vm356, %v1805, 0
      %v1813 = vsel %vm356, %v1806, 0
      %v1816 = vsel %vm356, %v1807, 0
      %v1819 = vsel %vm356, %v1808, 0
      %1821 = vmatprep.subr.mxu0 %v1801
      %1822 = vmatpush1.msra.mxu0 %v1802
      %1823 = vmatprep.subr.mxu0 0.0
      %1824 = vmatpush1.msra.mxu0 0.0
      %1825 = vmatprep.subr.mxu0 0.0
      %1826 = vmatpush1.msra.mxu0 0.0
      %1827 = vmatprep.subr.mxu0 0.0
      %1828 = vmatpush1.msra.mxu0 0.0
      %1829 = vmatprep.subr.mxu0 0.0
      %1830 = vmatpush1.msra.mxu0 0.0
      %1831 = vmatprep.subr.mxu0 0.0
      %1832 = vmatpush1.msra.mxu0 0.0
      %1833 = vmatprep.subr.mxu0 0.0
      %1834 = vmatpush1.msra.mxu0 0.0
      %1835 = vmatprep.subr.mxu0 0.0
      %1836 = vmatpush1.msra.mxu0 0.0
      %1837 = vmatprep.subr.mxu0 0.0
      %1838 = vmatpush1.msra.mxu0 0.0
      %1839 = vmatprep.subr.mxu0 0.0
      %1840 = vmatpush1.msra.mxu0 0.0
      %1841 = vmatprep.subr.mxu0 0.0
      %1842 = vmatpush1.msra.mxu0 0.0
      %1843 = vmatprep.subr.mxu0 0.0
      %1844 = vmatpush1.msra.mxu0 0.0
      %1845 = vmatprep.subr.mxu0 0.0
      %1846 = vmatpush1.msra.mxu0 0.0
      %1847 = vmatprep.subr.mxu0 0.0
      %1848 = vmatpush1.msra.mxu0 0.0
      %1849 = vmatprep.subr.mxu0 0.0
      %1850 = vmatpush1.msra.mxu0 0.0
      %1851 = vmatprep.subr.mxu0 0.0
      %1852 = vmatpush1.msra.mxu0 0.0
      %1853 = vmatprep.subr.mxu0 0.0
      %1854 = vmatpush1.msra.mxu0 0.0
      %1855 = vmatprep.subr.mxu0 0.0
      %1856 = vmatpush1.msra.mxu0 0.0
      %1857 = vmatprep.subr.mxu0 0.0
      %1858 = vmatpush1.msra.mxu0 0.0
      %1859 = vmatprep.subr.mxu0 0.0
      %1860 = vmatpush1.msra.mxu0 0.0
      %1861 = vmatprep.subr.mxu0 0.0
      %1862 = vmatpush1.msra.mxu0 0.0
      %1863 = vmatprep.subr.mxu0 0.0
      %1864 = vmatpush1.msra.mxu0 0.0
      %1865 = vmatprep.subr.mxu0 0.0
      %1866 = vmatpush1.msra.mxu0 0.0
      %1867 = vmatprep.subr.mxu0 0.0
      %1868 = vmatpush1.msra.mxu0 0.0
      %1869 = vmatprep.subr.mxu0 0.0
      %1870 = vmatpush1.msra.mxu0 0.0
      %1871 = vmatprep.subr.mxu0 0.0
      %1872 = vmatpush1.msra.mxu0 0.0
      %1873 = vmatprep.subr.mxu0 0.0
      %1874 = vmatpush1.msra.mxu0 0.0
      %1875 = vmatprep.subr.mxu0 0.0
      %1876 = vmatpush1.msra.mxu0 0.0
      %1877 = vmatprep.subr.mxu0 0.0
      %1878 = vmatpush1.msra.mxu0 0.0
      %1879 = vmatprep.subr.mxu0 0.0
      %1880 = vmatpush1.msra.mxu0 0.0
      %1881 = vmatprep.subr.mxu0 0.0
      %1882 = vmatpush1.msra.mxu0 0.0
      %1883 = vmatprep.subr.mxu0 0.0
      %1884 = vmatpush1.msra.mxu0 0.0
      %1885 = vmatprep.mubr.f32.mxu0 0.0
      %1886 = vmatmul.mubr.f32.gmra.mrb[0].mxu0 %v1810
      %v1887 = vpop.f32.mrb[0].mxu0
      %v1888 = vadd.f32 0.0, %v1887
      %v1889 = vpop.f32.mrb[0].mxu0
      %v1890 = vadd.f32 0.0, %v1889
      %1891 = vmatprep.mubr.f32.mxu0 0.0
      %1892 = vmatmul.mubr.f32.gmra.mrb[0].mxu0 %v1813
      %v1893 = vpop.f32.mrb[0].mxu0
      %v1894 = vadd.f32 0.0, %v1893
      %v1895 = vpop.f32.mrb[0].mxu0
      %v1896 = vadd.f32 0.0, %v1895
      %1897 = vmatprep.mubr.f32.mxu0 0.0
      %1898 = vmatmul.mubr.f32.gmra.mrb[0].mxu0 %v1816
      %v1899 = vpop.f32.mrb[0].mxu0
      %v1900 = vadd.f32 0.0, %v1899
      %v1901 = vpop.f32.mrb[0].mxu0
      %v1902 = vadd.f32 0.0, %v1901
      %1903 = vmatprep.mubr.f32.mxu0 0.0
      %1904 = vmatmul.mubr.f32.gmra.mrb[0].mxu0 %v1819
      %v1905 = vpop.f32.mrb[0].mxu0
      %v1906 = vadd.f32 0.0, %v1905
      %v1907 = vpop.f32.mrb[0].mxu0
      %v1908 = vadd.f32 0.0, %v1907
      %1909 = vdwg.mxu0
      %1910 = vmatprep.subr.mxu0 0.0
      %1911 = vmatpush1.msra.mxu0 %v1803
      %1912 = vmatprep.subr.mxu0 0.0
      %1913 = vmatpush1.msra.mxu0 0.0
      %1914 = vmatprep.subr.mxu0 0.0
      %1915 = vmatpush1.msra.mxu0 0.0
      %1916 = vmatprep.subr.mxu0 0.0
      %1917 = vmatpush1.msra.mxu0 0.0
      %1918 = vmatprep.subr.mxu0 0.0
      %1919 = vmatpush1.msra.mxu0 0.0
      %1920 = vmatprep.subr.mxu0 0.0
      %1921 = vmatpush1.msra.mxu0 0.0
      %1922 = vmatprep.subr.mxu0 0.0
      %1923 = vmatpush1.msra.mxu0 0.0
      %1924 = vmatprep.subr.mxu0 0.0
      %1925 = vmatpush1.msra.mxu0 0.0
      %1926 = vmatprep.subr.mxu0 0.0
      %1927 = vmatpush1.msra.mxu0 0.0
      %1928 = vmatprep.subr.mxu0 0.0
      %1929 = vmatpush1.msra.mxu0 0.0
      %1930 = vmatprep.subr.mxu0 0.0
      %1931 = vmatpush1.msra.mxu0 0.0
      %1932 = vmatprep.subr.mxu0 0.0
      %1933 = vmatpush1.msra.mxu0 0.0
      %1934 = vmatprep.subr.mxu0 0.0
      %1935 = vmatpush1.msra.mxu0 0.0
      %1936 = vmatprep.subr.mxu0 0.0
      %1937 = vmatpush1.msra.mxu0 0.0
      %1938 = vmatprep.subr.mxu0 0.0
      %1939 = vmatpush1.msra.mxu0 0.0
      %1940 = vmatprep.subr.mxu0 0.0
      %1941 = vmatpush1.msra.mxu0 0.0
      %1942 = vmatprep.subr.mxu0 0.0
      %1943 = vmatpush1.msra.mxu0 0.0
      %1944 = vmatprep.subr.mxu0 0.0
      %1945 = vmatpush1.msra.mxu0 0.0
      %1946 = vmatprep.subr.mxu0 0.0
      %1947 = vmatpush1.msra.mxu0 0.0
      %1948 = vmatprep.subr.mxu0 0.0
      %1949 = vmatpush1.msra.mxu0 0.0
      %1950 = vmatprep.subr.mxu0 0.0
      %1951 = vmatpush1.msra.mxu0 0.0
      %1952 = vmatprep.subr.mxu0 0.0
      %1953 = vmatpush1.msra.mxu0 0.0
      %1954 = vmatprep.subr.mxu0 0.0
      %1955 = vmatpush1.msra.mxu0 0.0
      %1956 = vmatprep.subr.mxu0 0.0
      %1957 = vmatpush1.msra.mxu0 0.0
      %1958 = vmatprep.subr.mxu0 0.0
      %1959 = vmatpush1.msra.mxu0 0.0
      %1960 = vmatprep.subr.mxu0 0.0
      %1961 = vmatpush1.msra.mxu0 0.0
      %1962 = vmatprep.subr.mxu0 0.0
      %1963 = vmatpush1.msra.mxu0 0.0
      %1964 = vmatprep.subr.mxu0 0.0
      %1965 = vmatpush1.msra.mxu0 0.0
      %1966 = vmatprep.subr.mxu0 0.0
      %1967 = vmatpush1.msra.mxu0 0.0
      %1968 = vmatprep.subr.mxu0 0.0
      %1969 = vmatpush1.msra.mxu0 0.0
      %1970 = vmatprep.subr.mxu0 0.0
      %1971 = vmatpush1.msra.mxu0 0.0
      %1972 = vmatprep.subr.mxu0 0.0
      %1973 = vmatpush1.msra.mxu0 0.0
      %1974 = vmatprep.mubr.f32.mxu0 0.0
      %1975 = vmatmul.mubr.f32.gmra.mrb[0].mxu0 %v1810
      %v1976 = vpop.f32.mrb[0].mxu0
      %v1977 = vadd.f32 0.0, %v1976
      %v1978 = vpop.f32.mrb[0].mxu0
      %1979 = vmatprep.mubr.f32.mxu0 0.0
      %1980 = vmatmul.mubr.f32.gmra.mrb[0].mxu0 %v1813
      %v1981 = vpop.f32.mrb[0].mxu0
      %v1982 = vadd.f32 0.0, %v1981
      %v1983 = vpop.f32.mrb[0].mxu0
      %1984 = vmatprep.mubr.f32.mxu0 0.0
      %1985 = vmatmul.mubr.f32.gmra.mrb[0].mxu0 %v1816
      %v1986 = vpop.f32.mrb[0].mxu0
      %v1987 = vadd.f32 0.0, %v1986
      %v1988 = vpop.f32.mrb[0].mxu0
      %1989 = vmatprep.mubr.f32.mxu0 0.0
      %1990 = vmatmul.mubr.f32.gmra.mrb[0].mxu0 %v1819
      %v1991 = vpop.f32.mrb[0].mxu0
      %v1992 = vadd.f32 0.0, %v1991
      %v1993 = vpop.f32.mrb[0].mxu0
      %1994 = vdwg.mxu0
      %v1995 = vadd.f32 %v1782, %v1888
      %v1996 = vadd.f32 %v1783, %v1890
      %v1997 = vadd.f32 %v1784, %v1977
      %v1998 = vadd.f32 %v1785, %v1894
      %v1999 = vadd.f32 %v1786, %v1896
      %v2000 = vadd.f32 %v1787, %v1982
      %v2001 = vadd.f32 %v1788, %v1900
      %v2002 = vadd.f32 %v1789, %v1902
      %v2003 = vadd.f32 %v1790, %v1987
      %v2004 = vadd.f32 %v1791, %v1906
      %v2005 = vadd.f32 %v1792, %v1908
      %v2006 = vadd.f32 %v1793, %v1992
      %2007 = vrot.lane.b32.xlu0 %v331, 90
      %v2008 = vpop.permute.xlu0 %2007
      %2009 = vrot.lane.b32.xlu0 %v332, 90
      %v2010 = vpop.permute.xlu0 %2009
      %2011 = vrot.lane.b32.xlu0 %v333, 90
      %v2012 = vpop.permute.xlu0 %2011
      %vm2013 = vcmp.lt.s32.totalorder %v346, 90
      %v2014 = vsel %vm2013, %v2010, %v2012
      %v2015 = vsel %vm2013, %v2008, %v2010
      %v2016 = vsel %vm2013, %v2012, %v2008
      %s2017 = scalar_lea.vmem %s1, 256
      %v2018 = vld [vmem:[%s2017] sm:$0xff]
      %v2019 = vld [vmem:[%s2017 + $0x8] sm:$0xff]
      %v2020 = vld [vmem:[%s2017 + $0x10] sm:$0xff]
      %v2021 = vld [vmem:[%s2017 + $0x18] sm:$0xff]
      %v2023 = vsel %vm356, %v2018, 0
      %v2026 = vsel %vm356, %v2019, 0
      %v2029 = vsel %vm356, %v2020, 0
      %v2032 = vsel %vm356, %v2021, 0
      %2034 = vmatprep.subr.mxu0 %v2014
      %2035 = vmatpush1.msra.mxu0 %v2015
      %2036 = vmatprep.subr.mxu0 0.0
      %2037 = vmatpush1.msra.mxu0 0.0
      %2038 = vmatprep.subr.mxu0 0.0
      %2039 = vmatpush1.msra.mxu0 0.0
      %2040 = vmatprep.subr.mxu0 0.0
      %2041 = vmatpush1.msra.mxu0 0.0
      %2042 = vmatprep.subr.mxu0 0.0
      %2043 = vmatpush1.msra.mxu0 0.0
      %2044 = vmatprep.subr.mxu0 0.0
      %2045 = vmatpush1.msra.mxu0 0.0
      %2046 = vmatprep.subr.mxu0 0.0
      %2047 = vmatpush1.msra.mxu0 0.0
      %2048 = vmatprep.subr.mxu0 0.0
      %2049 = vmatpush1.msra.mxu0 0.0
      %2050 = vmatprep.subr.mxu0 0.0
      %2051 = vmatpush1.msra.mxu0 0.0
      %2052 = vmatprep.subr.mxu0 0.0
      %2053 = vmatpush1.msra.mxu0 0.0
      %2054 = vmatprep.subr.mxu0 0.0
      %2055 = vmatpush1.msra.mxu0 0.0
      %2056 = vmatprep.subr.mxu0 0.0
      %2057 = vmatpush1.msra.mxu0 0.0
      %2058 = vmatprep.subr.mxu0 0.0
      %2059 = vmatpush1.msra.mxu0 0.0
      %2060 = vmatprep.subr.mxu0 0.0
      %2061 = vmatpush1.msra.mxu0 0.0
      %2062 = vmatprep.subr.mxu0 0.0
      %2063 = vmatpush1.msra.mxu0 0.0
      %2064 = vmatprep.subr.mxu0 0.0
      %2065 = vmatpush1.msra.mxu0 0.0
      %2066 = vmatprep.subr.mxu0 0.0
      %2067 = vmatpush1.msra.mxu0 0.0
      %2068 = vmatprep.subr.mxu0 0.0
      %2069 = vmatpush1.msra.mxu0 0.0
      %2070 = vmatprep.subr.mxu0 0.0
      %2071 = vmatpush1.msra.mxu0 0.0
      %2072 = vmatprep.subr.mxu0 0.0
      %2073 = vmatpush1.msra.mxu0 0.0
      %2074 = vmatprep.subr.mxu0 0.0
      %2075 = vmatpush1.msra.mxu0 0.0
      %2076 = vmatprep.subr.mxu0 0.0
      %2077 = vmatpush1.msra.mxu0 0.0
      %2078 = vmatprep.subr.mxu0 0.0
      %2079 = vmatpush1.msra.mxu0 0.0
      %2080 = vmatprep.subr.mxu0 0.0
      %2081 = vmatpush1.msra.mxu0 0.0
      %2082 = vmatprep.subr.mxu0 0.0
      %2083 = vmatpush1.msra.mxu0 0.0
      %2084 = vmatprep.subr.mxu0 0.0
      %2085 = vmatpush1.msra.mxu0 0.0
      %2086 = vmatprep.subr.mxu0 0.0
      %2087 = vmatpush1.msra.mxu0 0.0
      %2088 = vmatprep.subr.mxu0 0.0
      %2089 = vmatpush1.msra.mxu0 0.0
      %2090 = vmatprep.subr.mxu0 0.0
      %2091 = vmatpush1.msra.mxu0 0.0
      %2092 = vmatprep.subr.mxu0 0.0
      %2093 = vmatpush1.msra.mxu0 0.0
      %2094 = vmatprep.subr.mxu0 0.0
      %2095 = vmatpush1.msra.mxu0 0.0
      %2096 = vmatprep.subr.mxu0 0.0
      %2097 = vmatpush1.msra.mxu0 0.0
      %2098 = vmatprep.mubr.f32.mxu0 0.0
      %2099 = vmatmul.mubr.f32.gmra.mrb[0].mxu0 %v2023
      %v2100 = vpop.f32.mrb[0].mxu0
      %v2101 = vadd.f32 0.0, %v2100
      %v2102 = vpop.f32.mrb[0].mxu0
      %v2103 = vadd.f32 0.0, %v2102
      %2104 = vmatprep.mubr.f32.mxu0 0.0
      %2105 = vmatmul.mubr.f32.gmra.mrb[0].mxu0 %v2026
      %v2106 = vpop.f32.mrb[0].mxu0
      %v2107 = vadd.f32 0.0, %v2106
      %v2108 = vpop.f32.mrb[0].mxu0
      %v2109 = vadd.f32 0.0, %v2108
      %2110 = vmatprep.mubr.f32.mxu0 0.0
      %2111 = vmatmul.mubr.f32.gmra.mrb[0].mxu0 %v2029
      %v2112 = vpop.f32.mrb[0].mxu0
      %v2113 = vadd.f32 0.0, %v2112
      %v2114 = vpop.f32.mrb[0].mxu0
      %v2115 = vadd.f32 0.0, %v2114
      %2116 = vmatprep.mubr.f32.mxu0 0.0
      %2117 = vmatmul.mubr.f32.gmra.mrb[0].mxu0 %v2032
      %v2118 = vpop.f32.mrb[0].mxu0
      %v2119 = vadd.f32 0.0, %v2118
      %v2120 = vpop.f32.mrb[0].mxu0
      %v2121 = vadd.f32 0.0, %v2120
      %2122 = vdwg.mxu0
      %2123 = vmatprep.subr.mxu0 0.0
      %2124 = vmatpush1.msra.mxu0 %v2016
      %2125 = vmatprep.subr.mxu0 0.0
      %2126 = vmatpush1.msra.mxu0 0.0
      %2127 = vmatprep.subr.mxu0 0.0
      %2128 = vmatpush1.msra.mxu0 0.0
      %2129 = vmatprep.subr.mxu0 0.0
      %2130 = vmatpush1.msra.mxu0 0.0
      %2131 = vmatprep.subr.mxu0 0.0
      %2132 = vmatpush1.msra.mxu0 0.0
      %2133 = vmatprep.subr.mxu0 0.0
      %2134 = vmatpush1.msra.mxu0 0.0
      %2135 = vmatprep.subr.mxu0 0.0
      %2136 = vmatpush1.msra.mxu0 0.0
      %2137 = vmatprep.subr.mxu0 0.0
      %2138 = vmatpush1.msra.mxu0 0.0
      %2139 = vmatprep.subr.mxu0 0.0
      %2140 = vmatpush1.msra.mxu0 0.0
      %2141 = vmatprep.subr.mxu0 0.0
      %2142 = vmatpush1.msra.mxu0 0.0
      %2143 = vmatprep.subr.mxu0 0.0
      %2144 = vmatpush1.msra.mxu0 0.0
      %2145 = vmatprep.subr.mxu0 0.0
      %2146 = vmatpush1.msra.mxu0 0.0
      %2147 = vmatprep.subr.mxu0 0.0
      %2148 = vmatpush1.msra.mxu0 0.0
      %2149 = vmatprep.subr.mxu0 0.0
      %2150 = vmatpush1.msra.mxu0 0.0
      %2151 = vmatprep.subr.mxu0 0.0
      %2152 = vmatpush1.msra.mxu0 0.0
      %2153 = vmatprep.subr.mxu0 0.0
      %2154 = vmatpush1.msra.mxu0 0.0
      %2155 = vmatprep.subr.mxu0 0.0
      %2156 = vmatpush1.msra.mxu0 0.0
      %2157 = vmatprep.subr.mxu0 0.0
      %2158 = vmatpush1.msra.mxu0 0.0
      %2159 = vmatprep.subr.mxu0 0.0
      %2160 = vmatpush1.msra.mxu0 0.0
      %2161 = vmatprep.subr.mxu0 0.0
      %2162 = vmatpush1.msra.mxu0 0.0
      %2163 = vmatprep.subr.mxu0 0.0
      %2164 = vmatpush1.msra.mxu0 0.0
      %2165 = vmatprep.subr.mxu0 0.0
      %2166 = vmatpush1.msra.mxu0 0.0
      %2167 = vmatprep.subr.mxu0 0.0
      %2168 = vmatpush1.msra.mxu0 0.0
      %2169 = vmatprep.subr.mxu0 0.0
      %2170 = vmatpush1.msra.mxu0 0.0
      %2171 = vmatprep.subr.mxu0 0.0
      %2172 = vmatpush1.msra.mxu0 0.0
      %2173 = vmatprep.subr.mxu0 0.0
      %2174 = vmatpush1.msra.mxu0 0.0
      %2175 = vmatprep.subr.mxu0 0.0
      %2176 = vmatpush1.msra.mxu0 0.0
      %2177 = vmatprep.subr.mxu0 0.0
      %2178 = vmatpush1.msra.mxu0 0.0
      %2179 = vmatprep.subr.mxu0 0.0
      %2180 = vmatpush1.msra.mxu0 0.0
      %2181 = vmatprep.subr.mxu0 0.0
      %2182 = vmatpush1.msra.mxu0 0.0
      %2183 = vmatprep.subr.mxu0 0.0
      %2184 = vmatpush1.msra.mxu0 0.0
      %2185 = vmatprep.subr.mxu0 0.0
      %2186 = vmatpush1.msra.mxu0 0.0
      %2187 = vmatprep.mubr.f32.mxu0 0.0
      %2188 = vmatmul.mubr.f32.gmra.mrb[0].mxu0 %v2023
      %v2189 = vpop.f32.mrb[0].mxu0
      %v2190 = vadd.f32 0.0, %v2189
      %v2191 = vpop.f32.mrb[0].mxu0
      %2192 = vmatprep.mubr.f32.mxu0 0.0
      %2193 = vmatmul.mubr.f32.gmra.mrb[0].mxu0 %v2026
      %v2194 = vpop.f32.mrb[0].mxu0
      %v2195 = vadd.f32 0.0, %v2194
      %v2196 = vpop.f32.mrb[0].mxu0
      %2197 = vmatprep.mubr.f32.mxu0 0.0
      %2198 = vmatmul.mubr.f32.gmra.mrb[0].mxu0 %v2029
      %v2199 = vpop.f32.mrb[0].mxu0
      %v2200 = vadd.f32 0.0, %v2199
      %v2201 = vpop.f32.mrb[0].mxu0
      %2202 = vmatprep.mubr.f32.mxu0 0.0
      %2203 = vmatmul.mubr.f32.gmra.mrb[0].mxu0 %v2032
      %v2204 = vpop.f32.mrb[0].mxu0
      %v2205 = vadd.f32 0.0, %v2204
      %v2206 = vpop.f32.mrb[0].mxu0
      %2207 = vdwg.mxu0
      %v2208 = vadd.f32 %v1995, %v2101
      %v2209 = vadd.f32 %v1996, %v2103
      %v2210 = vadd.f32 %v1997, %v2190
      %v2211 = vadd.f32 %v1998, %v2107
      %v2212 = vadd.f32 %v1999, %v2109
      %v2213 = vadd.f32 %v2000, %v2195
      %v2214 = vadd.f32 %v2001, %v2113
      %v2215 = vadd.f32 %v2002, %v2115
      %v2216 = vadd.f32 %v2003, %v2200
      %v2217 = vadd.f32 %v2004, %v2119
      %v2218 = vadd.f32 %v2005, %v2121
      %v2219 = vadd.f32 %v2006, %v2205
      %v2220 = vld [vmem:[%s2] sm:$0xff]
      %v2221 = vld [vmem:[%s2 + $0x8] sm:$0xff]
      %v2222 = vld [vmem:[%s2 + $0x10] sm:$0xff]
      %v2223 = vld [vmem:[%s2 + $0x18] sm:$0xff]
      %2225 = vset.pattern.permute.xlu0 0
      %2226 = vperm.xlu0 %2225, %v2220
      %v2227 = vpop.permute.xlu0 %2226
      %2230 = vset.pattern.permute.xlu0 0
      %2231 = vperm.xlu0 %2230, %v2221
      %v2232 = vpop.permute.xlu0 %2231
      %2235 = vset.pattern.permute.xlu0 0
      %2236 = vperm.xlu0 %2235, %v2222
      %v2237 = vpop.permute.xlu0 %2236
      %2240 = vset.pattern.permute.xlu0 0
      %2241 = vperm.xlu0 %2240, %v2223
      %v2242 = vpop.permute.xlu0 %2241
      %v2244 = vadd.f32 %v2208, %v2227
      %v2245 = vadd.f32 %v2209, %v2227
      %v2246 = vadd.f32 %v2210, %v2227
      %v2247 = vadd.f32 %v2211, %v2232
      %v2248 = vadd.f32 %v2212, %v2232
      %v2249 = vadd.f32 %v2213, %v2232
      %v2250 = vadd.f32 %v2214, %v2237
      %v2251 = vadd.f32 %v2215, %v2237
      %v2252 = vadd.f32 %v2216, %v2237
      %v2253 = vadd.f32 %v2217, %v2242
      %v2254 = vadd.f32 %v2218, %v2242
      %v2255 = vadd.f32 %v2219, %v2242
      %2256 = vst [vmem:[%s320] sm:$0xff] %v2244
      %2257 = vst [vmem:[%s320 + $0x8] sm:$0xff] %v2245
      %2258 = vst [vmem:[%s320 + $0x10] sm:$0xff] %v2246
      %2259 = vst [vmem:[%s320 + $0x18] sm:$0xff] %v2247
      %2260 = vst [vmem:[%s320 + $0x20] sm:$0xff] %v2248
      %2261 = vst [vmem:[%s320 + $0x28] sm:$0xff] %v2249
      %2262 = vst [vmem:[%s320 + $0x30] sm:$0xff] %v2250
      %2263 = vst [vmem:[%s320 + $0x38] sm:$0xff] %v2251
      %2264 = vst [vmem:[%s320 + $0x40] sm:$0xff] %v2252
      %2265 = vst [vmem:[%s320 + $0x48] sm:$0xff] %v2253
      %2266 = vst [vmem:[%s320 + $0x50] sm:$0xff] %v2254
      %2267 = vst [vmem:[%s320 + $0x58] sm:$0xff] %v2255
      %v2269 = vlaneseq
      %v2270 = vshrl.u32 %v2269, 7
      %v2271 = vsub.s32 0, %v2270
      %v2272 = vrot.slane %v334, %v2271
      %v2273 = vlaneseq
      %v2274 = vshrl.u32 %v2273, 7
      %v2275 = vsub.s32 1, %v2274
      %v2276 = vrot.slane %v334, %v2275
      %v2277 = vlaneseq
      %v2278 = vshrl.u32 %v2277, 7
      %v2279 = vsub.s32 2, %v2278
      %v2280 = vrot.slane %v334, %v2279
      %v2284 = vmul.f32 %v2244, %v2272
      %v2285 = vmul.f32 %v2245, %v2276
      %v2286 = vmul.f32 %v2246, %v2280
      %v2287 = vmul.f32 %v2247, %v2272
      %v2288 = vmul.f32 %v2248, %v2276
      %v2289 = vmul.f32 %v2249, %v2280
      %v2290 = vmul.f32 %v2250, %v2272
      %v2291 = vmul.f32 %v2251, %v2276
      %v2292 = vmul.f32 %v2252, %v2280
      %v2293 = vmul.f32 %v2253, %v2272
      %v2294 = vmul.f32 %v2254, %v2276
      %v2295 = vmul.f32 %v2255, %v2280
      %v2296 = vadd.f32 %v2284, %v2285
      %v2297 = vadd.f32 %v2296, %v2286
      %2298 = vadd.xlane.f32.xlu0 %v2297
      %v2299 = vpop.xlane.xlu0 %2298
      %v2300 = vadd.f32 %v2287, %v2288
      %v2301 = vadd.f32 %v2300, %v2289
      %2302 = vadd.xlane.f32.xlu0 %v2301
      %v2303 = vpop.xlane.xlu0 %2302
      %v2304 = vadd.f32 %v2290, %v2291
      %v2305 = vadd.f32 %v2304, %v2292
      %2306 = vadd.xlane.f32.xlu0 %v2305
      %v2307 = vpop.xlane.xlu0 %2306
      %v2308 = vadd.f32 %v2293, %v2294
      %v2309 = vadd.f32 %v2308, %v2295
      %2310 = vadd.xlane.f32.xlu0 %v2309
      %v2311 = vpop.xlane.xlu0 %2310
      %v2312 = vmul.f32 %v2299, 0.00390625
      %v2313 = vmul.f32 %v2303, 0.00390625
      %v2314 = vmul.f32 %v2307, 0.00390625
      %v2315 = vmul.f32 %v2311, 0.00390625
      %v2316 = vsub.f32 %v2244, %v2312
      %v2317 = vsub.f32 %v2245, %v2312
      %v2318 = vsub.f32 %v2246, %v2312
      %v2319 = vsub.f32 %v2247, %v2313
      %v2320 = vsub.f32 %v2248, %v2313
      %v2321 = vsub.f32 %v2249, %v2313
      %v2322 = vsub.f32 %v2250, %v2314
      %v2323 = vsub.f32 %v2251, %v2314
      %v2324 = vsub.f32 %v2252, %v2314
      %v2325 = vsub.f32 %v2253, %v2315
      %v2326 = vsub.f32 %v2254, %v2315
      %v2327 = vsub.f32 %v2255, %v2315
      %v2328 = vmul.f32 %v2316, %v2272
      %v2329 = vmul.f32 %v2317, %v2276
      %v2330 = vmul.f32 %v2318, %v2280
      %v2331 = vmul.f32 %v2319, %v2272
      %v2332 = vmul.f32 %v2320, %v2276
      %v2333 = vmul.f32 %v2321, %v2280
      %v2334 = vmul.f32 %v2322, %v2272
      %v2335 = vmul.f32 %v2323, %v2276
      %v2336 = vmul.f32 %v2324, %v2280
      %v2337 = vmul.f32 %v2325, %v2272
      %v2338 = vmul.f32 %v2326, %v2276
      %v2339 = vmul.f32 %v2327, %v2280
      %vm2340 = vcmask 7168
      %2341 = vst.msk [vmem:[%s325] sm:$0xff] %vm2340, %v2299
      %2342 = vst.msk [vmem:[%s325 + $0x8] sm:$0xff] %vm2340, %v2303
      %2343 = vst.msk [vmem:[%s325 + $0x10] sm:$0xff] %vm2340, %v2307
      %2344 = vst.msk [vmem:[%s325 + $0x18] sm:$0xff] %vm2340, %v2311
      %v2345 = vmul.f32 %v2328, %v2328
      %v2346 = vmul.f32 %v2329, %v2329
      %v2347 = vmul.f32 %v2330, %v2330
      %v2348 = vmul.f32 %v2331, %v2331
      %v2349 = vmul.f32 %v2332, %v2332
      %v2350 = vmul.f32 %v2333, %v2333
      %v2351 = vmul.f32 %v2334, %v2334
      %v2352 = vmul.f32 %v2335, %v2335
      %v2353 = vmul.f32 %v2336, %v2336
      %v2354 = vmul.f32 %v2337, %v2337
      %v2355 = vmul.f32 %v2338, %v2338
      %v2356 = vmul.f32 %v2339, %v2339
      %v2357 = vadd.f32 %v2345, %v2346
      %v2358 = vadd.f32 %v2357, %v2347
      %2359 = vadd.xlane.f32.xlu0 %v2358
      %v2360 = vpop.xlane.xlu0 %2359
      %v2361 = vadd.f32 %v2348, %v2349
      %v2362 = vadd.f32 %v2361, %v2350
      %2363 = vadd.xlane.f32.xlu0 %v2362
      %v2364 = vpop.xlane.xlu0 %2363
      %v2365 = vadd.f32 %v2351, %v2352
      %v2366 = vadd.f32 %v2365, %v2353
      %2367 = vadd.xlane.f32.xlu0 %v2366
      %v2368 = vpop.xlane.xlu0 %2367
      %v2369 = vadd.f32 %v2354, %v2355
      %v2370 = vadd.f32 %v2369, %v2356
      %2371 = vadd.xlane.f32.xlu0 %v2370
      %v2372 = vpop.xlane.xlu0 %2371
      %2373 = vst.msk [vmem:[%s330] sm:$0xff] %vm2340, %v2360
      %2374 = vst.msk [vmem:[%s330 + $0x8] sm:$0xff] %vm2340, %v2364
      %2375 = vst.msk [vmem:[%s330 + $0x10] sm:$0xff] %vm2340, %v2368
      %2376 = vst.msk [vmem:[%s330 + $0x18] sm:$0xff] %vm2340, %v2372
      %p2377 = scmp.lt.s32.totalorder %s20, 1
      %s2378 = scalar_select %p2377, %s20, 1
      %s2379 = smul.addr %s2378, 12
      %s2380 = smul.addr %s2379, 8
      %s2381 = scalar_lea.vmem %s6, %s2380
      %p2382 = scmp.lt.s32.totalorder %s20, 1
      %s2383 = scalar_select %p2382, %s20, 1
      %s2384 = smul.addr %s2383, 4
      %s2385 = smul.addr %s2384, 8
      %s2386 = scalar_lea.vmem %s7, %s2385
      %p2387 = scmp.lt.s32.totalorder %s20, 1
      %s2388 = scalar_select %p2387, %s20, 1
      %s2389 = smul.addr %s2388, 4
      %s2390 = smul.addr %s2389, 8
      %s2391 = scalar_lea.vmem %s8, %s2390
      // Predicated region
      $region45: #{up_transition_forward.4} parent=43 // pred_check
        %p2392 = pneg %p169
      $region46: #{up_transition_forward.4} parent=43 // pred_check_branch
        %2394 = sbr.rel (%p2392) target = $region48
      $region47: #{up_transition_forward.4} parent=43 // pred_region
        _
      $region48: #{up_transition_forward.4} parent=43 // pred_fallthru
        _
      // Predicated region
      $region49: #{up_transition_forward.4} parent=43 // pred_check
        %p2395 = pneg %p195
      $region50: #{up_transition_forward.4} parent=43 // pred_check_branch
        %2397 = sbr.rel (%p2395) target = $region52
      $region51: #{up_transition_forward.4} parent=43 // pred_region
        _
      $region52: #{up_transition_forward.4} parent=43 // pred_fallthru
        _
      // Predicated region
      $region53: #{up_transition_forward.4} parent=43 // pred_check
        %p2398 = pneg %p221
      $region54: #{up_transition_forward.4} parent=43 // pred_check_branch
        %2400 = sbr.rel (%p2398) target = $region56
      $region55: #{up_transition_forward.4} parent=43 // pred_region
        _
      $region56: #{up_transition_forward.4} parent=43 // pred_fallthru
        _
    $region44: #{up_transition_forward.4} parent=5 // pred_fallthru
      _
    %p2401 = scmp.le.s32.totalorder 2, %s15
    // Predicated region
    $region57: #{up_transition_forward.4} parent=5 // pred_check
      %p2402 = pneg %p2401
    $region58: #{up_transition_forward.4} parent=5 // pred_check_branch
      %2404 = sbr.rel (%p2402) target = $region60
    $region59: #{up_transition_forward.4} parent=5 // pred_region
      %s2405 = ssub.s32 %s15, 2
      // Predicated region
      $region61: #{up_transition_forward.4} parent=59 // pred_check
        %p2406 = pneg %p175
      $region62: #{up_transition_forward.4} parent=59 // pred_check_branch
        %2408 = sbr.rel (%p2406) target = $region64
      $region63: #{up_transition_forward.4} parent=59 // pred_region
        %p2409 = scmp.lt.s32.totalorder %s21, 1
        %s2410 = scalar_select %p2409, %s21, 1
        %s2411 = smul.addr %s2410, 12
        %s2412 = smul.addr %s2411, 8
        %s2413 = scalar_lea.vmem %s6, %s2412
      $region64: #{up_transition_forward.4} parent=59 // pred_fallthru
        _
      // Predicated region
      $region65: #{up_transition_forward.4} parent=59 // pred_check
        %p2414 = pneg %p201
      $region66: #{up_transition_forward.4} parent=59 // pred_check_branch
        %2416 = sbr.rel (%p2414) target = $region68
      $region67: #{up_transition_forward.4} parent=59 // pred_region
        %p2417 = scmp.lt.s32.totalorder %s21, 1
        %s2418 = scalar_select %p2417, %s21, 1
        %s2419 = smul.addr %s2418, 4
        %s2420 = smul.addr %s2419, 8
        %s2421 = scalar_lea.vmem %s7, %s2420
      $region68: #{up_transition_forward.4} parent=59 // pred_fallthru
        _
      // Predicated region
      $region69: #{up_transition_forward.4} parent=59 // pred_check
        %p2422 = pneg %p227
      $region70: #{up_transition_forward.4} parent=59 // pred_check_branch
        %2424 = sbr.rel (%p2422) target = $region72
      $region71: #{up_transition_forward.4} parent=59 // pred_region
        %p2425 = scmp.lt.s32.totalorder %s21, 1
        %s2426 = scalar_select %p2425, %s21, 1
        %s2427 = smul.addr %s2426, 4
        %s2428 = smul.addr %s2427, 8
        %s2429 = scalar_lea.vmem %s8, %s2428
      $region72: #{up_transition_forward.4} parent=59 // pred_fallthru
        _
    $region60: #{up_transition_forward.4} parent=5 // pred_fallthru
      _
  $region6: #{up_transition_forward.4} parent=0 // loop_footer
    %s19 = sadd.s32 1, %s15
  $region7: #{up_transition_forward.4} parent=0 // loop_footer_branch
    %14 = sbr.rel target = $region3
  $region8: #{up_transition_forward.4} parent=0 // loop_exit
    _

// kernel: up_transition_forward.7
$region0: #{up_transition_forward.7}
  #allocation0 [shape = 'u32[]', space=smem, size = 0x4, offset = 0x4, fixed_abs, tag = 'smem constant byte address 0x4 - core index']
  #allocation1 [shape = 'u32[144,128]{1,0:T(1,128)}', space=vmem, size = 0x12000, scoped, tag = 'internal scratch']
  #allocation2 [shape = 'f32[1,1]{1,0:T(1,128)S(1)}', space=vmem, size = 0x200, scoped, tag = 'scoped memory for up_transition_forward.7']
  %s0 = inlined_call_operand.vmem [shape: f32[2,8,1280], index: 0, kind: input, shape index: {}]
  %s1 = inlined_call_operand.vmem [shape: f32[2,8,1280], index: 1, kind: input, shape index: {}]
  %s2 = inlined_call_operand.vmem [shape: f32[8,1], index: 2, kind: input, shape index: {}]
  %s3 = inlined_call_operand.vmem [shape: f32[8,1], index: 3, kind: input, shape index: {}]
  %s4 = inlined_call_operand.vmem [shape: f32[8,1], index: 4, kind: input, shape index: {}]
  %s5 = inlined_call_operand.<no memory space> [shape: f32[1,1], index: 5, kind: input, shape index: {}]
  %s6 = inlined_call_operand.vmem [shape: f32[2,2,1280], index: 6, kind: output, shape index: {}]
  %s7 = sld [smem:[#allocation0]]
  $region57: #{up_transition_forward.7} parent=0
    _
  %s9 = ssub.s32 1, %s7
  %s10 = scalar_select 0, %s9, %s7
  %v11 = vstv %s5
  %12 = vst [vmem:[#allocation2] sm:$0x1] %v11
  loop: start=0, step=1, limit=4
  $region2: #{up_transition_forward.7} parent=0 // loop_pre_header
    _
  $region3: #{up_transition_forward.7} parent=0 // loop_header
    %s14 = sphi 0, %s18
    %p15 = scmp.ge.s32.totalorder %s14, 4
    %s24 = sphi 0, %s26
    %s27 = sphi 0, %s24
    %s28 = sphi 0, %s27
    %s44 = sphi 0, %s28
    %s50 = sphi 0, %s52
    %s53 = sphi 0, %s50
    %s54 = sphi 0, %s53
    %s70 = sphi 0, %s54
    %s74 = sphi 0, %s74
    %s76 = sphi 0, %s74
    %s77 = sphi 0, %s76
    %s91 = sphi 0, %s77
    %s95 = sphi 0, %s95
    %s97 = sphi 0, %s95
    %s98 = sphi 0, %s97
    %s112 = sphi 0, %s98
    %s116 = sphi 0, %s116
    %s118 = sphi 0, %s116
    %s119 = sphi 0, %s118
    %s133 = sphi 0, %s119
    %s137 = sphi 0, %s137
    %s139 = sphi 0, %s137
    %s140 = sphi 0, %s139
    %s154 = sphi 0, %s140
    %s160 = sphi 0, %s162
    %s163 = sphi 0, %s160
    %s164 = sphi 0, %s163
    %s180 = sphi 0, %s164
  $region4: #{up_transition_forward.7} parent=0 // loop_header_branch
    %17 = sbr.rel (%p15) target = $region8
  $region5: #{up_transition_forward.7} parent=0 // loop_body
    %s19 = ssub.s32 %s14, 1
    %s20 = ssub.s32 %s14, 2
    %s21 = sadd.s32 %s14, 1
    %s22 = ssub.s32 %s14, %s21
    %p23 = scmp.eq.s32.totalorder %s22, 0
    %s25 = sadd.s32 %s24, 1
    %s26 = scalar_select %p23, %s24, %s25
    %p29 = pneg %p23
    %p30 = scmp.eq.s32.totalorder %s14, 1
    %p31 = por %p29, %p30
    %p32 = scmp.ne.s32.totalorder %s24, %s27
    %p33 = scmp.eq.s32.totalorder %s14, 0
    %p34 = por %p32, %p33
    %p35 = scmp.ne.s32.totalorder %s24, %s27
    %p36 = scmp.eq.s32.totalorder %s19, 1
    %p37 = por %p35, %p36
    %p38 = scmp.ne.s32.totalorder %s27, %s28
    %p39 = scmp.eq.s32.totalorder %s19, 0
    %p40 = por %p38, %p39
    %p41 = scmp.ne.s32.totalorder %s27, %s28
    %p42 = scmp.eq.s32.totalorder %s20, 1
    %p43 = por %p41, %p42
    %p45 = scmp.ne.s32.totalorder %s28, %s44
    %p46 = scmp.eq.s32.totalorder %s20, 0
    %p47 = por %p45, %p46
    %s48 = ssub.s32 %s14, %s21
    %p49 = scmp.eq.s32.totalorder %s48, 0
    %s51 = sadd.s32 %s50, 1
    %s52 = scalar_select %p49, %s50, %s51
    %p55 = pneg %p49
    %p56 = scmp.eq.s32.totalorder %s14, 1
    %p57 = por %p55, %p56
    %p58 = scmp.ne.s32.totalorder %s50, %s53
    %p59 = scmp.eq.s32.totalorder %s14, 0
    %p60 = por %p58, %p59
    %p61 = scmp.ne.s32.totalorder %s50, %s53
    %p62 = scmp.eq.s32.totalorder %s19, 1
    %p63 = por %p61, %p62
    %p64 = scmp.ne.s32.totalorder %s53, %s54
    %p65 = scmp.eq.s32.totalorder %s19, 0
    %p66 = por %p64, %p65
    %p67 = scmp.ne.s32.totalorder %s53, %s54
    %p68 = scmp.eq.s32.totalorder %s20, 1
    %p69 = por %p67, %p68
    %p71 = scmp.ne.s32.totalorder %s54, %s70
    %p72 = scmp.eq.s32.totalorder %s20, 0
    %p73 = por %p71, %p72
    %s75 = sadd.s32 %s74, 1
    %p78 = scmp.eq.s32.totalorder %s14, 1
    %p79 = scmp.ne.s32.totalorder %s74, %s76
    %p80 = scmp.eq.s32.totalorder %s14, 0
    %p81 = por %p79, %p80
    %p82 = scmp.ne.s32.totalorder %s74, %s76
    %p83 = scmp.eq.s32.totalorder %s19, 1
    %p84 = por %p82, %p83
    %p85 = scmp.ne.s32.totalorder %s76, %s77
    %p86 = scmp.eq.s32.totalorder %s19, 0
    %p87 = por %p85, %p86
    %p88 = scmp.ne.s32.totalorder %s76, %s77
    %p89 = scmp.eq.s32.totalorder %s20, 1
    %p90 = por %p88, %p89
    %p92 = scmp.ne.s32.totalorder %s77, %s91
    %p93 = scmp.eq.s32.totalorder %s20, 0
    %p94 = por %p92, %p93
    %s96 = sadd.s32 %s95, 1
    %p99 = scmp.eq.s32.totalorder %s14, 1
    %p100 = scmp.ne.s32.totalorder %s95, %s97
    %p101 = scmp.eq.s32.totalorder %s14, 0
    %p102 = por %p100, %p101
    %p103 = scmp.ne.s32.totalorder %s95, %s97
    %p104 = scmp.eq.s32.totalorder %s19, 1
    %p105 = por %p103, %p104
    %p106 = scmp.ne.s32.totalorder %s97, %s98
    %p107 = scmp.eq.s32.totalorder %s19, 0
    %p108 = por %p106, %p107
    %p109 = scmp.ne.s32.totalorder %s97, %s98
    %p110 = scmp.eq.s32.totalorder %s20, 1
    %p111 = por %p109, %p110
    %p113 = scmp.ne.s32.totalorder %s98, %s112
    %p114 = scmp.eq.s32.totalorder %s20, 0
    %p115 = por %p113, %p114
    %s117 = sadd.s32 %s116, 1
    %p120 = scmp.eq.s32.totalorder %s14, 1
    %p121 = scmp.ne.s32.totalorder %s116, %s118
    %p122 = scmp.eq.s32.totalorder %s14, 0
    %p123 = por %p121, %p122
    %p124 = scmp.ne.s32.totalorder %s116, %s118
    %p125 = scmp.eq.s32.totalorder %s19, 1
    %p126 = por %p124, %p125
    %p127 = scmp.ne.s32.totalorder %s118, %s119
    %p128 = scmp.eq.s32.totalorder %s19, 0
    %p129 = por %p127, %p128
    %p130 = scmp.ne.s32.totalorder %s118, %s119
    %p131 = scmp.eq.s32.totalorder %s20, 1
    %p132 = por %p130, %p131
    %p134 = scmp.ne.s32.totalorder %s119, %s133
    %p135 = scmp.eq.s32.totalorder %s20, 0
    %p136 = por %p134, %p135
    %s138 = sadd.s32 %s137, 1
    %p141 = scmp.eq.s32.totalorder %s14, 1
    %p142 = scmp.ne.s32.totalorder %s137, %s139
    %p143 = scmp.eq.s32.totalorder %s14, 0
    %p144 = por %p142, %p143
    %p145 = scmp.ne.s32.totalorder %s137, %s139
    %p146 = scmp.eq.s32.totalorder %s19, 1
    %p147 = por %p145, %p146
    %p148 = scmp.ne.s32.totalorder %s139, %s140
    %p149 = scmp.eq.s32.totalorder %s19, 0
    %p150 = por %p148, %p149
    %p151 = scmp.ne.s32.totalorder %s139, %s140
    %p152 = scmp.eq.s32.totalorder %s20, 1
    %p153 = por %p151, %p152
    %p155 = scmp.ne.s32.totalorder %s140, %s154
    %p156 = scmp.eq.s32.totalorder %s20, 0
    %p157 = por %p155, %p156
    %s158 = ssub.s32 %s14, %s21
    %p159 = scmp.eq.s32.totalorder %s158, 0
    %s161 = sadd.s32 %s160, 1
    %s162 = scalar_select %p159, %s160, %s161
    %p165 = pneg %p159
    %p166 = scmp.eq.s32.totalorder %s14, 1
    %p167 = por %p165, %p166
    %p168 = scmp.ne.s32.totalorder %s160, %s163
    %p169 = scmp.eq.s32.totalorder %s14, 0
    %p170 = por %p168, %p169
    %p171 = scmp.ne.s32.totalorder %s160, %s163
    %p172 = scmp.eq.s32.totalorder %s19, 1
    %p173 = por %p171, %p172
    %p174 = scmp.ne.s32.totalorder %s163, %s164
    %p175 = scmp.eq.s32.totalorder %s19, 0
    %p176 = por %p174, %p175
    %p177 = scmp.ne.s32.totalorder %s163, %s164
    %p178 = scmp.eq.s32.totalorder %s20, 1
    %p179 = por %p177, %p178
    %p181 = scmp.ne.s32.totalorder %s164, %s180
    %p182 = scmp.eq.s32.totalorder %s20, 0
    %p183 = por %p181, %p182
    %p184 = scmp.le.s32.totalorder 1, %s14
    %p185 = scmp.lt.s32.totalorder %s14, 3
    %p186 = pnand %p184, %p185
    %p187 = pneg %p186
    // Predicated region
    $region9: #{up_transition_forward.7} parent=5 // pred_check
      _
    $region10: #{up_transition_forward.7} parent=5 // pred_check_branch
      %189 = sbr.rel (%p186) target = $region12
    $region11: #{up_transition_forward.7} parent=5 // pred_region
      %s190 = ssub.s32 %s14, 1
      // Predicated region
      $region13: #{up_transition_forward.7} parent=11 // pred_check
        %p191 = pneg %p87
      $region14: #{up_transition_forward.7} parent=11 // pred_check_branch
        %193 = sbr.rel (%p191) target = $region16
      $region15: #{up_transition_forward.7} parent=11 // pred_region
        _
      $region16: #{up_transition_forward.7} parent=11 // pred_fallthru
        _
      // Predicated region
      $region17: #{up_transition_forward.7} parent=11 // pred_check
        %p194 = pneg %p108
      $region18: #{up_transition_forward.7} parent=11 // pred_check_branch
        %196 = sbr.rel (%p194) target = $region20
      $region19: #{up_transition_forward.7} parent=11 // pred_region
        _
      $region20: #{up_transition_forward.7} parent=11 // pred_fallthru
        _
      // Predicated region
      $region21: #{up_transition_forward.7} parent=11 // pred_check
        %p197 = pneg %p129
      $region22: #{up_transition_forward.7} parent=11 // pred_check_branch
        %199 = sbr.rel (%p197) target = $region24
      $region23: #{up_transition_forward.7} parent=11 // pred_region
        _
      $region24: #{up_transition_forward.7} parent=11 // pred_fallthru
        _
      // Predicated region
      $region25: #{up_transition_forward.7} parent=11 // pred_check
        %p200 = pneg %p150
      $region26: #{up_transition_forward.7} parent=11 // pred_check_branch
        %202 = sbr.rel (%p200) target = $region28
      $region27: #{up_transition_forward.7} parent=11 // pred_region
        _
      $region28: #{up_transition_forward.7} parent=11 // pred_fallthru
        _
    $region12: #{up_transition_forward.7} parent=5 // pred_fallthru
      _
    %p203 = scmp.lt.s32.totalorder %s14, 2
    // Predicated region
    $region29: #{up_transition_forward.7} parent=5 // pred_check
      %p204 = pneg %p203
    $region30: #{up_transition_forward.7} parent=5 // pred_check_branch
      %206 = sbr.rel (%p204) target = $region32
    $region31: #{up_transition_forward.7} parent=5 // pred_region
      // Predicated region
      $region33: #{up_transition_forward.7} parent=31 // pred_check
        %p207 = pneg %p34
      $region34: #{up_transition_forward.7} parent=31 // pred_check_branch
        %209 = sbr.rel (%p207) target = $region36
      $region35: #{up_transition_forward.7} parent=31 // pred_region
        %p210 = scmp.lt.s32.totalorder %s14, 1
        %s211 = scalar_select %p210, %s14, 1
        %s212 = smul.addr %s211, 10
        %s213 = smul.addr %s212, 8
        %s214 = scalar_lea.vmem %s0, %s213
      $region36: #{up_transition_forward.7} parent=31 // pred_fallthru
        _
      // Predicated region
      $region37: #{up_transition_forward.7} parent=31 // pred_check
        %p215 = pneg %p60
      $region38: #{up_transition_forward.7} parent=31 // pred_check_branch
        %217 = sbr.rel (%p215) target = $region40
      $region39: #{up_transition_forward.7} parent=31 // pred_region
        %p218 = scmp.lt.s32.totalorder %s14, 1
        %s219 = scalar_select %p218, %s14, 1
        %s220 = smul.addr %s219, 10
        %s221 = smul.addr %s220, 8
        %s222 = scalar_lea.vmem %s1, %s221
      $region40: #{up_transition_forward.7} parent=31 // pred_fallthru
        _
    $region32: #{up_transition_forward.7} parent=5 // pred_fallthru
      _
    %p223 = scmp.le.s32.totalorder 1, %s14
    %p224 = scmp.lt.s32.totalorder %s14, 3
    %p225 = pnand %p223, %p224
    %p226 = pneg %p225
    // Predicated region
    $region41: #{up_transition_forward.7} parent=5 // pred_check
      _
    $region42: #{up_transition_forward.7} parent=5 // pred_check_branch
      %228 = sbr.rel (%p225) target = $region44
    $region43: #{up_transition_forward.7} parent=5 // pred_region
      %s229 = ssub.s32 %s14, 1
      %p230 = scmp.lt.s32.totalorder %s19, 1
      %s231 = scalar_select %p230, %s19, 1
      %s232 = smul.addr %s231, 10
      %s233 = smul.addr %s232, 8
      %s234 = scalar_lea.vmem %s0, %s233
      %p235 = pneg %p40
      %p236 = pneg %p37
      %p237 = scmp.lt.s32.totalorder %s19, 1
      %s238 = scalar_select %p237, %s19, 1
      %s239 = smul.addr %s238, 10
      %s240 = smul.addr %s239, 8
      %s241 = scalar_lea.vmem %s1, %s240
      %p242 = pneg %p66
      %p243 = pneg %p63
      %p244 = pneg %p87
      %p245 = pneg %p84
      %p246 = pneg %p108
      %p247 = pneg %p105
      %p248 = pneg %p129
      %p249 = pneg %p126
      %p250 = pneg %p150
      %p251 = pneg %p147
      %p252 = pneg %p176
      %p253 = pneg %p173
      %p254 = scmp.lt.s32.totalorder %s19, 1
      %s255 = scalar_select %p254, %s19, 1
      %s256 = smul.addr %s255, 10
      %s257 = smul.addr %s256, 2
      %s258 = scalar_lea.vmem %s6, %s257
      %p259 = scmp.lt.s32.totalorder %s19, 1
      %s260 = scalar_select %p259, %s19, 1
      %s261 = smul.addr %s260, 10
      %s262 = smul.addr %s261, 8
      %s263 = scalar_lea.vmem %s0, %s262
      %p264 = scmp.lt.s32.totalorder %s19, 1
      %s265 = scalar_select %p264, %s19, 1
      %s266 = smul.addr %s265, 10
      %s267 = smul.addr %s266, 8
      %s268 = scalar_lea.vmem %s1, %s267
      %p269 = scmp.lt.s32.totalorder %s19, 1
      %s270 = scalar_select %p269, %s19, 1
      %s271 = smul.addr %s270, 10
      %s272 = smul.addr %s271, 2
      %s273 = scalar_lea.vmem %s6, %s272
      %v274 = vld [vmem:[%s268] sm:$0xff]
      %v275 = vld [vmem:[%s268 + $0x8] sm:$0xff]
      %v276 = vld [vmem:[%s268 + $0x10] sm:$0xff]
      %v277 = vld [vmem:[%s268 + $0x18] sm:$0xff]
      %v278 = vld [vmem:[%s268 + $0x20] sm:$0xff]
      %v279 = vld [vmem:[%s268 + $0x28] sm:$0xff]
      %v280 = vld [vmem:[%s268 + $0x30] sm:$0xff]
      %v281 = vld [vmem:[%s268 + $0x38] sm:$0xff]
      %v282 = vld [vmem:[%s268 + $0x40] sm:$0xff]
      %v283 = vld [vmem:[%s268 + $0x48] sm:$0xff]
      %v284 = vld [vmem:[%s2] sm:$0xff]
      %286 = vset.pattern.permute.xlu0 0
      %287 = vperm.xlu0 %286, %v284
      %v288 = vpop.permute.xlu0 %287
      %v290 = vmul.f32 %v274, %v288
      %v291 = vmul.f32 %v275, %v288
      %v292 = vmul.f32 %v276, %v288
      %v293 = vmul.f32 %v277, %v288
      %v294 = vmul.f32 %v278, %v288
      %v295 = vmul.f32 %v279, %v288
      %v296 = vmul.f32 %v280, %v288
      %v297 = vmul.f32 %v281, %v288
      %v298 = vmul.f32 %v282, %v288
      %v299 = vmul.f32 %v283, %v288
      %v300 = vld [vmem:[%s3] sm:$0xff]
      %302 = vset.pattern.permute.xlu0 0
      %303 = vperm.xlu0 %302, %v300
      %v304 = vpop.permute.xlu0 %303
      %v306 = vadd.f32 %v290, %v304
      %v307 = vadd.f32 %v291, %v304
      %v308 = vadd.f32 %v292, %v304
      %v309 = vadd.f32 %v293, %v304
      %v310 = vadd.f32 %v294, %v304
      %v311 = vadd.f32 %v295, %v304
      %v312 = vadd.f32 %v296, %v304
      %v313 = vadd.f32 %v297, %v304
      %v314 = vadd.f32 %v298, %v304
      %v315 = vadd.f32 %v299, %v304
      %v316 = vld [vmem:[%s263] sm:$0xff]
      %v317 = vld [vmem:[%s263 + $0x8] sm:$0xff]
      %v318 = vld [vmem:[%s263 + $0x10] sm:$0xff]
      %v319 = vld [vmem:[%s263 + $0x18] sm:$0xff]
      %v320 = vld [vmem:[%s263 + $0x20] sm:$0xff]
      %v321 = vld [vmem:[%s263 + $0x28] sm:$0xff]
      %v322 = vld [vmem:[%s263 + $0x30] sm:$0xff]
      %v323 = vld [vmem:[%s263 + $0x38] sm:$0xff]
      %v324 = vld [vmem:[%s263 + $0x40] sm:$0xff]
      %v325 = vld [vmem:[%s263 + $0x48] sm:$0xff]
      %v326 = vadd.f32 %v316, %v306
      %v327 = vadd.f32 %v317, %v307
      %v328 = vadd.f32 %v318, %v308
      %v329 = vadd.f32 %v319, %v309
      %v330 = vadd.f32 %v320, %v310
      %v331 = vadd.f32 %v321, %v311
      %v332 = vadd.f32 %v322, %v312
      %v333 = vadd.f32 %v323, %v313
      %v334 = vadd.f32 %v324, %v314
      %v335 = vadd.f32 %v325, %v315
      %vm336 = vcmp.gt.f32.partialorder %v326, 0.0
      %vm337 = vcmp.gt.f32.partialorder %v327, 0.0
      %vm338 = vcmp.gt.f32.partialorder %v328, 0.0
      %vm339 = vcmp.gt.f32.partialorder %v329, 0.0
      %vm340 = vcmp.gt.f32.partialorder %v330, 0.0
      %vm341 = vcmp.gt.f32.partialorder %v331, 0.0
      %vm342 = vcmp.gt.f32.partialorder %v332, 0.0
      %vm343 = vcmp.gt.f32.partialorder %v333, 0.0
      %vm344 = vcmp.gt.f32.partialorder %v334, 0.0
      %vm345 = vcmp.gt.f32.partialorder %v335, 0.0
      %v346 = vmin.f32 %v326, 0.0
      %v347 = vmin.f32 %v327, 0.0
      %v348 = vmin.f32 %v328, 0.0
      %v349 = vmin.f32 %v329, 0.0
      %v350 = vmin.f32 %v330, 0.0
      %v351 = vmin.f32 %v331, 0.0
      %v352 = vmin.f32 %v332, 0.0
      %v353 = vmin.f32 %v333, 0.0
      %v354 = vmin.f32 %v334, 0.0
      %v355 = vmin.f32 %v335, 0.0
      %v356 = vmul.f32 %v346, 1.442695
      %v357 = vpow.pop %v356
      %v358 = vmul.f32 %v347, 1.442695
      %v359 = vpow.pop %v358
      %v360 = vmul.f32 %v348, 1.442695
      %v361 = vpow.pop %v360
      %v362 = vmul.f32 %v349, 1.442695
      %v363 = vpow.pop %v362
      %v364 = vmul.f32 %v350, 1.442695
      %v365 = vpow.pop %v364
      %v366 = vmul.f32 %v351, 1.442695
      %v367 = vpow.pop %v366
      %v368 = vmul.f32 %v352, 1.442695
      %v369 = vpow.pop %v368
      %v370 = vmul.f32 %v353, 1.442695
      %v371 = vpow.pop %v370
      %v372 = vmul.f32 %v354, 1.442695
      %v373 = vpow.pop %v372
      %v374 = vmul.f32 %v355, 1.442695
      %v375 = vpow.pop %v374
      %v376 = vsub.f32 %v357, 1.0
      %v377 = vsub.f32 %v359, 1.0
      %v378 = vsub.f32 %v361, 1.0
      %v379 = vsub.f32 %v363, 1.0
      %v380 = vsub.f32 %v365, 1.0
      %v381 = vsub.f32 %v367, 1.0
      %v382 = vsub.f32 %v369, 1.0
      %v383 = vsub.f32 %v371, 1.0
      %v384 = vsub.f32 %v373, 1.0
      %v385 = vsub.f32 %v375, 1.0
      %v386 = vsel %vm336, %v326, %v376
      %v387 = vsel %vm337, %v327, %v377
      %v388 = vsel %vm338, %v328, %v378
      %v389 = vsel %vm339, %v329, %v379
      %v390 = vsel %vm340, %v330, %v380
      %v391 = vsel %vm341, %v331, %v381
      %v392 = vsel %vm342, %v332, %v382
      %v393 = vsel %vm343, %v333, %v383
      %v394 = vsel %vm344, %v334, %v384
      %v395 = vsel %vm345, %v335, %v385
      %v396 = vld [vmem:[%s4] sm:$0xff]
      %398 = vset.pattern.permute.xlu0 0
      %399 = vperm.xlu0 %398, %v396
      %v400 = vpop.permute.xlu0 %399
      %v402 = vmul.f32 %v386, %v400
      %v403 = vmul.f32 %v387, %v400
      %v404 = vmul.f32 %v388, %v400
      %v405 = vmul.f32 %v389, %v400
      %v406 = vmul.f32 %v390, %v400
      %v407 = vmul.f32 %v391, %v400
      %v408 = vmul.f32 %v392, %v400
      %v409 = vmul.f32 %v393, %v400
      %v410 = vmul.f32 %v394, %v400
      %v411 = vmul.f32 %v395, %v400
      %v412 = vrot.slane %v402, 4
      %v413 = vadd.f32 %v402, %v412
      %v414 = vrot.slane %v413, 2
      %v415 = vadd.f32 %v413, %v414
      %v416 = vrot.slane %v415, 1
      %v417 = vadd.f32 %v415, %v416
      %v418 = vrot.slane %v403, 4
      %v419 = vadd.f32 %v403, %v418
      %v420 = vrot.slane %v419, 2
      %v421 = vadd.f32 %v419, %v420
      %v422 = vrot.slane %v421, 1
      %v423 = vadd.f32 %v421, %v422
      %v424 = vrot.slane %v404, 4
      %v425 = vadd.f32 %v404, %v424
      %v426 = vrot.slane %v425, 2
      %v427 = vadd.f32 %v425, %v426
      %v428 = vrot.slane %v427, 1
      %v429 = vadd.f32 %v427, %v428
      %v430 = vrot.slane %v405, 4
      %v431 = vadd.f32 %v405, %v430
      %v432 = vrot.slane %v431, 2
      %v433 = vadd.f32 %v431, %v432
      %v434 = vrot.slane %v433, 1
      %v435 = vadd.f32 %v433, %v434
      %v436 = vrot.slane %v406, 4
      %v437 = vadd.f32 %v406, %v436
      %v438 = vrot.slane %v437, 2
      %v439 = vadd.f32 %v437, %v438
      %v440 = vrot.slane %v439, 1
      %v441 = vadd.f32 %v439, %v440
      %v442 = vrot.slane %v407, 4
      %v443 = vadd.f32 %v407, %v442
      %v444 = vrot.slane %v443, 2
      %v445 = vadd.f32 %v443, %v444
      %v446 = vrot.slane %v445, 1
      %v447 = vadd.f32 %v445, %v446
      %v448 = vrot.slane %v408, 4
      %v449 = vadd.f32 %v408, %v448
      %v450 = vrot.slane %v449, 2
      %v451 = vadd.f32 %v449, %v450
      %v452 = vrot.slane %v451, 1
      %v453 = vadd.f32 %v451, %v452
      %v454 = vrot.slane %v409, 4
      %v455 = vadd.f32 %v409, %v454
      %v456 = vrot.slane %v455, 2
      %v457 = vadd.f32 %v455, %v456
      %v458 = vrot.slane %v457, 1
      %v459 = vadd.f32 %v457, %v458
      %v460 = vrot.slane %v410, 4
      %v461 = vadd.f32 %v410, %v460
      %v462 = vrot.slane %v461, 2
      %v463 = vadd.f32 %v461, %v462
      %v464 = vrot.slane %v463, 1
      %v465 = vadd.f32 %v463, %v464
      %v466 = vrot.slane %v411, 4
      %v467 = vadd.f32 %v411, %v466
      %v468 = vrot.slane %v467, 2
      %v469 = vadd.f32 %v467, %v468
      %v470 = vrot.slane %v469, 1
      %v471 = vadd.f32 %v469, %v470
      %v472 = vld [vmem:[#allocation2] sm:$0x1]
      %474 = vset.pattern.permute.xlu0 0
      %475 = vperm.xlu0 %474, %v472
      %v476 = vpop.permute.xlu0 %475
      %v478 = vlaneseq
      %v479 = vshrl.u32 %v478, 7
      %v480 = vsub.s32 0, %v479
      %v481 = vrot.slane %v476, %v480
      %v482 = vadd.f32 %v417, %v481
      %v483 = vadd.f32 %v423, %v481
      %v484 = vadd.f32 %v429, %v481
      %v485 = vadd.f32 %v435, %v481
      %v486 = vadd.f32 %v441, %v481
      %v487 = vadd.f32 %v447, %v481
      %v488 = vadd.f32 %v453, %v481
      %v489 = vadd.f32 %v459, %v481
      %v490 = vadd.f32 %v465, %v481
      %v491 = vadd.f32 %v471, %v481
      %v492 = vsub.f32 0.0, %v482
      %v493 = vsub.f32 0.0, %v483
      %v494 = vsub.f32 0.0, %v484
      %v495 = vsub.f32 0.0, %v485
      %v496 = vsub.f32 0.0, %v486
      %v497 = vsub.f32 0.0, %v487
      %v498 = vsub.f32 0.0, %v488
      %v499 = vsub.f32 0.0, %v489
      %v500 = vsub.f32 0.0, %v490
      %v501 = vsub.f32 0.0, %v491
      %v502 = vmul.f32 %v492, 1.442695
      %v503 = vpow.pop %v502
      %v504 = vmul.f32 %v493, 1.442695
      %v505 = vpow.pop %v504
      %v506 = vmul.f32 %v494, 1.442695
      %v507 = vpow.pop %v506
      %v508 = vmul.f32 %v495, 1.442695
      %v509 = vpow.pop %v508
      %v510 = vmul.f32 %v496, 1.442695
      %v511 = vpow.pop %v510
      %v512 = vmul.f32 %v497, 1.442695
      %v513 = vpow.pop %v512
      %v514 = vmul.f32 %v498, 1.442695
      %v515 = vpow.pop %v514
      %v516 = vmul.f32 %v499, 1.442695
      %v517 = vpow.pop %v516
      %v518 = vmul.f32 %v500, 1.442695
      %v519 = vpow.pop %v518
      %v520 = vmul.f32 %v501, 1.442695
      %v521 = vpow.pop %v520
      %v522 = vadd.f32 %v503, 1.0
      %v523 = vadd.f32 %v505, 1.0
      %v524 = vadd.f32 %v507, 1.0
      %v525 = vadd.f32 %v509, 1.0
      %v526 = vadd.f32 %v511, 1.0
      %v527 = vadd.f32 %v513, 1.0
      %v528 = vadd.f32 %v515, 1.0
      %v529 = vadd.f32 %v517, 1.0
      %v530 = vadd.f32 %v519, 1.0
      %v531 = vadd.f32 %v521, 1.0
      %v532 = vrcp.pop %v522
      %v533 = vmul.f32 1.0, %v532
      %v534 = vrcp.pop %v523
      %v535 = vmul.f32 1.0, %v534
      %v536 = vrcp.pop %v524
      %v537 = vmul.f32 1.0, %v536
      %v538 = vrcp.pop %v525
      %v539 = vmul.f32 1.0, %v538
      %v540 = vrcp.pop %v526
      %v541 = vmul.f32 1.0, %v540
      %v542 = vrcp.pop %v527
      %v543 = vmul.f32 1.0, %v542
      %v544 = vrcp.pop %v528
      %v545 = vmul.f32 1.0, %v544
      %v546 = vrcp.pop %v529
      %v547 = vmul.f32 1.0, %v546
      %v548 = vrcp.pop %v530
      %v549 = vmul.f32 1.0, %v548
      %v550 = vrcp.pop %v531
      %v551 = vmul.f32 1.0, %v550
      %v552 = vsub.f32 1.0, %v533
      %v553 = vsub.f32 1.0, %v535
      %v554 = vsub.f32 1.0, %v537
      %v555 = vsub.f32 1.0, %v539
      %v556 = vsub.f32 1.0, %v541
      %v557 = vsub.f32 1.0, %v543
      %v558 = vsub.f32 1.0, %v545
      %v559 = vsub.f32 1.0, %v547
      %v560 = vsub.f32 1.0, %v549
      %v561 = vsub.f32 1.0, %v551
      %vm562 = vcmask 1040384
      %v563 = vsel %vm562, %v552, %v533
      %v564 = vsel %vm562, %v553, %v535
      %v565 = vsel %vm562, %v554, %v537
      %v566 = vsel %vm562, %v555, %v539
      %v567 = vsel %vm562, %v556, %v541
      %v568 = vsel %vm562, %v557, %v543
      %v569 = vsel %vm562, %v558, %v545
      %v570 = vsel %vm562, %v559, %v547
      %v571 = vsel %vm562, %v560, %v549
      %v572 = vsel %vm562, %v561, %v551
      %v583 = vcombine.low %v563, %v564
      %v584 = vcombine.low %v565, %v566
      %v586 = vunpack.c.l.s4 1983009808
      %v587 = vunpack.c.0.s8 %v586
      %v588 = vlaneseq
      %v589 = vshrl.u32 %v588, 7
      %v590 = vsub.s32 %v587, %v589
      %v591 = vrot.slane %v583, %v590
      %v593 = vunpack.c.l.s4 1983009808
      %v594 = vunpack.c.0.s8 %v593
      %v595 = vlaneseq
      %v596 = vshrl.u32 %v595, 7
      %v597 = vsub.s32 %v594, %v596
      %v598 = vrot.slane %v584, %v597
      %v599 = vcombine.low %v591, %v598
      %v600 = vcombine.low %v567, %v568
      %v601 = vcombine.low %v569, %v570
      %v603 = vunpack.c.l.s4 1983009808
      %v604 = vunpack.c.0.s8 %v603
      %v605 = vlaneseq
      %v606 = vshrl.u32 %v605, 7
      %v607 = vsub.s32 %v604, %v606
      %v608 = vrot.slane %v600, %v607
      %v610 = vunpack.c.l.s4 1983009808
      %v611 = vunpack.c.0.s8 %v610
      %v612 = vlaneseq
      %v613 = vshrl.u32 %v612, 7
      %v614 = vsub.s32 %v611, %v613
      %v615 = vrot.slane %v601, %v614
      %v616 = vcombine.low %v608, %v615
      %v617 = vcombine.low %v571, %v572
      %v619 = vunpack.c.l.s4 1983009808
      %v620 = vunpack.c.0.s8 %v619
      %v621 = vlaneseq
      %v622 = vshrl.u32 %v621, 7
      %v623 = vsub.s32 %v620, %v622
      %v624 = vrot.slane %v617, %v623
      %628 = vst [vmem:[%s273] sm:$0xff] %v599
      %629 = vst [vmem:[%s273 + $0x8] sm:$0xff] %v616
      %630 = vst [vmem:[%s273 + $0x10] sm:$0xf] %v624
      %p631 = scmp.lt.s32.totalorder %s19, 1
      %s632 = scalar_select %p631, %s19, 1
      %s633 = smul.addr %s632, 10
      %s634 = smul.addr %s633, 2
      %s635 = scalar_lea.vmem %s6, %s634
      // Predicated region
      $region45: #{up_transition_forward.7} parent=43 // pred_check
        %p636 = pneg %p173
      $region46: #{up_transition_forward.7} parent=43 // pred_check_branch
        %638 = sbr.rel (%p636) target = $region48
      $region47: #{up_transition_forward.7} parent=43 // pred_region
        _
      $region48: #{up_transition_forward.7} parent=43 // pred_fallthru
        _
    $region44: #{up_transition_forward.7} parent=5 // pred_fallthru
      _
    %p639 = scmp.le.s32.totalorder 2, %s14
    // Predicated region
    $region49: #{up_transition_forward.7} parent=5 // pred_check
      %p640 = pneg %p639
    $region50: #{up_transition_forward.7} parent=5 // pred_check_branch
      %642 = sbr.rel (%p640) target = $region52
    $region51: #{up_transition_forward.7} parent=5 // pred_region
      %s643 = ssub.s32 %s14, 2
      // Predicated region
      $region53: #{up_transition_forward.7} parent=51 // pred_check
        %p644 = pneg %p179
      $region54: #{up_transition_forward.7} parent=51 // pred_check_branch
        %646 = sbr.rel (%p644) target = $region56
      $region55: #{up_transition_forward.7} parent=51 // pred_region
        %p647 = scmp.lt.s32.totalorder %s20, 1
        %s648 = scalar_select %p647, %s20, 1
        %s649 = smul.addr %s648, 10
        %s650 = smul.addr %s649, 2
        %s651 = scalar_lea.vmem %s6, %s650
      $region56: #{up_transition_forward.7} parent=51 // pred_fallthru
        _
    $region52: #{up_transition_forward.7} parent=5 // pred_fallthru
      _
  $region6: #{up_transition_forward.7} parent=0 // loop_footer
    %s18 = sadd.s32 1, %s14
  $region7: #{up_transition_forward.7} parent=0 // loop_footer_branch
    %13 = sbr.rel target = $region3
  $region8: #{up_transition_forward.7} parent=0 // loop_exit
    _

// kernel: up_transition_forward.5
$region0: #{up_transition_forward.5}
  #allocation0 [shape = 'u32[]', space=smem, size = 0x4, offset = 0x4, fixed_abs, tag = 'smem constant byte address 0x4 - core index']
  #allocation1 [shape = 'u32[144,128]{1,0:T(1,128)}', space=vmem, size = 0x12000, scoped, tag = 'internal scratch']
  %s0 = inlined_call_operand.vmem [shape: f32[2,8,1280], index: 0, kind: input, shape index: {}]
  %s1 = inlined_call_operand.vmem [shape: f32[9,8,8], index: 1, kind: input, shape index: {}]
  %s2 = inlined_call_operand.vmem [shape: f32[8,1], index: 2, kind: input, shape index: {}]
  %s3 = inlined_call_operand.vmem [shape: f32[8,1], index: 3, kind: input, shape index: {}]
  %s4 = inlined_call_operand.vmem [shape: f32[8,1], index: 4, kind: input, shape index: {}]
  %s5 = inlined_call_operand.vmem [shape: f32[1,1280], index: 5, kind: input, shape index: {}]
  %s6 = inlined_call_operand.vmem [shape: f32[2,8,1280], index: 6, kind: output, shape index: {0}]
  %s7 = inlined_call_operand.vmem [shape: f32[2,8,1], index: 7, kind: output, shape index: {1}]
  %s8 = inlined_call_operand.vmem [shape: f32[2,8,1], index: 8, kind: output, shape index: {2}]
  %9 = xla_tuple %s6, %s7, %s8
  %s10 = sld [smem:[#allocation0]]
  $region73: #{up_transition_forward.5} parent=0
    _
  %s12 = ssub.s32 1, %s10
  %s13 = scalar_select 0, %s12, %s10
  loop: start=0, step=1, limit=4
  $region2: #{up_transition_forward.5} parent=0 // loop_pre_header
    _
  $region3: #{up_transition_forward.5} parent=0 // loop_header
    %s15 = sphi 0, %s19
    %p16 = scmp.ge.s32.totalorder %s15, 4
    %s25 = sphi 0, %s27
    %s28 = sphi 0, %s25
    %s29 = sphi 0, %s28
    %s45 = sphi 0, %s29
    %s49 = sphi 0, %s49
    %s51 = sphi 0, %s49
    %s52 = sphi 0, %s51
    %s66 = sphi 0, %s52
    %s70 = sphi 0, %s70
    %s72 = sphi 0, %s70
    %s73 = sphi 0, %s72
    %s87 = sphi 0, %s73
    %s91 = sphi 0, %s91
    %s93 = sphi 0, %s91
    %s94 = sphi 0, %s93
    %s108 = sphi 0, %s94
    %s112 = sphi 0, %s112
    %s114 = sphi 0, %s112
    %s115 = sphi 0, %s114
    %s129 = sphi 0, %s115
    %s133 = sphi 0, %s133
    %s135 = sphi 0, %s133
    %s136 = sphi 0, %s135
    %s150 = sphi 0, %s136
    %s156 = sphi 0, %s158
    %s159 = sphi 0, %s156
    %s160 = sphi 0, %s159
    %s176 = sphi 0, %s160
    %s182 = sphi 0, %s184
    %s185 = sphi 0, %s182
    %s186 = sphi 0, %s185
    %s202 = sphi 0, %s186
    %s208 = sphi 0, %s210
    %s211 = sphi 0, %s208
    %s212 = sphi 0, %s211
    %s228 = sphi 0, %s212
  $region4: #{up_transition_forward.5} parent=0 // loop_header_branch
    %18 = sbr.rel (%p16) target = $region8
  $region5: #{up_transition_forward.5} parent=0 // loop_body
    %s20 = ssub.s32 %s15, 1
    %s21 = ssub.s32 %s15, 2
    %s22 = sadd.s32 %s15, 1
    %s23 = ssub.s32 %s15, %s22
    %p24 = scmp.eq.s32.totalorder %s23, 0
    %s26 = sadd.s32 %s25, 1
    %s27 = scalar_select %p24, %s25, %s26
    %p30 = pneg %p24
    %p31 = scmp.eq.s32.totalorder %s15, 1
    %p32 = por %p30, %p31
    %p33 = scmp.ne.s32.totalorder %s25, %s28
    %p34 = scmp.eq.s32.totalorder %s15, 0
    %p35 = por %p33, %p34
    %p36 = scmp.ne.s32.totalorder %s25, %s28
    %p37 = scmp.eq.s32.totalorder %s20, 1
    %p38 = por %p36, %p37
    %p39 = scmp.ne.s32.totalorder %s28, %s29
    %p40 = scmp.eq.s32.totalorder %s20, 0
    %p41 = por %p39, %p40
    %p42 = scmp.ne.s32.totalorder %s28, %s29
    %p43 = scmp.eq.s32.totalorder %s21, 1
    %p44 = por %p42, %p43
    %p46 = scmp.ne.s32.totalorder %s29, %s45
    %p47 = scmp.eq.s32.totalorder %s21, 0
    %p48 = por %p46, %p47
    %s50 = sadd.s32 %s49, 1
    %p53 = scmp.eq.s32.totalorder %s15, 1
    %p54 = scmp.ne.s32.totalorder %s49, %s51
    %p55 = scmp.eq.s32.totalorder %s15, 0
    %p56 = por %p54, %p55
    %p57 = scmp.ne.s32.totalorder %s49, %s51
    %p58 = scmp.eq.s32.totalorder %s20, 1
    %p59 = por %p57, %p58
    %p60 = scmp.ne.s32.totalorder %s51, %s52
    %p61 = scmp.eq.s32.totalorder %s20, 0
    %p62 = por %p60, %p61
    %p63 = scmp.ne.s32.totalorder %s51, %s52
    %p64 = scmp.eq.s32.totalorder %s21, 1
    %p65 = por %p63, %p64
    %p67 = scmp.ne.s32.totalorder %s52, %s66
    %p68 = scmp.eq.s32.totalorder %s21, 0
    %p69 = por %p67, %p68
    %s71 = sadd.s32 %s70, 1
    %p74 = scmp.eq.s32.totalorder %s15, 1
    %p75 = scmp.ne.s32.totalorder %s70, %s72
    %p76 = scmp.eq.s32.totalorder %s15, 0
    %p77 = por %p75, %p76
    %p78 = scmp.ne.s32.totalorder %s70, %s72
    %p79 = scmp.eq.s32.totalorder %s20, 1
    %p80 = por %p78, %p79
    %p81 = scmp.ne.s32.totalorder %s72, %s73
    %p82 = scmp.eq.s32.totalorder %s20, 0
    %p83 = por %p81, %p82
    %p84 = scmp.ne.s32.totalorder %s72, %s73
    %p85 = scmp.eq.s32.totalorder %s21, 1
    %p86 = por %p84, %p85
    %p88 = scmp.ne.s32.totalorder %s73, %s87
    %p89 = scmp.eq.s32.totalorder %s21, 0
    %p90 = por %p88, %p89
    %s92 = sadd.s32 %s91, 1
    %p95 = scmp.eq.s32.totalorder %s15, 1
    %p96 = scmp.ne.s32.totalorder %s91, %s93
    %p97 = scmp.eq.s32.totalorder %s15, 0
    %p98 = por %p96, %p97
    %p99 = scmp.ne.s32.totalorder %s91, %s93
    %p100 = scmp.eq.s32.totalorder %s20, 1
    %p101 = por %p99, %p100
    %p102 = scmp.ne.s32.totalorder %s93, %s94
    %p103 = scmp.eq.s32.totalorder %s20, 0
    %p104 = por %p102, %p103
    %p105 = scmp.ne.s32.totalorder %s93, %s94
    %p106 = scmp.eq.s32.totalorder %s21, 1
    %p107 = por %p105, %p106
    %p109 = scmp.ne.s32.totalorder %s94, %s108
    %p110 = scmp.eq.s32.totalorder %s21, 0
    %p111 = por %p109, %p110
    %s113 = sadd.s32 %s112, 1
    %p116 = scmp.eq.s32.totalorder %s15, 1
    %p117 = scmp.ne.s32.totalorder %s112, %s114
    %p118 = scmp.eq.s32.totalorder %s15, 0
    %p119 = por %p117, %p118
    %p120 = scmp.ne.s32.totalorder %s112, %s114
    %p121 = scmp.eq.s32.totalorder %s20, 1
    %p122 = por %p120, %p121
    %p123 = scmp.ne.s32.totalorder %s114, %s115
    %p124 = scmp.eq.s32.totalorder %s20, 0
    %p125 = por %p123, %p124
    %p126 = scmp.ne.s32.totalorder %s114, %s115
    %p127 = scmp.eq.s32.totalorder %s21, 1
    %p128 = por %p126, %p127
    %p130 = scmp.ne.s32.totalorder %s115, %s129
    %p131 = scmp.eq.s32.totalorder %s21, 0
    %p132 = por %p130, %p131
    %s134 = sadd.s32 %s133, 1
    %p137 = scmp.eq.s32.totalorder %s15, 1
    %p138 = scmp.ne.s32.totalorder %s133, %s135
    %p139 = scmp.eq.s32.totalorder %s15, 0
    %p140 = por %p138, %p139
    %p141 = scmp.ne.s32.totalorder %s133, %s135
    %p142 = scmp.eq.s32.totalorder %s20, 1
    %p143 = por %p141, %p142
    %p144 = scmp.ne.s32.totalorder %s135, %s136
    %p145 = scmp.eq.s32.totalorder %s20, 0
    %p146 = por %p144, %p145
    %p147 = scmp.ne.s32.totalorder %s135, %s136
    %p148 = scmp.eq.s32.totalorder %s21, 1
    %p149 = por %p147, %p148
    %p151 = scmp.ne.s32.totalorder %s136, %s150
    %p152 = scmp.eq.s32.totalorder %s21, 0
    %p153 = por %p151, %p152
    %s154 = ssub.s32 %s15, %s22
    %p155 = scmp.eq.s32.totalorder %s154, 0
    %s157 = sadd.s32 %s156, 1
    %s158 = scalar_select %p155, %s156, %s157
    %p161 = pneg %p155
    %p162 = scmp.eq.s32.totalorder %s15, 1
    %p163 = por %p161, %p162
    %p164 = scmp.ne.s32.totalorder %s156, %s159
    %p165 = scmp.eq.s32.totalorder %s15, 0
    %p166 = por %p164, %p165
    %p167 = scmp.ne.s32.totalorder %s156, %s159
    %p168 = scmp.eq.s32.totalorder %s20, 1
    %p169 = por %p167, %p168
    %p170 = scmp.ne.s32.totalorder %s159, %s160
    %p171 = scmp.eq.s32.totalorder %s20, 0
    %p172 = por %p170, %p171
    %p173 = scmp.ne.s32.totalorder %s159, %s160
    %p174 = scmp.eq.s32.totalorder %s21, 1
    %p175 = por %p173, %p174
    %p177 = scmp.ne.s32.totalorder %s160, %s176
    %p178 = scmp.eq.s32.totalorder %s21, 0
    %p179 = por %p177, %p178
    %s180 = ssub.s32 %s15, %s22
    %p181 = scmp.eq.s32.totalorder %s180, 0
    %s183 = sadd.s32 %s182, 1
    %s184 = scalar_select %p181, %s182, %s183
    %p187 = pneg %p181
    %p188 = scmp.eq.s32.totalorder %s15, 1
    %p189 = por %p187, %p188
    %p190 = scmp.ne.s32.totalorder %s182, %s185
    %p191 = scmp.eq.s32.totalorder %s15, 0
    %p192 = por %p190, %p191
    %p193 = scmp.ne.s32.totalorder %s182, %s185
    %p194 = scmp.eq.s32.totalorder %s20, 1
    %p195 = por %p193, %p194
    %p196 = scmp.ne.s32.totalorder %s185, %s186
    %p197 = scmp.eq.s32.totalorder %s20, 0
    %p198 = por %p196, %p197
    %p199 = scmp.ne.s32.totalorder %s185, %s186
    %p200 = scmp.eq.s32.totalorder %s21, 1
    %p201 = por %p199, %p200
    %p203 = scmp.ne.s32.totalorder %s186, %s202
    %p204 = scmp.eq.s32.totalorder %s21, 0
    %p205 = por %p203, %p204
    %s206 = ssub.s32 %s15, %s22
    %p207 = scmp.eq.s32.totalorder %s206, 0
    %s209 = sadd.s32 %s208, 1
    %s210 = scalar_select %p207, %s208, %s209
    %p213 = pneg %p207
    %p214 = scmp.eq.s32.totalorder %s15, 1
    %p215 = por %p213, %p214
    %p216 = scmp.ne.s32.totalorder %s208, %s211
    %p217 = scmp.eq.s32.totalorder %s15, 0
    %p218 = por %p216, %p217
    %p219 = scmp.ne.s32.totalorder %s208, %s211
    %p220 = scmp.eq.s32.totalorder %s20, 1
    %p221 = por %p219, %p220
    %p222 = scmp.ne.s32.totalorder %s211, %s212
    %p223 = scmp.eq.s32.totalorder %s20, 0
    %p224 = por %p222, %p223
    %p225 = scmp.ne.s32.totalorder %s211, %s212
    %p226 = scmp.eq.s32.totalorder %s21, 1
    %p227 = por %p225, %p226
    %p229 = scmp.ne.s32.totalorder %s212, %s228
    %p230 = scmp.eq.s32.totalorder %s21, 0
    %p231 = por %p229, %p230
    %p232 = scmp.le.s32.totalorder 1, %s15
    %p233 = scmp.lt.s32.totalorder %s15, 3
    %p234 = pnand %p232, %p233
    %p235 = pneg %p234
    // Predicated region
    $region9: #{up_transition_forward.5} parent=5 // pred_check
      _
    $region10: #{up_transition_forward.5} parent=5 // pred_check_branch
      %237 = sbr.rel (%p234) target = $region12
    $region11: #{up_transition_forward.5} parent=5 // pred_region
      %s238 = ssub.s32 %s15, 1
      // Predicated region
      $region13: #{up_transition_forward.5} parent=11 // pred_check
        %p239 = pneg %p62
      $region14: #{up_transition_forward.5} parent=11 // pred_check_branch
        %241 = sbr.rel (%p239) target = $region16
      $region15: #{up_transition_forward.5} parent=11 // pred_region
        _
      $region16: #{up_transition_forward.5} parent=11 // pred_fallthru
        _
      // Predicated region
      $region17: #{up_transition_forward.5} parent=11 // pred_check
        %p242 = pneg %p83
      $region18: #{up_transition_forward.5} parent=11 // pred_check_branch
        %244 = sbr.rel (%p242) target = $region20
      $region19: #{up_transition_forward.5} parent=11 // pred_region
        _
      $region20: #{up_transition_forward.5} parent=11 // pred_fallthru
        _
      // Predicated region
      $region21: #{up_transition_forward.5} parent=11 // pred_check
        %p245 = pneg %p104
      $region22: #{up_transition_forward.5} parent=11 // pred_check_branch
        %247 = sbr.rel (%p245) target = $region24
      $region23: #{up_transition_forward.5} parent=11 // pred_region
        _
      $region24: #{up_transition_forward.5} parent=11 // pred_fallthru
        _
      // Predicated region
      $region25: #{up_transition_forward.5} parent=11 // pred_check
        %p248 = pneg %p125
      $region26: #{up_transition_forward.5} parent=11 // pred_check_branch
        %250 = sbr.rel (%p248) target = $region28
      $region27: #{up_transition_forward.5} parent=11 // pred_region
        _
      $region28: #{up_transition_forward.5} parent=11 // pred_fallthru
        _
      // Predicated region
      $region29: #{up_transition_forward.5} parent=11 // pred_check
        %p251 = pneg %p146
      $region30: #{up_transition_forward.5} parent=11 // pred_check_branch
        %253 = sbr.rel (%p251) target = $region32
      $region31: #{up_transition_forward.5} parent=11 // pred_region
        _
      $region32: #{up_transition_forward.5} parent=11 // pred_fallthru
        _
    $region12: #{up_transition_forward.5} parent=5 // pred_fallthru
      _
    %p254 = scmp.lt.s32.totalorder %s15, 2
    // Predicated region
    $region33: #{up_transition_forward.5} parent=5 // pred_check
      %p255 = pneg %p254
    $region34: #{up_transition_forward.5} parent=5 // pred_check_branch
      %257 = sbr.rel (%p255) target = $region36
    $region35: #{up_transition_forward.5} parent=5 // pred_region
      // Predicated region
      $region37: #{up_transition_forward.5} parent=35 // pred_check
        %p258 = pneg %p35
      $region38: #{up_transition_forward.5} parent=35 // pred_check_branch
        %260 = sbr.rel (%p258) target = $region40
      $region39: #{up_transition_forward.5} parent=35 // pred_region
        %p261 = scmp.lt.s32.totalorder %s15, 1
        %s262 = scalar_select %p261, %s15, 1
        %s263 = smul.addr %s262, 10
        %s264 = smul.addr %s263, 8
        %s265 = scalar_lea.vmem %s0, %s264
      $region40: #{up_transition_forward.5} parent=35 // pred_fallthru
        _
    $region36: #{up_transition_forward.5} parent=5 // pred_fallthru
      _
    %p266 = scmp.le.s32.totalorder 1, %s15
    %p267 = scmp.lt.s32.totalorder %s15, 3
    %p268 = pnand %p266, %p267
    %p269 = pneg %p268
    // Predicated region
    $region41: #{up_transition_forward.5} parent=5 // pred_check
      _
    $region42: #{up_transition_forward.5} parent=5 // pred_check_branch
      %271 = sbr.rel (%p268) target = $region44
    $region43: #{up_transition_forward.5} parent=5 // pred_region
      %s272 = ssub.s32 %s15, 1
      %p273 = scmp.lt.s32.totalorder %s20, 1
      %s274 = scalar_select %p273, %s20, 1
      %s275 = smul.addr %s274, 10
      %s276 = smul.addr %s275, 8
      %s277 = scalar_lea.vmem %s0, %s276
      %p278 = pneg %p41
      %p279 = pneg %p38
      %p280 = pneg %p62
      %p281 = pneg %p59
      %p282 = pneg %p83
      %p283 = pneg %p80
      %p284 = pneg %p104
      %p285 = pneg %p101
      %p286 = pneg %p125
      %p287 = pneg %p122
      %p288 = pneg %p146
      %p289 = pneg %p143
      %p290 = pneg %p172
      %p291 = pneg %p169
      %p292 = scmp.lt.s32.totalorder %s20, 1
      %s293 = scalar_select %p292, %s20, 1
      %s294 = smul.addr %s293, 10
      %s295 = smul.addr %s294, 8
      %s296 = scalar_lea.vmem %s6, %s295
      %p297 = pneg %p198
      %p298 = pneg %p195
      %p299 = scmp.lt.s32.totalorder %s20, 1
      %s300 = scalar_select %p299, %s20, 1
      %s301 = smul.addr %s300, 8
      %s302 = scalar_lea.vmem %s7, %s301
      %p303 = pneg %p224
      %p304 = pneg %p221
      %p305 = scmp.lt.s32.totalorder %s20, 1
      %s306 = scalar_select %p305, %s20, 1
      %s307 = smul.addr %s306, 8
      %s308 = scalar_lea.vmem %s8, %s307
      %p309 = scmp.lt.s32.totalorder %s20, 1
      %s310 = scalar_select %p309, %s20, 1
      %s311 = smul.addr %s310, 10
      %s312 = smul.addr %s311, 8
      %s313 = scalar_lea.vmem %s0, %s312
      %p314 = scmp.lt.s32.totalorder %s20, 1
      %s315 = scalar_select %p314, %s20, 1
      %s316 = smul.addr %s315, 10
      %s317 = smul.addr %s316, 8
      %s318 = scalar_lea.vmem %s6, %s317
      %p319 = scmp.lt.s32.totalorder %s20, 1
      %s320 = scalar_select %p319, %s20, 1
      %s321 = smul.addr %s320, 8
      %s322 = scalar_lea.vmem %s7, %s321
      %p323 = scmp.lt.s32.totalorder %s20, 1
      %s324 = scalar_select %p323, %s20, 1
      %s325 = smul.addr %s324, 8
      %s326 = scalar_lea.vmem %s8, %s325
      %v327 = vld [vmem:[%s313] sm:$0xff]
      %v328 = vld [vmem:[%s313 + $0x8] sm:$0xff]
      %v329 = vld [vmem:[%s313 + $0x10] sm:$0xff]
      %v330 = vld [vmem:[%s313 + $0x18] sm:$0xff]
      %v331 = vld [vmem:[%s313 + $0x20] sm:$0xff]
      %v332 = vld [vmem:[%s313 + $0x28] sm:$0xff]
      %v333 = vld [vmem:[%s313 + $0x30] sm:$0xff]
      %v334 = vld [vmem:[%s313 + $0x38] sm:$0xff]
      %v335 = vld [vmem:[%s313 + $0x40] sm:$0xff]
      %v336 = vld [vmem:[%s313 + $0x48] sm:$0xff]
      %v337 = vld [vmem:[%s5] sm:$0xff]
      %v338 = vld [vmem:[%s5 + $0x8] sm:$0x3]
      %v339 = vld [vmem:[%s3] sm:$0xff]
      %341 = vset.pattern.permute.xlu0 0
      %342 = vperm.xlu0 %341, %v339
      %v343 = vpop.permute.xlu0 %342
      %v345 = vmul.f32 %v327, %v343
      %v346 = vmul.f32 %v328, %v343
      %v347 = vmul.f32 %v329, %v343
      %v348 = vmul.f32 %v330, %v343
      %v349 = vmul.f32 %v331, %v343
      %v350 = vmul.f32 %v332, %v343
      %v351 = vmul.f32 %v333, %v343
      %v352 = vmul.f32 %v334, %v343
      %v353 = vmul.f32 %v335, %v343
      %v354 = vmul.f32 %v336, %v343
      %v355 = vld [vmem:[%s4] sm:$0xff]
      %357 = vset.pattern.permute.xlu0 0
      %358 = vperm.xlu0 %357, %v355
      %v359 = vpop.permute.xlu0 %358
      %v361 = vadd.f32 %v345, %v359
      %v362 = vadd.f32 %v346, %v359
      %v363 = vadd.f32 %v347, %v359
      %v364 = vadd.f32 %v348, %v359
      %v365 = vadd.f32 %v349, %v359
      %v366 = vadd.f32 %v350, %v359
      %v367 = vadd.f32 %v351, %v359
      %v368 = vadd.f32 %v352, %v359
      %v369 = vadd.f32 %v353, %v359
      %v370 = vadd.f32 %v354, %v359
      %vm371 = vcmp.gt.f32.partialorder %v361, 0.0
      %vm372 = vcmp.gt.f32.partialorder %v362, 0.0
      %vm373 = vcmp.gt.f32.partialorder %v363, 0.0
      %vm374 = vcmp.gt.f32.partialorder %v364, 0.0
      %vm375 = vcmp.gt.f32.partialorder %v365, 0.0
      %vm376 = vcmp.gt.f32.partialorder %v366, 0.0
      %vm377 = vcmp.gt.f32.partialorder %v367, 0.0
      %vm378 = vcmp.gt.f32.partialorder %v368, 0.0
      %vm379 = vcmp.gt.f32.partialorder %v369, 0.0
      %vm380 = vcmp.gt.f32.partialorder %v370, 0.0
      %v381 = vmin.f32 %v361, 0.0
      %v382 = vmin.f32 %v362, 0.0
      %v383 = vmin.f32 %v363, 0.0
      %v384 = vmin.f32 %v364, 0.0
      %v385 = vmin.f32 %v365, 0.0
      %v386 = vmin.f32 %v366, 0.0
      %v387 = vmin.f32 %v367, 0.0
      %v388 = vmin.f32 %v368, 0.0
      %v389 = vmin.f32 %v369, 0.0
      %v390 = vmin.f32 %v370, 0.0
      %v391 = vmul.f32 %v381, 1.442695
      %v392 = vpow.pop %v391
      %v393 = vmul.f32 %v382, 1.442695
      %v394 = vpow.pop %v393
      %v395 = vmul.f32 %v383, 1.442695
      %v396 = vpow.pop %v395
      %v397 = vmul.f32 %v384, 1.442695
      %v398 = vpow.pop %v397
      %v399 = vmul.f32 %v385, 1.442695
      %v400 = vpow.pop %v399
      %v401 = vmul.f32 %v386, 1.442695
      %v402 = vpow.pop %v401
      %v403 = vmul.f32 %v387, 1.442695
      %v404 = vpow.pop %v403
      %v405 = vmul.f32 %v388, 1.442695
      %v406 = vpow.pop %v405
      %v407 = vmul.f32 %v389, 1.442695
      %v408 = vpow.pop %v407
      %v409 = vmul.f32 %v390, 1.442695
      %v410 = vpow.pop %v409
      %v411 = vsub.f32 %v392, 1.0
      %v412 = vsub.f32 %v394, 1.0
      %v413 = vsub.f32 %v396, 1.0
      %v414 = vsub.f32 %v398, 1.0
      %v415 = vsub.f32 %v400, 1.0
      %v416 = vsub.f32 %v402, 1.0
      %v417 = vsub.f32 %v404, 1.0
      %v418 = vsub.f32 %v406, 1.0
      %v419 = vsub.f32 %v408, 1.0
      %v420 = vsub.f32 %v410, 1.0
      %v421 = vsel %vm371, %v361, %v411
      %v422 = vsel %vm372, %v362, %v412
      %v423 = vsel %vm373, %v363, %v413
      %v424 = vsel %vm374, %v364, %v414
      %v425 = vsel %vm375, %v365, %v415
      %v426 = vsel %vm376, %v366, %v416
      %v427 = vsel %vm377, %v367, %v417
      %v428 = vsel %vm378, %v368, %v418
      %v429 = vsel %vm379, %v369, %v419
      %v430 = vsel %vm380, %v370, %v420
      %v433 = vlaneseq
      %v434 = vshrl.u32 %v433, 7
      %v435 = vsub.s32 0, %v434
      %v436 = vrot.slane %v337, %v435
      %v437 = vlaneseq
      %v438 = vshrl.u32 %v437, 7
      %v439 = vsub.s32 1, %v438
      %v440 = vrot.slane %v337, %v439
      %v441 = vlaneseq
      %v442 = vshrl.u32 %v441, 7
      %v443 = vsub.s32 2, %v442
      %v444 = vrot.slane %v337, %v443
      %v445 = vlaneseq
      %v446 = vshrl.u32 %v445, 7
      %v447 = vsub.s32 3, %v446
      %v448 = vrot.slane %v337, %v447
      %v449 = vlaneseq
      %v450 = vshrl.u32 %v449, 7
      %v451 = vsub.s32 4, %v450
      %v452 = vrot.slane %v337, %v451
      %v453 = vlaneseq
      %v454 = vshrl.u32 %v453, 7
      %v455 = vsub.s32 5, %v454
      %v456 = vrot.slane %v337, %v455
      %v457 = vlaneseq
      %v458 = vshrl.u32 %v457, 7
      %v459 = vsub.s32 6, %v458
      %v460 = vrot.slane %v337, %v459
      %v461 = vlaneseq
      %v462 = vshrl.u32 %v461, 7
      %v463 = vsub.s32 7, %v462
      %v464 = vrot.slane %v337, %v463
      %v465 = vlaneseq
      %v466 = vshrl.u32 %v465, 7
      %v467 = vsub.s32 0, %v466
      %v468 = vrot.slane %v338, %v467
      %v469 = vlaneseq
      %v470 = vshrl.u32 %v469, 7
      %v471 = vsub.s32 1, %v470
      %v472 = vrot.slane %v338, %v471
      %v483 = vmul.f32 %v421, %v436
      %v484 = vmul.f32 %v422, %v440
      %v485 = vmul.f32 %v423, %v444
      %v486 = vmul.f32 %v424, %v448
      %v487 = vmul.f32 %v425, %v452
      %v488 = vmul.f32 %v426, %v456
      %v489 = vmul.f32 %v427, %v460
      %v490 = vmul.f32 %v428, %v464
      %v491 = vmul.f32 %v429, %v468
      %v492 = vmul.f32 %v430, %v472
      %493 = vrot.lane.b32.xlu0 %v483, 35
      %v494 = vpop.permute.xlu0 %493
      %495 = vrot.lane.b32.xlu0 %v484, 35
      %v496 = vpop.permute.xlu0 %495
      %497 = vrot.lane.b32.xlu0 %v485, 35
      %v498 = vpop.permute.xlu0 %497
      %499 = vrot.lane.b32.xlu0 %v486, 35
      %v500 = vpop.permute.xlu0 %499
      %501 = vrot.lane.b32.xlu0 %v487, 35
      %v502 = vpop.permute.xlu0 %501
      %503 = vrot.lane.b32.xlu0 %v488, 35
      %v504 = vpop.permute.xlu0 %503
      %505 = vrot.lane.b32.xlu0 %v489, 35
      %v506 = vpop.permute.xlu0 %505
      %507 = vrot.lane.b32.xlu0 %v490, 35
      %v508 = vpop.permute.xlu0 %507
      %509 = vrot.lane.b32.xlu0 %v491, 35
      %v510 = vpop.permute.xlu0 %509
      %511 = vrot.lane.b32.xlu0 %v492, 35
      %v512 = vpop.permute.xlu0 %511
      %v513 = vlaneseq
      %v514 = vand.u32 %v513, 127
      %vm515 = vcmp.lt.s32.totalorder %v514, 35
      %v516 = vsel %vm515, %v510, %v512
      %v517 = vsel %vm515, %v508, %v510
      %v518 = vsel %vm515, %v506, %v508
      %v519 = vsel %vm515, %v504, %v506
      %v520 = vsel %vm515, %v502, %v504
      %v521 = vsel %vm515, %v500, %v502
      %v522 = vsel %vm515, %v498, %v500
      %v523 = vsel %vm515, %v496, %v498
      %v524 = vsel %vm515, %v494, %v496
      %v525 = vsel %vm515, %v512, %v494
      %v526 = vld [vmem:[%s1] sm:$0xff]
      %527 = vrot.lane.b32.xlu0 %v483, 34
      %v528 = vpop.permute.xlu0 %527
      %529 = vrot.lane.b32.xlu0 %v484, 34
      %v530 = vpop.permute.xlu0 %529
      %531 = vrot.lane.b32.xlu0 %v485, 34
      %v532 = vpop.permute.xlu0 %531
      %533 = vrot.lane.b32.xlu0 %v486, 34
      %v534 = vpop.permute.xlu0 %533
      %535 = vrot.lane.b32.xlu0 %v487, 34
      %v536 = vpop.permute.xlu0 %535
      %537 = vrot.lane.b32.xlu0 %v488, 34
      %v538 = vpop.permute.xlu0 %537
      %539 = vrot.lane.b32.xlu0 %v489, 34
      %v540 = vpop.permute.xlu0 %539
      %541 = vrot.lane.b32.xlu0 %v490, 34
      %v542 = vpop.permute.xlu0 %541
      %543 = vrot.lane.b32.xlu0 %v491, 34
      %v544 = vpop.permute.xlu0 %543
      %545 = vrot.lane.b32.xlu0 %v492, 34
      %v546 = vpop.permute.xlu0 %545
      %vm547 = vcmp.lt.s32.totalorder %v514, 34
      %v548 = vsel %vm547, %v544, %v546
      %v549 = vsel %vm547, %v542, %v544
      %v550 = vsel %vm547, %v540, %v542
      %v551 = vsel %vm547, %v538, %v540
      %v552 = vsel %vm547, %v536, %v538
      %v553 = vsel %vm547, %v534, %v536
      %v554 = vsel %vm547, %v532, %v534
      %v555 = vsel %vm547, %v530, %v532
      %v556 = vsel %vm547, %v528, %v530
      %v557 = vsel %vm547, %v546, %v528
      %s558 = scalar_lea.vmem %s1, 8
      %v559 = vld [vmem:[%s558] sm:$0xff]
      %vm560 = vcmask 64512
      %v562 = vsel %vm560, %v559, 0
      %564 = vmatprep.subr.mxu0 %v556
      %565 = vmatpush1.msra.mxu0 %v557
      %566 = vmatprep.subr.mxu0 0.0
      %567 = vmatpush1.msra.mxu0 0.0
      %568 = vmatprep.subr.mxu0 0.0
      %569 = vmatpush1.msra.mxu0 0.0
      %570 = vmatprep.subr.mxu0 0.0
      %571 = vmatpush1.msra.mxu0 0.0
      %572 = vmatprep.subr.mxu0 0.0
      %573 = vmatpush1.msra.mxu0 0.0
      %574 = vmatprep.subr.mxu0 0.0
      %575 = vmatpush1.msra.mxu0 0.0
      %576 = vmatprep.subr.mxu0 0.0
      %577 = vmatpush1.msra.mxu0 0.0
      %578 = vmatprep.subr.mxu0 0.0
      %579 = vmatpush1.msra.mxu0 0.0
      %580 = vmatprep.subr.mxu0 0.0
      %581 = vmatpush1.msra.mxu0 0.0
      %582 = vmatprep.subr.mxu0 0.0
      %583 = vmatpush1.msra.mxu0 0.0
      %584 = vmatprep.subr.mxu0 0.0
      %585 = vmatpush1.msra.mxu0 0.0
      %586 = vmatprep.subr.mxu0 0.0
      %587 = vmatpush1.msra.mxu0 0.0
      %588 = vmatprep.subr.mxu0 0.0
      %589 = vmatpush1.msra.mxu0 0.0
      %590 = vmatprep.subr.mxu0 0.0
      %591 = vmatpush1.msra.mxu0 0.0
      %592 = vmatprep.subr.mxu0 0.0
      %593 = vmatpush1.msra.mxu0 0.0
      %594 = vmatprep.subr.mxu0 0.0
      %595 = vmatpush1.msra.mxu0 0.0
      %596 = vmatprep.subr.mxu0 0.0
      %597 = vmatpush1.msra.mxu0 0.0
      %598 = vmatprep.subr.mxu0 0.0
      %599 = vmatpush1.msra.mxu0 0.0
      %600 = vmatprep.subr.mxu0 0.0
      %601 = vmatpush1.msra.mxu0 0.0
      %602 = vmatprep.subr.mxu0 0.0
      %603 = vmatpush1.msra.mxu0 0.0
      %604 = vmatprep.subr.mxu0 0.0
      %605 = vmatpush1.msra.mxu0 0.0
      %606 = vmatprep.subr.mxu0 0.0
      %607 = vmatpush1.msra.mxu0 0.0
      %608 = vmatprep.subr.mxu0 0.0
      %609 = vmatpush1.msra.mxu0 0.0
      %610 = vmatprep.subr.mxu0 0.0
      %611 = vmatpush1.msra.mxu0 0.0
      %612 = vmatprep.subr.mxu0 0.0
      %613 = vmatpush1.msra.mxu0 0.0
      %614 = vmatprep.subr.mxu0 0.0
      %615 = vmatpush1.msra.mxu0 0.0
      %616 = vmatprep.subr.mxu0 0.0
      %617 = vmatpush1.msra.mxu0 0.0
      %618 = vmatprep.subr.mxu0 0.0
      %619 = vmatpush1.msra.mxu0 0.0
      %620 = vmatprep.subr.mxu0 0.0
      %621 = vmatpush1.msra.mxu0 0.0
      %622 = vmatprep.subr.mxu0 0.0
      %623 = vmatpush1.msra.mxu0 0.0
      %624 = vmatprep.subr.mxu0 0.0
      %625 = vmatpush1.msra.mxu0 0.0
      %626 = vmatprep.subr.mxu0 0.0
      %627 = vmatpush1.msra.mxu0 0.0
      %628 = vmatprep.mubr.f32.mxu0 0.0
      %629 = vmatmul.mubr.f32.gmra.mrb[0].mxu0 %v562
      %v630 = vpop.f32.mrb[0].mxu0
      %v631 = vadd.f32 0.0, %v630
      %v632 = vpop.f32.mrb[0].mxu0
      %v633 = vadd.f32 0.0, %v632
      %634 = vdwg.mxu0
      %635 = vmatprep.subr.mxu0 %v554
      %636 = vmatpush1.msra.mxu0 %v555
      %637 = vmatprep.subr.mxu0 0.0
      %638 = vmatpush1.msra.mxu0 0.0
      %639 = vmatprep.subr.mxu0 0.0
      %640 = vmatpush1.msra.mxu0 0.0
      %641 = vmatprep.subr.mxu0 0.0
      %642 = vmatpush1.msra.mxu0 0.0
      %643 = vmatprep.subr.mxu0 0.0
      %644 = vmatpush1.msra.mxu0 0.0
      %645 = vmatprep.subr.mxu0 0.0
      %646 = vmatpush1.msra.mxu0 0.0
      %647 = vmatprep.subr.mxu0 0.0
      %648 = vmatpush1.msra.mxu0 0.0
      %649 = vmatprep.subr.mxu0 0.0
      %650 = vmatpush1.msra.mxu0 0.0
      %651 = vmatprep.subr.mxu0 0.0
      %652 = vmatpush1.msra.mxu0 0.0
      %653 = vmatprep.subr.mxu0 0.0
      %654 = vmatpush1.msra.mxu0 0.0
      %655 = vmatprep.subr.mxu0 0.0
      %656 = vmatpush1.msra.mxu0 0.0
      %657 = vmatprep.subr.mxu0 0.0
      %658 = vmatpush1.msra.mxu0 0.0
      %659 = vmatprep.subr.mxu0 0.0
      %660 = vmatpush1.msra.mxu0 0.0
      %661 = vmatprep.subr.mxu0 0.0
      %662 = vmatpush1.msra.mxu0 0.0
      %663 = vmatprep.subr.mxu0 0.0
      %664 = vmatpush1.msra.mxu0 0.0
      %665 = vmatprep.subr.mxu0 0.0
      %666 = vmatpush1.msra.mxu0 0.0
      %667 = vmatprep.subr.mxu0 0.0
      %668 = vmatpush1.msra.mxu0 0.0
      %669 = vmatprep.subr.mxu0 0.0
      %670 = vmatpush1.msra.mxu0 0.0
      %671 = vmatprep.subr.mxu0 0.0
      %672 = vmatpush1.msra.mxu0 0.0
      %673 = vmatprep.subr.mxu0 0.0
      %674 = vmatpush1.msra.mxu0 0.0
      %675 = vmatprep.subr.mxu0 0.0
      %676 = vmatpush1.msra.mxu0 0.0
      %677 = vmatprep.subr.mxu0 0.0
      %678 = vmatpush1.msra.mxu0 0.0
      %679 = vmatprep.subr.mxu0 0.0
      %680 = vmatpush1.msra.mxu0 0.0
      %681 = vmatprep.subr.mxu0 0.0
      %682 = vmatpush1.msra.mxu0 0.0
      %683 = vmatprep.subr.mxu0 0.0
      %684 = vmatpush1.msra.mxu0 0.0
      %685 = vmatprep.subr.mxu0 0.0
      %686 = vmatpush1.msra.mxu0 0.0
      %687 = vmatprep.subr.mxu0 0.0
      %688 = vmatpush1.msra.mxu0 0.0
      %689 = vmatprep.subr.mxu0 0.0
      %690 = vmatpush1.msra.mxu0 0.0
      %691 = vmatprep.subr.mxu0 0.0
      %692 = vmatpush1.msra.mxu0 0.0
      %693 = vmatprep.subr.mxu0 0.0
      %694 = vmatpush1.msra.mxu0 0.0
      %695 = vmatprep.subr.mxu0 0.0
      %696 = vmatpush1.msra.mxu0 0.0
      %697 = vmatprep.subr.mxu0 0.0
      %698 = vmatpush1.msra.mxu0 0.0
      %699 = vmatprep.mubr.f32.mxu0 0.0
      %700 = vmatmul.mubr.f32.gmra.mrb[0].mxu0 %v562
      %v701 = vpop.f32.mrb[0].mxu0
      %v702 = vadd.f32 0.0, %v701
      %v703 = vpop.f32.mrb[0].mxu0
      %v704 = vadd.f32 0.0, %v703
      %705 = vdwg.mxu0
      %706 = vmatprep.subr.mxu0 %v552
      %707 = vmatpush1.msra.mxu0 %v553
      %708 = vmatprep.subr.mxu0 0.0
      %709 = vmatpush1.msra.mxu0 0.0
      %710 = vmatprep.subr.mxu0 0.0
      %711 = vmatpush1.msra.mxu0 0.0
      %712 = vmatprep.subr.mxu0 0.0
      %713 = vmatpush1.msra.mxu0 0.0
      %714 = vmatprep.subr.mxu0 0.0
      %715 = vmatpush1.msra.mxu0 0.0
      %716 = vmatprep.subr.mxu0 0.0
      %717 = vmatpush1.msra.mxu0 0.0
      %718 = vmatprep.subr.mxu0 0.0
      %719 = vmatpush1.msra.mxu0 0.0
      %720 = vmatprep.subr.mxu0 0.0
      %721 = vmatpush1.msra.mxu0 0.0
      %722 = vmatprep.subr.mxu0 0.0
      %723 = vmatpush1.msra.mxu0 0.0
      %724 = vmatprep.subr.mxu0 0.0
      %725 = vmatpush1.msra.mxu0 0.0
      %726 = vmatprep.subr.mxu0 0.0
      %727 = vmatpush1.msra.mxu0 0.0
      %728 = vmatprep.subr.mxu0 0.0
      %729 = vmatpush1.msra.mxu0 0.0
      %730 = vmatprep.subr.mxu0 0.0
      %731 = vmatpush1.msra.mxu0 0.0
      %732 = vmatprep.subr.mxu0 0.0
      %733 = vmatpush1.msra.mxu0 0.0
      %734 = vmatprep.subr.mxu0 0.0
      %735 = vmatpush1.msra.mxu0 0.0
      %736 = vmatprep.subr.mxu0 0.0
      %737 = vmatpush1.msra.mxu0 0.0
      %738 = vmatprep.subr.mxu0 0.0
      %739 = vmatpush1.msra.mxu0 0.0
      %740 = vmatprep.subr.mxu0 0.0
      %741 = vmatpush1.msra.mxu0 0.0
      %742 = vmatprep.subr.mxu0 0.0
      %743 = vmatpush1.msra.mxu0 0.0
      %744 = vmatprep.subr.mxu0 0.0
      %745 = vmatpush1.msra.mxu0 0.0
      %746 = vmatprep.subr.mxu0 0.0
      %747 = vmatpush1.msra.mxu0 0.0
      %748 = vmatprep.subr.mxu0 0.0
      %749 = vmatpush1.msra.mxu0 0.0
      %750 = vmatprep.subr.mxu0 0.0
      %751 = vmatpush1.msra.mxu0 0.0
      %752 = vmatprep.subr.mxu0 0.0
      %753 = vmatpush1.msra.mxu0 0.0
      %754 = vmatprep.subr.mxu0 0.0
      %755 = vmatpush1.msra.mxu0 0.0
      %756 = vmatprep.subr.mxu0 0.0
      %757 = vmatpush1.msra.mxu0 0.0
      %758 = vmatprep.subr.mxu0 0.0
      %759 = vmatpush1.msra.mxu0 0.0
      %760 = vmatprep.subr.mxu0 0.0
      %761 = vmatpush1.msra.mxu0 0.0
      %762 = vmatprep.subr.mxu0 0.0
      %763 = vmatpush1.msra.mxu0 0.0
      %764 = vmatprep.subr.mxu0 0.0
      %765 = vmatpush1.msra.mxu0 0.0
      %766 = vmatprep.subr.mxu0 0.0
      %767 = vmatpush1.msra.mxu0 0.0
      %768 = vmatprep.subr.mxu0 0.0
      %769 = vmatpush1.msra.mxu0 0.0
      %770 = vmatprep.mubr.f32.mxu0 0.0
      %771 = vmatmul.mubr.f32.gmra.mrb[0].mxu0 %v562
      %v772 = vpop.f32.mrb[0].mxu0
      %v773 = vadd.f32 0.0, %v772
      %v774 = vpop.f32.mrb[0].mxu0
      %v775 = vadd.f32 0.0, %v774
      %776 = vdwg.mxu0
      %777 = vmatprep.subr.mxu0 %v550
      %778 = vmatpush1.msra.mxu0 %v551
      %779 = vmatprep.subr.mxu0 0.0
      %780 = vmatpush1.msra.mxu0 0.0
      %781 = vmatprep.subr.mxu0 0.0
      %782 = vmatpush1.msra.mxu0 0.0
      %783 = vmatprep.subr.mxu0 0.0
      %784 = vmatpush1.msra.mxu0 0.0
      %785 = vmatprep.subr.mxu0 0.0
      %786 = vmatpush1.msra.mxu0 0.0
      %787 = vmatprep.subr.mxu0 0.0
      %788 = vmatpush1.msra.mxu0 0.0
      %789 = vmatprep.subr.mxu0 0.0
      %790 = vmatpush1.msra.mxu0 0.0
      %791 = vmatprep.subr.mxu0 0.0
      %792 = vmatpush1.msra.mxu0 0.0
      %793 = vmatprep.subr.mxu0 0.0
      %794 = vmatpush1.msra.mxu0 0.0
      %795 = vmatprep.subr.mxu0 0.0
      %796 = vmatpush1.msra.mxu0 0.0
      %797 = vmatprep.subr.mxu0 0.0
      %798 = vmatpush1.msra.mxu0 0.0
      %799 = vmatprep.subr.mxu0 0.0
      %800 = vmatpush1.msra.mxu0 0.0
      %801 = vmatprep.subr.mxu0 0.0
      %802 = vmatpush1.msra.mxu0 0.0
      %803 = vmatprep.subr.mxu0 0.0
      %804 = vmatpush1.msra.mxu0 0.0
      %805 = vmatprep.subr.mxu0 0.0
      %806 = vmatpush1.msra.mxu0 0.0
      %807 = vmatprep.subr.mxu0 0.0
      %808 = vmatpush1.msra.mxu0 0.0
      %809 = vmatprep.subr.mxu0 0.0
      %810 = vmatpush1.msra.mxu0 0.0
      %811 = vmatprep.subr.mxu0 0.0
      %812 = vmatpush1.msra.mxu0 0.0
      %813 = vmatprep.subr.mxu0 0.0
      %814 = vmatpush1.msra.mxu0 0.0
      %815 = vmatprep.subr.mxu0 0.0
      %816 = vmatpush1.msra.mxu0 0.0
      %817 = vmatprep.subr.mxu0 0.0
      %818 = vmatpush1.msra.mxu0 0.0
      %819 = vmatprep.subr.mxu0 0.0
      %820 = vmatpush1.msra.mxu0 0.0
      %821 = vmatprep.subr.mxu0 0.0
      %822 = vmatpush1.msra.mxu0 0.0
      %823 = vmatprep.subr.mxu0 0.0
      %824 = vmatpush1.msra.mxu0 0.0
      %825 = vmatprep.subr.mxu0 0.0
      %826 = vmatpush1.msra.mxu0 0.0
      %827 = vmatprep.subr.mxu0 0.0
      %828 = vmatpush1.msra.mxu0 0.0
      %829 = vmatprep.subr.mxu0 0.0
      %830 = vmatpush1.msra.mxu0 0.0
      %831 = vmatprep.subr.mxu0 0.0
      %832 = vmatpush1.msra.mxu0 0.0
      %833 = vmatprep.subr.mxu0 0.0
      %834 = vmatpush1.msra.mxu0 0.0
      %835 = vmatprep.subr.mxu0 0.0
      %836 = vmatpush1.msra.mxu0 0.0
      %837 = vmatprep.subr.mxu0 0.0
      %838 = vmatpush1.msra.mxu0 0.0
      %839 = vmatprep.subr.mxu0 0.0
      %840 = vmatpush1.msra.mxu0 0.0
      %841 = vmatprep.mubr.f32.mxu0 0.0
      %842 = vmatmul.mubr.f32.gmra.mrb[0].mxu0 %v562
      %v843 = vpop.f32.mrb[0].mxu0
      %v844 = vadd.f32 0.0, %v843
      %v845 = vpop.f32.mrb[0].mxu0
      %v846 = vadd.f32 0.0, %v845
      %847 = vdwg.mxu0
      %848 = vmatprep.subr.mxu0 %v548
      %849 = vmatpush1.msra.mxu0 %v549
      %850 = vmatprep.subr.mxu0 0.0
      %851 = vmatpush1.msra.mxu0 0.0
      %852 = vmatprep.subr.mxu0 0.0
      %853 = vmatpush1.msra.mxu0 0.0
      %854 = vmatprep.subr.mxu0 0.0
      %855 = vmatpush1.msra.mxu0 0.0
      %856 = vmatprep.subr.mxu0 0.0
      %857 = vmatpush1.msra.mxu0 0.0
      %858 = vmatprep.subr.mxu0 0.0
      %859 = vmatpush1.msra.mxu0 0.0
      %860 = vmatprep.subr.mxu0 0.0
      %861 = vmatpush1.msra.mxu0 0.0
      %862 = vmatprep.subr.mxu0 0.0
      %863 = vmatpush1.msra.mxu0 0.0
      %864 = vmatprep.subr.mxu0 0.0
      %865 = vmatpush1.msra.mxu0 0.0
      %866 = vmatprep.subr.mxu0 0.0
      %867 = vmatpush1.msra.mxu0 0.0
      %868 = vmatprep.subr.mxu0 0.0
      %869 = vmatpush1.msra.mxu0 0.0
      %870 = vmatprep.subr.mxu0 0.0
      %871 = vmatpush1.msra.mxu0 0.0
      %872 = vmatprep.subr.mxu0 0.0
      %873 = vmatpush1.msra.mxu0 0.0
      %874 = vmatprep.subr.mxu0 0.0
      %875 = vmatpush1.msra.mxu0 0.0
      %876 = vmatprep.subr.mxu0 0.0
      %877 = vmatpush1.msra.mxu0 0.0
      %878 = vmatprep.subr.mxu0 0.0
      %879 = vmatpush1.msra.mxu0 0.0
      %880 = vmatprep.subr.mxu0 0.0
      %881 = vmatpush1.msra.mxu0 0.0
      %882 = vmatprep.subr.mxu0 0.0
      %883 = vmatpush1.msra.mxu0 0.0
      %884 = vmatprep.subr.mxu0 0.0
      %885 = vmatpush1.msra.mxu0 0.0
      %886 = vmatprep.subr.mxu0 0.0
      %887 = vmatpush1.msra.mxu0 0.0
      %888 = vmatprep.subr.mxu0 0.0
      %889 = vmatpush1.msra.mxu0 0.0
      %890 = vmatprep.subr.mxu0 0.0
      %891 = vmatpush1.msra.mxu0 0.0
      %892 = vmatprep.subr.mxu0 0.0
      %893 = vmatpush1.msra.mxu0 0.0
      %894 = vmatprep.subr.mxu0 0.0
      %895 = vmatpush1.msra.mxu0 0.0
      %896 = vmatprep.subr.mxu0 0.0
      %897 = vmatpush1.msra.mxu0 0.0
      %898 = vmatprep.subr.mxu0 0.0
      %899 = vmatpush1.msra.mxu0 0.0
      %900 = vmatprep.subr.mxu0 0.0
      %901 = vmatpush1.msra.mxu0 0.0
      %902 = vmatprep.subr.mxu0 0.0
      %903 = vmatpush1.msra.mxu0 0.0
      %904 = vmatprep.subr.mxu0 0.0
      %905 = vmatpush1.msra.mxu0 0.0
      %906 = vmatprep.subr.mxu0 0.0
      %907 = vmatpush1.msra.mxu0 0.0
      %908 = vmatprep.subr.mxu0 0.0
      %909 = vmatpush1.msra.mxu0 0.0
      %910 = vmatprep.subr.mxu0 0.0
      %911 = vmatpush1.msra.mxu0 0.0
      %912 = vmatprep.mubr.f32.mxu0 0.0
      %913 = vmatmul.mubr.f32.gmra.mrb[0].mxu0 %v562
      %v914 = vpop.f32.mrb[0].mxu0
      %v915 = vadd.f32 0.0, %v914
      %v916 = vpop.f32.mrb[0].mxu0
      %v917 = vadd.f32 0.0, %v916
      %918 = vdwg.mxu0
      %v920 = vsel %vm560, %v526, 0
      %922 = vmatprep.subr.mxu0 %v524
      %923 = vmatpush1.msra.mxu0 %v525
      %924 = vmatprep.subr.mxu0 0.0
      %925 = vmatpush1.msra.mxu0 0.0
      %926 = vmatprep.subr.mxu0 0.0
      %927 = vmatpush1.msra.mxu0 0.0
      %928 = vmatprep.subr.mxu0 0.0
      %929 = vmatpush1.msra.mxu0 0.0
      %930 = vmatprep.subr.mxu0 0.0
      %931 = vmatpush1.msra.mxu0 0.0
      %932 = vmatprep.subr.mxu0 0.0
      %933 = vmatpush1.msra.mxu0 0.0
      %934 = vmatprep.subr.mxu0 0.0
      %935 = vmatpush1.msra.mxu0 0.0
      %936 = vmatprep.subr.mxu0 0.0
      %937 = vmatpush1.msra.mxu0 0.0
      %938 = vmatprep.subr.mxu0 0.0
      %939 = vmatpush1.msra.mxu0 0.0
      %940 = vmatprep.subr.mxu0 0.0
      %941 = vmatpush1.msra.mxu0 0.0
      %942 = vmatprep.subr.mxu0 0.0
      %943 = vmatpush1.msra.mxu0 0.0
      %944 = vmatprep.subr.mxu0 0.0
      %945 = vmatpush1.msra.mxu0 0.0
      %946 = vmatprep.subr.mxu0 0.0
      %947 = vmatpush1.msra.mxu0 0.0
      %948 = vmatprep.subr.mxu0 0.0
      %949 = vmatpush1.msra.mxu0 0.0
      %950 = vmatprep.subr.mxu0 0.0
      %951 = vmatpush1.msra.mxu0 0.0
      %952 = vmatprep.subr.mxu0 0.0
      %953 = vmatpush1.msra.mxu0 0.0
      %954 = vmatprep.subr.mxu0 0.0
      %955 = vmatpush1.msra.mxu0 0.0
      %956 = vmatprep.subr.mxu0 0.0
      %957 = vmatpush1.msra.mxu0 0.0
      %958 = vmatprep.subr.mxu0 0.0
      %959 = vmatpush1.msra.mxu0 0.0
      %960 = vmatprep.subr.mxu0 0.0
      %961 = vmatpush1.msra.mxu0 0.0
      %962 = vmatprep.subr.mxu0 0.0
      %963 = vmatpush1.msra.mxu0 0.0
      %964 = vmatprep.subr.mxu0 0.0
      %965 = vmatpush1.msra.mxu0 0.0
      %966 = vmatprep.subr.mxu0 0.0
      %967 = vmatpush1.msra.mxu0 0.0
      %968 = vmatprep.subr.mxu0 0.0
      %969 = vmatpush1.msra.mxu0 0.0
      %970 = vmatprep.subr.mxu0 0.0
      %971 = vmatpush1.msra.mxu0 0.0
      %972 = vmatprep.subr.mxu0 0.0
      %973 = vmatpush1.msra.mxu0 0.0
      %974 = vmatprep.subr.mxu0 0.0
      %975 = vmatpush1.msra.mxu0 0.0
      %976 = vmatprep.subr.mxu0 0.0
      %977 = vmatpush1.msra.mxu0 0.0
      %978 = vmatprep.subr.mxu0 0.0
      %979 = vmatpush1.msra.mxu0 0.0
      %980 = vmatprep.subr.mxu0 0.0
      %981 = vmatpush1.msra.mxu0 0.0
      %982 = vmatprep.subr.mxu0 0.0
      %983 = vmatpush1.msra.mxu0 0.0
      %984 = vmatprep.subr.mxu0 0.0
      %985 = vmatpush1.msra.mxu0 0.0
      %986 = vmatprep.mubr.f32.mxu0 0.0
      %987 = vmatmul.mubr.f32.gmra.mrb[0].mxu0 %v920
      %v988 = vpop.f32.mrb[0].mxu0
      %v989 = vadd.f32 %v631, %v988
      %v990 = vpop.f32.mrb[0].mxu0
      %v991 = vadd.f32 %v633, %v990
      %992 = vdwg.mxu0
      %993 = vmatprep.subr.mxu0 %v522
      %994 = vmatpush1.msra.mxu0 %v523
      %995 = vmatprep.subr.mxu0 0.0
      %996 = vmatpush1.msra.mxu0 0.0
      %997 = vmatprep.subr.mxu0 0.0
      %998 = vmatpush1.msra.mxu0 0.0
      %999 = vmatprep.subr.mxu0 0.0
      %1000 = vmatpush1.msra.mxu0 0.0
      %1001 = vmatprep.subr.mxu0 0.0
      %1002 = vmatpush1.msra.mxu0 0.0
      %1003 = vmatprep.subr.mxu0 0.0
      %1004 = vmatpush1.msra.mxu0 0.0
      %1005 = vmatprep.subr.mxu0 0.0
      %1006 = vmatpush1.msra.mxu0 0.0
      %1007 = vmatprep.subr.mxu0 0.0
      %1008 = vmatpush1.msra.mxu0 0.0
      %1009 = vmatprep.subr.mxu0 0.0
      %1010 = vmatpush1.msra.mxu0 0.0
      %1011 = vmatprep.subr.mxu0 0.0
      %1012 = vmatpush1.msra.mxu0 0.0
      %1013 = vmatprep.subr.mxu0 0.0
      %1014 = vmatpush1.msra.mxu0 0.0
      %1015 = vmatprep.subr.mxu0 0.0
      %1016 = vmatpush1.msra.mxu0 0.0
      %1017 = vmatprep.subr.mxu0 0.0
      %1018 = vmatpush1.msra.mxu0 0.0
      %1019 = vmatprep.subr.mxu0 0.0
      %1020 = vmatpush1.msra.mxu0 0.0
      %1021 = vmatprep.subr.mxu0 0.0
      %1022 = vmatpush1.msra.mxu0 0.0
      %1023 = vmatprep.subr.mxu0 0.0
      %1024 = vmatpush1.msra.mxu0 0.0
      %1025 = vmatprep.subr.mxu0 0.0
      %1026 = vmatpush1.msra.mxu0 0.0
      %1027 = vmatprep.subr.mxu0 0.0
      %1028 = vmatpush1.msra.mxu0 0.0
      %1029 = vmatprep.subr.mxu0 0.0
      %1030 = vmatpush1.msra.mxu0 0.0
      %1031 = vmatprep.subr.mxu0 0.0
      %1032 = vmatpush1.msra.mxu0 0.0
      %1033 = vmatprep.subr.mxu0 0.0
      %1034 = vmatpush1.msra.mxu0 0.0
      %1035 = vmatprep.subr.mxu0 0.0
      %1036 = vmatpush1.msra.mxu0 0.0
      %1037 = vmatprep.subr.mxu0 0.0
      %1038 = vmatpush1.msra.mxu0 0.0
      %1039 = vmatprep.subr.mxu0 0.0
      %1040 = vmatpush1.msra.mxu0 0.0
      %1041 = vmatprep.subr.mxu0 0.0
      %1042 = vmatpush1.msra.mxu0 0.0
      %1043 = vmatprep.subr.mxu0 0.0
      %1044 = vmatpush1.msra.mxu0 0.0
      %1045 = vmatprep.subr.mxu0 0.0
      %1046 = vmatpush1.msra.mxu0 0.0
      %1047 = vmatprep.subr.mxu0 0.0
      %1048 = vmatpush1.msra.mxu0 0.0
      %1049 = vmatprep.subr.mxu0 0.0
      %1050 = vmatpush1.msra.mxu0 0.0
      %1051 = vmatprep.subr.mxu0 0.0
      %1052 = vmatpush1.msra.mxu0 0.0
      %1053 = vmatprep.subr.mxu0 0.0
      %1054 = vmatpush1.msra.mxu0 0.0
      %1055 = vmatprep.subr.mxu0 0.0
      %1056 = vmatpush1.msra.mxu0 0.0
      %1057 = vmatprep.mubr.f32.mxu0 0.0
      %1058 = vmatmul.mubr.f32.gmra.mrb[0].mxu0 %v920
      %v1059 = vpop.f32.mrb[0].mxu0
      %v1060 = vadd.f32 %v702, %v1059
      %v1061 = vpop.f32.mrb[0].mxu0
      %v1062 = vadd.f32 %v704, %v1061
      %1063 = vdwg.mxu0
      %1064 = vmatprep.subr.mxu0 %v520
      %1065 = vmatpush1.msra.mxu0 %v521
      %1066 = vmatprep.subr.mxu0 0.0
      %1067 = vmatpush1.msra.mxu0 0.0
      %1068 = vmatprep.subr.mxu0 0.0
      %1069 = vmatpush1.msra.mxu0 0.0
      %1070 = vmatprep.subr.mxu0 0.0
      %1071 = vmatpush1.msra.mxu0 0.0
      %1072 = vmatprep.subr.mxu0 0.0
      %1073 = vmatpush1.msra.mxu0 0.0
      %1074 = vmatprep.subr.mxu0 0.0
      %1075 = vmatpush1.msra.mxu0 0.0
      %1076 = vmatprep.subr.mxu0 0.0
      %1077 = vmatpush1.msra.mxu0 0.0
      %1078 = vmatprep.subr.mxu0 0.0
      %1079 = vmatpush1.msra.mxu0 0.0
      %1080 = vmatprep.subr.mxu0 0.0
      %1081 = vmatpush1.msra.mxu0 0.0
      %1082 = vmatprep.subr.mxu0 0.0
      %1083 = vmatpush1.msra.mxu0 0.0
      %1084 = vmatprep.subr.mxu0 0.0
      %1085 = vmatpush1.msra.mxu0 0.0
      %1086 = vmatprep.subr.mxu0 0.0
      %1087 = vmatpush1.msra.mxu0 0.0
      %1088 = vmatprep.subr.mxu0 0.0
      %1089 = vmatpush1.msra.mxu0 0.0
      %1090 = vmatprep.subr.mxu0 0.0
      %1091 = vmatpush1.msra.mxu0 0.0
      %1092 = vmatprep.subr.mxu0 0.0
      %1093 = vmatpush1.msra.mxu0 0.0
      %1094 = vmatprep.subr.mxu0 0.0
      %1095 = vmatpush1.msra.mxu0 0.0
      %1096 = vmatprep.subr.mxu0 0.0
      %1097 = vmatpush1.msra.mxu0 0.0
      %1098 = vmatprep.subr.mxu0 0.0
      %1099 = vmatpush1.msra.mxu0 0.0
      %1100 = vmatprep.subr.mxu0 0.0
      %1101 = vmatpush1.msra.mxu0 0.0
      %1102 = vmatprep.subr.mxu0 0.0
      %1103 = vmatpush1.msra.mxu0 0.0
      %1104 = vmatprep.subr.mxu0 0.0
      %1105 = vmatpush1.msra.mxu0 0.0
      %1106 = vmatprep.subr.mxu0 0.0
      %1107 = vmatpush1.msra.mxu0 0.0
      %1108 = vmatprep.subr.mxu0 0.0
      %1109 = vmatpush1.msra.mxu0 0.0
      %1110 = vmatprep.subr.mxu0 0.0
      %1111 = vmatpush1.msra.mxu0 0.0
      %1112 = vmatprep.subr.mxu0 0.0
      %1113 = vmatpush1.msra.mxu0 0.0
      %1114 = vmatprep.subr.mxu0 0.0
      %1115 = vmatpush1.msra.mxu0 0.0
      %1116 = vmatprep.subr.mxu0 0.0
      %1117 = vmatpush1.msra.mxu0 0.0
      %1118 = vmatprep.subr.mxu0 0.0
      %1119 = vmatpush1.msra.mxu0 0.0
      %1120 = vmatprep.subr.mxu0 0.0
      %1121 = vmatpush1.msra.mxu0 0.0
      %1122 = vmatprep.subr.mxu0 0.0
      %1123 = vmatpush1.msra.mxu0 0.0
      %1124 = vmatprep.subr.mxu0 0.0
      %1125 = vmatpush1.msra.mxu0 0.0
      %1126 = vmatprep.subr.mxu0 0.0
      %1127 = vmatpush1.msra.mxu0 0.0
      %1128 = vmatprep.mubr.f32.mxu0 0.0
      %1129 = vmatmul.mubr.f32.gmra.mrb[0].mxu0 %v920
      %v1130 = vpop.f32.mrb[0].mxu0
      %v1131 = vadd.f32 %v773, %v1130
      %v1132 = vpop.f32.mrb[0].mxu0
      %v1133 = vadd.f32 %v775, %v1132
      %1134 = vdwg.mxu0
      %1135 = vmatprep.subr.mxu0 %v518
      %1136 = vmatpush1.msra.mxu0 %v519
      %1137 = vmatprep.subr.mxu0 0.0
      %1138 = vmatpush1.msra.mxu0 0.0
      %1139 = vmatprep.subr.mxu0 0.0
      %1140 = vmatpush1.msra.mxu0 0.0
      %1141 = vmatprep.subr.mxu0 0.0
      %1142 = vmatpush1.msra.mxu0 0.0
      %1143 = vmatprep.subr.mxu0 0.0
      %1144 = vmatpush1.msra.mxu0 0.0
      %1145 = vmatprep.subr.mxu0 0.0
      %1146 = vmatpush1.msra.mxu0 0.0
      %1147 = vmatprep.subr.mxu0 0.0
      %1148 = vmatpush1.msra.mxu0 0.0
      %1149 = vmatprep.subr.mxu0 0.0
      %1150 = vmatpush1.msra.mxu0 0.0
      %1151 = vmatprep.subr.mxu0 0.0
      %1152 = vmatpush1.msra.mxu0 0.0
      %1153 = vmatprep.subr.mxu0 0.0
      %1154 = vmatpush1.msra.mxu0 0.0
      %1155 = vmatprep.subr.mxu0 0.0
      %1156 = vmatpush1.msra.mxu0 0.0
      %1157 = vmatprep.subr.mxu0 0.0
      %1158 = vmatpush1.msra.mxu0 0.0
      %1159 = vmatprep.subr.mxu0 0.0
      %1160 = vmatpush1.msra.mxu0 0.0
      %1161 = vmatprep.subr.mxu0 0.0
      %1162 = vmatpush1.msra.mxu0 0.0
      %1163 = vmatprep.subr.mxu0 0.0
      %1164 = vmatpush1.msra.mxu0 0.0
      %1165 = vmatprep.subr.mxu0 0.0
      %1166 = vmatpush1.msra.mxu0 0.0
      %1167 = vmatprep.subr.mxu0 0.0
      %1168 = vmatpush1.msra.mxu0 0.0
      %1169 = vmatprep.subr.mxu0 0.0
      %1170 = vmatpush1.msra.mxu0 0.0
      %1171 = vmatprep.subr.mxu0 0.0
      %1172 = vmatpush1.msra.mxu0 0.0
      %1173 = vmatprep.subr.mxu0 0.0
      %1174 = vmatpush1.msra.mxu0 0.0
      %1175 = vmatprep.subr.mxu0 0.0
      %1176 = vmatpush1.msra.mxu0 0.0
      %1177 = vmatprep.subr.mxu0 0.0
      %1178 = vmatpush1.msra.mxu0 0.0
      %1179 = vmatprep.subr.mxu0 0.0
      %1180 = vmatpush1.msra.mxu0 0.0
      %1181 = vmatprep.subr.mxu0 0.0
      %1182 = vmatpush1.msra.mxu0 0.0
      %1183 = vmatprep.subr.mxu0 0.0
      %1184 = vmatpush1.msra.mxu0 0.0
      %1185 = vmatprep.subr.mxu0 0.0
      %1186 = vmatpush1.msra.mxu0 0.0
      %1187 = vmatprep.subr.mxu0 0.0
      %1188 = vmatpush1.msra.mxu0 0.0
      %1189 = vmatprep.subr.mxu0 0.0
      %1190 = vmatpush1.msra.mxu0 0.0
      %1191 = vmatprep.subr.mxu0 0.0
      %1192 = vmatpush1.msra.mxu0 0.0
      %1193 = vmatprep.subr.mxu0 0.0
      %1194 = vmatpush1.msra.mxu0 0.0
      %1195 = vmatprep.subr.mxu0 0.0
      %1196 = vmatpush1.msra.mxu0 0.0
      %1197 = vmatprep.subr.mxu0 0.0
      %1198 = vmatpush1.msra.mxu0 0.0
      %1199 = vmatprep.mubr.f32.mxu0 0.0
      %1200 = vmatmul.mubr.f32.gmra.mrb[0].mxu0 %v920
      %v1201 = vpop.f32.mrb[0].mxu0
      %v1202 = vadd.f32 %v844, %v1201
      %v1203 = vpop.f32.mrb[0].mxu0
      %v1204 = vadd.f32 %v846, %v1203
      %1205 = vdwg.mxu0
      %1206 = vmatprep.subr.mxu0 %v516
      %1207 = vmatpush1.msra.mxu0 %v517
      %1208 = vmatprep.subr.mxu0 0.0
      %1209 = vmatpush1.msra.mxu0 0.0
      %1210 = vmatprep.subr.mxu0 0.0
      %1211 = vmatpush1.msra.mxu0 0.0
      %1212 = vmatprep.subr.mxu0 0.0
      %1213 = vmatpush1.msra.mxu0 0.0
      %1214 = vmatprep.subr.mxu0 0.0
      %1215 = vmatpush1.msra.mxu0 0.0
      %1216 = vmatprep.subr.mxu0 0.0
      %1217 = vmatpush1.msra.mxu0 0.0
      %1218 = vmatprep.subr.mxu0 0.0
      %1219 = vmatpush1.msra.mxu0 0.0
      %1220 = vmatprep.subr.mxu0 0.0
      %1221 = vmatpush1.msra.mxu0 0.0
      %1222 = vmatprep.subr.mxu0 0.0
      %1223 = vmatpush1.msra.mxu0 0.0
      %1224 = vmatprep.subr.mxu0 0.0
      %1225 = vmatpush1.msra.mxu0 0.0
      %1226 = vmatprep.subr.mxu0 0.0
      %1227 = vmatpush1.msra.mxu0 0.0
      %1228 = vmatprep.subr.mxu0 0.0
      %1229 = vmatpush1.msra.mxu0 0.0
      %1230 = vmatprep.subr.mxu0 0.0
      %1231 = vmatpush1.msra.mxu0 0.0
      %1232 = vmatprep.subr.mxu0 0.0
      %1233 = vmatpush1.msra.mxu0 0.0
      %1234 = vmatprep.subr.mxu0 0.0
      %1235 = vmatpush1.msra.mxu0 0.0
      %1236 = vmatprep.subr.mxu0 0.0
      %1237 = vmatpush1.msra.mxu0 0.0
      %1238 = vmatprep.subr.mxu0 0.0
      %1239 = vmatpush1.msra.mxu0 0.0
      %1240 = vmatprep.subr.mxu0 0.0
      %1241 = vmatpush1.msra.mxu0 0.0
      %1242 = vmatprep.subr.mxu0 0.0
      %1243 = vmatpush1.msra.mxu0 0.0
      %1244 = vmatprep.subr.mxu0 0.0
      %1245 = vmatpush1.msra.mxu0 0.0
      %1246 = vmatprep.subr.mxu0 0.0
      %1247 = vmatpush1.msra.mxu0 0.0
      %1248 = vmatprep.subr.mxu0 0.0
      %1249 = vmatpush1.msra.mxu0 0.0
      %1250 = vmatprep.subr.mxu0 0.0
      %1251 = vmatpush1.msra.mxu0 0.0
      %1252 = vmatprep.subr.mxu0 0.0
      %1253 = vmatpush1.msra.mxu0 0.0
      %1254 = vmatprep.subr.mxu0 0.0
      %1255 = vmatpush1.msra.mxu0 0.0
      %1256 = vmatprep.subr.mxu0 0.0
      %1257 = vmatpush1.msra.mxu0 0.0
      %1258 = vmatprep.subr.mxu0 0.0
      %1259 = vmatpush1.msra.mxu0 0.0
      %1260 = vmatprep.subr.mxu0 0.0
      %1261 = vmatpush1.msra.mxu0 0.0
      %1262 = vmatprep.subr.mxu0 0.0
      %1263 = vmatpush1.msra.mxu0 0.0
      %1264 = vmatprep.subr.mxu0 0.0
      %1265 = vmatpush1.msra.mxu0 0.0
      %1266 = vmatprep.subr.mxu0 0.0
      %1267 = vmatpush1.msra.mxu0 0.0
      %1268 = vmatprep.subr.mxu0 0.0
      %1269 = vmatpush1.msra.mxu0 0.0
      %1270 = vmatprep.mubr.f32.mxu0 0.0
      %1271 = vmatmul.mubr.f32.gmra.mrb[0].mxu0 %v920
      %v1272 = vpop.f32.mrb[0].mxu0
      %v1273 = vadd.f32 %v915, %v1272
      %v1274 = vpop.f32.mrb[0].mxu0
      %v1275 = vadd.f32 %v917, %v1274
      %1276 = vdwg.mxu0
      %1277 = vrot.lane.b32.xlu0 %v483, 33
      %v1278 = vpop.permute.xlu0 %1277
      %1279 = vrot.lane.b32.xlu0 %v484, 33
      %v1280 = vpop.permute.xlu0 %1279
      %1281 = vrot.lane.b32.xlu0 %v485, 33
      %v1282 = vpop.permute.xlu0 %1281
      %1283 = vrot.lane.b32.xlu0 %v486, 33
      %v1284 = vpop.permute.xlu0 %1283
      %1285 = vrot.lane.b32.xlu0 %v487, 33
      %v1286 = vpop.permute.xlu0 %1285
      %1287 = vrot.lane.b32.xlu0 %v488, 33
      %v1288 = vpop.permute.xlu0 %1287
      %1289 = vrot.lane.b32.xlu0 %v489, 33
      %v1290 = vpop.permute.xlu0 %1289
      %1291 = vrot.lane.b32.xlu0 %v490, 33
      %v1292 = vpop.permute.xlu0 %1291
      %1293 = vrot.lane.b32.xlu0 %v491, 33
      %v1294 = vpop.permute.xlu0 %1293
      %1295 = vrot.lane.b32.xlu0 %v492, 33
      %v1296 = vpop.permute.xlu0 %1295
      %vm1297 = vcmp.lt.s32.totalorder %v514, 33
      %v1298 = vsel %vm1297, %v1294, %v1296
      %v1299 = vsel %vm1297, %v1292, %v1294
      %v1300 = vsel %vm1297, %v1290, %v1292
      %v1301 = vsel %vm1297, %v1288, %v1290
      %v1302 = vsel %vm1297, %v1286, %v1288
      %v1303 = vsel %vm1297, %v1284, %v1286
      %v1304 = vsel %vm1297, %v1282, %v1284
      %v1305 = vsel %vm1297, %v1280, %v1282
      %v1306 = vsel %vm1297, %v1278, %v1280
      %v1307 = vsel %vm1297, %v1296, %v1278
      %s1308 = scalar_lea.vmem %s1, 16
      %v1309 = vld [vmem:[%s1308] sm:$0xff]
      %v1311 = vsel %vm560, %v1309, 0
      %1313 = vmatprep.subr.mxu0 %v1306
      %1314 = vmatpush1.msra.mxu0 %v1307
      %1315 = vmatprep.subr.mxu0 0.0
      %1316 = vmatpush1.msra.mxu0 0.0
      %1317 = vmatprep.subr.mxu0 0.0
      %1318 = vmatpush1.msra.mxu0 0.0
      %1319 = vmatprep.subr.mxu0 0.0
      %1320 = vmatpush1.msra.mxu0 0.0
      %1321 = vmatprep.subr.mxu0 0.0
      %1322 = vmatpush1.msra.mxu0 0.0
      %1323 = vmatprep.subr.mxu0 0.0
      %1324 = vmatpush1.msra.mxu0 0.0
      %1325 = vmatprep.subr.mxu0 0.0
      %1326 = vmatpush1.msra.mxu0 0.0
      %1327 = vmatprep.subr.mxu0 0.0
      %1328 = vmatpush1.msra.mxu0 0.0
      %1329 = vmatprep.subr.mxu0 0.0
      %1330 = vmatpush1.msra.mxu0 0.0
      %1331 = vmatprep.subr.mxu0 0.0
      %1332 = vmatpush1.msra.mxu0 0.0
      %1333 = vmatprep.subr.mxu0 0.0
      %1334 = vmatpush1.msra.mxu0 0.0
      %1335 = vmatprep.subr.mxu0 0.0
      %1336 = vmatpush1.msra.mxu0 0.0
      %1337 = vmatprep.subr.mxu0 0.0
      %1338 = vmatpush1.msra.mxu0 0.0
      %1339 = vmatprep.subr.mxu0 0.0
      %1340 = vmatpush1.msra.mxu0 0.0
      %1341 = vmatprep.subr.mxu0 0.0
      %1342 = vmatpush1.msra.mxu0 0.0
      %1343 = vmatprep.subr.mxu0 0.0
      %1344 = vmatpush1.msra.mxu0 0.0
      %1345 = vmatprep.subr.mxu0 0.0
      %1346 = vmatpush1.msra.mxu0 0.0
      %1347 = vmatprep.subr.mxu0 0.0
      %1348 = vmatpush1.msra.mxu0 0.0
      %1349 = vmatprep.subr.mxu0 0.0
      %1350 = vmatpush1.msra.mxu0 0.0
      %1351 = vmatprep.subr.mxu0 0.0
      %1352 = vmatpush1.msra.mxu0 0.0
      %1353 = vmatprep.subr.mxu0 0.0
      %1354 = vmatpush1.msra.mxu0 0.0
      %1355 = vmatprep.subr.mxu0 0.0
      %1356 = vmatpush1.msra.mxu0 0.0
      %1357 = vmatprep.subr.mxu0 0.0
      %1358 = vmatpush1.msra.mxu0 0.0
      %1359 = vmatprep.subr.mxu0 0.0
      %1360 = vmatpush1.msra.mxu0 0.0
      %1361 = vmatprep.subr.mxu0 0.0
      %1362 = vmatpush1.msra.mxu0 0.0
      %1363 = vmatprep.subr.mxu0 0.0
      %1364 = vmatpush1.msra.mxu0 0.0
      %1365 = vmatprep.subr.mxu0 0.0
      %1366 = vmatpush1.msra.mxu0 0.0
      %1367 = vmatprep.subr.mxu0 0.0
      %1368 = vmatpush1.msra.mxu0 0.0
      %1369 = vmatprep.subr.mxu0 0.0
      %1370 = vmatpush1.msra.mxu0 0.0
      %1371 = vmatprep.subr.mxu0 0.0
      %1372 = vmatpush1.msra.mxu0 0.0
      %1373 = vmatprep.subr.mxu0 0.0
      %1374 = vmatpush1.msra.mxu0 0.0
      %1375 = vmatprep.subr.mxu0 0.0
      %1376 = vmatpush1.msra.mxu0 0.0
      %1377 = vmatprep.mubr.f32.mxu0 0.0
      %1378 = vmatmul.mubr.f32.gmra.mrb[0].mxu0 %v1311
      %v1379 = vpop.f32.mrb[0].mxu0
      %v1380 = vadd.f32 0.0, %v1379
      %v1381 = vpop.f32.mrb[0].mxu0
      %v1382 = vadd.f32 0.0, %v1381
      %1383 = vdwg.mxu0
      %1384 = vmatprep.subr.mxu0 %v1304
      %1385 = vmatpush1.msra.mxu0 %v1305
      %1386 = vmatprep.subr.mxu0 0.0
      %1387 = vmatpush1.msra.mxu0 0.0
      %1388 = vmatprep.subr.mxu0 0.0
      %1389 = vmatpush1.msra.mxu0 0.0
      %1390 = vmatprep.subr.mxu0 0.0
      %1391 = vmatpush1.msra.mxu0 0.0
      %1392 = vmatprep.subr.mxu0 0.0
      %1393 = vmatpush1.msra.mxu0 0.0
      %1394 = vmatprep.subr.mxu0 0.0
      %1395 = vmatpush1.msra.mxu0 0.0
      %1396 = vmatprep.subr.mxu0 0.0
      %1397 = vmatpush1.msra.mxu0 0.0
      %1398 = vmatprep.subr.mxu0 0.0
      %1399 = vmatpush1.msra.mxu0 0.0
      %1400 = vmatprep.subr.mxu0 0.0
      %1401 = vmatpush1.msra.mxu0 0.0
      %1402 = vmatprep.subr.mxu0 0.0
      %1403 = vmatpush1.msra.mxu0 0.0
      %1404 = vmatprep.subr.mxu0 0.0
      %1405 = vmatpush1.msra.mxu0 0.0
      %1406 = vmatprep.subr.mxu0 0.0
      %1407 = vmatpush1.msra.mxu0 0.0
      %1408 = vmatprep.subr.mxu0 0.0
      %1409 = vmatpush1.msra.mxu0 0.0
      %1410 = vmatprep.subr.mxu0 0.0
      %1411 = vmatpush1.msra.mxu0 0.0
      %1412 = vmatprep.subr.mxu0 0.0
      %1413 = vmatpush1.msra.mxu0 0.0
      %1414 = vmatprep.subr.mxu0 0.0
      %1415 = vmatpush1.msra.mxu0 0.0
      %1416 = vmatprep.subr.mxu0 0.0
      %1417 = vmatpush1.msra.mxu0 0.0
      %1418 = vmatprep.subr.mxu0 0.0
      %1419 = vmatpush1.msra.mxu0 0.0
      %1420 = vmatprep.subr.mxu0 0.0
      %1421 = vmatpush1.msra.mxu0 0.0
      %1422 = vmatprep.subr.mxu0 0.0
      %1423 = vmatpush1.msra.mxu0 0.0
      %1424 = vmatprep.subr.mxu0 0.0
      %1425 = vmatpush1.msra.mxu0 0.0
      %1426 = vmatprep.subr.mxu0 0.0
      %1427 = vmatpush1.msra.mxu0 0.0
      %1428 = vmatprep.subr.mxu0 0.0
      %1429 = vmatpush1.msra.mxu0 0.0
      %1430 = vmatprep.subr.mxu0 0.0
      %1431 = vmatpush1.msra.mxu0 0.0
      %1432 = vmatprep.subr.mxu0 0.0
      %1433 = vmatpush1.msra.mxu0 0.0
      %1434 = vmatprep.subr.mxu0 0.0
      %1435 = vmatpush1.msra.mxu0 0.0
      %1436 = vmatprep.subr.mxu0 0.0
      %1437 = vmatpush1.msra.mxu0 0.0
      %1438 = vmatprep.subr.mxu0 0.0
      %1439 = vmatpush1.msra.mxu0 0.0
      %1440 = vmatprep.subr.mxu0 0.0
      %1441 = vmatpush1.msra.mxu0 0.0
      %1442 = vmatprep.subr.mxu0 0.0
      %1443 = vmatpush1.msra.mxu0 0.0
      %1444 = vmatprep.subr.mxu0 0.0
      %1445 = vmatpush1.msra.mxu0 0.0
      %1446 = vmatprep.subr.mxu0 0.0
      %1447 = vmatpush1.msra.mxu0 0.0
      %1448 = vmatprep.mubr.f32.mxu0 0.0
      %1449 = vmatmul.mubr.f32.gmra.mrb[0].mxu0 %v1311
      %v1450 = vpop.f32.mrb[0].mxu0
      %v1451 = vadd.f32 0.0, %v1450
      %v1452 = vpop.f32.mrb[0].mxu0
      %v1453 = vadd.f32 0.0, %v1452
      %1454 = vdwg.mxu0
      %1455 = vmatprep.subr.mxu0 %v1302
      %1456 = vmatpush1.msra.mxu0 %v1303
      %1457 = vmatprep.subr.mxu0 0.0
      %1458 = vmatpush1.msra.mxu0 0.0
      %1459 = vmatprep.subr.mxu0 0.0
      %1460 = vmatpush1.msra.mxu0 0.0
      %1461 = vmatprep.subr.mxu0 0.0
      %1462 = vmatpush1.msra.mxu0 0.0
      %1463 = vmatprep.subr.mxu0 0.0
      %1464 = vmatpush1.msra.mxu0 0.0
      %1465 = vmatprep.subr.mxu0 0.0
      %1466 = vmatpush1.msra.mxu0 0.0
      %1467 = vmatprep.subr.mxu0 0.0
      %1468 = vmatpush1.msra.mxu0 0.0
      %1469 = vmatprep.subr.mxu0 0.0
      %1470 = vmatpush1.msra.mxu0 0.0
      %1471 = vmatprep.subr.mxu0 0.0
      %1472 = vmatpush1.msra.mxu0 0.0
      %1473 = vmatprep.subr.mxu0 0.0
      %1474 = vmatpush1.msra.mxu0 0.0
      %1475 = vmatprep.subr.mxu0 0.0
      %1476 = vmatpush1.msra.mxu0 0.0
      %1477 = vmatprep.subr.mxu0 0.0
      %1478 = vmatpush1.msra.mxu0 0.0
      %1479 = vmatprep.subr.mxu0 0.0
      %1480 = vmatpush1.msra.mxu0 0.0
      %1481 = vmatprep.subr.mxu0 0.0
      %1482 = vmatpush1.msra.mxu0 0.0
      %1483 = vmatprep.subr.mxu0 0.0
      %1484 = vmatpush1.msra.mxu0 0.0
      %1485 = vmatprep.subr.mxu0 0.0
      %1486 = vmatpush1.msra.mxu0 0.0
      %1487 = vmatprep.subr.mxu0 0.0
      %1488 = vmatpush1.msra.mxu0 0.0
      %1489 = vmatprep.subr.mxu0 0.0
      %1490 = vmatpush1.msra.mxu0 0.0
      %1491 = vmatprep.subr.mxu0 0.0
      %1492 = vmatpush1.msra.mxu0 0.0
      %1493 = vmatprep.subr.mxu0 0.0
      %1494 = vmatpush1.msra.mxu0 0.0
      %1495 = vmatprep.subr.mxu0 0.0
      %1496 = vmatpush1.msra.mxu0 0.0
      %1497 = vmatprep.subr.mxu0 0.0
      %1498 = vmatpush1.msra.mxu0 0.0
      %1499 = vmatprep.subr.mxu0 0.0
      %1500 = vmatpush1.msra.mxu0 0.0
      %1501 = vmatprep.subr.mxu0 0.0
      %1502 = vmatpush1.msra.mxu0 0.0
      %1503 = vmatprep.subr.mxu0 0.0
      %1504 = vmatpush1.msra.mxu0 0.0
      %1505 = vmatprep.subr.mxu0 0.0
      %1506 = vmatpush1.msra.mxu0 0.0
      %1507 = vmatprep.subr.mxu0 0.0
      %1508 = vmatpush1.msra.mxu0 0.0
      %1509 = vmatprep.subr.mxu0 0.0
      %1510 = vmatpush1.msra.mxu0 0.0
      %1511 = vmatprep.subr.mxu0 0.0
      %1512 = vmatpush1.msra.mxu0 0.0
      %1513 = vmatprep.subr.mxu0 0.0
      %1514 = vmatpush1.msra.mxu0 0.0
      %1515 = vmatprep.subr.mxu0 0.0
      %1516 = vmatpush1.msra.mxu0 0.0
      %1517 = vmatprep.subr.mxu0 0.0
      %1518 = vmatpush1.msra.mxu0 0.0
      %1519 = vmatprep.mubr.f32.mxu0 0.0
      %1520 = vmatmul.mubr.f32.gmra.mrb[0].mxu0 %v1311
      %v1521 = vpop.f32.mrb[0].mxu0
      %v1522 = vadd.f32 0.0, %v1521
      %v1523 = vpop.f32.mrb[0].mxu0
      %v1524 = vadd.f32 0.0, %v1523
      %1525 = vdwg.mxu0
      %1526 = vmatprep.subr.mxu0 %v1300
      %1527 = vmatpush1.msra.mxu0 %v1301
      %1528 = vmatprep.subr.mxu0 0.0
      %1529 = vmatpush1.msra.mxu0 0.0
      %1530 = vmatprep.subr.mxu0 0.0
      %1531 = vmatpush1.msra.mxu0 0.0
      %1532 = vmatprep.subr.mxu0 0.0
      %1533 = vmatpush1.msra.mxu0 0.0
      %1534 = vmatprep.subr.mxu0 0.0
      %1535 = vmatpush1.msra.mxu0 0.0
      %1536 = vmatprep.subr.mxu0 0.0
      %1537 = vmatpush1.msra.mxu0 0.0
      %1538 = vmatprep.subr.mxu0 0.0
      %1539 = vmatpush1.msra.mxu0 0.0
      %1540 = vmatprep.subr.mxu0 0.0
      %1541 = vmatpush1.msra.mxu0 0.0
      %1542 = vmatprep.subr.mxu0 0.0
      %1543 = vmatpush1.msra.mxu0 0.0
      %1544 = vmatprep.subr.mxu0 0.0
      %1545 = vmatpush1.msra.mxu0 0.0
      %1546 = vmatprep.subr.mxu0 0.0
      %1547 = vmatpush1.msra.mxu0 0.0
      %1548 = vmatprep.subr.mxu0 0.0
      %1549 = vmatpush1.msra.mxu0 0.0
      %1550 = vmatprep.subr.mxu0 0.0
      %1551 = vmatpush1.msra.mxu0 0.0
      %1552 = vmatprep.subr.mxu0 0.0
      %1553 = vmatpush1.msra.mxu0 0.0
      %1554 = vmatprep.subr.mxu0 0.0
      %1555 = vmatpush1.msra.mxu0 0.0
      %1556 = vmatprep.subr.mxu0 0.0
      %1557 = vmatpush1.msra.mxu0 0.0
      %1558 = vmatprep.subr.mxu0 0.0
      %1559 = vmatpush1.msra.mxu0 0.0
      %1560 = vmatprep.subr.mxu0 0.0
      %1561 = vmatpush1.msra.mxu0 0.0
      %1562 = vmatprep.subr.mxu0 0.0
      %1563 = vmatpush1.msra.mxu0 0.0
      %1564 = vmatprep.subr.mxu0 0.0
      %1565 = vmatpush1.msra.mxu0 0.0
      %1566 = vmatprep.subr.mxu0 0.0
      %1567 = vmatpush1.msra.mxu0 0.0
      %1568 = vmatprep.subr.mxu0 0.0
      %1569 = vmatpush1.msra.mxu0 0.0
      %1570 = vmatprep.subr.mxu0 0.0
      %1571 = vmatpush1.msra.mxu0 0.0
      %1572 = vmatprep.subr.mxu0 0.0
      %1573 = vmatpush1.msra.mxu0 0.0
      %1574 = vmatprep.subr.mxu0 0.0
      %1575 = vmatpush1.msra.mxu0 0.0
      %1576 = vmatprep.subr.mxu0 0.0
      %1577 = vmatpush1.msra.mxu0 0.0
      %1578 = vmatprep.subr.mxu0 0.0
      %1579 = vmatpush1.msra.mxu0 0.0
      %1580 = vmatprep.subr.mxu0 0.0
      %1581 = vmatpush1.msra.mxu0 0.0
      %1582 = vmatprep.subr.mxu0 0.0
      %1583 = vmatpush1.msra.mxu0 0.0
      %1584 = vmatprep.subr.mxu0 0.0
      %1585 = vmatpush1.msra.mxu0 0.0
      %1586 = vmatprep.subr.mxu0 0.0
      %1587 = vmatpush1.msra.mxu0 0.0
      %1588 = vmatprep.subr.mxu0 0.0
      %1589 = vmatpush1.msra.mxu0 0.0
      %1590 = vmatprep.mubr.f32.mxu0 0.0
      %1591 = vmatmul.mubr.f32.gmra.mrb[0].mxu0 %v1311
      %v1592 = vpop.f32.mrb[0].mxu0
      %v1593 = vadd.f32 0.0, %v1592
      %v1594 = vpop.f32.mrb[0].mxu0
      %v1595 = vadd.f32 0.0, %v1594
      %1596 = vdwg.mxu0
      %1597 = vmatprep.subr.mxu0 %v1298
      %1598 = vmatpush1.msra.mxu0 %v1299
      %1599 = vmatprep.subr.mxu0 0.0
      %1600 = vmatpush1.msra.mxu0 0.0
      %1601 = vmatprep.subr.mxu0 0.0
      %1602 = vmatpush1.msra.mxu0 0.0
      %1603 = vmatprep.subr.mxu0 0.0
      %1604 = vmatpush1.msra.mxu0 0.0
      %1605 = vmatprep.subr.mxu0 0.0
      %1606 = vmatpush1.msra.mxu0 0.0
      %1607 = vmatprep.subr.mxu0 0.0
      %1608 = vmatpush1.msra.mxu0 0.0
      %1609 = vmatprep.subr.mxu0 0.0
      %1610 = vmatpush1.msra.mxu0 0.0
      %1611 = vmatprep.subr.mxu0 0.0
      %1612 = vmatpush1.msra.mxu0 0.0
      %1613 = vmatprep.subr.mxu0 0.0
      %1614 = vmatpush1.msra.mxu0 0.0
      %1615 = vmatprep.subr.mxu0 0.0
      %1616 = vmatpush1.msra.mxu0 0.0
      %1617 = vmatprep.subr.mxu0 0.0
      %1618 = vmatpush1.msra.mxu0 0.0
      %1619 = vmatprep.subr.mxu0 0.0
      %1620 = vmatpush1.msra.mxu0 0.0
      %1621 = vmatprep.subr.mxu0 0.0
      %1622 = vmatpush1.msra.mxu0 0.0
      %1623 = vmatprep.subr.mxu0 0.0
      %1624 = vmatpush1.msra.mxu0 0.0
      %1625 = vmatprep.subr.mxu0 0.0
      %1626 = vmatpush1.msra.mxu0 0.0
      %1627 = vmatprep.subr.mxu0 0.0
      %1628 = vmatpush1.msra.mxu0 0.0
      %1629 = vmatprep.subr.mxu0 0.0
      %1630 = vmatpush1.msra.mxu0 0.0
      %1631 = vmatprep.subr.mxu0 0.0
      %1632 = vmatpush1.msra.mxu0 0.0
      %1633 = vmatprep.subr.mxu0 0.0
      %1634 = vmatpush1.msra.mxu0 0.0
      %1635 = vmatprep.subr.mxu0 0.0
      %1636 = vmatpush1.msra.mxu0 0.0
      %1637 = vmatprep.subr.mxu0 0.0
      %1638 = vmatpush1.msra.mxu0 0.0
      %1639 = vmatprep.subr.mxu0 0.0
      %1640 = vmatpush1.msra.mxu0 0.0
      %1641 = vmatprep.subr.mxu0 0.0
      %1642 = vmatpush1.msra.mxu0 0.0
      %1643 = vmatprep.subr.mxu0 0.0
      %1644 = vmatpush1.msra.mxu0 0.0
      %1645 = vmatprep.subr.mxu0 0.0
      %1646 = vmatpush1.msra.mxu0 0.0
      %1647 = vmatprep.subr.mxu0 0.0
      %1648 = vmatpush1.msra.mxu0 0.0
      %1649 = vmatprep.subr.mxu0 0.0
      %1650 = vmatpush1.msra.mxu0 0.0
      %1651 = vmatprep.subr.mxu0 0.0
      %1652 = vmatpush1.msra.mxu0 0.0
      %1653 = vmatprep.subr.mxu0 0.0
      %1654 = vmatpush1.msra.mxu0 0.0
      %1655 = vmatprep.subr.mxu0 0.0
      %1656 = vmatpush1.msra.mxu0 0.0
      %1657 = vmatprep.subr.mxu0 0.0
      %1658 = vmatpush1.msra.mxu0 0.0
      %1659 = vmatprep.subr.mxu0 0.0
      %1660 = vmatpush1.msra.mxu0 0.0
      %1661 = vmatprep.mubr.f32.mxu0 0.0
      %1662 = vmatmul.mubr.f32.gmra.mrb[0].mxu0 %v1311
      %v1663 = vpop.f32.mrb[0].mxu0
      %v1664 = vadd.f32 0.0, %v1663
      %v1665 = vpop.f32.mrb[0].mxu0
      %v1666 = vadd.f32 0.0, %v1665
      %1667 = vdwg.mxu0
      %v1668 = vadd.f32 %v989, %v1380
      %v1669 = vadd.f32 %v991, %v1382
      %v1670 = vadd.f32 %v1060, %v1451
      %v1671 = vadd.f32 %v1062, %v1453
      %v1672 = vadd.f32 %v1131, %v1522
      %v1673 = vadd.f32 %v1133, %v1524
      %v1674 = vadd.f32 %v1202, %v1593
      %v1675 = vadd.f32 %v1204, %v1595
      %v1676 = vadd.f32 %v1273, %v1664
      %v1677 = vadd.f32 %v1275, %v1666
      %1678 = vrot.lane.b32.xlu0 %v483, 1
      %v1679 = vpop.permute.xlu0 %1678
      %1680 = vrot.lane.b32.xlu0 %v484, 1
      %v1681 = vpop.permute.xlu0 %1680
      %1682 = vrot.lane.b32.xlu0 %v485, 1
      %v1683 = vpop.permute.xlu0 %1682
      %1684 = vrot.lane.b32.xlu0 %v486, 1
      %v1685 = vpop.permute.xlu0 %1684
      %1686 = vrot.lane.b32.xlu0 %v487, 1
      %v1687 = vpop.permute.xlu0 %1686
      %1688 = vrot.lane.b32.xlu0 %v488, 1
      %v1689 = vpop.permute.xlu0 %1688
      %1690 = vrot.lane.b32.xlu0 %v489, 1
      %v1691 = vpop.permute.xlu0 %1690
      %1692 = vrot.lane.b32.xlu0 %v490, 1
      %v1693 = vpop.permute.xlu0 %1692
      %1694 = vrot.lane.b32.xlu0 %v491, 1
      %v1695 = vpop.permute.xlu0 %1694
      %1696 = vrot.lane.b32.xlu0 %v492, 1
      %v1697 = vpop.permute.xlu0 %1696
      %vm1698 = vcmp.lt.s32.totalorder %v514, 1
      %v1699 = vsel %vm1698, %v1695, %v1697
      %v1700 = vsel %vm1698, %v1693, %v1695
      %v1701 = vsel %vm1698, %v1691, %v1693
      %v1702 = vsel %vm1698, %v1689, %v1691
      %v1703 = vsel %vm1698, %v1687, %v1689
      %v1704 = vsel %vm1698, %v1685, %v1687
      %v1705 = vsel %vm1698, %v1683, %v1685
      %v1706 = vsel %vm1698, %v1681, %v1683
      %v1707 = vsel %vm1698, %v1679, %v1681
      %v1708 = vsel %vm1698, %v1697, %v1679
      %s1709 = scalar_lea.vmem %s1, 24
      %v1710 = vld [vmem:[%s1709] sm:$0xff]
      %v1712 = vsel %vm560, %v1710, 0
      %1714 = vmatprep.subr.mxu0 %v1707
      %1715 = vmatpush1.msra.mxu0 %v1708
      %1716 = vmatprep.subr.mxu0 0.0
      %1717 = vmatpush1.msra.mxu0 0.0
      %1718 = vmatprep.subr.mxu0 0.0
      %1719 = vmatpush1.msra.mxu0 0.0
      %1720 = vmatprep.subr.mxu0 0.0
      %1721 = vmatpush1.msra.mxu0 0.0
      %1722 = vmatprep.subr.mxu0 0.0
      %1723 = vmatpush1.msra.mxu0 0.0
      %1724 = vmatprep.subr.mxu0 0.0
      %1725 = vmatpush1.msra.mxu0 0.0
      %1726 = vmatprep.subr.mxu0 0.0
      %1727 = vmatpush1.msra.mxu0 0.0
      %1728 = vmatprep.subr.mxu0 0.0
      %1729 = vmatpush1.msra.mxu0 0.0
      %1730 = vmatprep.subr.mxu0 0.0
      %1731 = vmatpush1.msra.mxu0 0.0
      %1732 = vmatprep.subr.mxu0 0.0
      %1733 = vmatpush1.msra.mxu0 0.0
      %1734 = vmatprep.subr.mxu0 0.0
      %1735 = vmatpush1.msra.mxu0 0.0
      %1736 = vmatprep.subr.mxu0 0.0
      %1737 = vmatpush1.msra.mxu0 0.0
      %1738 = vmatprep.subr.mxu0 0.0
      %1739 = vmatpush1.msra.mxu0 0.0
      %1740 = vmatprep.subr.mxu0 0.0
      %1741 = vmatpush1.msra.mxu0 0.0
      %1742 = vmatprep.subr.mxu0 0.0
      %1743 = vmatpush1.msra.mxu0 0.0
      %1744 = vmatprep.subr.mxu0 0.0
      %1745 = vmatpush1.msra.mxu0 0.0
      %1746 = vmatprep.subr.mxu0 0.0
      %1747 = vmatpush1.msra.mxu0 0.0
      %1748 = vmatprep.subr.mxu0 0.0
      %1749 = vmatpush1.msra.mxu0 0.0
      %1750 = vmatprep.subr.mxu0 0.0
      %1751 = vmatpush1.msra.mxu0 0.0
      %1752 = vmatprep.subr.mxu0 0.0
      %1753 = vmatpush1.msra.mxu0 0.0
      %1754 = vmatprep.subr.mxu0 0.0
      %1755 = vmatpush1.msra.mxu0 0.0
      %1756 = vmatprep.subr.mxu0 0.0
      %1757 = vmatpush1.msra.mxu0 0.0
      %1758 = vmatprep.subr.mxu0 0.0
      %1759 = vmatpush1.msra.mxu0 0.0
      %1760 = vmatprep.subr.mxu0 0.0
      %1761 = vmatpush1.msra.mxu0 0.0
      %1762 = vmatprep.subr.mxu0 0.0
      %1763 = vmatpush1.msra.mxu0 0.0
      %1764 = vmatprep.subr.mxu0 0.0
      %1765 = vmatpush1.msra.mxu0 0.0
      %1766 = vmatprep.subr.mxu0 0.0
      %1767 = vmatpush1.msra.mxu0 0.0
      %1768 = vmatprep.subr.mxu0 0.0
      %1769 = vmatpush1.msra.mxu0 0.0
      %1770 = vmatprep.subr.mxu0 0.0
      %1771 = vmatpush1.msra.mxu0 0.0
      %1772 = vmatprep.subr.mxu0 0.0
      %1773 = vmatpush1.msra.mxu0 0.0
      %1774 = vmatprep.subr.mxu0 0.0
      %1775 = vmatpush1.msra.mxu0 0.0
      %1776 = vmatprep.subr.mxu0 0.0
      %1777 = vmatpush1.msra.mxu0 0.0
      %1778 = vmatprep.mubr.f32.mxu0 0.0
      %1779 = vmatmul.mubr.f32.gmra.mrb[0].mxu0 %v1712
      %v1780 = vpop.f32.mrb[0].mxu0
      %v1781 = vadd.f32 0.0, %v1780
      %v1782 = vpop.f32.mrb[0].mxu0
      %v1783 = vadd.f32 0.0, %v1782
      %1784 = vdwg.mxu0
      %1785 = vmatprep.subr.mxu0 %v1705
      %1786 = vmatpush1.msra.mxu0 %v1706
      %1787 = vmatprep.subr.mxu0 0.0
      %1788 = vmatpush1.msra.mxu0 0.0
      %1789 = vmatprep.subr.mxu0 0.0
      %1790 = vmatpush1.msra.mxu0 0.0
      %1791 = vmatprep.subr.mxu0 0.0
      %1792 = vmatpush1.msra.mxu0 0.0
      %1793 = vmatprep.subr.mxu0 0.0
      %1794 = vmatpush1.msra.mxu0 0.0
      %1795 = vmatprep.subr.mxu0 0.0
      %1796 = vmatpush1.msra.mxu0 0.0
      %1797 = vmatprep.subr.mxu0 0.0
      %1798 = vmatpush1.msra.mxu0 0.0
      %1799 = vmatprep.subr.mxu0 0.0
      %1800 = vmatpush1.msra.mxu0 0.0
      %1801 = vmatprep.subr.mxu0 0.0
      %1802 = vmatpush1.msra.mxu0 0.0
      %1803 = vmatprep.subr.mxu0 0.0
      %1804 = vmatpush1.msra.mxu0 0.0
      %1805 = vmatprep.subr.mxu0 0.0
      %1806 = vmatpush1.msra.mxu0 0.0
      %1807 = vmatprep.subr.mxu0 0.0
      %1808 = vmatpush1.msra.mxu0 0.0
      %1809 = vmatprep.subr.mxu0 0.0
      %1810 = vmatpush1.msra.mxu0 0.0
      %1811 = vmatprep.subr.mxu0 0.0
      %1812 = vmatpush1.msra.mxu0 0.0
      %1813 = vmatprep.subr.mxu0 0.0
      %1814 = vmatpush1.msra.mxu0 0.0
      %1815 = vmatprep.subr.mxu0 0.0
      %1816 = vmatpush1.msra.mxu0 0.0
      %1817 = vmatprep.subr.mxu0 0.0
      %1818 = vmatpush1.msra.mxu0 0.0
      %1819 = vmatprep.subr.mxu0 0.0
      %1820 = vmatpush1.msra.mxu0 0.0
      %1821 = vmatprep.subr.mxu0 0.0
      %1822 = vmatpush1.msra.mxu0 0.0
      %1823 = vmatprep.subr.mxu0 0.0
      %1824 = vmatpush1.msra.mxu0 0.0
      %1825 = vmatprep.subr.mxu0 0.0
      %1826 = vmatpush1.msra.mxu0 0.0
      %1827 = vmatprep.subr.mxu0 0.0
      %1828 = vmatpush1.msra.mxu0 0.0
      %1829 = vmatprep.subr.mxu0 0.0
      %1830 = vmatpush1.msra.mxu0 0.0
      %1831 = vmatprep.subr.mxu0 0.0
      %1832 = vmatpush1.msra.mxu0 0.0
      %1833 = vmatprep.subr.mxu0 0.0
      %1834 = vmatpush1.msra.mxu0 0.0
      %1835 = vmatprep.subr.mxu0 0.0
      %1836 = vmatpush1.msra.mxu0 0.0
      %1837 = vmatprep.subr.mxu0 0.0
      %1838 = vmatpush1.msra.mxu0 0.0
      %1839 = vmatprep.subr.mxu0 0.0
      %1840 = vmatpush1.msra.mxu0 0.0
      %1841 = vmatprep.subr.mxu0 0.0
      %1842 = vmatpush1.msra.mxu0 0.0
      %1843 = vmatprep.subr.mxu0 0.0
      %1844 = vmatpush1.msra.mxu0 0.0
      %1845 = vmatprep.subr.mxu0 0.0
      %1846 = vmatpush1.msra.mxu0 0.0
      %1847 = vmatprep.subr.mxu0 0.0
      %1848 = vmatpush1.msra.mxu0 0.0
      %1849 = vmatprep.mubr.f32.mxu0 0.0
      %1850 = vmatmul.mubr.f32.gmra.mrb[0].mxu0 %v1712
      %v1851 = vpop.f32.mrb[0].mxu0
      %v1852 = vadd.f32 0.0, %v1851
      %v1853 = vpop.f32.mrb[0].mxu0
      %v1854 = vadd.f32 0.0, %v1853
      %1855 = vdwg.mxu0
      %1856 = vmatprep.subr.mxu0 %v1703
      %1857 = vmatpush1.msra.mxu0 %v1704
      %1858 = vmatprep.subr.mxu0 0.0
      %1859 = vmatpush1.msra.mxu0 0.0
      %1860 = vmatprep.subr.mxu0 0.0
      %1861 = vmatpush1.msra.mxu0 0.0
      %1862 = vmatprep.subr.mxu0 0.0
      %1863 = vmatpush1.msra.mxu0 0.0
      %1864 = vmatprep.subr.mxu0 0.0
      %1865 = vmatpush1.msra.mxu0 0.0
      %1866 = vmatprep.subr.mxu0 0.0
      %1867 = vmatpush1.msra.mxu0 0.0
      %1868 = vmatprep.subr.mxu0 0.0
      %1869 = vmatpush1.msra.mxu0 0.0
      %1870 = vmatprep.subr.mxu0 0.0
      %1871 = vmatpush1.msra.mxu0 0.0
      %1872 = vmatprep.subr.mxu0 0.0
      %1873 = vmatpush1.msra.mxu0 0.0
      %1874 = vmatprep.subr.mxu0 0.0
      %1875 = vmatpush1.msra.mxu0 0.0
      %1876 = vmatprep.subr.mxu0 0.0
      %1877 = vmatpush1.msra.mxu0 0.0
      %1878 = vmatprep.subr.mxu0 0.0
      %1879 = vmatpush1.msra.mxu0 0.0
      %1880 = vmatprep.subr.mxu0 0.0
      %1881 = vmatpush1.msra.mxu0 0.0
      %1882 = vmatprep.subr.mxu0 0.0
      %1883 = vmatpush1.msra.mxu0 0.0
      %1884 = vmatprep.subr.mxu0 0.0
      %1885 = vmatpush1.msra.mxu0 0.0
      %1886 = vmatprep.subr.mxu0 0.0
      %1887 = vmatpush1.msra.mxu0 0.0
      %1888 = vmatprep.subr.mxu0 0.0
      %1889 = vmatpush1.msra.mxu0 0.0
      %1890 = vmatprep.subr.mxu0 0.0
      %1891 = vmatpush1.msra.mxu0 0.0
      %1892 = vmatprep.subr.mxu0 0.0
      %1893 = vmatpush1.msra.mxu0 0.0
      %1894 = vmatprep.subr.mxu0 0.0
      %1895 = vmatpush1.msra.mxu0 0.0
      %1896 = vmatprep.subr.mxu0 0.0
      %1897 = vmatpush1.msra.mxu0 0.0
      %1898 = vmatprep.subr.mxu0 0.0
      %1899 = vmatpush1.msra.mxu0 0.0
      %1900 = vmatprep.subr.mxu0 0.0
      %1901 = vmatpush1.msra.mxu0 0.0
      %1902 = vmatprep.subr.mxu0 0.0
      %1903 = vmatpush1.msra.mxu0 0.0
      %1904 = vmatprep.subr.mxu0 0.0
      %1905 = vmatpush1.msra.mxu0 0.0
      %1906 = vmatprep.subr.mxu0 0.0
      %1907 = vmatpush1.msra.mxu0 0.0
      %1908 = vmatprep.subr.mxu0 0.0
      %1909 = vmatpush1.msra.mxu0 0.0
      %1910 = vmatprep.subr.mxu0 0.0
      %1911 = vmatpush1.msra.mxu0 0.0
      %1912 = vmatprep.subr.mxu0 0.0
      %1913 = vmatpush1.msra.mxu0 0.0
      %1914 = vmatprep.subr.mxu0 0.0
      %1915 = vmatpush1.msra.mxu0 0.0
      %1916 = vmatprep.subr.mxu0 0.0
      %1917 = vmatpush1.msra.mxu0 0.0
      %1918 = vmatprep.subr.mxu0 0.0
      %1919 = vmatpush1.msra.mxu0 0.0
      %1920 = vmatprep.mubr.f32.mxu0 0.0
      %1921 = vmatmul.mubr.f32.gmra.mrb[0].mxu0 %v1712
      %v1922 = vpop.f32.mrb[0].mxu0
      %v1923 = vadd.f32 0.0, %v1922
      %v1924 = vpop.f32.mrb[0].mxu0
      %v1925 = vadd.f32 0.0, %v1924
      %1926 = vdwg.mxu0
      %1927 = vmatprep.subr.mxu0 %v1701
      %1928 = vmatpush1.msra.mxu0 %v1702
      %1929 = vmatprep.subr.mxu0 0.0
      %1930 = vmatpush1.msra.mxu0 0.0
      %1931 = vmatprep.subr.mxu0 0.0
      %1932 = vmatpush1.msra.mxu0 0.0
      %1933 = vmatprep.subr.mxu0 0.0
      %1934 = vmatpush1.msra.mxu0 0.0
      %1935 = vmatprep.subr.mxu0 0.0
      %1936 = vmatpush1.msra.mxu0 0.0
      %1937 = vmatprep.subr.mxu0 0.0
      %1938 = vmatpush1.msra.mxu0 0.0
      %1939 = vmatprep.subr.mxu0 0.0
      %1940 = vmatpush1.msra.mxu0 0.0
      %1941 = vmatprep.subr.mxu0 0.0
      %1942 = vmatpush1.msra.mxu0 0.0
      %1943 = vmatprep.subr.mxu0 0.0
      %1944 = vmatpush1.msra.mxu0 0.0
      %1945 = vmatprep.subr.mxu0 0.0
      %1946 = vmatpush1.msra.mxu0 0.0
      %1947 = vmatprep.subr.mxu0 0.0
      %1948 = vmatpush1.msra.mxu0 0.0
      %1949 = vmatprep.subr.mxu0 0.0
      %1950 = vmatpush1.msra.mxu0 0.0
      %1951 = vmatprep.subr.mxu0 0.0
      %1952 = vmatpush1.msra.mxu0 0.0
      %1953 = vmatprep.subr.mxu0 0.0
      %1954 = vmatpush1.msra.mxu0 0.0
      %1955 = vmatprep.subr.mxu0 0.0
      %1956 = vmatpush1.msra.mxu0 0.0
      %1957 = vmatprep.subr.mxu0 0.0
      %1958 = vmatpush1.msra.mxu0 0.0
      %1959 = vmatprep.subr.mxu0 0.0
      %1960 = vmatpush1.msra.mxu0 0.0
      %1961 = vmatprep.subr.mxu0 0.0
      %1962 = vmatpush1.msra.mxu0 0.0
      %1963 = vmatprep.subr.mxu0 0.0
      %1964 = vmatpush1.msra.mxu0 0.0
      %1965 = vmatprep.subr.mxu0 0.0
      %1966 = vmatpush1.msra.mxu0 0.0
      %1967 = vmatprep.subr.mxu0 0.0
      %1968 = vmatpush1.msra.mxu0 0.0
      %1969 = vmatprep.subr.mxu0 0.0
      %1970 = vmatpush1.msra.mxu0 0.0
      %1971 = vmatprep.subr.mxu0 0.0
      %1972 = vmatpush1.msra.mxu0 0.0
      %1973 = vmatprep.subr.mxu0 0.0
      %1974 = vmatpush1.msra.mxu0 0.0
      %1975 = vmatprep.subr.mxu0 0.0
      %1976 = vmatpush1.msra.mxu0 0.0
      %1977 = vmatprep.subr.mxu0 0.0
      %1978 = vmatpush1.msra.mxu0 0.0
      %1979 = vmatprep.subr.mxu0 0.0
      %1980 = vmatpush1.msra.mxu0 0.0
      %1981 = vmatprep.subr.mxu0 0.0
      %1982 = vmatpush1.msra.mxu0 0.0
      %1983 = vmatprep.subr.mxu0 0.0
      %1984 = vmatpush1.msra.mxu0 0.0
      %1985 = vmatprep.subr.mxu0 0.0
      %1986 = vmatpush1.msra.mxu0 0.0
      %1987 = vmatprep.subr.mxu0 0.0
      %1988 = vmatpush1.msra.mxu0 0.0
      %1989 = vmatprep.subr.mxu0 0.0
      %1990 = vmatpush1.msra.mxu0 0.0
      %1991 = vmatprep.mubr.f32.mxu0 0.0
      %1992 = vmatmul.mubr.f32.gmra.mrb[0].mxu0 %v1712
      %v1993 = vpop.f32.mrb[0].mxu0
      %v1994 = vadd.f32 0.0, %v1993
      %v1995 = vpop.f32.mrb[0].mxu0
      %v1996 = vadd.f32 0.0, %v1995
      %1997 = vdwg.mxu0
      %1998 = vmatprep.subr.mxu0 %v1699
      %1999 = vmatpush1.msra.mxu0 %v1700
      %2000 = vmatprep.subr.mxu0 0.0
      %2001 = vmatpush1.msra.mxu0 0.0
      %2002 = vmatprep.subr.mxu0 0.0
      %2003 = vmatpush1.msra.mxu0 0.0
      %2004 = vmatprep.subr.mxu0 0.0
      %2005 = vmatpush1.msra.mxu0 0.0
      %2006 = vmatprep.subr.mxu0 0.0
      %2007 = vmatpush1.msra.mxu0 0.0
      %2008 = vmatprep.subr.mxu0 0.0
      %2009 = vmatpush1.msra.mxu0 0.0
      %2010 = vmatprep.subr.mxu0 0.0
      %2011 = vmatpush1.msra.mxu0 0.0
      %2012 = vmatprep.subr.mxu0 0.0
      %2013 = vmatpush1.msra.mxu0 0.0
      %2014 = vmatprep.subr.mxu0 0.0
      %2015 = vmatpush1.msra.mxu0 0.0
      %2016 = vmatprep.subr.mxu0 0.0
      %2017 = vmatpush1.msra.mxu0 0.0
      %2018 = vmatprep.subr.mxu0 0.0
      %2019 = vmatpush1.msra.mxu0 0.0
      %2020 = vmatprep.subr.mxu0 0.0
      %2021 = vmatpush1.msra.mxu0 0.0
      %2022 = vmatprep.subr.mxu0 0.0
      %2023 = vmatpush1.msra.mxu0 0.0
      %2024 = vmatprep.subr.mxu0 0.0
      %2025 = vmatpush1.msra.mxu0 0.0
      %2026 = vmatprep.subr.mxu0 0.0
      %2027 = vmatpush1.msra.mxu0 0.0
      %2028 = vmatprep.subr.mxu0 0.0
      %2029 = vmatpush1.msra.mxu0 0.0
      %2030 = vmatprep.subr.mxu0 0.0
      %2031 = vmatpush1.msra.mxu0 0.0
      %2032 = vmatprep.subr.mxu0 0.0
      %2033 = vmatpush1.msra.mxu0 0.0
      %2034 = vmatprep.subr.mxu0 0.0
      %2035 = vmatpush1.msra.mxu0 0.0
      %2036 = vmatprep.subr.mxu0 0.0
      %2037 = vmatpush1.msra.mxu0 0.0
      %2038 = vmatprep.subr.mxu0 0.0
      %2039 = vmatpush1.msra.mxu0 0.0
      %2040 = vmatprep.subr.mxu0 0.0
      %2041 = vmatpush1.msra.mxu0 0.0
      %2042 = vmatprep.subr.mxu0 0.0
      %2043 = vmatpush1.msra.mxu0 0.0
      %2044 = vmatprep.subr.mxu0 0.0
      %2045 = vmatpush1.msra.mxu0 0.0
      %2046 = vmatprep.subr.mxu0 0.0
      %2047 = vmatpush1.msra.mxu0 0.0
      %2048 = vmatprep.subr.mxu0 0.0
      %2049 = vmatpush1.msra.mxu0 0.0
      %2050 = vmatprep.subr.mxu0 0.0
      %2051 = vmatpush1.msra.mxu0 0.0
      %2052 = vmatprep.subr.mxu0 0.0
      %2053 = vmatpush1.msra.mxu0 0.0
      %2054 = vmatprep.subr.mxu0 0.0
      %2055 = vmatpush1.msra.mxu0 0.0
      %2056 = vmatprep.subr.mxu0 0.0
      %2057 = vmatpush1.msra.mxu0 0.0
      %2058 = vmatprep.subr.mxu0 0.0
      %2059 = vmatpush1.msra.mxu0 0.0
      %2060 = vmatprep.subr.mxu0 0.0
      %2061 = vmatpush1.msra.mxu0 0.0
      %2062 = vmatprep.mubr.f32.mxu0 0.0
      %2063 = vmatmul.mubr.f32.gmra.mrb[0].mxu0 %v1712
      %v2064 = vpop.f32.mrb[0].mxu0
      %v2065 = vadd.f32 0.0, %v2064
      %v2066 = vpop.f32.mrb[0].mxu0
      %v2067 = vadd.f32 0.0, %v2066
      %2068 = vdwg.mxu0
      %v2069 = vadd.f32 %v1668, %v1781
      %v2070 = vadd.f32 %v1669, %v1783
      %v2071 = vadd.f32 %v1670, %v1852
      %v2072 = vadd.f32 %v1671, %v1854
      %v2073 = vadd.f32 %v1672, %v1923
      %v2074 = vadd.f32 %v1673, %v1925
      %v2075 = vadd.f32 %v1674, %v1994
      %v2076 = vadd.f32 %v1675, %v1996
      %v2077 = vadd.f32 %v1676, %v2065
      %v2078 = vadd.f32 %v1677, %v2067
      %s2079 = scalar_lea.vmem %s1, 32
      %v2080 = vld [vmem:[%s2079] sm:$0xff]
      %v2082 = vsel %vm560, %v2080, 0
      %2084 = vmatprep.subr.mxu0 %v484
      %2085 = vmatpush1.msra.mxu0 %v483
      %2086 = vmatprep.subr.mxu0 0.0
      %2087 = vmatpush1.msra.mxu0 0.0
      %2088 = vmatprep.subr.mxu0 0.0
      %2089 = vmatpush1.msra.mxu0 0.0
      %2090 = vmatprep.subr.mxu0 0.0
      %2091 = vmatpush1.msra.mxu0 0.0
      %2092 = vmatprep.subr.mxu0 0.0
      %2093 = vmatpush1.msra.mxu0 0.0
      %2094 = vmatprep.subr.mxu0 0.0
      %2095 = vmatpush1.msra.mxu0 0.0
      %2096 = vmatprep.subr.mxu0 0.0
      %2097 = vmatpush1.msra.mxu0 0.0
      %2098 = vmatprep.subr.mxu0 0.0
      %2099 = vmatpush1.msra.mxu0 0.0
      %2100 = vmatprep.subr.mxu0 0.0
      %2101 = vmatpush1.msra.mxu0 0.0
      %2102 = vmatprep.subr.mxu0 0.0
      %2103 = vmatpush1.msra.mxu0 0.0
      %2104 = vmatprep.subr.mxu0 0.0
      %2105 = vmatpush1.msra.mxu0 0.0
      %2106 = vmatprep.subr.mxu0 0.0
      %2107 = vmatpush1.msra.mxu0 0.0
      %2108 = vmatprep.subr.mxu0 0.0
      %2109 = vmatpush1.msra.mxu0 0.0
      %2110 = vmatprep.subr.mxu0 0.0
      %2111 = vmatpush1.msra.mxu0 0.0
      %2112 = vmatprep.subr.mxu0 0.0
      %2113 = vmatpush1.msra.mxu0 0.0
      %2114 = vmatprep.subr.mxu0 0.0
      %2115 = vmatpush1.msra.mxu0 0.0
      %2116 = vmatprep.subr.mxu0 0.0
      %2117 = vmatpush1.msra.mxu0 0.0
      %2118 = vmatprep.subr.mxu0 0.0
      %2119 = vmatpush1.msra.mxu0 0.0
      %2120 = vmatprep.subr.mxu0 0.0
      %2121 = vmatpush1.msra.mxu0 0.0
      %2122 = vmatprep.subr.mxu0 0.0
      %2123 = vmatpush1.msra.mxu0 0.0
      %2124 = vmatprep.subr.mxu0 0.0
      %2125 = vmatpush1.msra.mxu0 0.0
      %2126 = vmatprep.subr.mxu0 0.0
      %2127 = vmatpush1.msra.mxu0 0.0
      %2128 = vmatprep.subr.mxu0 0.0
      %2129 = vmatpush1.msra.mxu0 0.0
      %2130 = vmatprep.subr.mxu0 0.0
      %2131 = vmatpush1.msra.mxu0 0.0
      %2132 = vmatprep.subr.mxu0 0.0
      %2133 = vmatpush1.msra.mxu0 0.0
      %2134 = vmatprep.subr.mxu0 0.0
      %2135 = vmatpush1.msra.mxu0 0.0
      %2136 = vmatprep.subr.mxu0 0.0
      %2137 = vmatpush1.msra.mxu0 0.0
      %2138 = vmatprep.subr.mxu0 0.0
      %2139 = vmatpush1.msra.mxu0 0.0
      %2140 = vmatprep.subr.mxu0 0.0
      %2141 = vmatpush1.msra.mxu0 0.0
      %2142 = vmatprep.subr.mxu0 0.0
      %2143 = vmatpush1.msra.mxu0 0.0
      %2144 = vmatprep.subr.mxu0 0.0
      %2145 = vmatpush1.msra.mxu0 0.0
      %2146 = vmatprep.subr.mxu0 0.0
      %2147 = vmatpush1.msra.mxu0 0.0
      %2148 = vmatprep.mubr.f32.mxu0 0.0
      %2149 = vmatmul.mubr.f32.gmra.mrb[0].mxu0 %v2082
      %v2150 = vpop.f32.mrb[0].mxu0
      %v2151 = vadd.f32 0.0, %v2150
      %v2152 = vpop.f32.mrb[0].mxu0
      %v2153 = vadd.f32 0.0, %v2152
      %2154 = vdwg.mxu0
      %2155 = vmatprep.subr.mxu0 %v486
      %2156 = vmatpush1.msra.mxu0 %v485
      %2157 = vmatprep.subr.mxu0 0.0
      %2158 = vmatpush1.msra.mxu0 0.0
      %2159 = vmatprep.subr.mxu0 0.0
      %2160 = vmatpush1.msra.mxu0 0.0
      %2161 = vmatprep.subr.mxu0 0.0
      %2162 = vmatpush1.msra.mxu0 0.0
      %2163 = vmatprep.subr.mxu0 0.0
      %2164 = vmatpush1.msra.mxu0 0.0
      %2165 = vmatprep.subr.mxu0 0.0
      %2166 = vmatpush1.msra.mxu0 0.0
      %2167 = vmatprep.subr.mxu0 0.0
      %2168 = vmatpush1.msra.mxu0 0.0
      %2169 = vmatprep.subr.mxu0 0.0
      %2170 = vmatpush1.msra.mxu0 0.0
      %2171 = vmatprep.subr.mxu0 0.0
      %2172 = vmatpush1.msra.mxu0 0.0
      %2173 = vmatprep.subr.mxu0 0.0
      %2174 = vmatpush1.msra.mxu0 0.0
      %2175 = vmatprep.subr.mxu0 0.0
      %2176 = vmatpush1.msra.mxu0 0.0
      %2177 = vmatprep.subr.mxu0 0.0
      %2178 = vmatpush1.msra.mxu0 0.0
      %2179 = vmatprep.subr.mxu0 0.0
      %2180 = vmatpush1.msra.mxu0 0.0
      %2181 = vmatprep.subr.mxu0 0.0
      %2182 = vmatpush1.msra.mxu0 0.0
      %2183 = vmatprep.subr.mxu0 0.0
      %2184 = vmatpush1.msra.mxu0 0.0
      %2185 = vmatprep.subr.mxu0 0.0
      %2186 = vmatpush1.msra.mxu0 0.0
      %2187 = vmatprep.subr.mxu0 0.0
      %2188 = vmatpush1.msra.mxu0 0.0
      %2189 = vmatprep.subr.mxu0 0.0
      %2190 = vmatpush1.msra.mxu0 0.0
      %2191 = vmatprep.subr.mxu0 0.0
      %2192 = vmatpush1.msra.mxu0 0.0
      %2193 = vmatprep.subr.mxu0 0.0
      %2194 = vmatpush1.msra.mxu0 0.0
      %2195 = vmatprep.subr.mxu0 0.0
      %2196 = vmatpush1.msra.mxu0 0.0
      %2197 = vmatprep.subr.mxu0 0.0
      %2198 = vmatpush1.msra.mxu0 0.0
      %2199 = vmatprep.subr.mxu0 0.0
      %2200 = vmatpush1.msra.mxu0 0.0
      %2201 = vmatprep.subr.mxu0 0.0
      %2202 = vmatpush1.msra.mxu0 0.0
      %2203 = vmatprep.subr.mxu0 0.0
      %2204 = vmatpush1.msra.mxu0 0.0
      %2205 = vmatprep.subr.mxu0 0.0
      %2206 = vmatpush1.msra.mxu0 0.0
      %2207 = vmatprep.subr.mxu0 0.0
      %2208 = vmatpush1.msra.mxu0 0.0
      %2209 = vmatprep.subr.mxu0 0.0
      %2210 = vmatpush1.msra.mxu0 0.0
      %2211 = vmatprep.subr.mxu0 0.0
      %2212 = vmatpush1.msra.mxu0 0.0
      %2213 = vmatprep.subr.mxu0 0.0
      %2214 = vmatpush1.msra.mxu0 0.0
      %2215 = vmatprep.subr.mxu0 0.0
      %2216 = vmatpush1.msra.mxu0 0.0
      %2217 = vmatprep.subr.mxu0 0.0
      %2218 = vmatpush1.msra.mxu0 0.0
      %2219 = vmatprep.mubr.f32.mxu0 0.0
      %2220 = vmatmul.mubr.f32.gmra.mrb[0].mxu0 %v2082
      %v2221 = vpop.f32.mrb[0].mxu0
      %v2222 = vadd.f32 0.0, %v2221
      %v2223 = vpop.f32.mrb[0].mxu0
      %v2224 = vadd.f32 0.0, %v2223
      %2225 = vdwg.mxu0
      %2226 = vmatprep.subr.mxu0 %v488
      %2227 = vmatpush1.msra.mxu0 %v487
      %2228 = vmatprep.subr.mxu0 0.0
      %2229 = vmatpush1.msra.mxu0 0.0
      %2230 = vmatprep.subr.mxu0 0.0
      %2231 = vmatpush1.msra.mxu0 0.0
      %2232 = vmatprep.subr.mxu0 0.0
      %2233 = vmatpush1.msra.mxu0 0.0
      %2234 = vmatprep.subr.mxu0 0.0
      %2235 = vmatpush1.msra.mxu0 0.0
      %2236 = vmatprep.subr.mxu0 0.0
      %2237 = vmatpush1.msra.mxu0 0.0
      %2238 = vmatprep.subr.mxu0 0.0
      %2239 = vmatpush1.msra.mxu0 0.0
      %2240 = vmatprep.subr.mxu0 0.0
      %2241 = vmatpush1.msra.mxu0 0.0
      %2242 = vmatprep.subr.mxu0 0.0
      %2243 = vmatpush1.msra.mxu0 0.0
      %2244 = vmatprep.subr.mxu0 0.0
      %2245 = vmatpush1.msra.mxu0 0.0
      %2246 = vmatprep.subr.mxu0 0.0
      %2247 = vmatpush1.msra.mxu0 0.0
      %2248 = vmatprep.subr.mxu0 0.0
      %2249 = vmatpush1.msra.mxu0 0.0
      %2250 = vmatprep.subr.mxu0 0.0
      %2251 = vmatpush1.msra.mxu0 0.0
      %2252 = vmatprep.subr.mxu0 0.0
      %2253 = vmatpush1.msra.mxu0 0.0
      %2254 = vmatprep.subr.mxu0 0.0
      %2255 = vmatpush1.msra.mxu0 0.0
      %2256 = vmatprep.subr.mxu0 0.0
      %2257 = vmatpush1.msra.mxu0 0.0
      %2258 = vmatprep.subr.mxu0 0.0
      %2259 = vmatpush1.msra.mxu0 0.0
      %2260 = vmatprep.subr.mxu0 0.0
      %2261 = vmatpush1.msra.mxu0 0.0
      %2262 = vmatprep.subr.mxu0 0.0
      %2263 = vmatpush1.msra.mxu0 0.0
      %2264 = vmatprep.subr.mxu0 0.0
      %2265 = vmatpush1.msra.mxu0 0.0
      %2266 = vmatprep.subr.mxu0 0.0
      %2267 = vmatpush1.msra.mxu0 0.0
      %2268 = vmatprep.subr.mxu0 0.0
      %2269 = vmatpush1.msra.mxu0 0.0
      %2270 = vmatprep.subr.mxu0 0.0
      %2271 = vmatpush1.msra.mxu0 0.0
      %2272 = vmatprep.subr.mxu0 0.0
      %2273 = vmatpush1.msra.mxu0 0.0
      %2274 = vmatprep.subr.mxu0 0.0
      %2275 = vmatpush1.msra.mxu0 0.0
      %2276 = vmatprep.subr.mxu0 0.0
      %2277 = vmatpush1.msra.mxu0 0.0
      %2278 = vmatprep.subr.mxu0 0.0
      %2279 = vmatpush1.msra.mxu0 0.0
      %2280 = vmatprep.subr.mxu0 0.0
      %2281 = vmatpush1.msra.mxu0 0.0
      %2282 = vmatprep.subr.mxu0 0.0
      %2283 = vmatpush1.msra.mxu0 0.0
      %2284 = vmatprep.subr.mxu0 0.0
      %2285 = vmatpush1.msra.mxu0 0.0
      %2286 = vmatprep.subr.mxu0 0.0
      %2287 = vmatpush1.msra.mxu0 0.0
      %2288 = vmatprep.subr.mxu0 0.0
      %2289 = vmatpush1.msra.mxu0 0.0
      %2290 = vmatprep.mubr.f32.mxu0 0.0
      %2291 = vmatmul.mubr.f32.gmra.mrb[0].mxu0 %v2082
      %v2292 = vpop.f32.mrb[0].mxu0
      %v2293 = vadd.f32 0.0, %v2292
      %v2294 = vpop.f32.mrb[0].mxu0
      %v2295 = vadd.f32 0.0, %v2294
      %2296 = vdwg.mxu0
      %2297 = vmatprep.subr.mxu0 %v490
      %2298 = vmatpush1.msra.mxu0 %v489
      %2299 = vmatprep.subr.mxu0 0.0
      %2300 = vmatpush1.msra.mxu0 0.0
      %2301 = vmatprep.subr.mxu0 0.0
      %2302 = vmatpush1.msra.mxu0 0.0
      %2303 = vmatprep.subr.mxu0 0.0
      %2304 = vmatpush1.msra.mxu0 0.0
      %2305 = vmatprep.subr.mxu0 0.0
      %2306 = vmatpush1.msra.mxu0 0.0
      %2307 = vmatprep.subr.mxu0 0.0
      %2308 = vmatpush1.msra.mxu0 0.0
      %2309 = vmatprep.subr.mxu0 0.0
      %2310 = vmatpush1.msra.mxu0 0.0
      %2311 = vmatprep.subr.mxu0 0.0
      %2312 = vmatpush1.msra.mxu0 0.0
      %2313 = vmatprep.subr.mxu0 0.0
      %2314 = vmatpush1.msra.mxu0 0.0
      %2315 = vmatprep.subr.mxu0 0.0
      %2316 = vmatpush1.msra.mxu0 0.0
      %2317 = vmatprep.subr.mxu0 0.0
      %2318 = vmatpush1.msra.mxu0 0.0
      %2319 = vmatprep.subr.mxu0 0.0
      %2320 = vmatpush1.msra.mxu0 0.0
      %2321 = vmatprep.subr.mxu0 0.0
      %2322 = vmatpush1.msra.mxu0 0.0
      %2323 = vmatprep.subr.mxu0 0.0
      %2324 = vmatpush1.msra.mxu0 0.0
      %2325 = vmatprep.subr.mxu0 0.0
      %2326 = vmatpush1.msra.mxu0 0.0
      %2327 = vmatprep.subr.mxu0 0.0
      %2328 = vmatpush1.msra.mxu0 0.0
      %2329 = vmatprep.subr.mxu0 0.0
      %2330 = vmatpush1.msra.mxu0 0.0
      %2331 = vmatprep.subr.mxu0 0.0
      %2332 = vmatpush1.msra.mxu0 0.0
      %2333 = vmatprep.subr.mxu0 0.0
      %2334 = vmatpush1.msra.mxu0 0.0
      %2335 = vmatprep.subr.mxu0 0.0
      %2336 = vmatpush1.msra.mxu0 0.0
      %2337 = vmatprep.subr.mxu0 0.0
      %2338 = vmatpush1.msra.mxu0 0.0
      %2339 = vmatprep.subr.mxu0 0.0
      %2340 = vmatpush1.msra.mxu0 0.0
      %2341 = vmatprep.subr.mxu0 0.0
      %2342 = vmatpush1.msra.mxu0 0.0
      %2343 = vmatprep.subr.mxu0 0.0
      %2344 = vmatpush1.msra.mxu0 0.0
      %2345 = vmatprep.subr.mxu0 0.0
      %2346 = vmatpush1.msra.mxu0 0.0
      %2347 = vmatprep.subr.mxu0 0.0
      %2348 = vmatpush1.msra.mxu0 0.0
      %2349 = vmatprep.subr.mxu0 0.0
      %2350 = vmatpush1.msra.mxu0 0.0
      %2351 = vmatprep.subr.mxu0 0.0
      %2352 = vmatpush1.msra.mxu0 0.0
      %2353 = vmatprep.subr.mxu0 0.0
      %2354 = vmatpush1.msra.mxu0 0.0
      %2355 = vmatprep.subr.mxu0 0.0
      %2356 = vmatpush1.msra.mxu0 0.0
      %2357 = vmatprep.subr.mxu0 0.0
      %2358 = vmatpush1.msra.mxu0 0.0
      %2359 = vmatprep.subr.mxu0 0.0
      %2360 = vmatpush1.msra.mxu0 0.0
      %2361 = vmatprep.mubr.f32.mxu0 0.0
      %2362 = vmatmul.mubr.f32.gmra.mrb[0].mxu0 %v2082
      %v2363 = vpop.f32.mrb[0].mxu0
      %v2364 = vadd.f32 0.0, %v2363
      %v2365 = vpop.f32.mrb[0].mxu0
      %v2366 = vadd.f32 0.0, %v2365
      %2367 = vdwg.mxu0
      %2368 = vmatprep.subr.mxu0 %v492
      %2369 = vmatpush1.msra.mxu0 %v491
      %2370 = vmatprep.subr.mxu0 0.0
      %2371 = vmatpush1.msra.mxu0 0.0
      %2372 = vmatprep.subr.mxu0 0.0
      %2373 = vmatpush1.msra.mxu0 0.0
      %2374 = vmatprep.subr.mxu0 0.0
      %2375 = vmatpush1.msra.mxu0 0.0
      %2376 = vmatprep.subr.mxu0 0.0
      %2377 = vmatpush1.msra.mxu0 0.0
      %2378 = vmatprep.subr.mxu0 0.0
      %2379 = vmatpush1.msra.mxu0 0.0
      %2380 = vmatprep.subr.mxu0 0.0
      %2381 = vmatpush1.msra.mxu0 0.0
      %2382 = vmatprep.subr.mxu0 0.0
      %2383 = vmatpush1.msra.mxu0 0.0
      %2384 = vmatprep.subr.mxu0 0.0
      %2385 = vmatpush1.msra.mxu0 0.0
      %2386 = vmatprep.subr.mxu0 0.0
      %2387 = vmatpush1.msra.mxu0 0.0
      %2388 = vmatprep.subr.mxu0 0.0
      %2389 = vmatpush1.msra.mxu0 0.0
      %2390 = vmatprep.subr.mxu0 0.0
      %2391 = vmatpush1.msra.mxu0 0.0
      %2392 = vmatprep.subr.mxu0 0.0
      %2393 = vmatpush1.msra.mxu0 0.0
      %2394 = vmatprep.subr.mxu0 0.0
      %2395 = vmatpush1.msra.mxu0 0.0
      %2396 = vmatprep.subr.mxu0 0.0
      %2397 = vmatpush1.msra.mxu0 0.0
      %2398 = vmatprep.subr.mxu0 0.0
      %2399 = vmatpush1.msra.mxu0 0.0
      %2400 = vmatprep.subr.mxu0 0.0
      %2401 = vmatpush1.msra.mxu0 0.0
      %2402 = vmatprep.subr.mxu0 0.0
      %2403 = vmatpush1.msra.mxu0 0.0
      %2404 = vmatprep.subr.mxu0 0.0
      %2405 = vmatpush1.msra.mxu0 0.0
      %2406 = vmatprep.subr.mxu0 0.0
      %2407 = vmatpush1.msra.mxu0 0.0
      %2408 = vmatprep.subr.mxu0 0.0
      %2409 = vmatpush1.msra.mxu0 0.0
      %2410 = vmatprep.subr.mxu0 0.0
      %2411 = vmatpush1.msra.mxu0 0.0
      %2412 = vmatprep.subr.mxu0 0.0
      %2413 = vmatpush1.msra.mxu0 0.0
      %2414 = vmatprep.subr.mxu0 0.0
      %2415 = vmatpush1.msra.mxu0 0.0
      %2416 = vmatprep.subr.mxu0 0.0
      %2417 = vmatpush1.msra.mxu0 0.0
      %2418 = vmatprep.subr.mxu0 0.0
      %2419 = vmatpush1.msra.mxu0 0.0
      %2420 = vmatprep.subr.mxu0 0.0
      %2421 = vmatpush1.msra.mxu0 0.0
      %2422 = vmatprep.subr.mxu0 0.0
      %2423 = vmatpush1.msra.mxu0 0.0
      %2424 = vmatprep.subr.mxu0 0.0
      %2425 = vmatpush1.msra.mxu0 0.0
      %2426 = vmatprep.subr.mxu0 0.0
      %2427 = vmatpush1.msra.mxu0 0.0
      %2428 = vmatprep.subr.mxu0 0.0
      %2429 = vmatpush1.msra.mxu0 0.0
      %2430 = vmatprep.subr.mxu0 0.0
      %2431 = vmatpush1.msra.mxu0 0.0
      %2432 = vmatprep.mubr.f32.mxu0 0.0
      %2433 = vmatmul.mubr.f32.gmra.mrb[0].mxu0 %v2082
      %v2434 = vpop.f32.mrb[0].mxu0
      %v2435 = vadd.f32 0.0, %v2434
      %v2436 = vpop.f32.mrb[0].mxu0
      %v2437 = vadd.f32 0.0, %v2436
      %2438 = vdwg.mxu0
      %v2439 = vadd.f32 %v2069, %v2151
      %v2440 = vadd.f32 %v2070, %v2153
      %v2441 = vadd.f32 %v2071, %v2222
      %v2442 = vadd.f32 %v2072, %v2224
      %v2443 = vadd.f32 %v2073, %v2293
      %v2444 = vadd.f32 %v2074, %v2295
      %v2445 = vadd.f32 %v2075, %v2364
      %v2446 = vadd.f32 %v2076, %v2366
      %v2447 = vadd.f32 %v2077, %v2435
      %v2448 = vadd.f32 %v2078, %v2437
      %2449 = vrot.lane.b32.xlu0 %v483, 127
      %v2450 = vpop.permute.xlu0 %2449
      %2451 = vrot.lane.b32.xlu0 %v484, 127
      %v2452 = vpop.permute.xlu0 %2451
      %2453 = vrot.lane.b32.xlu0 %v485, 127
      %v2454 = vpop.permute.xlu0 %2453
      %2455 = vrot.lane.b32.xlu0 %v486, 127
      %v2456 = vpop.permute.xlu0 %2455
      %2457 = vrot.lane.b32.xlu0 %v487, 127
      %v2458 = vpop.permute.xlu0 %2457
      %2459 = vrot.lane.b32.xlu0 %v488, 127
      %v2460 = vpop.permute.xlu0 %2459
      %2461 = vrot.lane.b32.xlu0 %v489, 127
      %v2462 = vpop.permute.xlu0 %2461
      %2463 = vrot.lane.b32.xlu0 %v490, 127
      %v2464 = vpop.permute.xlu0 %2463
      %2465 = vrot.lane.b32.xlu0 %v491, 127
      %v2466 = vpop.permute.xlu0 %2465
      %2467 = vrot.lane.b32.xlu0 %v492, 127
      %v2468 = vpop.permute.xlu0 %2467
      %vm2469 = vcmp.lt.s32.totalorder %v514, 127
      %v2470 = vsel %vm2469, %v2466, %v2468
      %v2471 = vsel %vm2469, %v2464, %v2466
      %v2472 = vsel %vm2469, %v2462, %v2464
      %v2473 = vsel %vm2469, %v2460, %v2462
      %v2474 = vsel %vm2469, %v2458, %v2460
      %v2475 = vsel %vm2469, %v2456, %v2458
      %v2476 = vsel %vm2469, %v2454, %v2456
      %v2477 = vsel %vm2469, %v2452, %v2454
      %v2478 = vsel %vm2469, %v2450, %v2452
      %v2479 = vsel %vm2469, %v2468, %v2450
      %s2480 = scalar_lea.vmem %s1, 40
      %v2481 = vld [vmem:[%s2480] sm:$0xff]
      %v2483 = vsel %vm560, %v2481, 0
      %2485 = vmatprep.subr.mxu0 %v2477
      %2486 = vmatpush1.msra.mxu0 %v2478
      %2487 = vmatprep.subr.mxu0 0.0
      %2488 = vmatpush1.msra.mxu0 0.0
      %2489 = vmatprep.subr.mxu0 0.0
      %2490 = vmatpush1.msra.mxu0 0.0
      %2491 = vmatprep.subr.mxu0 0.0
      %2492 = vmatpush1.msra.mxu0 0.0
      %2493 = vmatprep.subr.mxu0 0.0
      %2494 = vmatpush1.msra.mxu0 0.0
      %2495 = vmatprep.subr.mxu0 0.0
      %2496 = vmatpush1.msra.mxu0 0.0
      %2497 = vmatprep.subr.mxu0 0.0
      %2498 = vmatpush1.msra.mxu0 0.0
      %2499 = vmatprep.subr.mxu0 0.0
      %2500 = vmatpush1.msra.mxu0 0.0
      %2501 = vmatprep.subr.mxu0 0.0
      %2502 = vmatpush1.msra.mxu0 0.0
      %2503 = vmatprep.subr.mxu0 0.0
      %2504 = vmatpush1.msra.mxu0 0.0
      %2505 = vmatprep.subr.mxu0 0.0
      %2506 = vmatpush1.msra.mxu0 0.0
      %2507 = vmatprep.subr.mxu0 0.0
      %2508 = vmatpush1.msra.mxu0 0.0
      %2509 = vmatprep.subr.mxu0 0.0
      %2510 = vmatpush1.msra.mxu0 0.0
      %2511 = vmatprep.subr.mxu0 0.0
      %2512 = vmatpush1.msra.mxu0 0.0
      %2513 = vmatprep.subr.mxu0 0.0
      %2514 = vmatpush1.msra.mxu0 0.0
      %2515 = vmatprep.subr.mxu0 0.0
      %2516 = vmatpush1.msra.mxu0 0.0
      %2517 = vmatprep.subr.mxu0 0.0
      %2518 = vmatpush1.msra.mxu0 0.0
      %2519 = vmatprep.subr.mxu0 0.0
      %2520 = vmatpush1.msra.mxu0 0.0
      %2521 = vmatprep.subr.mxu0 0.0
      %2522 = vmatpush1.msra.mxu0 0.0
      %2523 = vmatprep.subr.mxu0 0.0
      %2524 = vmatpush1.msra.mxu0 0.0
      %2525 = vmatprep.subr.mxu0 0.0
      %2526 = vmatpush1.msra.mxu0 0.0
      %2527 = vmatprep.subr.mxu0 0.0
      %2528 = vmatpush1.msra.mxu0 0.0
      %2529 = vmatprep.subr.mxu0 0.0
      %2530 = vmatpush1.msra.mxu0 0.0
      %2531 = vmatprep.subr.mxu0 0.0
      %2532 = vmatpush1.msra.mxu0 0.0
      %2533 = vmatprep.subr.mxu0 0.0
      %2534 = vmatpush1.msra.mxu0 0.0
      %2535 = vmatprep.subr.mxu0 0.0
      %2536 = vmatpush1.msra.mxu0 0.0
      %2537 = vmatprep.subr.mxu0 0.0
      %2538 = vmatpush1.msra.mxu0 0.0
      %2539 = vmatprep.subr.mxu0 0.0
      %2540 = vmatpush1.msra.mxu0 0.0
      %2541 = vmatprep.subr.mxu0 0.0
      %2542 = vmatpush1.msra.mxu0 0.0
      %2543 = vmatprep.subr.mxu0 0.0
      %2544 = vmatpush1.msra.mxu0 0.0
      %2545 = vmatprep.subr.mxu0 0.0
      %2546 = vmatpush1.msra.mxu0 0.0
      %2547 = vmatprep.subr.mxu0 0.0
      %2548 = vmatpush1.msra.mxu0 0.0
      %2549 = vmatprep.mubr.f32.mxu0 0.0
      %2550 = vmatmul.mubr.f32.gmra.mrb[0].mxu0 %v2483
      %v2551 = vpop.f32.mrb[0].mxu0
      %v2552 = vadd.f32 0.0, %v2551
      %v2553 = vpop.f32.mrb[0].mxu0
      %v2554 = vadd.f32 0.0, %v2553
      %2555 = vdwg.mxu0
      %2556 = vmatprep.subr.mxu0 %v2475
      %2557 = vmatpush1.msra.mxu0 %v2476
      %2558 = vmatprep.subr.mxu0 0.0
      %2559 = vmatpush1.msra.mxu0 0.0
      %2560 = vmatprep.subr.mxu0 0.0
      %2561 = vmatpush1.msra.mxu0 0.0
      %2562 = vmatprep.subr.mxu0 0.0
      %2563 = vmatpush1.msra.mxu0 0.0
      %2564 = vmatprep.subr.mxu0 0.0
      %2565 = vmatpush1.msra.mxu0 0.0
      %2566 = vmatprep.subr.mxu0 0.0
      %2567 = vmatpush1.msra.mxu0 0.0
      %2568 = vmatprep.subr.mxu0 0.0
      %2569 = vmatpush1.msra.mxu0 0.0
      %2570 = vmatprep.subr.mxu0 0.0
      %2571 = vmatpush1.msra.mxu0 0.0
      %2572 = vmatprep.subr.mxu0 0.0
      %2573 = vmatpush1.msra.mxu0 0.0
      %2574 = vmatprep.subr.mxu0 0.0
      %2575 = vmatpush1.msra.mxu0 0.0
      %2576 = vmatprep.subr.mxu0 0.0
      %2577 = vmatpush1.msra.mxu0 0.0
      %2578 = vmatprep.subr.mxu0 0.0
      %2579 = vmatpush1.msra.mxu0 0.0
      %2580 = vmatprep.subr.mxu0 0.0
      %2581 = vmatpush1.msra.mxu0 0.0
      %2582 = vmatprep.subr.mxu0 0.0
      %2583 = vmatpush1.msra.mxu0 0.0
      %2584 = vmatprep.subr.mxu0 0.0
      %2585 = vmatpush1.msra.mxu0 0.0
      %2586 = vmatprep.subr.mxu0 0.0
      %2587 = vmatpush1.msra.mxu0 0.0
      %2588 = vmatprep.subr.mxu0 0.0
      %2589 = vmatpush1.msra.mxu0 0.0
      %2590 = vmatprep.subr.mxu0 0.0
      %2591 = vmatpush1.msra.mxu0 0.0
      %2592 = vmatprep.subr.mxu0 0.0
      %2593 = vmatpush1.msra.mxu0 0.0
      %2594 = vmatprep.subr.mxu0 0.0
      %2595 = vmatpush1.msra.mxu0 0.0
      %2596 = vmatprep.subr.mxu0 0.0
      %2597 = vmatpush1.msra.mxu0 0.0
      %2598 = vmatprep.subr.mxu0 0.0
      %2599 = vmatpush1.msra.mxu0 0.0
      %2600 = vmatprep.subr.mxu0 0.0
      %2601 = vmatpush1.msra.mxu0 0.0
      %2602 = vmatprep.subr.mxu0 0.0
      %2603 = vmatpush1.msra.mxu0 0.0
      %2604 = vmatprep.subr.mxu0 0.0
      %2605 = vmatpush1.msra.mxu0 0.0
      %2606 = vmatprep.subr.mxu0 0.0
      %2607 = vmatpush1.msra.mxu0 0.0
      %2608 = vmatprep.subr.mxu0 0.0
      %2609 = vmatpush1.msra.mxu0 0.0
      %2610 = vmatprep.subr.mxu0 0.0
      %2611 = vmatpush1.msra.mxu0 0.0
      %2612 = vmatprep.subr.mxu0 0.0
      %2613 = vmatpush1.msra.mxu0 0.0
      %2614 = vmatprep.subr.mxu0 0.0
      %2615 = vmatpush1.msra.mxu0 0.0
      %2616 = vmatprep.subr.mxu0 0.0
      %2617 = vmatpush1.msra.mxu0 0.0
      %2618 = vmatprep.subr.mxu0 0.0
      %2619 = vmatpush1.msra.mxu0 0.0
      %2620 = vmatprep.mubr.f32.mxu0 0.0
      %2621 = vmatmul.mubr.f32.gmra.mrb[0].mxu0 %v2483
      %v2622 = vpop.f32.mrb[0].mxu0
      %v2623 = vadd.f32 0.0, %v2622
      %v2624 = vpop.f32.mrb[0].mxu0
      %v2625 = vadd.f32 0.0, %v2624
      %2626 = vdwg.mxu0
      %2627 = vmatprep.subr.mxu0 %v2473
      %2628 = vmatpush1.msra.mxu0 %v2474
      %2629 = vmatprep.subr.mxu0 0.0
      %2630 = vmatpush1.msra.mxu0 0.0
      %2631 = vmatprep.subr.mxu0 0.0
      %2632 = vmatpush1.msra.mxu0 0.0
      %2633 = vmatprep.subr.mxu0 0.0
      %2634 = vmatpush1.msra.mxu0 0.0
      %2635 = vmatprep.subr.mxu0 0.0
      %2636 = vmatpush1.msra.mxu0 0.0
      %2637 = vmatprep.subr.mxu0 0.0
      %2638 = vmatpush1.msra.mxu0 0.0
      %2639 = vmatprep.subr.mxu0 0.0
      %2640 = vmatpush1.msra.mxu0 0.0
      %2641 = vmatprep.subr.mxu0 0.0
      %2642 = vmatpush1.msra.mxu0 0.0
      %2643 = vmatprep.subr.mxu0 0.0
      %2644 = vmatpush1.msra.mxu0 0.0
      %2645 = vmatprep.subr.mxu0 0.0
      %2646 = vmatpush1.msra.mxu0 0.0
      %2647 = vmatprep.subr.mxu0 0.0
      %2648 = vmatpush1.msra.mxu0 0.0
      %2649 = vmatprep.subr.mxu0 0.0
      %2650 = vmatpush1.msra.mxu0 0.0
      %2651 = vmatprep.subr.mxu0 0.0
      %2652 = vmatpush1.msra.mxu0 0.0
      %2653 = vmatprep.subr.mxu0 0.0
      %2654 = vmatpush1.msra.mxu0 0.0
      %2655 = vmatprep.subr.mxu0 0.0
      %2656 = vmatpush1.msra.mxu0 0.0
      %2657 = vmatprep.subr.mxu0 0.0
      %2658 = vmatpush1.msra.mxu0 0.0
      %2659 = vmatprep.subr.mxu0 0.0
      %2660 = vmatpush1.msra.mxu0 0.0
      %2661 = vmatprep.subr.mxu0 0.0
      %2662 = vmatpush1.msra.mxu0 0.0
      %2663 = vmatprep.subr.mxu0 0.0
      %2664 = vmatpush1.msra.mxu0 0.0
      %2665 = vmatprep.subr.mxu0 0.0
      %2666 = vmatpush1.msra.mxu0 0.0
      %2667 = vmatprep.subr.mxu0 0.0
      %2668 = vmatpush1.msra.mxu0 0.0
      %2669 = vmatprep.subr.mxu0 0.0
      %2670 = vmatpush1.msra.mxu0 0.0
      %2671 = vmatprep.subr.mxu0 0.0
      %2672 = vmatpush1.msra.mxu0 0.0
      %2673 = vmatprep.subr.mxu0 0.0
      %2674 = vmatpush1.msra.mxu0 0.0
      %2675 = vmatprep.subr.mxu0 0.0
      %2676 = vmatpush1.msra.mxu0 0.0
      %2677 = vmatprep.subr.mxu0 0.0
      %2678 = vmatpush1.msra.mxu0 0.0
      %2679 = vmatprep.subr.mxu0 0.0
      %2680 = vmatpush1.msra.mxu0 0.0
      %2681 = vmatprep.subr.mxu0 0.0
      %2682 = vmatpush1.msra.mxu0 0.0
      %2683 = vmatprep.subr.mxu0 0.0
      %2684 = vmatpush1.msra.mxu0 0.0
      %2685 = vmatprep.subr.mxu0 0.0
      %2686 = vmatpush1.msra.mxu0 0.0
      %2687 = vmatprep.subr.mxu0 0.0
      %2688 = vmatpush1.msra.mxu0 0.0
      %2689 = vmatprep.subr.mxu0 0.0
      %2690 = vmatpush1.msra.mxu0 0.0
      %2691 = vmatprep.mubr.f32.mxu0 0.0
      %2692 = vmatmul.mubr.f32.gmra.mrb[0].mxu0 %v2483
      %v2693 = vpop.f32.mrb[0].mxu0
      %v2694 = vadd.f32 0.0, %v2693
      %v2695 = vpop.f32.mrb[0].mxu0
      %v2696 = vadd.f32 0.0, %v2695
      %2697 = vdwg.mxu0
      %2698 = vmatprep.subr.mxu0 %v2471
      %2699 = vmatpush1.msra.mxu0 %v2472
      %2700 = vmatprep.subr.mxu0 0.0
      %2701 = vmatpush1.msra.mxu0 0.0
      %2702 = vmatprep.subr.mxu0 0.0
      %2703 = vmatpush1.msra.mxu0 0.0
      %2704 = vmatprep.subr.mxu0 0.0
      %2705 = vmatpush1.msra.mxu0 0.0
      %2706 = vmatprep.subr.mxu0 0.0
      %2707 = vmatpush1.msra.mxu0 0.0
      %2708 = vmatprep.subr.mxu0 0.0
      %2709 = vmatpush1.msra.mxu0 0.0
      %2710 = vmatprep.subr.mxu0 0.0
      %2711 = vmatpush1.msra.mxu0 0.0
      %2712 = vmatprep.subr.mxu0 0.0
      %2713 = vmatpush1.msra.mxu0 0.0
      %2714 = vmatprep.subr.mxu0 0.0
      %2715 = vmatpush1.msra.mxu0 0.0
      %2716 = vmatprep.subr.mxu0 0.0
      %2717 = vmatpush1.msra.mxu0 0.0
      %2718 = vmatprep.subr.mxu0 0.0
      %2719 = vmatpush1.msra.mxu0 0.0
      %2720 = vmatprep.subr.mxu0 0.0
      %2721 = vmatpush1.msra.mxu0 0.0
      %2722 = vmatprep.subr.mxu0 0.0
      %2723 = vmatpush1.msra.mxu0 0.0
      %2724 = vmatprep.subr.mxu0 0.0
      %2725 = vmatpush1.msra.mxu0 0.0
      %2726 = vmatprep.subr.mxu0 0.0
      %2727 = vmatpush1.msra.mxu0 0.0
      %2728 = vmatprep.subr.mxu0 0.0
      %2729 = vmatpush1.msra.mxu0 0.0
      %2730 = vmatprep.subr.mxu0 0.0
      %2731 = vmatpush1.msra.mxu0 0.0
      %2732 = vmatprep.subr.mxu0 0.0
      %2733 = vmatpush1.msra.mxu0 0.0
      %2734 = vmatprep.subr.mxu0 0.0
      %2735 = vmatpush1.msra.mxu0 0.0
      %2736 = vmatprep.subr.mxu0 0.0
      %2737 = vmatpush1.msra.mxu0 0.0
      %2738 = vmatprep.subr.mxu0 0.0
      %2739 = vmatpush1.msra.mxu0 0.0
      %2740 = vmatprep.subr.mxu0 0.0
      %2741 = vmatpush1.msra.mxu0 0.0
      %2742 = vmatprep.subr.mxu0 0.0
      %2743 = vmatpush1.msra.mxu0 0.0
      %2744 = vmatprep.subr.mxu0 0.0
      %2745 = vmatpush1.msra.mxu0 0.0
      %2746 = vmatprep.subr.mxu0 0.0
      %2747 = vmatpush1.msra.mxu0 0.0
      %2748 = vmatprep.subr.mxu0 0.0
      %2749 = vmatpush1.msra.mxu0 0.0
      %2750 = vmatprep.subr.mxu0 0.0
      %2751 = vmatpush1.msra.mxu0 0.0
      %2752 = vmatprep.subr.mxu0 0.0
      %2753 = vmatpush1.msra.mxu0 0.0
      %2754 = vmatprep.subr.mxu0 0.0
      %2755 = vmatpush1.msra.mxu0 0.0
      %2756 = vmatprep.subr.mxu0 0.0
      %2757 = vmatpush1.msra.mxu0 0.0
      %2758 = vmatprep.subr.mxu0 0.0
      %2759 = vmatpush1.msra.mxu0 0.0
      %2760 = vmatprep.subr.mxu0 0.0
      %2761 = vmatpush1.msra.mxu0 0.0
      %2762 = vmatprep.mubr.f32.mxu0 0.0
      %2763 = vmatmul.mubr.f32.gmra.mrb[0].mxu0 %v2483
      %v2764 = vpop.f32.mrb[0].mxu0
      %v2765 = vadd.f32 0.0, %v2764
      %v2766 = vpop.f32.mrb[0].mxu0
      %v2767 = vadd.f32 0.0, %v2766
      %2768 = vdwg.mxu0
      %2769 = vmatprep.subr.mxu0 %v2479
      %2770 = vmatpush1.msra.mxu0 %v2470
      %2771 = vmatprep.subr.mxu0 0.0
      %2772 = vmatpush1.msra.mxu0 0.0
      %2773 = vmatprep.subr.mxu0 0.0
      %2774 = vmatpush1.msra.mxu0 0.0
      %2775 = vmatprep.subr.mxu0 0.0
      %2776 = vmatpush1.msra.mxu0 0.0
      %2777 = vmatprep.subr.mxu0 0.0
      %2778 = vmatpush1.msra.mxu0 0.0
      %2779 = vmatprep.subr.mxu0 0.0
      %2780 = vmatpush1.msra.mxu0 0.0
      %2781 = vmatprep.subr.mxu0 0.0
      %2782 = vmatpush1.msra.mxu0 0.0
      %2783 = vmatprep.subr.mxu0 0.0
      %2784 = vmatpush1.msra.mxu0 0.0
      %2785 = vmatprep.subr.mxu0 0.0
      %2786 = vmatpush1.msra.mxu0 0.0
      %2787 = vmatprep.subr.mxu0 0.0
      %2788 = vmatpush1.msra.mxu0 0.0
      %2789 = vmatprep.subr.mxu0 0.0
      %2790 = vmatpush1.msra.mxu0 0.0
      %2791 = vmatprep.subr.mxu0 0.0
      %2792 = vmatpush1.msra.mxu0 0.0
      %2793 = vmatprep.subr.mxu0 0.0
      %2794 = vmatpush1.msra.mxu0 0.0
      %2795 = vmatprep.subr.mxu0 0.0
      %2796 = vmatpush1.msra.mxu0 0.0
      %2797 = vmatprep.subr.mxu0 0.0
      %2798 = vmatpush1.msra.mxu0 0.0
      %2799 = vmatprep.subr.mxu0 0.0
      %2800 = vmatpush1.msra.mxu0 0.0
      %2801 = vmatprep.subr.mxu0 0.0
      %2802 = vmatpush1.msra.mxu0 0.0
      %2803 = vmatprep.subr.mxu0 0.0
      %2804 = vmatpush1.msra.mxu0 0.0
      %2805 = vmatprep.subr.mxu0 0.0
      %2806 = vmatpush1.msra.mxu0 0.0
      %2807 = vmatprep.subr.mxu0 0.0
      %2808 = vmatpush1.msra.mxu0 0.0
      %2809 = vmatprep.subr.mxu0 0.0
      %2810 = vmatpush1.msra.mxu0 0.0
      %2811 = vmatprep.subr.mxu0 0.0
      %2812 = vmatpush1.msra.mxu0 0.0
      %2813 = vmatprep.subr.mxu0 0.0
      %2814 = vmatpush1.msra.mxu0 0.0
      %2815 = vmatprep.subr.mxu0 0.0
      %2816 = vmatpush1.msra.mxu0 0.0
      %2817 = vmatprep.subr.mxu0 0.0
      %2818 = vmatpush1.msra.mxu0 0.0
      %2819 = vmatprep.subr.mxu0 0.0
      %2820 = vmatpush1.msra.mxu0 0.0
      %2821 = vmatprep.subr.mxu0 0.0
      %2822 = vmatpush1.msra.mxu0 0.0
      %2823 = vmatprep.subr.mxu0 0.0
      %2824 = vmatpush1.msra.mxu0 0.0
      %2825 = vmatprep.subr.mxu0 0.0
      %2826 = vmatpush1.msra.mxu0 0.0
      %2827 = vmatprep.subr.mxu0 0.0
      %2828 = vmatpush1.msra.mxu0 0.0
      %2829 = vmatprep.subr.mxu0 0.0
      %2830 = vmatpush1.msra.mxu0 0.0
      %2831 = vmatprep.subr.mxu0 0.0
      %2832 = vmatpush1.msra.mxu0 0.0
      %2833 = vmatprep.mubr.f32.mxu0 0.0
      %2834 = vmatmul.mubr.f32.gmra.mrb[0].mxu0 %v2483
      %v2835 = vpop.f32.mrb[0].mxu0
      %v2836 = vadd.f32 0.0, %v2835
      %v2837 = vpop.f32.mrb[0].mxu0
      %v2838 = vadd.f32 0.0, %v2837
      %2839 = vdwg.mxu0
      %v2840 = vadd.f32 %v2439, %v2552
      %v2841 = vadd.f32 %v2440, %v2554
      %v2842 = vadd.f32 %v2441, %v2623
      %v2843 = vadd.f32 %v2442, %v2625
      %v2844 = vadd.f32 %v2443, %v2694
      %v2845 = vadd.f32 %v2444, %v2696
      %v2846 = vadd.f32 %v2445, %v2765
      %v2847 = vadd.f32 %v2446, %v2767
      %v2848 = vadd.f32 %v2447, %v2836
      %v2849 = vadd.f32 %v2448, %v2838
      %2850 = vrot.lane.b32.xlu0 %v483, 95
      %v2851 = vpop.permute.xlu0 %2850
      %2852 = vrot.lane.b32.xlu0 %v484, 95
      %v2853 = vpop.permute.xlu0 %2852
      %2854 = vrot.lane.b32.xlu0 %v485, 95
      %v2855 = vpop.permute.xlu0 %2854
      %2856 = vrot.lane.b32.xlu0 %v486, 95
      %v2857 = vpop.permute.xlu0 %2856
      %2858 = vrot.lane.b32.xlu0 %v487, 95
      %v2859 = vpop.permute.xlu0 %2858
      %2860 = vrot.lane.b32.xlu0 %v488, 95
      %v2861 = vpop.permute.xlu0 %2860
      %2862 = vrot.lane.b32.xlu0 %v489, 95
      %v2863 = vpop.permute.xlu0 %2862
      %2864 = vrot.lane.b32.xlu0 %v490, 95
      %v2865 = vpop.permute.xlu0 %2864
      %2866 = vrot.lane.b32.xlu0 %v491, 95
      %v2867 = vpop.permute.xlu0 %2866
      %2868 = vrot.lane.b32.xlu0 %v492, 95
      %v2869 = vpop.permute.xlu0 %2868
      %vm2870 = vcmp.lt.s32.totalorder %v514, 95
      %v2871 = vsel %vm2870, %v2867, %v2869
      %v2872 = vsel %vm2870, %v2865, %v2867
      %v2873 = vsel %vm2870, %v2863, %v2865
      %v2874 = vsel %vm2870, %v2861, %v2863
      %v2875 = vsel %vm2870, %v2859, %v2861
      %v2876 = vsel %vm2870, %v2857, %v2859
      %v2877 = vsel %vm2870, %v2855, %v2857
      %v2878 = vsel %vm2870, %v2853, %v2855
      %v2879 = vsel %vm2870, %v2851, %v2853
      %v2880 = vsel %vm2870, %v2869, %v2851
      %s2881 = scalar_lea.vmem %s1, 48
      %v2882 = vld [vmem:[%s2881] sm:$0xff]
      %v2884 = vsel %vm560, %v2882, 0
      %2886 = vmatprep.subr.mxu0 %v2878
      %2887 = vmatpush1.msra.mxu0 %v2879
      %2888 = vmatprep.subr.mxu0 0.0
      %2889 = vmatpush1.msra.mxu0 0.0
      %2890 = vmatprep.subr.mxu0 0.0
      %2891 = vmatpush1.msra.mxu0 0.0
      %2892 = vmatprep.subr.mxu0 0.0
      %2893 = vmatpush1.msra.mxu0 0.0
      %2894 = vmatprep.subr.mxu0 0.0
      %2895 = vmatpush1.msra.mxu0 0.0
      %2896 = vmatprep.subr.mxu0 0.0
      %2897 = vmatpush1.msra.mxu0 0.0
      %2898 = vmatprep.subr.mxu0 0.0
      %2899 = vmatpush1.msra.mxu0 0.0
      %2900 = vmatprep.subr.mxu0 0.0
      %2901 = vmatpush1.msra.mxu0 0.0
      %2902 = vmatprep.subr.mxu0 0.0
      %2903 = vmatpush1.msra.mxu0 0.0
      %2904 = vmatprep.subr.mxu0 0.0
      %2905 = vmatpush1.msra.mxu0 0.0
      %2906 = vmatprep.subr.mxu0 0.0
      %2907 = vmatpush1.msra.mxu0 0.0
      %2908 = vmatprep.subr.mxu0 0.0
      %2909 = vmatpush1.msra.mxu0 0.0
      %2910 = vmatprep.subr.mxu0 0.0
      %2911 = vmatpush1.msra.mxu0 0.0
      %2912 = vmatprep.subr.mxu0 0.0
      %2913 = vmatpush1.msra.mxu0 0.0
      %2914 = vmatprep.subr.mxu0 0.0
      %2915 = vmatpush1.msra.mxu0 0.0
      %2916 = vmatprep.subr.mxu0 0.0
      %2917 = vmatpush1.msra.mxu0 0.0
      %2918 = vmatprep.subr.mxu0 0.0
      %2919 = vmatpush1.msra.mxu0 0.0
      %2920 = vmatprep.subr.mxu0 0.0
      %2921 = vmatpush1.msra.mxu0 0.0
      %2922 = vmatprep.subr.mxu0 0.0
      %2923 = vmatpush1.msra.mxu0 0.0
      %2924 = vmatprep.subr.mxu0 0.0
      %2925 = vmatpush1.msra.mxu0 0.0
      %2926 = vmatprep.subr.mxu0 0.0
      %2927 = vmatpush1.msra.mxu0 0.0
      %2928 = vmatprep.subr.mxu0 0.0
      %2929 = vmatpush1.msra.mxu0 0.0
      %2930 = vmatprep.subr.mxu0 0.0
      %2931 = vmatpush1.msra.mxu0 0.0
      %2932 = vmatprep.subr.mxu0 0.0
      %2933 = vmatpush1.msra.mxu0 0.0
      %2934 = vmatprep.subr.mxu0 0.0
      %2935 = vmatpush1.msra.mxu0 0.0
      %2936 = vmatprep.subr.mxu0 0.0
      %2937 = vmatpush1.msra.mxu0 0.0
      %2938 = vmatprep.subr.mxu0 0.0
      %2939 = vmatpush1.msra.mxu0 0.0
      %2940 = vmatprep.subr.mxu0 0.0
      %2941 = vmatpush1.msra.mxu0 0.0
      %2942 = vmatprep.subr.mxu0 0.0
      %2943 = vmatpush1.msra.mxu0 0.0
      %2944 = vmatprep.subr.mxu0 0.0
      %2945 = vmatpush1.msra.mxu0 0.0
      %2946 = vmatprep.subr.mxu0 0.0
      %2947 = vmatpush1.msra.mxu0 0.0
      %2948 = vmatprep.subr.mxu0 0.0
      %2949 = vmatpush1.msra.mxu0 0.0
      %2950 = vmatprep.mubr.f32.mxu0 0.0
      %2951 = vmatmul.mubr.f32.gmra.mrb[0].mxu0 %v2884
      %v2952 = vpop.f32.mrb[0].mxu0
      %v2953 = vadd.f32 0.0, %v2952
      %v2954 = vpop.f32.mrb[0].mxu0
      %v2955 = vadd.f32 0.0, %v2954
      %2956 = vdwg.mxu0
      %2957 = vmatprep.subr.mxu0 %v2876
      %2958 = vmatpush1.msra.mxu0 %v2877
      %2959 = vmatprep.subr.mxu0 0.0
      %2960 = vmatpush1.msra.mxu0 0.0
      %2961 = vmatprep.subr.mxu0 0.0
      %2962 = vmatpush1.msra.mxu0 0.0
      %2963 = vmatprep.subr.mxu0 0.0
      %2964 = vmatpush1.msra.mxu0 0.0
      %2965 = vmatprep.subr.mxu0 0.0
      %2966 = vmatpush1.msra.mxu0 0.0
      %2967 = vmatprep.subr.mxu0 0.0
      %2968 = vmatpush1.msra.mxu0 0.0
      %2969 = vmatprep.subr.mxu0 0.0
      %2970 = vmatpush1.msra.mxu0 0.0
      %2971 = vmatprep.subr.mxu0 0.0
      %2972 = vmatpush1.msra.mxu0 0.0
      %2973 = vmatprep.subr.mxu0 0.0
      %2974 = vmatpush1.msra.mxu0 0.0
      %2975 = vmatprep.subr.mxu0 0.0
      %2976 = vmatpush1.msra.mxu0 0.0
      %2977 = vmatprep.subr.mxu0 0.0
      %2978 = vmatpush1.msra.mxu0 0.0
      %2979 = vmatprep.subr.mxu0 0.0
      %2980 = vmatpush1.msra.mxu0 0.0
      %2981 = vmatprep.subr.mxu0 0.0
      %2982 = vmatpush1.msra.mxu0 0.0
      %2983 = vmatprep.subr.mxu0 0.0
      %2984 = vmatpush1.msra.mxu0 0.0
      %2985 = vmatprep.subr.mxu0 0.0
      %2986 = vmatpush1.msra.mxu0 0.0
      %2987 = vmatprep.subr.mxu0 0.0
      %2988 = vmatpush1.msra.mxu0 0.0
      %2989 = vmatprep.subr.mxu0 0.0
      %2990 = vmatpush1.msra.mxu0 0.0
      %2991 = vmatprep.subr.mxu0 0.0
      %2992 = vmatpush1.msra.mxu0 0.0
      %2993 = vmatprep.subr.mxu0 0.0
      %2994 = vmatpush1.msra.mxu0 0.0
      %2995 = vmatprep.subr.mxu0 0.0
      %2996 = vmatpush1.msra.mxu0 0.0
      %2997 = vmatprep.subr.mxu0 0.0
      %2998 = vmatpush1.msra.mxu0 0.0
      %2999 = vmatprep.subr.mxu0 0.0
      %3000 = vmatpush1.msra.mxu0 0.0
      %3001 = vmatprep.subr.mxu0 0.0
      %3002 = vmatpush1.msra.mxu0 0.0
      %3003 = vmatprep.subr.mxu0 0.0
      %3004 = vmatpush1.msra.mxu0 0.0
      %3005 = vmatprep.subr.mxu0 0.0
      %3006 = vmatpush1.msra.mxu0 0.0
      %3007 = vmatprep.subr.mxu0 0.0
      %3008 = vmatpush1.msra.mxu0 0.0
      %3009 = vmatprep.subr.mxu0 0.0
      %3010 = vmatpush1.msra.mxu0 0.0
      %3011 = vmatprep.subr.mxu0 0.0
      %3012 = vmatpush1.msra.mxu0 0.0
      %3013 = vmatprep.subr.mxu0 0.0
      %3014 = vmatpush1.msra.mxu0 0.0
      %3015 = vmatprep.subr.mxu0 0.0
      %3016 = vmatpush1.msra.mxu0 0.0
      %3017 = vmatprep.subr.mxu0 0.0
      %3018 = vmatpush1.msra.mxu0 0.0
      %3019 = vmatprep.subr.mxu0 0.0
      %3020 = vmatpush1.msra.mxu0 0.0
      %3021 = vmatprep.mubr.f32.mxu0 0.0
      %3022 = vmatmul.mubr.f32.gmra.mrb[0].mxu0 %v2884
      %v3023 = vpop.f32.mrb[0].mxu0
      %v3024 = vadd.f32 0.0, %v3023
      %v3025 = vpop.f32.mrb[0].mxu0
      %v3026 = vadd.f32 0.0, %v3025
      %3027 = vdwg.mxu0
      %3028 = vmatprep.subr.mxu0 %v2874
      %3029 = vmatpush1.msra.mxu0 %v2875
      %3030 = vmatprep.subr.mxu0 0.0
      %3031 = vmatpush1.msra.mxu0 0.0
      %3032 = vmatprep.subr.mxu0 0.0
      %3033 = vmatpush1.msra.mxu0 0.0
      %3034 = vmatprep.subr.mxu0 0.0
      %3035 = vmatpush1.msra.mxu0 0.0
      %3036 = vmatprep.subr.mxu0 0.0
      %3037 = vmatpush1.msra.mxu0 0.0
      %3038 = vmatprep.subr.mxu0 0.0
      %3039 = vmatpush1.msra.mxu0 0.0
      %3040 = vmatprep.subr.mxu0 0.0
      %3041 = vmatpush1.msra.mxu0 0.0
      %3042 = vmatprep.subr.mxu0 0.0
      %3043 = vmatpush1.msra.mxu0 0.0
      %3044 = vmatprep.subr.mxu0 0.0
      %3045 = vmatpush1.msra.mxu0 0.0
      %3046 = vmatprep.subr.mxu0 0.0
      %3047 = vmatpush1.msra.mxu0 0.0
      %3048 = vmatprep.subr.mxu0 0.0
      %3049 = vmatpush1.msra.mxu0 0.0
      %3050 = vmatprep.subr.mxu0 0.0
      %3051 = vmatpush1.msra.mxu0 0.0
      %3052 = vmatprep.subr.mxu0 0.0
      %3053 = vmatpush1.msra.mxu0 0.0
      %3054 = vmatprep.subr.mxu0 0.0
      %3055 = vmatpush1.msra.mxu0 0.0
      %3056 = vmatprep.subr.mxu0 0.0
      %3057 = vmatpush1.msra.mxu0 0.0
      %3058 = vmatprep.subr.mxu0 0.0
      %3059 = vmatpush1.msra.mxu0 0.0
      %3060 = vmatprep.subr.mxu0 0.0
      %3061 = vmatpush1.msra.mxu0 0.0
      %3062 = vmatprep.subr.mxu0 0.0
      %3063 = vmatpush1.msra.mxu0 0.0
      %3064 = vmatprep.subr.mxu0 0.0
      %3065 = vmatpush1.msra.mxu0 0.0
      %3066 = vmatprep.subr.mxu0 0.0
      %3067 = vmatpush1.msra.mxu0 0.0
      %3068 = vmatprep.subr.mxu0 0.0
      %3069 = vmatpush1.msra.mxu0 0.0
      %3070 = vmatprep.subr.mxu0 0.0
      %3071 = vmatpush1.msra.mxu0 0.0
      %3072 = vmatprep.subr.mxu0 0.0
      %3073 = vmatpush1.msra.mxu0 0.0
      %3074 = vmatprep.subr.mxu0 0.0
      %3075 = vmatpush1.msra.mxu0 0.0
      %3076 = vmatprep.subr.mxu0 0.0
      %3077 = vmatpush1.msra.mxu0 0.0
      %3078 = vmatprep.subr.mxu0 0.0
      %3079 = vmatpush1.msra.mxu0 0.0
      %3080 = vmatprep.subr.mxu0 0.0
      %3081 = vmatpush1.msra.mxu0 0.0
      %3082 = vmatprep.subr.mxu0 0.0
      %3083 = vmatpush1.msra.mxu0 0.0
      %3084 = vmatprep.subr.mxu0 0.0
      %3085 = vmatpush1.msra.mxu0 0.0
      %3086 = vmatprep.subr.mxu0 0.0
      %3087 = vmatpush1.msra.mxu0 0.0
      %3088 = vmatprep.subr.mxu0 0.0
      %3089 = vmatpush1.msra.mxu0 0.0
      %3090 = vmatprep.subr.mxu0 0.0
      %3091 = vmatpush1.msra.mxu0 0.0
      %3092 = vmatprep.mubr.f32.mxu0 0.0
      %3093 = vmatmul.mubr.f32.gmra.mrb[0].mxu0 %v2884
      %v3094 = vpop.f32.mrb[0].mxu0
      %v3095 = vadd.f32 0.0, %v3094
      %v3096 = vpop.f32.mrb[0].mxu0
      %v3097 = vadd.f32 0.0, %v3096
      %3098 = vdwg.mxu0
      %3099 = vmatprep.subr.mxu0 %v2872
      %3100 = vmatpush1.msra.mxu0 %v2873
      %3101 = vmatprep.subr.mxu0 0.0
      %3102 = vmatpush1.msra.mxu0 0.0
      %3103 = vmatprep.subr.mxu0 0.0
      %3104 = vmatpush1.msra.mxu0 0.0
      %3105 = vmatprep.subr.mxu0 0.0
      %3106 = vmatpush1.msra.mxu0 0.0
      %3107 = vmatprep.subr.mxu0 0.0
      %3108 = vmatpush1.msra.mxu0 0.0
      %3109 = vmatprep.subr.mxu0 0.0
      %3110 = vmatpush1.msra.mxu0 0.0
      %3111 = vmatprep.subr.mxu0 0.0
      %3112 = vmatpush1.msra.mxu0 0.0
      %3113 = vmatprep.subr.mxu0 0.0
      %3114 = vmatpush1.msra.mxu0 0.0
      %3115 = vmatprep.subr.mxu0 0.0
      %3116 = vmatpush1.msra.mxu0 0.0
      %3117 = vmatprep.subr.mxu0 0.0
      %3118 = vmatpush1.msra.mxu0 0.0
      %3119 = vmatprep.subr.mxu0 0.0
      %3120 = vmatpush1.msra.mxu0 0.0
      %3121 = vmatprep.subr.mxu0 0.0
      %3122 = vmatpush1.msra.mxu0 0.0
      %3123 = vmatprep.subr.mxu0 0.0
      %3124 = vmatpush1.msra.mxu0 0.0
      %3125 = vmatprep.subr.mxu0 0.0
      %3126 = vmatpush1.msra.mxu0 0.0
      %3127 = vmatprep.subr.mxu0 0.0
      %3128 = vmatpush1.msra.mxu0 0.0
      %3129 = vmatprep.subr.mxu0 0.0
      %3130 = vmatpush1.msra.mxu0 0.0
      %3131 = vmatprep.subr.mxu0 0.0
      %3132 = vmatpush1.msra.mxu0 0.0
      %3133 = vmatprep.subr.mxu0 0.0
      %3134 = vmatpush1.msra.mxu0 0.0
      %3135 = vmatprep.subr.mxu0 0.0
      %3136 = vmatpush1.msra.mxu0 0.0
      %3137 = vmatprep.subr.mxu0 0.0
      %3138 = vmatpush1.msra.mxu0 0.0
      %3139 = vmatprep.subr.mxu0 0.0
      %3140 = vmatpush1.msra.mxu0 0.0
      %3141 = vmatprep.subr.mxu0 0.0
      %3142 = vmatpush1.msra.mxu0 0.0
      %3143 = vmatprep.subr.mxu0 0.0
      %3144 = vmatpush1.msra.mxu0 0.0
      %3145 = vmatprep.subr.mxu0 0.0
      %3146 = vmatpush1.msra.mxu0 0.0
      %3147 = vmatprep.subr.mxu0 0.0
      %3148 = vmatpush1.msra.mxu0 0.0
      %3149 = vmatprep.subr.mxu0 0.0
      %3150 = vmatpush1.msra.mxu0 0.0
      %3151 = vmatprep.subr.mxu0 0.0
      %3152 = vmatpush1.msra.mxu0 0.0
      %3153 = vmatprep.subr.mxu0 0.0
      %3154 = vmatpush1.msra.mxu0 0.0
      %3155 = vmatprep.subr.mxu0 0.0
      %3156 = vmatpush1.msra.mxu0 0.0
      %3157 = vmatprep.subr.mxu0 0.0
      %3158 = vmatpush1.msra.mxu0 0.0
      %3159 = vmatprep.subr.mxu0 0.0
      %3160 = vmatpush1.msra.mxu0 0.0
      %3161 = vmatprep.subr.mxu0 0.0
      %3162 = vmatpush1.msra.mxu0 0.0
      %3163 = vmatprep.mubr.f32.mxu0 0.0
      %3164 = vmatmul.mubr.f32.gmra.mrb[0].mxu0 %v2884
      %v3165 = vpop.f32.mrb[0].mxu0
      %v3166 = vadd.f32 0.0, %v3165
      %v3167 = vpop.f32.mrb[0].mxu0
      %v3168 = vadd.f32 0.0, %v3167
      %3169 = vdwg.mxu0
      %3170 = vmatprep.subr.mxu0 %v2880
      %3171 = vmatpush1.msra.mxu0 %v2871
      %3172 = vmatprep.subr.mxu0 0.0
      %3173 = vmatpush1.msra.mxu0 0.0
      %3174 = vmatprep.subr.mxu0 0.0
      %3175 = vmatpush1.msra.mxu0 0.0
      %3176 = vmatprep.subr.mxu0 0.0
      %3177 = vmatpush1.msra.mxu0 0.0
      %3178 = vmatprep.subr.mxu0 0.0
      %3179 = vmatpush1.msra.mxu0 0.0
      %3180 = vmatprep.subr.mxu0 0.0
      %3181 = vmatpush1.msra.mxu0 0.0
      %3182 = vmatprep.subr.mxu0 0.0
      %3183 = vmatpush1.msra.mxu0 0.0
      %3184 = vmatprep.subr.mxu0 0.0
      %3185 = vmatpush1.msra.mxu0 0.0
      %3186 = vmatprep.subr.mxu0 0.0
      %3187 = vmatpush1.msra.mxu0 0.0
      %3188 = vmatprep.subr.mxu0 0.0
      %3189 = vmatpush1.msra.mxu0 0.0
      %3190 = vmatprep.subr.mxu0 0.0
      %3191 = vmatpush1.msra.mxu0 0.0
      %3192 = vmatprep.subr.mxu0 0.0
      %3193 = vmatpush1.msra.mxu0 0.0
      %3194 = vmatprep.subr.mxu0 0.0
      %3195 = vmatpush1.msra.mxu0 0.0
      %3196 = vmatprep.subr.mxu0 0.0
      %3197 = vmatpush1.msra.mxu0 0.0
      %3198 = vmatprep.subr.mxu0 0.0
      %3199 = vmatpush1.msra.mxu0 0.0
      %3200 = vmatprep.subr.mxu0 0.0
      %3201 = vmatpush1.msra.mxu0 0.0
      %3202 = vmatprep.subr.mxu0 0.0
      %3203 = vmatpush1.msra.mxu0 0.0
      %3204 = vmatprep.subr.mxu0 0.0
      %3205 = vmatpush1.msra.mxu0 0.0
      %3206 = vmatprep.subr.mxu0 0.0
      %3207 = vmatpush1.msra.mxu0 0.0
      %3208 = vmatprep.subr.mxu0 0.0
      %3209 = vmatpush1.msra.mxu0 0.0
      %3210 = vmatprep.subr.mxu0 0.0
      %3211 = vmatpush1.msra.mxu0 0.0
      %3212 = vmatprep.subr.mxu0 0.0
      %3213 = vmatpush1.msra.mxu0 0.0
      %3214 = vmatprep.subr.mxu0 0.0
      %3215 = vmatpush1.msra.mxu0 0.0
      %3216 = vmatprep.subr.mxu0 0.0
      %3217 = vmatpush1.msra.mxu0 0.0
      %3218 = vmatprep.subr.mxu0 0.0
      %3219 = vmatpush1.msra.mxu0 0.0
      %3220 = vmatprep.subr.mxu0 0.0
      %3221 = vmatpush1.msra.mxu0 0.0
      %3222 = vmatprep.subr.mxu0 0.0
      %3223 = vmatpush1.msra.mxu0 0.0
      %3224 = vmatprep.subr.mxu0 0.0
      %3225 = vmatpush1.msra.mxu0 0.0
      %3226 = vmatprep.subr.mxu0 0.0
      %3227 = vmatpush1.msra.mxu0 0.0
      %3228 = vmatprep.subr.mxu0 0.0
      %3229 = vmatpush1.msra.mxu0 0.0
      %3230 = vmatprep.subr.mxu0 0.0
      %3231 = vmatpush1.msra.mxu0 0.0
      %3232 = vmatprep.subr.mxu0 0.0
      %3233 = vmatpush1.msra.mxu0 0.0
      %3234 = vmatprep.mubr.f32.mxu0 0.0
      %3235 = vmatmul.mubr.f32.gmra.mrb[0].mxu0 %v2884
      %v3236 = vpop.f32.mrb[0].mxu0
      %v3237 = vadd.f32 0.0, %v3236
      %v3238 = vpop.f32.mrb[0].mxu0
      %v3239 = vadd.f32 0.0, %v3238
      %3240 = vdwg.mxu0
      %v3241 = vadd.f32 %v2840, %v2953
      %v3242 = vadd.f32 %v2841, %v2955
      %v3243 = vadd.f32 %v2842, %v3024
      %v3244 = vadd.f32 %v2843, %v3026
      %v3245 = vadd.f32 %v2844, %v3095
      %v3246 = vadd.f32 %v2845, %v3097
      %v3247 = vadd.f32 %v2846, %v3166
      %v3248 = vadd.f32 %v2847, %v3168
      %v3249 = vadd.f32 %v2848, %v3237
      %v3250 = vadd.f32 %v2849, %v3239
      %3251 = vrot.lane.b32.xlu0 %v483, 94
      %v3252 = vpop.permute.xlu0 %3251
      %3253 = vrot.lane.b32.xlu0 %v484, 94
      %v3254 = vpop.permute.xlu0 %3253
      %3255 = vrot.lane.b32.xlu0 %v485, 94
      %v3256 = vpop.permute.xlu0 %3255
      %3257 = vrot.lane.b32.xlu0 %v486, 94
      %v3258 = vpop.permute.xlu0 %3257
      %3259 = vrot.lane.b32.xlu0 %v487, 94
      %v3260 = vpop.permute.xlu0 %3259
      %3261 = vrot.lane.b32.xlu0 %v488, 94
      %v3262 = vpop.permute.xlu0 %3261
      %3263 = vrot.lane.b32.xlu0 %v489, 94
      %v3264 = vpop.permute.xlu0 %3263
      %3265 = vrot.lane.b32.xlu0 %v490, 94
      %v3266 = vpop.permute.xlu0 %3265
      %3267 = vrot.lane.b32.xlu0 %v491, 94
      %v3268 = vpop.permute.xlu0 %3267
      %3269 = vrot.lane.b32.xlu0 %v492, 94
      %v3270 = vpop.permute.xlu0 %3269
      %vm3271 = vcmp.lt.s32.totalorder %v514, 94
      %v3272 = vsel %vm3271, %v3268, %v3270
      %v3273 = vsel %vm3271, %v3266, %v3268
      %v3274 = vsel %vm3271, %v3264, %v3266
      %v3275 = vsel %vm3271, %v3262, %v3264
      %v3276 = vsel %vm3271, %v3260, %v3262
      %v3277 = vsel %vm3271, %v3258, %v3260
      %v3278 = vsel %vm3271, %v3256, %v3258
      %v3279 = vsel %vm3271, %v3254, %v3256
      %v3280 = vsel %vm3271, %v3252, %v3254
      %v3281 = vsel %vm3271, %v3270, %v3252
      %s3282 = scalar_lea.vmem %s1, 56
      %v3283 = vld [vmem:[%s3282] sm:$0xff]
      %v3285 = vsel %vm560, %v3283, 0
      %3287 = vmatprep.subr.mxu0 %v3279
      %3288 = vmatpush1.msra.mxu0 %v3280
      %3289 = vmatprep.subr.mxu0 0.0
      %3290 = vmatpush1.msra.mxu0 0.0
      %3291 = vmatprep.subr.mxu0 0.0
      %3292 = vmatpush1.msra.mxu0 0.0
      %3293 = vmatprep.subr.mxu0 0.0
      %3294 = vmatpush1.msra.mxu0 0.0
      %3295 = vmatprep.subr.mxu0 0.0
      %3296 = vmatpush1.msra.mxu0 0.0
      %3297 = vmatprep.subr.mxu0 0.0
      %3298 = vmatpush1.msra.mxu0 0.0
      %3299 = vmatprep.subr.mxu0 0.0
      %3300 = vmatpush1.msra.mxu0 0.0
      %3301 = vmatprep.subr.mxu0 0.0
      %3302 = vmatpush1.msra.mxu0 0.0
      %3303 = vmatprep.subr.mxu0 0.0
      %3304 = vmatpush1.msra.mxu0 0.0
      %3305 = vmatprep.subr.mxu0 0.0
      %3306 = vmatpush1.msra.mxu0 0.0
      %3307 = vmatprep.subr.mxu0 0.0
      %3308 = vmatpush1.msra.mxu0 0.0
      %3309 = vmatprep.subr.mxu0 0.0
      %3310 = vmatpush1.msra.mxu0 0.0
      %3311 = vmatprep.subr.mxu0 0.0
      %3312 = vmatpush1.msra.mxu0 0.0
      %3313 = vmatprep.subr.mxu0 0.0
      %3314 = vmatpush1.msra.mxu0 0.0
      %3315 = vmatprep.subr.mxu0 0.0
      %3316 = vmatpush1.msra.mxu0 0.0
      %3317 = vmatprep.subr.mxu0 0.0
      %3318 = vmatpush1.msra.mxu0 0.0
      %3319 = vmatprep.subr.mxu0 0.0
      %3320 = vmatpush1.msra.mxu0 0.0
      %3321 = vmatprep.subr.mxu0 0.0
      %3322 = vmatpush1.msra.mxu0 0.0
      %3323 = vmatprep.subr.mxu0 0.0
      %3324 = vmatpush1.msra.mxu0 0.0
      %3325 = vmatprep.subr.mxu0 0.0
      %3326 = vmatpush1.msra.mxu0 0.0
      %3327 = vmatprep.subr.mxu0 0.0
      %3328 = vmatpush1.msra.mxu0 0.0
      %3329 = vmatprep.subr.mxu0 0.0
      %3330 = vmatpush1.msra.mxu0 0.0
      %3331 = vmatprep.subr.mxu0 0.0
      %3332 = vmatpush1.msra.mxu0 0.0
      %3333 = vmatprep.subr.mxu0 0.0
      %3334 = vmatpush1.msra.mxu0 0.0
      %3335 = vmatprep.subr.mxu0 0.0
      %3336 = vmatpush1.msra.mxu0 0.0
      %3337 = vmatprep.subr.mxu0 0.0
      %3338 = vmatpush1.msra.mxu0 0.0
      %3339 = vmatprep.subr.mxu0 0.0
      %3340 = vmatpush1.msra.mxu0 0.0
      %3341 = vmatprep.subr.mxu0 0.0
      %3342 = vmatpush1.msra.mxu0 0.0
      %3343 = vmatprep.subr.mxu0 0.0
      %3344 = vmatpush1.msra.mxu0 0.0
      %3345 = vmatprep.subr.mxu0 0.0
      %3346 = vmatpush1.msra.mxu0 0.0
      %3347 = vmatprep.subr.mxu0 0.0
      %3348 = vmatpush1.msra.mxu0 0.0
      %3349 = vmatprep.subr.mxu0 0.0
      %3350 = vmatpush1.msra.mxu0 0.0
      %3351 = vmatprep.mubr.f32.mxu0 0.0
      %3352 = vmatmul.mubr.f32.gmra.mrb[0].mxu0 %v3285
      %v3353 = vpop.f32.mrb[0].mxu0
      %v3354 = vadd.f32 0.0, %v3353
      %v3355 = vpop.f32.mrb[0].mxu0
      %v3356 = vadd.f32 0.0, %v3355
      %3357 = vdwg.mxu0
      %3358 = vmatprep.subr.mxu0 %v3277
      %3359 = vmatpush1.msra.mxu0 %v3278
      %3360 = vmatprep.subr.mxu0 0.0
      %3361 = vmatpush1.msra.mxu0 0.0
      %3362 = vmatprep.subr.mxu0 0.0
      %3363 = vmatpush1.msra.mxu0 0.0
      %3364 = vmatprep.subr.mxu0 0.0
      %3365 = vmatpush1.msra.mxu0 0.0
      %3366 = vmatprep.subr.mxu0 0.0
      %3367 = vmatpush1.msra.mxu0 0.0
      %3368 = vmatprep.subr.mxu0 0.0
      %3369 = vmatpush1.msra.mxu0 0.0
      %3370 = vmatprep.subr.mxu0 0.0
      %3371 = vmatpush1.msra.mxu0 0.0
      %3372 = vmatprep.subr.mxu0 0.0
      %3373 = vmatpush1.msra.mxu0 0.0
      %3374 = vmatprep.subr.mxu0 0.0
      %3375 = vmatpush1.msra.mxu0 0.0
      %3376 = vmatprep.subr.mxu0 0.0
      %3377 = vmatpush1.msra.mxu0 0.0
      %3378 = vmatprep.subr.mxu0 0.0
      %3379 = vmatpush1.msra.mxu0 0.0
      %3380 = vmatprep.subr.mxu0 0.0
      %3381 = vmatpush1.msra.mxu0 0.0
      %3382 = vmatprep.subr.mxu0 0.0
      %3383 = vmatpush1.msra.mxu0 0.0
      %3384 = vmatprep.subr.mxu0 0.0
      %3385 = vmatpush1.msra.mxu0 0.0
      %3386 = vmatprep.subr.mxu0 0.0
      %3387 = vmatpush1.msra.mxu0 0.0
      %3388 = vmatprep.subr.mxu0 0.0
      %3389 = vmatpush1.msra.mxu0 0.0
      %3390 = vmatprep.subr.mxu0 0.0
      %3391 = vmatpush1.msra.mxu0 0.0
      %3392 = vmatprep.subr.mxu0 0.0
      %3393 = vmatpush1.msra.mxu0 0.0
      %3394 = vmatprep.subr.mxu0 0.0
      %3395 = vmatpush1.msra.mxu0 0.0
      %3396 = vmatprep.subr.mxu0 0.0
      %3397 = vmatpush1.msra.mxu0 0.0
      %3398 = vmatprep.subr.mxu0 0.0
      %3399 = vmatpush1.msra.mxu0 0.0
      %3400 = vmatprep.subr.mxu0 0.0
      %3401 = vmatpush1.msra.mxu0 0.0
      %3402 = vmatprep.subr.mxu0 0.0
      %3403 = vmatpush1.msra.mxu0 0.0
      %3404 = vmatprep.subr.mxu0 0.0
      %3405 = vmatpush1.msra.mxu0 0.0
      %3406 = vmatprep.subr.mxu0 0.0
      %3407 = vmatpush1.msra.mxu0 0.0
      %3408 = vmatprep.subr.mxu0 0.0
      %3409 = vmatpush1.msra.mxu0 0.0
      %3410 = vmatprep.subr.mxu0 0.0
      %3411 = vmatpush1.msra.mxu0 0.0
      %3412 = vmatprep.subr.mxu0 0.0
      %3413 = vmatpush1.msra.mxu0 0.0
      %3414 = vmatprep.subr.mxu0 0.0
      %3415 = vmatpush1.msra.mxu0 0.0
      %3416 = vmatprep.subr.mxu0 0.0
      %3417 = vmatpush1.msra.mxu0 0.0
      %3418 = vmatprep.subr.mxu0 0.0
      %3419 = vmatpush1.msra.mxu0 0.0
      %3420 = vmatprep.subr.mxu0 0.0
      %3421 = vmatpush1.msra.mxu0 0.0
      %3422 = vmatprep.mubr.f32.mxu0 0.0
      %3423 = vmatmul.mubr.f32.gmra.mrb[0].mxu0 %v3285
      %v3424 = vpop.f32.mrb[0].mxu0
      %v3425 = vadd.f32 0.0, %v3424
      %v3426 = vpop.f32.mrb[0].mxu0
      %v3427 = vadd.f32 0.0, %v3426
      %3428 = vdwg.mxu0
      %3429 = vmatprep.subr.mxu0 %v3275
      %3430 = vmatpush1.msra.mxu0 %v3276
      %3431 = vmatprep.subr.mxu0 0.0
      %3432 = vmatpush1.msra.mxu0 0.0
      %3433 = vmatprep.subr.mxu0 0.0
      %3434 = vmatpush1.msra.mxu0 0.0
      %3435 = vmatprep.subr.mxu0 0.0
      %3436 = vmatpush1.msra.mxu0 0.0
      %3437 = vmatprep.subr.mxu0 0.0
      %3438 = vmatpush1.msra.mxu0 0.0
      %3439 = vmatprep.subr.mxu0 0.0
      %3440 = vmatpush1.msra.mxu0 0.0
      %3441 = vmatprep.subr.mxu0 0.0
      %3442 = vmatpush1.msra.mxu0 0.0
      %3443 = vmatprep.subr.mxu0 0.0
      %3444 = vmatpush1.msra.mxu0 0.0
      %3445 = vmatprep.subr.mxu0 0.0
      %3446 = vmatpush1.msra.mxu0 0.0
      %3447 = vmatprep.subr.mxu0 0.0
      %3448 = vmatpush1.msra.mxu0 0.0
      %3449 = vmatprep.subr.mxu0 0.0
      %3450 = vmatpush1.msra.mxu0 0.0
      %3451 = vmatprep.subr.mxu0 0.0
      %3452 = vmatpush1.msra.mxu0 0.0
      %3453 = vmatprep.subr.mxu0 0.0
      %3454 = vmatpush1.msra.mxu0 0.0
      %3455 = vmatprep.subr.mxu0 0.0
      %3456 = vmatpush1.msra.mxu0 0.0
      %3457 = vmatprep.subr.mxu0 0.0
      %3458 = vmatpush1.msra.mxu0 0.0
      %3459 = vmatprep.subr.mxu0 0.0
      %3460 = vmatpush1.msra.mxu0 0.0
      %3461 = vmatprep.subr.mxu0 0.0
      %3462 = vmatpush1.msra.mxu0 0.0
      %3463 = vmatprep.subr.mxu0 0.0
      %3464 = vmatpush1.msra.mxu0 0.0
      %3465 = vmatprep.subr.mxu0 0.0
      %3466 = vmatpush1.msra.mxu0 0.0
      %3467 = vmatprep.subr.mxu0 0.0
      %3468 = vmatpush1.msra.mxu0 0.0
      %3469 = vmatprep.subr.mxu0 0.0
      %3470 = vmatpush1.msra.mxu0 0.0
      %3471 = vmatprep.subr.mxu0 0.0
      %3472 = vmatpush1.msra.mxu0 0.0
      %3473 = vmatprep.subr.mxu0 0.0
      %3474 = vmatpush1.msra.mxu0 0.0
      %3475 = vmatprep.subr.mxu0 0.0
      %3476 = vmatpush1.msra.mxu0 0.0
      %3477 = vmatprep.subr.mxu0 0.0
      %3478 = vmatpush1.msra.mxu0 0.0
      %3479 = vmatprep.subr.mxu0 0.0
      %3480 = vmatpush1.msra.mxu0 0.0
      %3481 = vmatprep.subr.mxu0 0.0
      %3482 = vmatpush1.msra.mxu0 0.0
      %3483 = vmatprep.subr.mxu0 0.0
      %3484 = vmatpush1.msra.mxu0 0.0
      %3485 = vmatprep.subr.mxu0 0.0
      %3486 = vmatpush1.msra.mxu0 0.0
      %3487 = vmatprep.subr.mxu0 0.0
      %3488 = vmatpush1.msra.mxu0 0.0
      %3489 = vmatprep.subr.mxu0 0.0
      %3490 = vmatpush1.msra.mxu0 0.0
      %3491 = vmatprep.subr.mxu0 0.0
      %3492 = vmatpush1.msra.mxu0 0.0
      %3493 = vmatprep.mubr.f32.mxu0 0.0
      %3494 = vmatmul.mubr.f32.gmra.mrb[0].mxu0 %v3285
      %v3495 = vpop.f32.mrb[0].mxu0
      %v3496 = vadd.f32 0.0, %v3495
      %v3497 = vpop.f32.mrb[0].mxu0
      %v3498 = vadd.f32 0.0, %v3497
      %3499 = vdwg.mxu0
      %3500 = vmatprep.subr.mxu0 %v3273
      %3501 = vmatpush1.msra.mxu0 %v3274
      %3502 = vmatprep.subr.mxu0 0.0
      %3503 = vmatpush1.msra.mxu0 0.0
      %3504 = vmatprep.subr.mxu0 0.0
      %3505 = vmatpush1.msra.mxu0 0.0
      %3506 = vmatprep.subr.mxu0 0.0
      %3507 = vmatpush1.msra.mxu0 0.0
      %3508 = vmatprep.subr.mxu0 0.0
      %3509 = vmatpush1.msra.mxu0 0.0
      %3510 = vmatprep.subr.mxu0 0.0
      %3511 = vmatpush1.msra.mxu0 0.0
      %3512 = vmatprep.subr.mxu0 0.0
      %3513 = vmatpush1.msra.mxu0 0.0
      %3514 = vmatprep.subr.mxu0 0.0
      %3515 = vmatpush1.msra.mxu0 0.0
      %3516 = vmatprep.subr.mxu0 0.0
      %3517 = vmatpush1.msra.mxu0 0.0
      %3518 = vmatprep.subr.mxu0 0.0
      %3519 = vmatpush1.msra.mxu0 0.0
      %3520 = vmatprep.subr.mxu0 0.0
      %3521 = vmatpush1.msra.mxu0 0.0
      %3522 = vmatprep.subr.mxu0 0.0
      %3523 = vmatpush1.msra.mxu0 0.0
      %3524 = vmatprep.subr.mxu0 0.0
      %3525 = vmatpush1.msra.mxu0 0.0
      %3526 = vmatprep.subr.mxu0 0.0
      %3527 = vmatpush1.msra.mxu0 0.0
      %3528 = vmatprep.subr.mxu0 0.0
      %3529 = vmatpush1.msra.mxu0 0.0
      %3530 = vmatprep.subr.mxu0 0.0
      %3531 = vmatpush1.msra.mxu0 0.0
      %3532 = vmatprep.subr.mxu0 0.0
      %3533 = vmatpush1.msra.mxu0 0.0
      %3534 = vmatprep.subr.mxu0 0.0
      %3535 = vmatpush1.msra.mxu0 0.0
      %3536 = vmatprep.subr.mxu0 0.0
      %3537 = vmatpush1.msra.mxu0 0.0
      %3538 = vmatprep.subr.mxu0 0.0
      %3539 = vmatpush1.msra.mxu0 0.0
      %3540 = vmatprep.subr.mxu0 0.0
      %3541 = vmatpush1.msra.mxu0 0.0
      %3542 = vmatprep.subr.mxu0 0.0
      %3543 = vmatpush1.msra.mxu0 0.0
      %3544 = vmatprep.subr.mxu0 0.0
      %3545 = vmatpush1.msra.mxu0 0.0
      %3546 = vmatprep.subr.mxu0 0.0
      %3547 = vmatpush1.msra.mxu0 0.0
      %3548 = vmatprep.subr.mxu0 0.0
      %3549 = vmatpush1.msra.mxu0 0.0
      %3550 = vmatprep.subr.mxu0 0.0
      %3551 = vmatpush1.msra.mxu0 0.0
      %3552 = vmatprep.subr.mxu0 0.0
      %3553 = vmatpush1.msra.mxu0 0.0
      %3554 = vmatprep.subr.mxu0 0.0
      %3555 = vmatpush1.msra.mxu0 0.0
      %3556 = vmatprep.subr.mxu0 0.0
      %3557 = vmatpush1.msra.mxu0 0.0
      %3558 = vmatprep.subr.mxu0 0.0
      %3559 = vmatpush1.msra.mxu0 0.0
      %3560 = vmatprep.subr.mxu0 0.0
      %3561 = vmatpush1.msra.mxu0 0.0
      %3562 = vmatprep.subr.mxu0 0.0
      %3563 = vmatpush1.msra.mxu0 0.0
      %3564 = vmatprep.mubr.f32.mxu0 0.0
      %3565 = vmatmul.mubr.f32.gmra.mrb[0].mxu0 %v3285
      %v3566 = vpop.f32.mrb[0].mxu0
      %v3567 = vadd.f32 0.0, %v3566
      %v3568 = vpop.f32.mrb[0].mxu0
      %v3569 = vadd.f32 0.0, %v3568
      %3570 = vdwg.mxu0
      %3571 = vmatprep.subr.mxu0 %v3281
      %3572 = vmatpush1.msra.mxu0 %v3272
      %3573 = vmatprep.subr.mxu0 0.0
      %3574 = vmatpush1.msra.mxu0 0.0
      %3575 = vmatprep.subr.mxu0 0.0
      %3576 = vmatpush1.msra.mxu0 0.0
      %3577 = vmatprep.subr.mxu0 0.0
      %3578 = vmatpush1.msra.mxu0 0.0
      %3579 = vmatprep.subr.mxu0 0.0
      %3580 = vmatpush1.msra.mxu0 0.0
      %3581 = vmatprep.subr.mxu0 0.0
      %3582 = vmatpush1.msra.mxu0 0.0
      %3583 = vmatprep.subr.mxu0 0.0
      %3584 = vmatpush1.msra.mxu0 0.0
      %3585 = vmatprep.subr.mxu0 0.0
      %3586 = vmatpush1.msra.mxu0 0.0
      %3587 = vmatprep.subr.mxu0 0.0
      %3588 = vmatpush1.msra.mxu0 0.0
      %3589 = vmatprep.subr.mxu0 0.0
      %3590 = vmatpush1.msra.mxu0 0.0
      %3591 = vmatprep.subr.mxu0 0.0
      %3592 = vmatpush1.msra.mxu0 0.0
      %3593 = vmatprep.subr.mxu0 0.0
      %3594 = vmatpush1.msra.mxu0 0.0
      %3595 = vmatprep.subr.mxu0 0.0
      %3596 = vmatpush1.msra.mxu0 0.0
      %3597 = vmatprep.subr.mxu0 0.0
      %3598 = vmatpush1.msra.mxu0 0.0
      %3599 = vmatprep.subr.mxu0 0.0
      %3600 = vmatpush1.msra.mxu0 0.0
      %3601 = vmatprep.subr.mxu0 0.0
      %3602 = vmatpush1.msra.mxu0 0.0
      %3603 = vmatprep.subr.mxu0 0.0
      %3604 = vmatpush1.msra.mxu0 0.0
      %3605 = vmatprep.subr.mxu0 0.0
      %3606 = vmatpush1.msra.mxu0 0.0
      %3607 = vmatprep.subr.mxu0 0.0
      %3608 = vmatpush1.msra.mxu0 0.0
      %3609 = vmatprep.subr.mxu0 0.0
      %3610 = vmatpush1.msra.mxu0 0.0
      %3611 = vmatprep.subr.mxu0 0.0
      %3612 = vmatpush1.msra.mxu0 0.0
      %3613 = vmatprep.subr.mxu0 0.0
      %3614 = vmatpush1.msra.mxu0 0.0
      %3615 = vmatprep.subr.mxu0 0.0
      %3616 = vmatpush1.msra.mxu0 0.0
      %3617 = vmatprep.subr.mxu0 0.0
      %3618 = vmatpush1.msra.mxu0 0.0
      %3619 = vmatprep.subr.mxu0 0.0
      %3620 = vmatpush1.msra.mxu0 0.0
      %3621 = vmatprep.subr.mxu0 0.0
      %3622 = vmatpush1.msra.mxu0 0.0
      %3623 = vmatprep.subr.mxu0 0.0
      %3624 = vmatpush1.msra.mxu0 0.0
      %3625 = vmatprep.subr.mxu0 0.0
      %3626 = vmatpush1.msra.mxu0 0.0
      %3627 = vmatprep.subr.mxu0 0.0
      %3628 = vmatpush1.msra.mxu0 0.0
      %3629 = vmatprep.subr.mxu0 0.0
      %3630 = vmatpush1.msra.mxu0 0.0
      %3631 = vmatprep.subr.mxu0 0.0
      %3632 = vmatpush1.msra.mxu0 0.0
      %3633 = vmatprep.subr.mxu0 0.0
      %3634 = vmatpush1.msra.mxu0 0.0
      %3635 = vmatprep.mubr.f32.mxu0 0.0
      %3636 = vmatmul.mubr.f32.gmra.mrb[0].mxu0 %v3285
      %v3637 = vpop.f32.mrb[0].mxu0
      %v3638 = vadd.f32 0.0, %v3637
      %v3639 = vpop.f32.mrb[0].mxu0
      %v3640 = vadd.f32 0.0, %v3639
      %3641 = vdwg.mxu0
      %v3642 = vadd.f32 %v3241, %v3354
      %v3643 = vadd.f32 %v3242, %v3356
      %v3644 = vadd.f32 %v3243, %v3425
      %v3645 = vadd.f32 %v3244, %v3427
      %v3646 = vadd.f32 %v3245, %v3496
      %v3647 = vadd.f32 %v3246, %v3498
      %v3648 = vadd.f32 %v3247, %v3567
      %v3649 = vadd.f32 %v3248, %v3569
      %v3650 = vadd.f32 %v3249, %v3638
      %v3651 = vadd.f32 %v3250, %v3640
      %3652 = vrot.lane.b32.xlu0 %v483, 93
      %v3653 = vpop.permute.xlu0 %3652
      %3654 = vrot.lane.b32.xlu0 %v484, 93
      %v3655 = vpop.permute.xlu0 %3654
      %3656 = vrot.lane.b32.xlu0 %v485, 93
      %v3657 = vpop.permute.xlu0 %3656
      %3658 = vrot.lane.b32.xlu0 %v486, 93
      %v3659 = vpop.permute.xlu0 %3658
      %3660 = vrot.lane.b32.xlu0 %v487, 93
      %v3661 = vpop.permute.xlu0 %3660
      %3662 = vrot.lane.b32.xlu0 %v488, 93
      %v3663 = vpop.permute.xlu0 %3662
      %3664 = vrot.lane.b32.xlu0 %v489, 93
      %v3665 = vpop.permute.xlu0 %3664
      %3666 = vrot.lane.b32.xlu0 %v490, 93
      %v3667 = vpop.permute.xlu0 %3666
      %3668 = vrot.lane.b32.xlu0 %v491, 93
      %v3669 = vpop.permute.xlu0 %3668
      %3670 = vrot.lane.b32.xlu0 %v492, 93
      %v3671 = vpop.permute.xlu0 %3670
      %vm3672 = vcmp.lt.s32.totalorder %v514, 93
      %v3673 = vsel %vm3672, %v3669, %v3671
      %v3674 = vsel %vm3672, %v3667, %v3669
      %v3675 = vsel %vm3672, %v3665, %v3667
      %v3676 = vsel %vm3672, %v3663, %v3665
      %v3677 = vsel %vm3672, %v3661, %v3663
      %v3678 = vsel %vm3672, %v3659, %v3661
      %v3679 = vsel %vm3672, %v3657, %v3659
      %v3680 = vsel %vm3672, %v3655, %v3657
      %v3681 = vsel %vm3672, %v3653, %v3655
      %v3682 = vsel %vm3672, %v3671, %v3653
      %s3683 = scalar_lea.vmem %s1, 64
      %v3684 = vld [vmem:[%s3683] sm:$0xff]
      %v3686 = vsel %vm560, %v3684, 0
      %3688 = vmatprep.subr.mxu0 %v3680
      %3689 = vmatpush1.msra.mxu0 %v3681
      %3690 = vmatprep.subr.mxu0 0.0
      %3691 = vmatpush1.msra.mxu0 0.0
      %3692 = vmatprep.subr.mxu0 0.0
      %3693 = vmatpush1.msra.mxu0 0.0
      %3694 = vmatprep.subr.mxu0 0.0
      %3695 = vmatpush1.msra.mxu0 0.0
      %3696 = vmatprep.subr.mxu0 0.0
      %3697 = vmatpush1.msra.mxu0 0.0
      %3698 = vmatprep.subr.mxu0 0.0
      %3699 = vmatpush1.msra.mxu0 0.0
      %3700 = vmatprep.subr.mxu0 0.0
      %3701 = vmatpush1.msra.mxu0 0.0
      %3702 = vmatprep.subr.mxu0 0.0
      %3703 = vmatpush1.msra.mxu0 0.0
      %3704 = vmatprep.subr.mxu0 0.0
      %3705 = vmatpush1.msra.mxu0 0.0
      %3706 = vmatprep.subr.mxu0 0.0
      %3707 = vmatpush1.msra.mxu0 0.0
      %3708 = vmatprep.subr.mxu0 0.0
      %3709 = vmatpush1.msra.mxu0 0.0
      %3710 = vmatprep.subr.mxu0 0.0
      %3711 = vmatpush1.msra.mxu0 0.0
      %3712 = vmatprep.subr.mxu0 0.0
      %3713 = vmatpush1.msra.mxu0 0.0
      %3714 = vmatprep.subr.mxu0 0.0
      %3715 = vmatpush1.msra.mxu0 0.0
      %3716 = vmatprep.subr.mxu0 0.0
      %3717 = vmatpush1.msra.mxu0 0.0
      %3718 = vmatprep.subr.mxu0 0.0
      %3719 = vmatpush1.msra.mxu0 0.0
      %3720 = vmatprep.subr.mxu0 0.0
      %3721 = vmatpush1.msra.mxu0 0.0
      %3722 = vmatprep.subr.mxu0 0.0
      %3723 = vmatpush1.msra.mxu0 0.0
      %3724 = vmatprep.subr.mxu0 0.0
      %3725 = vmatpush1.msra.mxu0 0.0
      %3726 = vmatprep.subr.mxu0 0.0
      %3727 = vmatpush1.msra.mxu0 0.0
      %3728 = vmatprep.subr.mxu0 0.0
      %3729 = vmatpush1.msra.mxu0 0.0
      %3730 = vmatprep.subr.mxu0 0.0
      %3731 = vmatpush1.msra.mxu0 0.0
      %3732 = vmatprep.subr.mxu0 0.0
      %3733 = vmatpush1.msra.mxu0 0.0
      %3734 = vmatprep.subr.mxu0 0.0
      %3735 = vmatpush1.msra.mxu0 0.0
      %3736 = vmatprep.subr.mxu0 0.0
      %3737 = vmatpush1.msra.mxu0 0.0
      %3738 = vmatprep.subr.mxu0 0.0
      %3739 = vmatpush1.msra.mxu0 0.0
      %3740 = vmatprep.subr.mxu0 0.0
      %3741 = vmatpush1.msra.mxu0 0.0
      %3742 = vmatprep.subr.mxu0 0.0
      %3743 = vmatpush1.msra.mxu0 0.0
      %3744 = vmatprep.subr.mxu0 0.0
      %3745 = vmatpush1.msra.mxu0 0.0
      %3746 = vmatprep.subr.mxu0 0.0
      %3747 = vmatpush1.msra.mxu0 0.0
      %3748 = vmatprep.subr.mxu0 0.0
      %3749 = vmatpush1.msra.mxu0 0.0
      %3750 = vmatprep.subr.mxu0 0.0
      %3751 = vmatpush1.msra.mxu0 0.0
      %3752 = vmatprep.mubr.f32.mxu0 0.0
      %3753 = vmatmul.mubr.f32.gmra.mrb[0].mxu0 %v3686
      %v3754 = vpop.f32.mrb[0].mxu0
      %v3755 = vadd.f32 0.0, %v3754
      %v3756 = vpop.f32.mrb[0].mxu0
      %v3757 = vadd.f32 0.0, %v3756
      %3758 = vdwg.mxu0
      %3759 = vmatprep.subr.mxu0 %v3678
      %3760 = vmatpush1.msra.mxu0 %v3679
      %3761 = vmatprep.subr.mxu0 0.0
      %3762 = vmatpush1.msra.mxu0 0.0
      %3763 = vmatprep.subr.mxu0 0.0
      %3764 = vmatpush1.msra.mxu0 0.0
      %3765 = vmatprep.subr.mxu0 0.0
      %3766 = vmatpush1.msra.mxu0 0.0
      %3767 = vmatprep.subr.mxu0 0.0
      %3768 = vmatpush1.msra.mxu0 0.0
      %3769 = vmatprep.subr.mxu0 0.0
      %3770 = vmatpush1.msra.mxu0 0.0
      %3771 = vmatprep.subr.mxu0 0.0
      %3772 = vmatpush1.msra.mxu0 0.0
      %3773 = vmatprep.subr.mxu0 0.0
      %3774 = vmatpush1.msra.mxu0 0.0
      %3775 = vmatprep.subr.mxu0 0.0
      %3776 = vmatpush1.msra.mxu0 0.0
      %3777 = vmatprep.subr.mxu0 0.0
      %3778 = vmatpush1.msra.mxu0 0.0
      %3779 = vmatprep.subr.mxu0 0.0
      %3780 = vmatpush1.msra.mxu0 0.0
      %3781 = vmatprep.subr.mxu0 0.0
      %3782 = vmatpush1.msra.mxu0 0.0
      %3783 = vmatprep.subr.mxu0 0.0
      %3784 = vmatpush1.msra.mxu0 0.0
      %3785 = vmatprep.subr.mxu0 0.0
      %3786 = vmatpush1.msra.mxu0 0.0
      %3787 = vmatprep.subr.mxu0 0.0
      %3788 = vmatpush1.msra.mxu0 0.0
      %3789 = vmatprep.subr.mxu0 0.0
      %3790 = vmatpush1.msra.mxu0 0.0
      %3791 = vmatprep.subr.mxu0 0.0
      %3792 = vmatpush1.msra.mxu0 0.0
      %3793 = vmatprep.subr.mxu0 0.0
      %3794 = vmatpush1.msra.mxu0 0.0
      %3795 = vmatprep.subr.mxu0 0.0
      %3796 = vmatpush1.msra.mxu0 0.0
      %3797 = vmatprep.subr.mxu0 0.0
      %3798 = vmatpush1.msra.mxu0 0.0
      %3799 = vmatprep.subr.mxu0 0.0
      %3800 = vmatpush1.msra.mxu0 0.0
      %3801 = vmatprep.subr.mxu0 0.0
      %3802 = vmatpush1.msra.mxu0 0.0
      %3803 = vmatprep.subr.mxu0 0.0
      %3804 = vmatpush1.msra.mxu0 0.0
      %3805 = vmatprep.subr.mxu0 0.0
      %3806 = vmatpush1.msra.mxu0 0.0
      %3807 = vmatprep.subr.mxu0 0.0
      %3808 = vmatpush1.msra.mxu0 0.0
      %3809 = vmatprep.subr.mxu0 0.0
      %3810 = vmatpush1.msra.mxu0 0.0
      %3811 = vmatprep.subr.mxu0 0.0
      %3812 = vmatpush1.msra.mxu0 0.0
      %3813 = vmatprep.subr.mxu0 0.0
      %3814 = vmatpush1.msra.mxu0 0.0
      %3815 = vmatprep.subr.mxu0 0.0
      %3816 = vmatpush1.msra.mxu0 0.0
      %3817 = vmatprep.subr.mxu0 0.0
      %3818 = vmatpush1.msra.mxu0 0.0
      %3819 = vmatprep.subr.mxu0 0.0
      %3820 = vmatpush1.msra.mxu0 0.0
      %3821 = vmatprep.subr.mxu0 0.0
      %3822 = vmatpush1.msra.mxu0 0.0
      %3823 = vmatprep.mubr.f32.mxu0 0.0
      %3824 = vmatmul.mubr.f32.gmra.mrb[0].mxu0 %v3686
      %v3825 = vpop.f32.mrb[0].mxu0
      %v3826 = vadd.f32 0.0, %v3825
      %v3827 = vpop.f32.mrb[0].mxu0
      %v3828 = vadd.f32 0.0, %v3827
      %3829 = vdwg.mxu0
      %3830 = vmatprep.subr.mxu0 %v3676
      %3831 = vmatpush1.msra.mxu0 %v3677
      %3832 = vmatprep.subr.mxu0 0.0
      %3833 = vmatpush1.msra.mxu0 0.0
      %3834 = vmatprep.subr.mxu0 0.0
      %3835 = vmatpush1.msra.mxu0 0.0
      %3836 = vmatprep.subr.mxu0 0.0
      %3837 = vmatpush1.msra.mxu0 0.0
      %3838 = vmatprep.subr.mxu0 0.0
      %3839 = vmatpush1.msra.mxu0 0.0
      %3840 = vmatprep.subr.mxu0 0.0
      %3841 = vmatpush1.msra.mxu0 0.0
      %3842 = vmatprep.subr.mxu0 0.0
      %3843 = vmatpush1.msra.mxu0 0.0
      %3844 = vmatprep.subr.mxu0 0.0
      %3845 = vmatpush1.msra.mxu0 0.0
      %3846 = vmatprep.subr.mxu0 0.0
      %3847 = vmatpush1.msra.mxu0 0.0
      %3848 = vmatprep.subr.mxu0 0.0
      %3849 = vmatpush1.msra.mxu0 0.0
      %3850 = vmatprep.subr.mxu0 0.0
      %3851 = vmatpush1.msra.mxu0 0.0
      %3852 = vmatprep.subr.mxu0 0.0
      %3853 = vmatpush1.msra.mxu0 0.0
      %3854 = vmatprep.subr.mxu0 0.0
      %3855 = vmatpush1.msra.mxu0 0.0
      %3856 = vmatprep.subr.mxu0 0.0
      %3857 = vmatpush1.msra.mxu0 0.0
      %3858 = vmatprep.subr.mxu0 0.0
      %3859 = vmatpush1.msra.mxu0 0.0
      %3860 = vmatprep.subr.mxu0 0.0
      %3861 = vmatpush1.msra.mxu0 0.0
      %3862 = vmatprep.subr.mxu0 0.0
      %3863 = vmatpush1.msra.mxu0 0.0
      %3864 = vmatprep.subr.mxu0 0.0
      %3865 = vmatpush1.msra.mxu0 0.0
      %3866 = vmatprep.subr.mxu0 0.0
      %3867 = vmatpush1.msra.mxu0 0.0
      %3868 = vmatprep.subr.mxu0 0.0
      %3869 = vmatpush1.msra.mxu0 0.0
      %3870 = vmatprep.subr.mxu0 0.0
      %3871 = vmatpush1.msra.mxu0 0.0
      %3872 = vmatprep.subr.mxu0 0.0
      %3873 = vmatpush1.msra.mxu0 0.0
      %3874 = vmatprep.subr.mxu0 0.0
      %3875 = vmatpush1.msra.mxu0 0.0
      %3876 = vmatprep.subr.mxu0 0.0
      %3877 = vmatpush1.msra.mxu0 0.0
      %3878 = vmatprep.subr.mxu0 0.0
      %3879 = vmatpush1.msra.mxu0 0.0
      %3880 = vmatprep.subr.mxu0 0.0
      %3881 = vmatpush1.msra.mxu0 0.0
      %3882 = vmatprep.subr.mxu0 0.0
      %3883 = vmatpush1.msra.mxu0 0.0
      %3884 = vmatprep.subr.mxu0 0.0
      %3885 = vmatpush1.msra.mxu0 0.0
      %3886 = vmatprep.subr.mxu0 0.0
      %3887 = vmatpush1.msra.mxu0 0.0
      %3888 = vmatprep.subr.mxu0 0.0
      %3889 = vmatpush1.msra.mxu0 0.0
      %3890 = vmatprep.subr.mxu0 0.0
      %3891 = vmatpush1.msra.mxu0 0.0
      %3892 = vmatprep.subr.mxu0 0.0
      %3893 = vmatpush1.msra.mxu0 0.0
      %3894 = vmatprep.mubr.f32.mxu0 0.0
      %3895 = vmatmul.mubr.f32.gmra.mrb[0].mxu0 %v3686
      %v3896 = vpop.f32.mrb[0].mxu0
      %v3897 = vadd.f32 0.0, %v3896
      %v3898 = vpop.f32.mrb[0].mxu0
      %v3899 = vadd.f32 0.0, %v3898
      %3900 = vdwg.mxu0
      %3901 = vmatprep.subr.mxu0 %v3674
      %3902 = vmatpush1.msra.mxu0 %v3675
      %3903 = vmatprep.subr.mxu0 0.0
      %3904 = vmatpush1.msra.mxu0 0.0
      %3905 = vmatprep.subr.mxu0 0.0
      %3906 = vmatpush1.msra.mxu0 0.0
      %3907 = vmatprep.subr.mxu0 0.0
      %3908 = vmatpush1.msra.mxu0 0.0
      %3909 = vmatprep.subr.mxu0 0.0
      %3910 = vmatpush1.msra.mxu0 0.0
      %3911 = vmatprep.subr.mxu0 0.0
      %3912 = vmatpush1.msra.mxu0 0.0
      %3913 = vmatprep.subr.mxu0 0.0
      %3914 = vmatpush1.msra.mxu0 0.0
      %3915 = vmatprep.subr.mxu0 0.0
      %3916 = vmatpush1.msra.mxu0 0.0
      %3917 = vmatprep.subr.mxu0 0.0
      %3918 = vmatpush1.msra.mxu0 0.0
      %3919 = vmatprep.subr.mxu0 0.0
      %3920 = vmatpush1.msra.mxu0 0.0
      %3921 = vmatprep.subr.mxu0 0.0
      %3922 = vmatpush1.msra.mxu0 0.0
      %3923 = vmatprep.subr.mxu0 0.0
      %3924 = vmatpush1.msra.mxu0 0.0
      %3925 = vmatprep.subr.mxu0 0.0
      %3926 = vmatpush1.msra.mxu0 0.0
      %3927 = vmatprep.subr.mxu0 0.0
      %3928 = vmatpush1.msra.mxu0 0.0
      %3929 = vmatprep.subr.mxu0 0.0
      %3930 = vmatpush1.msra.mxu0 0.0
      %3931 = vmatprep.subr.mxu0 0.0
      %3932 = vmatpush1.msra.mxu0 0.0
      %3933 = vmatprep.subr.mxu0 0.0
      %3934 = vmatpush1.msra.mxu0 0.0
      %3935 = vmatprep.subr.mxu0 0.0
      %3936 = vmatpush1.msra.mxu0 0.0
      %3937 = vmatprep.subr.mxu0 0.0
      %3938 = vmatpush1.msra.mxu0 0.0
      %3939 = vmatprep.subr.mxu0 0.0
      %3940 = vmatpush1.msra.mxu0 0.0
      %3941 = vmatprep.subr.mxu0 0.0
      %3942 = vmatpush1.msra.mxu0 0.0
      %3943 = vmatprep.subr.mxu0 0.0
      %3944 = vmatpush1.msra.mxu0 0.0
      %3945 = vmatprep.subr.mxu0 0.0
      %3946 = vmatpush1.msra.mxu0 0.0
      %3947 = vmatprep.subr.mxu0 0.0
      %3948 = vmatpush1.msra.mxu0 0.0
      %3949 = vmatprep.subr.mxu0 0.0
      %3950 = vmatpush1.msra.mxu0 0.0
      %3951 = vmatprep.subr.mxu0 0.0
      %3952 = vmatpush1.msra.mxu0 0.0
      %3953 = vmatprep.subr.mxu0 0.0
      %3954 = vmatpush1.msra.mxu0 0.0
      %3955 = vmatprep.subr.mxu0 0.0
      %3956 = vmatpush1.msra.mxu0 0.0
      %3957 = vmatprep.subr.mxu0 0.0
      %3958 = vmatpush1.msra.mxu0 0.0
      %3959 = vmatprep.subr.mxu0 0.0
      %3960 = vmatpush1.msra.mxu0 0.0
      %3961 = vmatprep.subr.mxu0 0.0
      %3962 = vmatpush1.msra.mxu0 0.0
      %3963 = vmatprep.subr.mxu0 0.0
      %3964 = vmatpush1.msra.mxu0 0.0
      %3965 = vmatprep.mubr.f32.mxu0 0.0
      %3966 = vmatmul.mubr.f32.gmra.mrb[0].mxu0 %v3686
      %v3967 = vpop.f32.mrb[0].mxu0
      %v3968 = vadd.f32 0.0, %v3967
      %v3969 = vpop.f32.mrb[0].mxu0
      %v3970 = vadd.f32 0.0, %v3969
      %3971 = vdwg.mxu0
      %3972 = vmatprep.subr.mxu0 %v3682
      %3973 = vmatpush1.msra.mxu0 %v3673
      %3974 = vmatprep.subr.mxu0 0.0
      %3975 = vmatpush1.msra.mxu0 0.0
      %3976 = vmatprep.subr.mxu0 0.0
      %3977 = vmatpush1.msra.mxu0 0.0
      %3978 = vmatprep.subr.mxu0 0.0
      %3979 = vmatpush1.msra.mxu0 0.0
      %3980 = vmatprep.subr.mxu0 0.0
      %3981 = vmatpush1.msra.mxu0 0.0
      %3982 = vmatprep.subr.mxu0 0.0
      %3983 = vmatpush1.msra.mxu0 0.0
      %3984 = vmatprep.subr.mxu0 0.0
      %3985 = vmatpush1.msra.mxu0 0.0
      %3986 = vmatprep.subr.mxu0 0.0
      %3987 = vmatpush1.msra.mxu0 0.0
      %3988 = vmatprep.subr.mxu0 0.0
      %3989 = vmatpush1.msra.mxu0 0.0
      %3990 = vmatprep.subr.mxu0 0.0
      %3991 = vmatpush1.msra.mxu0 0.0
      %3992 = vmatprep.subr.mxu0 0.0
      %3993 = vmatpush1.msra.mxu0 0.0
      %3994 = vmatprep.subr.mxu0 0.0
      %3995 = vmatpush1.msra.mxu0 0.0
      %3996 = vmatprep.subr.mxu0 0.0
      %3997 = vmatpush1.msra.mxu0 0.0
      %3998 = vmatprep.subr.mxu0 0.0
      %3999 = vmatpush1.msra.mxu0 0.0
      %4000 = vmatprep.subr.mxu0 0.0
      %4001 = vmatpush1.msra.mxu0 0.0
      %4002 = vmatprep.subr.mxu0 0.0
      %4003 = vmatpush1.msra.mxu0 0.0
      %4004 = vmatprep.subr.mxu0 0.0
      %4005 = vmatpush1.msra.mxu0 0.0
      %4006 = vmatprep.subr.mxu0 0.0
      %4007 = vmatpush1.msra.mxu0 0.0
      %4008 = vmatprep.subr.mxu0 0.0
      %4009 = vmatpush1.msra.mxu0 0.0
      %4010 = vmatprep.subr.mxu0 0.0
      %4011 = vmatpush1.msra.mxu0 0.0
      %4012 = vmatprep.subr.mxu0 0.0
      %4013 = vmatpush1.msra.mxu0 0.0
      %4014 = vmatprep.subr.mxu0 0.0
      %4015 = vmatpush1.msra.mxu0 0.0
      %4016 = vmatprep.subr.mxu0 0.0
      %4017 = vmatpush1.msra.mxu0 0.0
      %4018 = vmatprep.subr.mxu0 0.0
      %4019 = vmatpush1.msra.mxu0 0.0
      %4020 = vmatprep.subr.mxu0 0.0
      %4021 = vmatpush1.msra.mxu0 0.0
      %4022 = vmatprep.subr.mxu0 0.0
      %4023 = vmatpush1.msra.mxu0 0.0
      %4024 = vmatprep.subr.mxu0 0.0
      %4025 = vmatpush1.msra.mxu0 0.0
      %4026 = vmatprep.subr.mxu0 0.0
      %4027 = vmatpush1.msra.mxu0 0.0
      %4028 = vmatprep.subr.mxu0 0.0
      %4029 = vmatpush1.msra.mxu0 0.0
      %4030 = vmatprep.subr.mxu0 0.0
      %4031 = vmatpush1.msra.mxu0 0.0
      %4032 = vmatprep.subr.mxu0 0.0
      %4033 = vmatpush1.msra.mxu0 0.0
      %4034 = vmatprep.subr.mxu0 0.0
      %4035 = vmatpush1.msra.mxu0 0.0
      %4036 = vmatprep.mubr.f32.mxu0 0.0
      %4037 = vmatmul.mubr.f32.gmra.mrb[0].mxu0 %v3686
      %v4038 = vpop.f32.mrb[0].mxu0
      %v4039 = vadd.f32 0.0, %v4038
      %v4040 = vpop.f32.mrb[0].mxu0
      %v4041 = vadd.f32 0.0, %v4040
      %4042 = vdwg.mxu0
      %v4043 = vadd.f32 %v3642, %v3755
      %v4044 = vadd.f32 %v3643, %v3757
      %v4045 = vadd.f32 %v3644, %v3826
      %v4046 = vadd.f32 %v3645, %v3828
      %v4047 = vadd.f32 %v3646, %v3897
      %v4048 = vadd.f32 %v3647, %v3899
      %v4049 = vadd.f32 %v3648, %v3968
      %v4050 = vadd.f32 %v3649, %v3970
      %v4051 = vadd.f32 %v3650, %v4039
      %v4052 = vadd.f32 %v3651, %v4041
      %v4053 = vld [vmem:[%s2] sm:$0xff]
      %4055 = vset.pattern.permute.xlu0 0
      %4056 = vperm.xlu0 %4055, %v4053
      %v4057 = vpop.permute.xlu0 %4056
      %v4059 = vadd.f32 %v4043, %v4057
      %v4060 = vadd.f32 %v4044, %v4057
      %v4061 = vadd.f32 %v4045, %v4057
      %v4062 = vadd.f32 %v4046, %v4057
      %v4063 = vadd.f32 %v4047, %v4057
      %v4064 = vadd.f32 %v4048, %v4057
      %v4065 = vadd.f32 %v4049, %v4057
      %v4066 = vadd.f32 %v4050, %v4057
      %v4067 = vadd.f32 %v4051, %v4057
      %v4068 = vadd.f32 %v4052, %v4057
      %4069 = vst [vmem:[%s318] sm:$0xff] %v4059
      %4070 = vst [vmem:[%s318 + $0x8] sm:$0xff] %v4060
      %4071 = vst [vmem:[%s318 + $0x10] sm:$0xff] %v4061
      %4072 = vst [vmem:[%s318 + $0x18] sm:$0xff] %v4062
      %4073 = vst [vmem:[%s318 + $0x20] sm:$0xff] %v4063
      %4074 = vst [vmem:[%s318 + $0x28] sm:$0xff] %v4064
      %4075 = vst [vmem:[%s318 + $0x30] sm:$0xff] %v4065
      %4076 = vst [vmem:[%s318 + $0x38] sm:$0xff] %v4066
      %4077 = vst [vmem:[%s318 + $0x40] sm:$0xff] %v4067
      %4078 = vst [vmem:[%s318 + $0x48] sm:$0xff] %v4068
      %v4079 = vmul.f32 %v4059, %v436
      %v4080 = vmul.f32 %v4060, %v440
      %v4081 = vmul.f32 %v4061, %v444
      %v4082 = vmul.f32 %v4062, %v448
      %v4083 = vmul.f32 %v4063, %v452
      %v4084 = vmul.f32 %v4064, %v456
      %v4085 = vmul.f32 %v4065, %v460
      %v4086 = vmul.f32 %v4066, %v464
      %v4087 = vmul.f32 %v4067, %v468
      %v4088 = vmul.f32 %v4068, %v472
      %v4089 = vadd.f32 %v4079, %v4080
      %v4090 = vadd.f32 %v4089, %v4081
      %v4091 = vadd.f32 %v4090, %v4082
      %v4092 = vadd.f32 %v4091, %v4083
      %v4093 = vadd.f32 %v4092, %v4084
      %v4094 = vadd.f32 %v4093, %v4085
      %v4095 = vadd.f32 %v4094, %v4086
      %v4096 = vadd.f32 %v4095, %v4087
      %v4097 = vadd.f32 %v4096, %v4088
      %4098 = vadd.xlane.f32.xlu0 %v4097
      %v4099 = vpop.xlane.xlu0 %4098
      %v4100 = vmul.f32 %v4099, 0.0009765625
      %v4101 = vsub.f32 %v4059, %v4100
      %v4102 = vsub.f32 %v4060, %v4100
      %v4103 = vsub.f32 %v4061, %v4100
      %v4104 = vsub.f32 %v4062, %v4100
      %v4105 = vsub.f32 %v4063, %v4100
      %v4106 = vsub.f32 %v4064, %v4100
      %v4107 = vsub.f32 %v4065, %v4100
      %v4108 = vsub.f32 %v4066, %v4100
      %v4109 = vsub.f32 %v4067, %v4100
      %v4110 = vsub.f32 %v4068, %v4100
      %v4111 = vmul.f32 %v4101, %v436
      %v4112 = vmul.f32 %v4102, %v440
      %v4113 = vmul.f32 %v4103, %v444
      %v4114 = vmul.f32 %v4104, %v448
      %v4115 = vmul.f32 %v4105, %v452
      %v4116 = vmul.f32 %v4106, %v456
      %v4117 = vmul.f32 %v4107, %v460
      %v4118 = vmul.f32 %v4108, %v464
      %v4119 = vmul.f32 %v4109, %v468
      %v4120 = vmul.f32 %v4110, %v472
      %vm4121 = vcmask 7168
      %4122 = vst.msk [vmem:[%s322] sm:$0xff] %vm4121, %v4099
      %v4123 = vmul.f32 %v4111, %v4111
      %v4124 = vmul.f32 %v4112, %v4112
      %v4125 = vmul.f32 %v4113, %v4113
      %v4126 = vmul.f32 %v4114, %v4114
      %v4127 = vmul.f32 %v4115, %v4115
      %v4128 = vmul.f32 %v4116, %v4116
      %v4129 = vmul.f32 %v4117, %v4117
      %v4130 = vmul.f32 %v4118, %v4118
      %v4131 = vmul.f32 %v4119, %v4119
      %v4132 = vmul.f32 %v4120, %v4120
      %v4133 = vadd.f32 %v4123, %v4124
      %v4134 = vadd.f32 %v4133, %v4125
      %v4135 = vadd.f32 %v4134, %v4126
      %v4136 = vadd.f32 %v4135, %v4127
      %v4137 = vadd.f32 %v4136, %v4128
      %v4138 = vadd.f32 %v4137, %v4129
      %v4139 = vadd.f32 %v4138, %v4130
      %v4140 = vadd.f32 %v4139, %v4131
      %v4141 = vadd.f32 %v4140, %v4132
      %4142 = vadd.xlane.f32.xlu0 %v4141
      %v4143 = vpop.xlane.xlu0 %4142
      %4144 = vst.msk [vmem:[%s326] sm:$0xff] %vm4121, %v4143
      %p4145 = scmp.lt.s32.totalorder %s20, 1
      %s4146 = scalar_select %p4145, %s20, 1
      %s4147 = smul.addr %s4146, 10
      %s4148 = smul.addr %s4147, 8
      %s4149 = scalar_lea.vmem %s6, %s4148
      %p4150 = scmp.lt.s32.totalorder %s20, 1
      %s4151 = scalar_select %p4150, %s20, 1
      %s4152 = smul.addr %s4151, 8
      %s4153 = scalar_lea.vmem %s7, %s4152
      %p4154 = scmp.lt.s32.totalorder %s20, 1
      %s4155 = scalar_select %p4154, %s20, 1
      %s4156 = smul.addr %s4155, 8
      %s4157 = scalar_lea.vmem %s8, %s4156
      // Predicated region
      $region45: #{up_transition_forward.5} parent=43 // pred_check
        %p4158 = pneg %p169
      $region46: #{up_transition_forward.5} parent=43 // pred_check_branch
        %4160 = sbr.rel (%p4158) target = $region48
      $region47: #{up_transition_forward.5} parent=43 // pred_region
        _
      $region48: #{up_transition_forward.5} parent=43 // pred_fallthru
        _
      // Predicated region
      $region49: #{up_transition_forward.5} parent=43 // pred_check
        %p4161 = pneg %p195
      $region50: #{up_transition_forward.5} parent=43 // pred_check_branch
        %4163 = sbr.rel (%p4161) target = $region52
      $region51: #{up_transition_forward.5} parent=43 // pred_region
        _
      $region52: #{up_transition_forward.5} parent=43 // pred_fallthru
        _
      // Predicated region
      $region53: #{up_transition_forward.5} parent=43 // pred_check
        %p4164 = pneg %p221
      $region54: #{up_transition_forward.5} parent=43 // pred_check_branch
        %4166 = sbr.rel (%p4164) target = $region56
      $region55: #{up_transition_forward.5} parent=43 // pred_region
        _
      $region56: #{up_transition_forward.5} parent=43 // pred_fallthru
        _
    $region44: #{up_transition_forward.5} parent=5 // pred_fallthru
      _
    %p4167 = scmp.le.s32.totalorder 2, %s15
    // Predicated region
    $region57: #{up_transition_forward.5} parent=5 // pred_check
      %p4168 = pneg %p4167
    $region58: #{up_transition_forward.5} parent=5 // pred_check_branch
      %4170 = sbr.rel (%p4168) target = $region60
    $region59: #{up_transition_forward.5} parent=5 // pred_region
      %s4171 = ssub.s32 %s15, 2
      // Predicated region
      $region61: #{up_transition_forward.5} parent=59 // pred_check
        %p4172 = pneg %p175
      $region62: #{up_transition_forward.5} parent=59 // pred_check_branch
        %4174 = sbr.rel (%p4172) target = $region64
      $region63: #{up_transition_forward.5} parent=59 // pred_region
        %p4175 = scmp.lt.s32.totalorder %s21, 1
        %s4176 = scalar_select %p4175, %s21, 1
        %s4177 = smul.addr %s4176, 10
        %s4178 = smul.addr %s4177, 8
        %s4179 = scalar_lea.vmem %s6, %s4178
      $region64: #{up_transition_forward.5} parent=59 // pred_fallthru
        _
      // Predicated region
      $region65: #{up_transition_forward.5} parent=59 // pred_check
        %p4180 = pneg %p201
      $region66: #{up_transition_forward.5} parent=59 // pred_check_branch
        %4182 = sbr.rel (%p4180) target = $region68
      $region67: #{up_transition_forward.5} parent=59 // pred_region
        %p4183 = scmp.lt.s32.totalorder %s21, 1
        %s4184 = scalar_select %p4183, %s21, 1
        %s4185 = smul.addr %s4184, 8
        %s4186 = scalar_lea.vmem %s7, %s4185
      $region68: #{up_transition_forward.5} parent=59 // pred_fallthru
        _
      // Predicated region
      $region69: #{up_transition_forward.5} parent=59 // pred_check
        %p4187 = pneg %p227
      $region70: #{up_transition_forward.5} parent=59 // pred_check_branch
        %4189 = sbr.rel (%p4187) target = $region72
      $region71: #{up_transition_forward.5} parent=59 // pred_region
        %p4190 = scmp.lt.s32.totalorder %s21, 1
        %s4191 = scalar_select %p4190, %s21, 1
        %s4192 = smul.addr %s4191, 8
        %s4193 = scalar_lea.vmem %s8, %s4192
      $region72: #{up_transition_forward.5} parent=59 // pred_fallthru
        _
    $region60: #{up_transition_forward.5} parent=5 // pred_fallthru
      _
  $region6: #{up_transition_forward.5} parent=0 // loop_footer
    %s19 = sadd.s32 1, %s15
  $region7: #{up_transition_forward.5} parent=0 // loop_footer_branch
    %14 = sbr.rel target = $region3
  $region8: #{up_transition_forward.5} parent=0 // loop_exit
    _

</llo_original>
